<compile_context>
chip_gen: v5e
topology: v5e:2x2
jax: 0.10.0
libtpu: 0.0.40
codegen_flags: <defaults>
</compile_context>

<pallas_src>
import jax
import jax.numpy as jnp
from jax import lax
from jax.experimental import pallas as pl
from jax.experimental.pallas import tpu as pltpu

IMG_CONTEXT_ID = 511   # stands in for InternLM2's 92546 (<IMG_CONTEXT>)
IGNORE_ID = -100       # CrossEntropyLoss default ignore_index


# ---------------------------------------------------------------------------
# Kernel 1: vision feature projection (stand-in for model.extract_feature)
# Tiled over the patch axis (parallel); W_vit tile revisited per patch tile.
# ---------------------------------------------------------------------------
def _vit_proj_kernel(patches_ref, w_ref, out_ref):
    out_ref[...] = jnp.dot(
        patches_ref[...], w_ref[...], preferred_element_type=jnp.float32
    ).astype(out_ref.dtype)


def vit_project(patches, w_vit, tp=256):
    P, Dp = patches.shape
    C = w_vit.shape[1]
    # pad lane-dense: Dp -> multiple of 128; P -> multiple of the patch tile
    dp_pad = pl.cdiv(Dp, 128) * 128
    tp = min(tp, pl.cdiv(P, 8) * 8)            # multiple of 8 sublanes
    p_pad = pl.cdiv(P, tp) * tp
    patches_p = jnp.pad(patches, ((0, p_pad - P), (0, dp_pad - Dp)))
    w_p = jnp.pad(w_vit, ((0, dp_pad - Dp), (0, 0)))
    out = pl.pallas_call(
        _vit_proj_kernel,
        out_shape=jax.ShapeDtypeStruct((p_pad, C), jnp.bfloat16),
        grid_spec=pltpu.PrefetchScalarGridSpec(
            num_scalar_prefetch=0,
            grid=(p_pad // tp,),
            in_specs=[
                pl.BlockSpec((tp, dp_pad), lambda i: (i, 0)),
                pl.BlockSpec((dp_pad, C), lambda i: (0, 0)),
            ],
            out_specs=pl.BlockSpec((tp, C), lambda i: (i, 0)),
        ),
        compiler_params=pltpu.CompilerParams(
            dimension_semantics=("parallel",)),
    )(patches_p, w_p)
    return out[:P]


# ---------------------------------------------------------------------------
# Kernel 2: fused [lm head matmul, V-tiled] + [online logsumexp] + [shifted CE]
#
# grid = (token_tiles [parallel], vocab_tiles [arbitrary])
#   - merged token embeds streamed once per token tile (single [tm,C] operand)
#   - W_lm streamed in (C, tv) tiles: never fully resident (real-vocab safe)
#   - running row-max / row-sum / target-logit scratch carried across the V axis
#   - padded vocab columns (tail tile) are masked to -1e30 so the LSE is exact
#   - at the last V tile, the tile's masked per-token losses are reduced to a
#     single partial sum written lane-dense; final mean/negate happens in JAX.
#   NOTE: the output block is revisited across the (inner) vocab axis and only
#   written on its last step — keep vocab as the innermost grid axis.
# ---------------------------------------------------------------------------
def _make_lm_ce_kernel(tv, v_total, has_pad):
    def _lm_ce_kernel(emb_ref, w_ref, lab_ref, out_ref, m_sc, s_sc, t_sc):
        v = pl.program_id(1)
        nv = pl.num_programs(1)

        @pl.when(v == 0)
        def _():
            m_sc[...] = jnp.full_like(m_sc, -jnp.inf)
            s_sc[...] = jnp.zeros_like(s_sc)
            t_sc[...] = jnp.zeros_like(t_sc)

        # lm head tile (stand-in for the language model): logits in f32
        logits = jnp.dot(emb_ref[...], w_ref[...],
                         preferred_element_type=jnp.float32)          # [tm, tv]

        # local column index within this vocab tile (no per-step iota add)
        col = lax.broadcasted_iota(jnp.int32, logits.shape, 1)         # [tm, tv]

        if has_pad:
            # zero-padded W columns would give logits == 0; exclude them from
            # the logsumexp (only the tail tile is actually affected).
            limit = v_total - v * tv                                   # scalar
            logits = jnp.where(col < limit, logits, jnp.float32(-1e30))

        labels = lab_ref[...]                                          # [tm,1] i32
        rel = labels - v * tv                                          # [tm,1]
        # fused target-logit extraction (same pass as max/sum)
        t_sc[...] += jnp.sum(jnp.where(col == rel, logits, 0.0),
                             axis=-1, keepdims=True)                   # [tm,1]

        # online logsumexp update across V tiles (each scratch touched once)
        m_prev = m_sc[...]
        m_new = jnp.maximum(m_prev, jnp.max(logits, axis=-1, keepdims=True))
        s_sc[...] = (s_sc[...] * jnp.exp(m_prev - m_new)
                     + jnp.sum(jnp.exp(logits - m_new), axis=-1, keepdims=True))
        m_sc[...] = m_new

        @pl.when(v == nv - 1)
        def _():
            lse = m_sc[...] + jnp.log(s_sc[...])                       # [tm,1]
            valid = labels != IGNORE_ID
            per_tok = jnp.where(valid, lse - t_sc[...], 0.0)           # [tm,1]
            # lane-dense (8,128) partial-sum slab for this token tile
            out_ref[...] = jnp.zeros(out_ref.shape, jnp.float32) + jnp.sum(per_tok)

    return _lm_ce_kernel


def lm_head_ce_partial(merged, w_lm, shift_labels, tm=512, tv=512):
    """Returns per-token-tile masked CE sums, shape [num_token_tiles].

    tm is the arithmetic-intensity knob (FLOP per W_lm byte == tm); tv sets the
    inner-grid trip count and per-step DMA size.  Per-generation sweet spots:
      v5e:  tm>=256, tv<=512      v6e: tm=768-1024, tv=512-1024
      v7x:  tm=384-512, tv=512 (64 MiB VMEM cap)
    """
    BN, C = merged.shape
    V = w_lm.shape[1]

    tm = max(8, min(tm, pl.cdiv(BN, 8) * 8))
    tv = max(128, min(tv, pl.cdiv(V, 128) * 128))
    bn_pad = pl.cdiv(BN, tm) * tm
    v_pad = pl.cdiv(V, tv) * tv
    n_t = bn_pad // tm
    n_v = v_pad // tv
    has_pad = v_pad != V

    # pad token rows (ignore-labelled -> contribute 0 loss) and vocab columns
    merged_p = jnp.pad(merged, ((0, bn_pad - BN), (0, 0)))
    labels_p = jnp.pad(shift_labels, ((0, bn_pad - BN), (0, 0)),
                       constant_values=IGNORE_ID)
    w_p = jnp.pad(w_lm, ((0, 0), (0, v_pad - V)))

    # explicit scoped-VMEM budget: double-buffered emb/W tiles + logits temps.
    buf_bytes = 2 * ((tm * C + C * tv) * merged_p.dtype.itemsize
                     + tm * 4 + 8 * 128 * 4)
    temp_bytes = 4 * tm * tv * 4          # f32 logits + elementwise temps
    scratch_bytes = 3 * tm * 4
    vmem_limit = int(min(64 * 1024 * 1024,
                         max(32 * 1024 * 1024,
                             1.5 * (buf_bytes + temp_bytes + scratch_bytes))))

    # TODO(synk): labels could move to SMEM via scalar prefetch; kept as a tiny
    # (tm,1) VMEM block since the vector compare against the vocab iota wants a
    # sublane-aligned vector anyway.
    partial = pl.pallas_call(
        _make_lm_ce_kernel(tv, V, has_pad),
        out_shape=jax.ShapeDtypeStruct((n_t, 8, 128), jnp.float32),
        grid_spec=pltpu.PrefetchScalarGridSpec(
            num_scalar_prefetch=0,
            grid=(n_t, n_v),
            in_specs=[
                pl.BlockSpec((tm, C), lambda i, v: (i, 0)),    # merged token embeds
                pl.BlockSpec((C, tv), lambda i, v: (0, v)),    # lm head weight tile
                pl.BlockSpec((tm, 1), lambda i, v: (i, 0)),    # shifted labels
            ],
            out_specs=pl.BlockSpec((1, 8, 128), lambda i, v: (i, 0, 0)),
            scratch_shapes=[
                pltpu.VMEM((tm, 1), jnp.float32),   # running row max
                pltpu.VMEM((tm, 1), jnp.float32),   # running exp-sum
                pltpu.VMEM((tm, 1), jnp.float32),   # target logit
            ],
        ),
        compiler_params=pltpu.CompilerParams(
            dimension_semantics=("parallel", "arbitrary"),
            vmem_limit_bytes=vmem_limit),
    )(merged_p, w_p, labels_p)
    return partial[:, 0, 0]


# ---------------------------------------------------------------------------
# Plain-JAX glue: patchify, embedding gather, image-token merge, final mean
# ---------------------------------------------------------------------------
def patchify_nchw(images, patch=4):
    B, Cin, H, W = images.shape
    x = images.reshape(B, Cin, H // patch, patch, W // patch, patch)
    x = x.transpose(0, 2, 4, 1, 3, 5)                  # B, h, w, Cin, ph, pw
    return x.reshape(B * (H // patch) * (W // patch), Cin * patch * patch)


def attack_forward(images, input_ids, labels, params):
    emb_table, w_vit, w_lm = params
    B, N = input_ids.shape

    # 1) embedding lookup (gather is glue)
    ids_flat = input_ids.reshape(B * N)
    input_embeds = jnp.take(emb_table, ids_flat, axis=0)       # [BN, C] bf16

    # 2) extract_feature stand-in (Pallas kernel 1)
    patches = patchify_nchw(images).astype(jnp.bfloat16)
    vit_embeds = vit_project(patches, w_vit)                   # [P, C] bf16

    # 3) merge vit tokens into <IMG_CONTEXT> positions (done here so the CE
    #    kernel streams a single token operand)
    sel = ids_flat == IMG_CONTEXT_ID
    idx = jnp.clip(jnp.cumsum(sel) - 1, 0, vit_embeds.shape[0] - 1)
    merged = jnp.where(sel[:, None], vit_embeds[idx], input_embeds)  # [BN, C]

    # 4) shifted labels: logits[..., :-1, :] vs labels[..., 1:]  (per batch row)
    shifted = jnp.concatenate(
        [labels[:, 1:], jnp.full((B, 1), IGNORE_ID, labels.dtype)], axis=1)
    shift_labels = shifted.reshape(B * N, 1).astype(jnp.int32)

    # 5+6) lm head + CE loss (Pallas kernel 2), mean over valid tokens, negated
    tile_sums = lm_head_ce_partial(merged, w_lm, shift_labels)
    total = jnp.sum(tile_sums)
    count = jnp.sum((shift_labels != IGNORE_ID).astype(jnp.float32))
    loss = jnp.where(count > 0, total / jnp.maximum(count, 1.0), 0.0)
    return -loss


# pure-JAX reference for sanity checking
def reference_forward(images, input_ids, labels, params):
    emb_table, w_vit, w_lm = params
    B, N = input_ids.shape
    ids_flat = input_ids.reshape(B * N)
    emb = jnp.take(emb_table, ids_flat, axis=0)
    patches = patchify_nchw(images).astype(jnp.bfloat16)
    vit = jnp.dot(patches, w_vit,
                  preferred_element_type=jnp.float32).astype(jnp.bfloat16)
    sel = ids_flat == IMG_CONTEXT_ID
    idx = jnp.clip(jnp.cumsum(sel) - 1, 0, vit.shape[0] - 1)
    emb = jnp.where(sel[:, None], vit[idx], emb)
    logits = jnp.dot(emb, w_lm, preferred_element_type=jnp.float32)
    shifted = jnp.concatenate(
        [labels[:, 1:], jnp.full((B, 1), IGNORE_ID, labels.dtype)],
        axis=1).reshape(-1)
    lse = jax.scipy.special.logsumexp(logits, axis=-1)
    tgt = jnp.take_along_axis(
        logits, jnp.clip(shifted, 0, logits.shape[-1] - 1)[:, None],
        axis=-1)[:, 0]
    valid = shifted != IGNORE_ID
    loss = jnp.sum(jnp.where(valid, lse - tgt, 0.0)) / jnp.maximum(
        jnp.sum(valid), 1)
    return -loss


if __name__ == "__main__":
    key = jax.random.PRNGKey(0)
    k_img, k_ids, k_emb, k_vit, k_lm = jax.random.split(key, 5)

    # small synthetic shapes (V deliberately NOT a multiple of tv to exercise
    # the padded-vocab masking path; BN spans two token tiles at tm=512)
    B, N, C, V = 1, 1024, 256, 640       # batch, seq, hidden, vocab
    Cin, H, W, patch = 3, 16, 16, 4      # NCHW image, 4x4 patches -> 16 vit tokens
    P = (H // patch) * (W // patch)      # num image tokens
    Dp = Cin * patch * patch

    # deterministic "parameters"
    emb_table = (0.02 * jax.random.normal(k_emb, (V, C))).astype(jnp.bfloat16)
    w_vit = (0.02 * jax.random.normal(k_vit, (Dp, C))).astype(jnp.bfloat16)
    w_lm = (0.02 * jax.random.normal(k_lm, (C, V))).astype(jnp.bfloat16)
    params = (emb_table, w_vit, w_lm)

    # inputs
    images = jax.random.normal(k_img, (B, Cin, H, W), jnp.float32)
    input_ids = jax.random.randint(k_ids, (B, N), 0, V, jnp.int32)
    # keep IMG_CONTEXT count exactly equal to the number of vit tokens
    input_ids = jnp.where(input_ids == IMG_CONTEXT_ID, 0, input_ids)
    input_ids = input_ids.at[:, 4:4 + P].set(IMG_CONTEXT_ID)   # <IMG_CONTEXT> span
    # labels: prompt region masked to -100 (like replace_numbers_before_target)
    labels = input_ids.at[:, :40].set(IGNORE_ID)

    out = jax.jit(attack_forward)(images, input_ids, labels, params)
    out = jax.block_until_ready(out)

    ref = reference_forward(images, input_ids, labels, params)
    assert jnp.isfinite(out), "non-finite loss"
    assert jnp.allclose(out, ref, rtol=2e-2, atol=2e-2), (out, ref)

    print("KERNEL_OK")
</pallas_src>

<mosaic_0001>
module attributes {stable_mosaic.version = 11 : i64} {
  func.func @_vit_proj_kernel(%arg0: i32, %arg1: memref<16x128xbf16, #tpu.memory_space<vmem>>, %arg2: memref<128x256xbf16, #tpu.memory_space<vmem>>, %arg3: memref<16x256xbf16, #tpu.memory_space<vmem>>) attributes {dimension_semantics = [#tpu.dimension_semantics<parallel>], iteration_bounds = array<i64: 1>, scalar_prefetch = 0 : i64, scratch_operands = 0 : i64, tpu.core_type = #tpu.core_type<tc>, window_params = [{transform_indices = @transform_0, window_bounds = array<i64: 16, 128>}, {pipeline_mode = #tpu.pipeline_mode<synchronous>, transform_indices = @transform_1, window_bounds = array<i64: 128, 256>}, {transform_indices = @transform_2, window_bounds = array<i64: 16, 256>}]} {
    %c0 = arith.constant 0 : index
    %c0_0 = arith.constant 0 : index
    %0 = vector.load %arg1[%c0, %c0_0] : memref<16x128xbf16, #tpu.memory_space<vmem>>, vector<16x128xbf16>
    %c0_1 = arith.constant 0 : index
    %c0_2 = arith.constant 0 : index
    %1 = vector.load %arg2[%c0_1, %c0_2] : memref<128x256xbf16, #tpu.memory_space<vmem>>, vector<128x256xbf16>
    %cst = arith.constant dense<0.000000e+00> : vector<16x256xf32>
    %2 = tpu.matmul %0, %1, %cst {dimension_numbers = #tpu.dot_dimension_numbers<[1], [0], [0], [1], [0, 0, 1, 1], [], []>} : vector<16x128xbf16>, vector<128x256xbf16>, vector<16x256xf32> -> vector<16x256xf32>
    %3 = arith.truncf %2 : vector<16x256xf32> to vector<16x256xbf16>
    %c0_3 = arith.constant 0 : index
    %c0_4 = arith.constant 0 : index
    %4 = vector.load %arg3[%c0_3, %c0_4] : memref<16x256xbf16, #tpu.memory_space<vmem>>, vector<16x256xbf16>
    tpu.vector_store %arg3[%c0_3, %c0_4], %3 {strides = array<i32>} : memref<16x256xbf16, #tpu.memory_space<vmem>>, vector<16x256xbf16>,
    return
  }
  func.func @transform_0(%arg0: i32) -> (i32, i32) {
    %c0_i32 = arith.constant 0 : i32
    %c0_i32_0 = arith.constant 0 : i32
    return %arg0, %c0_i32 : i32, i32
  }
  func.func @transform_1(%arg0: i32) -> (i32, i32) {
    %c0_i32 = arith.constant 0 : i32
    %c0_i32_0 = arith.constant 0 : i32
    %c0_i32_1 = arith.constant 0 : i32
    return %c0_i32, %c0_i32_0 : i32, i32
  }
  func.func @transform_2(%arg0: i32) -> (i32, i32) {
    %c0_i32 = arith.constant 0 : i32
    %c0_i32_0 = arith.constant 0 : i32
    return %arg0, %c0_i32 : i32, i32
  }
}

module attributes {stable_mosaic.version = 11 : i64} {
  func.func @_lm_ce_kernel(%arg0: i32, %arg1: i32, %arg2: memref<512x256xbf16, #tpu.memory_space<vmem>>, %arg3: memref<256x512xbf16, #tpu.memory_space<vmem>>, %arg4: memref<512x1xi32, #tpu.memory_space<vmem>>, %arg5: memref<1x8x128xf32, #tpu.memory_space<vmem>>, %arg6: memref<512x1xf32, #tpu.memory_space<vmem>>, %arg7: memref<512x1xf32, #tpu.memory_space<vmem>>, %arg8: memref<512x1xf32, #tpu.memory_space<vmem>>) attributes {dimension_semantics = [#tpu.dimension_semantics<parallel>, #tpu.dimension_semantics<arbitrary>], iteration_bounds = array<i64: 2, 2>, scalar_prefetch = 0 : i64, scratch_operands = 3 : i64, tpu.core_type = #tpu.core_type<tc>, window_params = [{transform_indices = @transform_0, window_bounds = array<i64: 512, 256>}, {transform_indices = @transform_1, window_bounds = array<i64: 256, 512>}, {transform_indices = @transform_2, window_bounds = array<i64: 512, 1>}, {transform_indices = @transform_3, window_bounds = array<i64: 1, 8, 128>}]} {
    %c0_i32 = arith.constant 0 : i32
    %0 = arith.cmpi eq, %arg1, %c0_i32 : i32
    %1 = arith.extui %0 : i1 to i32
    %c0_i32_0 = arith.constant 0 : i32
    %2 = arith.cmpi ne, %1, %c0_i32_0 : i32
    scf.if %2 {
      %cst_25 = arith.constant 0xFF800000 : f32
      %45 = vector.broadcast %cst_25 : f32 to vector<512x1xf32>
      %c0_26 = arith.constant 0 : index
      %c0_27 = arith.constant 0 : index
      %46 = vector.load %arg6[%c0_26, %c0_27] : memref<512x1xf32, #tpu.memory_space<vmem>>, vector<512x1xf32>
      tpu.vector_store %arg6[%c0_26, %c0_27], %45 {strides = array<i32>} : memref<512x1xf32, #tpu.memory_space<vmem>>, vector<512x1xf32>,
      %cst_28 = arith.constant 0.000000e+00 : f32
      %47 = vector.broadcast %cst_28 : f32 to vector<512x1xf32>
      %c0_29 = arith.constant 0 : index
      %c0_30 = arith.constant 0 : index
      %48 = vector.load %arg7[%c0_29, %c0_30] : memref<512x1xf32, #tpu.memory_space<vmem>>, vector<512x1xf32>
      tpu.vector_store %arg7[%c0_29, %c0_30], %47 {strides = array<i32>} : memref<512x1xf32, #tpu.memory_space<vmem>>, vector<512x1xf32>,
      %cst_31 = arith.constant 0.000000e+00 : f32
      %49 = vector.broadcast %cst_31 : f32 to vector<512x1xf32>
      %c0_32 = arith.constant 0 : index
      %c0_33 = arith.constant 0 : index
      %50 = vector.load %arg8[%c0_32, %c0_33] : memref<512x1xf32, #tpu.memory_space<vmem>>, vector<512x1xf32>
      tpu.vector_store %arg8[%c0_32, %c0_33], %49 {strides = array<i32>} : memref<512x1xf32, #tpu.memory_space<vmem>>, vector<512x1xf32>,
    } else {
    }
    %c0 = arith.constant 0 : index
    %c0_1 = arith.constant 0 : index
    %3 = vector.load %arg2[%c0, %c0_1] : memref<512x256xbf16, #tpu.memory_space<vmem>>, vector<512x256xbf16>
    %c0_2 = arith.constant 0 : index
    %c0_3 = arith.constant 0 : index
    %4 = vector.load %arg3[%c0_2, %c0_3] : memref<256x512xbf16, #tpu.memory_space<vmem>>, vector<256x512xbf16>
    %cst = arith.constant dense<0.000000e+00> : vector<512x512xf32>
    %5 = tpu.matmul %3, %4, %cst {dimension_numbers = #tpu.dot_dimension_numbers<[1], [0], [0], [1], [0, 0, 1, 1], [], []>} : vector<512x256xbf16>, vector<256x512xbf16>, vector<512x512xf32> -> vector<512x512xf32>
    %6 = tpu.iota {dimensions = array<i32: 1>} : vector<512x512xi32>
    %c512_i32 = arith.constant 512 : i32
    %7 = arith.muli %arg1, %c512_i32 : i32
    %c640_i32 = arith.constant 640 : i32
    %8 = arith.subi %c640_i32, %7 : i32
    %9 = vector.broadcast %8 : i32 to vector<512x512xi32>
    %10 = arith.cmpi slt, %6, %9 : vector<512x512xi32>
    %cst_4 = arith.constant -1.000000e+30 : f32
    %11 = vector.broadcast %cst_4 : f32 to vector<512x512xf32>
    %12 = arith.select %10, %5, %11 : vector<512x512xi1>, vector<512x512xf32>
    %c0_5 = arith.constant 0 : index
    %c0_6 = arith.constant 0 : index
    %13 = vector.load %arg4[%c0_5, %c0_6] : memref<512x1xi32, #tpu.memory_space<vmem>>, vector<512x1xi32>
    %c512_i32_7 = arith.constant 512 : i32
    %14 = arith.muli %arg1, %c512_i32_7 : i32
    %15 = vector.broadcast %14 : i32 to vector<512x1xi32>
    %16 = arith.subi %13, %15 : vector<512x1xi32>
    %c0_8 = arith.constant 0 : index
    %c0_9 = arith.constant 0 : index
    %17 = vector.load %arg8[%c0_8, %c0_9] : memref<512x1xf32, #tpu.memory_space<vmem>>, vector<512x1xf32>
    %18 = vector.broadcast %16 : vector<512x1xi32> to vector<512x512xi32>
    %19 = arith.cmpi eq, %6, %18 : vector<512x512xi32>
    %cst_10 = arith.constant 0.000000e+00 : f32
    %20 = vector.broadcast %cst_10 : f32 to vector<512x512xf32>
    %21 = arith.select %19, %12, %20 : vector<512x512xi1>, vector<512x512xf32>
    %cst_11 = arith.constant dense<0.000000e+00> : vector<512xf32>
    %22 = vector.multi_reduction <add>, %21, %cst_11 [1] : vector<512x512xf32> to vector<512xf32>
    %23 = vector.shape_cast %22 : vector<512xf32> to vector<512x1xf32>
    %24 = arith.addf %17, %23 : vector<512x1xf32>
    %c0_12 = arith.constant 0 : index
    %c0_13 = arith.constant 0 : index
    %25 = vector.load %arg8[%c0_12, %c0_13] : memref<512x1xf32, #tpu.memory_space<vmem>>, vector<512x1xf32>
    tpu.vector_store %arg8[%c0_12, %c0_13], %24 {strides = array<i32>} : memref<512x1xf32, #tpu.memory_space<vmem>>, vector<512x1xf32>,
    %c0_14 = arith.constant 0 : index
    %c0_15 = arith.constant 0 : index
    %26 = vector.load %arg6[%c0_14, %c0_15] : memref<512x1xf32, #tpu.memory_space<vmem>>, vector<512x1xf32>
    %cst_16 = arith.constant dense<0xFF800000> : vector<512xf32>
    %27 = vector.multi_reduction <maximumf>, %12, %cst_16 [1] : vector<512x512xf32> to vector<512xf32>
    %28 = vector.shape_cast %27 : vector<512xf32> to vector<512x1xf32>
    %29 = arith.maximumf %26, %28 : vector<512x1xf32>
    %c0_17 = arith.constant 0 : index
    %c0_18 = arith.constant 0 : index
    %30 = vector.load %arg7[%c0_17, %c0_18] : memref<512x1xf32, #tpu.memory_space<vmem>>, vector<512x1xf32>
    %31 = arith.subf %26, %29 : vector<512x1xf32>
    %32 = math.exp %31 : vector<512x1xf32>
    %33 = arith.mulf %30, %32 : vector<512x1xf32>
    %34 = vector.broadcast %29 : vector<512x1xf32> to vector<512x512xf32>
    %35 = arith.subf %12, %34 : vector<512x512xf32>
    %36 = math.exp %35 : vector<512x512xf32>
    %cst_19 = arith.constant dense<0.000000e+00> : vector<512xf32>
    %37 = vector.multi_reduction <add>, %36, %cst_19 [1] : vector<512x512xf32> to vector<512xf32>
    %38 = vector.shape_cast %37 : vector<512xf32> to vector<512x1xf32>
    %39 = arith.addf %33, %38 : vector<512x1xf32>
    %c0_20 = arith.constant 0 : index
    %c0_21 = arith.constant 0 : index
    %40 = vector.load %arg7[%c0_20, %c0_21] : memref<512x1xf32, #tpu.memory_space<vmem>>, vector<512x1xf32>
    tpu.vector_store %arg7[%c0_20, %c0_21], %39 {strides = array<i32>} : memref<512x1xf32, #tpu.memory_space<vmem>>, vector<512x1xf32>,
    %c0_22 = arith.constant 0 : index
    %c0_23 = arith.constant 0 : index
    %41 = vector.load %arg6[%c0_22, %c0_23] : memref<512x1xf32, #tpu.memory_space<vmem>>, vector<512x1xf32>
    tpu.vector_store %arg6[%c0_22, %c0_23], %29 {strides = array<i32>} : memref<512x1xf32, #tpu.memory_space<vmem>>, vector<512x1xf32>,
    %c1_i32 = arith.constant 1 : i32
    %42 = arith.cmpi eq, %arg1, %c1_i32 : i32
    %43 = arith.extui %42 : i1 to i32
    %c0_i32_24 = arith.constant 0 : i32
    %44 = arith.cmpi ne, %43, %c0_i32_24 : i32
    scf.if %44 {
      %c0_25 = arith.constant 0 : index
      %c0_26 = arith.constant 0 : index
      %45 = vector.load %arg6[%c0_25, %c0_26] : memref<512x1xf32, #tpu.memory_space<vmem>>, vector<512x1xf32>
      %c0_27 = arith.constant 0 : index
      %c0_28 = arith.constant 0 : index
      %46 = vector.load %arg7[%c0_27, %c0_28] : memref<512x1xf32, #tpu.memory_space<vmem>>, vector<512x1xf32>
      %47 = math.log %46 : vector<512x1xf32>
      %48 = arith.addf %45, %47 : vector<512x1xf32>
      %c-100_i32 = arith.constant -100 : i32
      %49 = vector.broadcast %c-100_i32 : i32 to vector<512x1xi32>
      %50 = arith.cmpi ne, %13, %49 : vector<512x1xi32>
      %c0_29 = arith.constant 0 : index
      %c0_30 = arith.constant 0 : index
      %51 = vector.load %arg8[%c0_29, %c0_30] : memref<512x1xf32, #tpu.memory_space<vmem>>, vector<512x1xf32>
      %52 = arith.subf %48, %51 : vector<512x1xf32>
      %cst_31 = arith.constant 0.000000e+00 : f32
      %53 = vector.broadcast %cst_31 : f32 to vector<512x1xf32>
      %54 = arith.select %50, %52, %53 : vector<512x1xi1>, vector<512x1xf32>
      %cst_32 = arith.constant 0.000000e+00 : f32
      %55 = vector.broadcast %cst_32 : f32 to vector<1x8x128xf32>
      %56 = vector.shape_cast %54 : vector<512x1xf32> to vector<1x512x1xf32>
      %cst_33 = arith.constant dense<0.000000e+00> : vector<1xf32>
      %57 = vector.multi_reduction <add>, %56, %cst_33 [1, 2] : vector<1x512x1xf32> to vector<1xf32>
      %58 = vector.shape_cast %57 : vector<1xf32> to vector<1x1x1xf32>
      %59 = vector.extract %58[0, 0, 0] : f32 from vector<1x1x1xf32>
      %60 = vector.broadcast %59 : f32 to vector<1x8x128xf32>
      %61 = arith.addf %55, %60 : vector<1x8x128xf32>
      %c0_34 = arith.constant 0 : index
      %c0_35 = arith.constant 0 : index
      %c0_36 = arith.constant 0 : index
      %62 = vector.load %arg5[%c0_34, %c0_35, %c0_36] : memref<1x8x128xf32, #tpu.memory_space<vmem>>, vector<1x8x128xf32>
      tpu.vector_store %arg5[%c0_34, %c0_35, %c0_36], %61 {strides = array<i32>} : memref<1x8x128xf32, #tpu.memory_space<vmem>>, vector<1x8x128xf32>,
    } else {
    }
    return
  }
  func.func @transform_0(%arg0: i32, %arg1: i32) -> (i32, i32) {
    %c0_i32 = arith.constant 0 : i32
    %c0_i32_0 = arith.constant 0 : i32
    return %arg0, %c0_i32 : i32, i32
  }
  func.func @transform_1(%arg0: i32, %arg1: i32) -> (i32, i32) {
    %c0_i32 = arith.constant 0 : i32
    %c0_i32_0 = arith.constant 0 : i32
    return %c0_i32, %arg1 : i32, i32
  }
  func.func @transform_2(%arg0: i32, %arg1: i32) -> (i32, i32) {
    %c0_i32 = arith.constant 0 : i32
    %c0_i32_0 = arith.constant 0 : i32
    return %arg0, %c0_i32 : i32, i32
  }
  func.func @transform_3(%arg0: i32, %arg1: i32) -> (i32, i32, i32) {
    %c0_i32 = arith.constant 0 : i32
    %c0_i32_0 = arith.constant 0 : i32
    %c0_i32_1 = arith.constant 0 : i32
    return %arg0, %c0_i32, %c0_i32_0 : i32, i32, i32
  }
}

</mosaic_0001>

<llo_original>
// kernel: attack_forward.2
$region0: #{attack_forward.2}
  #allocation0 [shape = 'u32[]', space=smem, size = 0x4, offset = 0x4, fixed_abs, tag = 'smem constant byte address 0x4 - core index']
  #allocation1 [shape = 'u32[72,128]{1,0:T(1,128)}', space=vmem, size = 0x9000, scoped, tag = 'internal scratch']
  %s0 = inlined_call_operand.vmem [shape: bf16[16,128], index: 0, kind: input, shape index: {}]
  %s1 = inlined_call_operand.vmem [shape: bf16[128,256], index: 1, kind: input, shape index: {}]
  %s2 = inlined_call_operand.vmem [shape: bf16[16,256], index: 2, kind: output, shape index: {}]
  %s3 = sld [smem:[#allocation0]]
  $region18: #{attack_forward.2} parent=0
    _
  %s5 = ssub.s32 1, %s3
  %s6 = scalar_select 0, %s5, %s3
  // Predicated region
  $region2: #{attack_forward.2} parent=0 // pred_check
    _
  $region3: #{attack_forward.2} parent=0 // pred_check_branch
    %8 = sbr.rel (0) target = $region5
  $region4: #{attack_forward.2} parent=0 // pred_region
    _
  $region5: #{attack_forward.2} parent=0 // pred_fallthru
    _
  // Predicated region
  $region6: #{attack_forward.2} parent=0 // pred_check
    _
  $region7: #{attack_forward.2} parent=0 // pred_check_branch
    %10 = sbr.rel (0) target = $region9
  $region8: #{attack_forward.2} parent=0 // pred_region
    _
  $region9: #{attack_forward.2} parent=0 // pred_fallthru
    _
  %v11 = vld [vmem:[%s0] sm:$0xf]
  %v12 = vld [vmem:[%s0 + $0x4] sm:$0xf]
  %v13 = vld [vmem:[%s1] sm:$0xff]
  %v14 = vld [vmem:[%s1 + $0x8] sm:$0xff]
  %v15 = vld [vmem:[%s1 + $0x10] sm:$0xff]
  %v16 = vld [vmem:[%s1 + $0x18] sm:$0xff]
  %v17 = vld [vmem:[%s1 + $0x20] sm:$0xff]
  %v18 = vld [vmem:[%s1 + $0x28] sm:$0xff]
  %v19 = vld [vmem:[%s1 + $0x30] sm:$0xff]
  %v20 = vld [vmem:[%s1 + $0x38] sm:$0xff]
  %v21 = vld [vmem:[%s1 + $0x40] sm:$0xff]
  %v22 = vld [vmem:[%s1 + $0x48] sm:$0xff]
  %v23 = vld [vmem:[%s1 + $0x50] sm:$0xff]
  %v24 = vld [vmem:[%s1 + $0x58] sm:$0xff]
  %v25 = vld [vmem:[%s1 + $0x60] sm:$0xff]
  %v26 = vld [vmem:[%s1 + $0x68] sm:$0xff]
  %v27 = vld [vmem:[%s1 + $0x70] sm:$0xff]
  %v28 = vld [vmem:[%s1 + $0x78] sm:$0xff]
  %v31 = vunpack.c.l.b16 %v11
  %v32 = vunpack.c.l.b16 %v12
  %v33 = vpack.c.b16 %v32, %v31
  %v51 = vunpack.c.l.b16 %v13
  %v52 = vunpack.c.h.b16 %v13
  %v53 = vunpack.c.l.b16 %v14
  %v54 = vunpack.c.h.b16 %v14
  %v55 = vunpack.c.l.b16 %v15
  %v56 = vunpack.c.h.b16 %v15
  %v57 = vunpack.c.l.b16 %v16
  %v58 = vunpack.c.h.b16 %v16
  %v59 = vunpack.c.l.b16 %v17
  %v60 = vunpack.c.h.b16 %v17
  %v61 = vunpack.c.l.b16 %v18
  %v62 = vunpack.c.h.b16 %v18
  %v63 = vunpack.c.l.b16 %v19
  %v64 = vunpack.c.h.b16 %v19
  %v65 = vunpack.c.l.b16 %v20
  %v66 = vunpack.c.h.b16 %v20
  %v67 = vunpack.c.l.b16 %v21
  %v68 = vunpack.c.h.b16 %v21
  %v69 = vunpack.c.l.b16 %v22
  %v70 = vunpack.c.h.b16 %v22
  %v71 = vunpack.c.l.b16 %v23
  %v72 = vunpack.c.h.b16 %v23
  %v73 = vunpack.c.l.b16 %v24
  %v74 = vunpack.c.h.b16 %v24
  %v75 = vunpack.c.l.b16 %v25
  %v76 = vunpack.c.h.b16 %v25
  %v77 = vunpack.c.l.b16 %v26
  %v78 = vunpack.c.h.b16 %v26
  %v79 = vunpack.c.l.b16 %v27
  %v80 = vunpack.c.h.b16 %v27
  %v81 = vunpack.c.l.b16 %v28
  %v82 = vunpack.c.h.b16 %v28
  %v83 = vpack.c.b16 %v53, %v51
  %v84 = vpack.c.b16 %v54, %v52
  %v85 = vpack.c.b16 %v57, %v55
  %v86 = vpack.c.b16 %v58, %v56
  %v87 = vpack.c.b16 %v61, %v59
  %v88 = vpack.c.b16 %v62, %v60
  %v89 = vpack.c.b16 %v65, %v63
  %v90 = vpack.c.b16 %v66, %v64
  %v91 = vpack.c.b16 %v69, %v67
  %v92 = vpack.c.b16 %v70, %v68
  %v93 = vpack.c.b16 %v73, %v71
  %v94 = vpack.c.b16 %v74, %v72
  %v95 = vpack.c.b16 %v77, %v75
  %v96 = vpack.c.b16 %v78, %v76
  %v97 = vpack.c.b16 %v81, %v79
  %v98 = vpack.c.b16 %v82, %v80
  %115 = vmatpush.bf16.msra.mxu0 %v97
  %116 = vmatpush.bf16.msra.mxu0 %v95
  %117 = vmatpush.bf16.msra.mxu0 %v93
  %118 = vmatpush.bf16.msra.mxu0 %v91
  %119 = vmatpush.bf16.msra.mxu0 %v89
  %120 = vmatpush.bf16.msra.mxu0 %v87
  %121 = vmatpush.bf16.msra.mxu0 %v85
  %122 = vmatpush.bf16.msra.mxu0 %v83
  %123 = vmatmul.bf16.gmra.mxu0 %v33
  %v124 = vpop.f32.mrf.mxu0
  %v125 = vadd.f32 0.0, %v124
  %v126 = vpop.f32.mrf.mxu0
  %v127 = vadd.f32 0.0, %v126
  %128 = vdwg.mxu0
  %129 = vmatpush.bf16.msra.mxu0 %v98
  %130 = vmatpush.bf16.msra.mxu0 %v96
  %131 = vmatpush.bf16.msra.mxu0 %v94
  %132 = vmatpush.bf16.msra.mxu0 %v92
  %133 = vmatpush.bf16.msra.mxu0 %v90
  %134 = vmatpush.bf16.msra.mxu0 %v88
  %135 = vmatpush.bf16.msra.mxu0 %v86
  %136 = vmatpush.bf16.msra.mxu0 %v84
  %137 = vmatmul.bf16.gmra.mxu0 %v33
  %v138 = vpop.f32.mrf.mxu0
  %v139 = vadd.f32 0.0, %v138
  %v140 = vpop.f32.mrf.mxu0
  %v141 = vadd.f32 0.0, %v140
  %142 = vdwg.mxu0
  %v143 = vpack.c.bf16 %v139, %v125
  %v144 = vpack.c.bf16 %v141, %v127
  %145 = vst [vmem:[%s2] sm:$0xff] %v143
  %146 = vst [vmem:[%s2 + $0x8] sm:$0xff] %v144
  // Predicated region
  $region10: #{attack_forward.2} parent=0 // pred_check
    _
  $region11: #{attack_forward.2} parent=0 // pred_check_branch
    %148 = sbr.rel (0) target = $region13
  $region12: #{attack_forward.2} parent=0 // pred_region
    _
  $region13: #{attack_forward.2} parent=0 // pred_fallthru
    _
  // Predicated region
  $region14: #{attack_forward.2} parent=0 // pred_check
    _
  $region15: #{attack_forward.2} parent=0 // pred_check_branch
    %150 = sbr.rel (0) target = $region17
  $region16: #{attack_forward.2} parent=0 // pred_region
    _
  $region17: #{attack_forward.2} parent=0 // pred_fallthru
    _

// kernel: attack_forward.3
$region0: #{attack_forward.3}
  #allocation0 [shape = 'u32[]', space=smem, size = 0x4, offset = 0x4, fixed_abs, tag = 'smem constant byte address 0x4 - core index']
  #allocation1 [shape = 'u32[72,128]{1,0:T(1,128)}', space=vmem, size = 0x9000, scoped, tag = 'internal scratch']
  #allocation2 [shape = 'f32[512,1]{1,0:T(8,128)}', space=vmem, size = 0x40000, scoped, tag = 'scratch operand']
  #allocation3 [shape = 'f32[512,1]{1,0:T(8,128)}', space=vmem, size = 0x40000, scoped, tag = 'scratch operand']
  #allocation4 [shape = 'f32[512,1]{1,0:T(8,128)}', space=vmem, size = 0x40000, scoped, tag = 'scratch operand']
  %s0 = inlined_call_operand.vmem [shape: bf16[1024,256], index: 0, kind: input, shape index: {}]
  %s1 = inlined_call_operand.vmem [shape: bf16[256,1024], index: 1, kind: input, shape index: {}]
  %s2 = inlined_call_operand.vmem [shape: s32[1024,1], index: 2, kind: input, shape index: {}]
  %s3 = inlined_call_operand.vmem [shape: f32[2,8,128], index: 3, kind: output, shape index: {}]
  %s4 = sld [smem:[#allocation0]]
  $region76: #{attack_forward.3} parent=0
    _
  %s6 = ssub.s32 1, %s4
  %s7 = scalar_select 0, %s6, %s4
  $region1: #{attack_forward.3} parent=0
    #allocation5 [shape = 'u8[524288]{0}', space=vmem, size = 0x80000, scoped, tag = 'input window, operand 1']
    loop: start=0, step=1, limit=6
    $region2: #{attack_forward.3} parent=1 // loop_pre_header
      _
    $region3: #{attack_forward.3} parent=1 // loop_header
      %s9 = sphi 0, %s13
      %p10 = scmp.ge.s32.totalorder %s9, 6
      %s16 = sphi 0, %s28
      %s17 = sphi 0, %s24
      %s18 = sphi 0, %s16
      %s19 = sphi 0, %s17
      %s20 = sphi 0, %s18
      %s21 = sphi 0, %s19
      %s31 = sphi 0, %s33
      %s34 = sphi 0, %s31
      %s35 = sphi 0, %s34
      %s51 = sphi 0, %s35
      %s57 = sphi 0, %s59
      %s60 = sphi 0, %s57
      %s61 = sphi 0, %s60
      %s77 = sphi 0, %s61
      %s83 = sphi 0, %s85
      %s86 = sphi 0, %s83
      %s87 = sphi 0, %s86
      %s103 = sphi 0, %s87
      %s109 = sphi 0, %s111
      %s112 = sphi 0, %s109
      %s113 = sphi 0, %s112
      %s129 = sphi 0, %s113
    $region4: #{attack_forward.3} parent=1 // loop_header_branch
      %12 = sbr.rel (%p10) target = $region8
    $region5: #{attack_forward.3} parent=1 // loop_body
      %s14 = ssub.s32 %s9, 1
      %s15 = ssub.s32 %s9, 2
      %s22 = sadd.s32 1, %s17
      %p23 = scmp.ge.s32.totalorder %s22, 2
      %s24 = scalar_select %p23, 0, %s22
      %s25 = sadd.s32 1, %s16
      %s26 = scalar_select %p23, %s25, %s16
      %p27 = scmp.ge.s32.totalorder %s26, 2
      %s28 = scalar_select %p27, 0, %s26
      %s29 = ssub.s32 %s16, %s28
      %p30 = scmp.eq.s32.totalorder %s29, 0
      %s32 = sadd.s32 %s31, 1
      %s33 = scalar_select %p30, %s31, %s32
      %p36 = pneg %p30
      %p37 = scmp.eq.s32.totalorder %s9, 3
      %p38 = por %p36, %p37
      %p39 = scmp.ne.s32.totalorder %s31, %s34
      %p40 = scmp.eq.s32.totalorder %s9, 0
      %p41 = por %p39, %p40
      %p42 = scmp.ne.s32.totalorder %s31, %s34
      %p43 = scmp.eq.s32.totalorder %s14, 3
      %p44 = por %p42, %p43
      %p45 = scmp.ne.s32.totalorder %s34, %s35
      %p46 = scmp.eq.s32.totalorder %s14, 0
      %p47 = por %p45, %p46
      %p48 = scmp.ne.s32.totalorder %s34, %s35
      %p49 = scmp.eq.s32.totalorder %s15, 3
      %p50 = por %p48, %p49
      %p52 = scmp.ne.s32.totalorder %s35, %s51
      %p53 = scmp.eq.s32.totalorder %s15, 0
      %p54 = por %p52, %p53
      %s55 = ssub.s32 %s17, %s24
      %p56 = scmp.eq.s32.totalorder %s55, 0
      %s58 = sadd.s32 %s57, 1
      %s59 = scalar_select %p56, %s57, %s58
      %p62 = pneg %p56
      %p63 = scmp.eq.s32.totalorder %s9, 3
      %p64 = por %p62, %p63
      %p65 = scmp.ne.s32.totalorder %s57, %s60
      %p66 = scmp.eq.s32.totalorder %s9, 0
      %p67 = por %p65, %p66
      %p68 = scmp.ne.s32.totalorder %s57, %s60
      %p69 = scmp.eq.s32.totalorder %s14, 3
      %p70 = por %p68, %p69
      %p71 = scmp.ne.s32.totalorder %s60, %s61
      %p72 = scmp.eq.s32.totalorder %s14, 0
      %p73 = por %p71, %p72
      %p74 = scmp.ne.s32.totalorder %s60, %s61
      %p75 = scmp.eq.s32.totalorder %s15, 3
      %p76 = por %p74, %p75
      %p78 = scmp.ne.s32.totalorder %s61, %s77
      %p79 = scmp.eq.s32.totalorder %s15, 0
      %p80 = por %p78, %p79
      %s81 = ssub.s32 %s16, %s28
      %p82 = scmp.eq.s32.totalorder %s81, 0
      %s84 = sadd.s32 %s83, 1
      %s85 = scalar_select %p82, %s83, %s84
      %p88 = pneg %p82
      %p89 = scmp.eq.s32.totalorder %s9, 3
      %p90 = por %p88, %p89
      %p91 = scmp.ne.s32.totalorder %s83, %s86
      %p92 = scmp.eq.s32.totalorder %s9, 0
      %p93 = por %p91, %p92
      %p94 = scmp.ne.s32.totalorder %s83, %s86
      %p95 = scmp.eq.s32.totalorder %s14, 3
      %p96 = por %p94, %p95
      %p97 = scmp.ne.s32.totalorder %s86, %s87
      %p98 = scmp.eq.s32.totalorder %s14, 0
      %p99 = por %p97, %p98
      %p100 = scmp.ne.s32.totalorder %s86, %s87
      %p101 = scmp.eq.s32.totalorder %s15, 3
      %p102 = por %p100, %p101
      %p104 = scmp.ne.s32.totalorder %s87, %s103
      %p105 = scmp.eq.s32.totalorder %s15, 0
      %p106 = por %p104, %p105
      %s107 = ssub.s32 %s16, %s28
      %p108 = scmp.eq.s32.totalorder %s107, 0
      %s110 = sadd.s32 %s109, 1
      %s111 = scalar_select %p108, %s109, %s110
      %p114 = pneg %p108
      %p115 = scmp.eq.s32.totalorder %s9, 3
      %p116 = por %p114, %p115
      %p117 = scmp.ne.s32.totalorder %s109, %s112
      %p118 = scmp.eq.s32.totalorder %s9, 0
      %p119 = por %p117, %p118
      %p120 = scmp.ne.s32.totalorder %s109, %s112
      %p121 = scmp.eq.s32.totalorder %s14, 3
      %p122 = por %p120, %p121
      %p123 = scmp.ne.s32.totalorder %s112, %s113
      %p124 = scmp.eq.s32.totalorder %s14, 0
      %p125 = por %p123, %p124
      %p126 = scmp.ne.s32.totalorder %s112, %s113
      %p127 = scmp.eq.s32.totalorder %s15, 3
      %p128 = por %p126, %p127
      %p130 = scmp.ne.s32.totalorder %s113, %s129
      %p131 = scmp.eq.s32.totalorder %s15, 0
      %p132 = por %p130, %p131
      %p133 = scmp.le.s32.totalorder 1, %s9
      %p134 = scmp.lt.s32.totalorder %s9, 5
      %p135 = pnand %p133, %p134
      %p136 = pneg %p135
      // Predicated region
      $region9: #{attack_forward.3} parent=5 // pred_check
        _
      $region10: #{attack_forward.3} parent=5 // pred_check_branch
        %138 = sbr.rel (%p135) target = $region12
      $region11: #{attack_forward.3} parent=5 // pred_region
        %s139 = ssub.s32 %s9, 1
      $region12: #{attack_forward.3} parent=5 // pred_fallthru
        _
      %p140 = scmp.lt.s32.totalorder %s9, 4
      // Predicated region
      $region13: #{attack_forward.3} parent=5 // pred_check
        %p141 = pneg %p140
      $region14: #{attack_forward.3} parent=5 // pred_check_branch
        %143 = sbr.rel (%p141) target = $region16
      $region15: #{attack_forward.3} parent=5 // pred_region
        // Predicated region
        $region17: #{attack_forward.3} parent=15 // pred_check
          %p144 = pneg %p41
        $region18: #{attack_forward.3} parent=15 // pred_check_branch
          %146 = sbr.rel (%p144) target = $region20
        $region19: #{attack_forward.3} parent=15 // pred_region
          %s147 = smul.u32 64, %s16
          %p148 = scmp.lt.s32.totalorder %s147, 127
          %s149 = scalar_select %p148, %s147, 127
          %s150 = smul.addr %s149, 2
          %s151 = smul.addr %s150, 4
          %s152 = scalar_lea.vmem %s0, %s151
          %s153 = smul.u32 64, %s16
        $region20: #{attack_forward.3} parent=15 // pred_fallthru
          _
        // Predicated region
        $region21: #{attack_forward.3} parent=15 // pred_check
          %p154 = pneg %p67
        $region22: #{attack_forward.3} parent=15 // pred_check_branch
          %156 = sbr.rel (%p154) target = $region24
        $region23: #{attack_forward.3} parent=15 // pred_region
          %s157 = sand.u32 %s57, 1
          %s158 = sand.u32 %s57, 1
          %s159 = smul.addr %s158, 512
          %s160 = scalar_lea.vmem [#allocation5], %s159
          %s161 = smul.u32 4, %s17
          %s162 = smul.addr %s161, 4
          %s163 = scalar_lea.vmem %s1, %s162
          // Predicated region
          $region25: #{attack_forward.3} parent=23 // pred_check
            _
          $region26: #{attack_forward.3} parent=23 // pred_check_branch
            %165 = sbr.rel (0) target = $region28
          $region27: #{attack_forward.3} parent=23 // pred_region
            // Predicated region
            $region29: #{attack_forward.3} parent=27 // pred_check
              _
            $region30: #{attack_forward.3} parent=27 // pred_check_branch
              %167 = sbr.rel (0) target = $region32
            $region31: #{attack_forward.3} parent=27 // pred_region
              loop: start=0, step=1, limit=1
              $region33: #{attack_forward.3} parent=31 // loop_pre_header
                _
              $region34: #{attack_forward.3} parent=31 // loop_header
                %s169 = sphi 0, %s173
                %p170 = scmp.ge.s32.totalorder %s169, 1
                %s174 = sphi %s163, %s163
                %s175 = sphi %s160, %s160
              $region35: #{attack_forward.3} parent=31 // loop_header_branch
                %172 = sbr.rel (%p170) target = $region39
              $region36: #{attack_forward.3} parent=31 // loop_body
                %v176 = vld [vmem:[%s174] sm:$0xff]
                %177 = vst [vmem:[%s175] sm:$0xff] %v176
                %v178 = vld [vmem:[%s174 + $0x8] sm:$0xff]
                %179 = vst [vmem:[%s175 + $0x8] sm:$0xff] %v178
                %v180 = vld [vmem:[%s174 + $0x20] sm:$0xff]
                %181 = vst [vmem:[%s175 + $0x10] sm:$0xff] %v180
                %v182 = vld [vmem:[%s174 + $0x28] sm:$0xff]
                %183 = vst [vmem:[%s175 + $0x18] sm:$0xff] %v182
                %v184 = vld [vmem:[%s174 + $0x40] sm:$0xff]
                %185 = vst [vmem:[%s175 + $0x20] sm:$0xff] %v184
                %v186 = vld [vmem:[%s174 + $0x48] sm:$0xff]
                %187 = vst [vmem:[%s175 + $0x28] sm:$0xff] %v186
                %v188 = vld [vmem:[%s174 + $0x60] sm:$0xff]
                %189 = vst [vmem:[%s175 + $0x30] sm:$0xff] %v188
                %v190 = vld [vmem:[%s174 + $0x68] sm:$0xff]
                %191 = vst [vmem:[%s175 + $0x38] sm:$0xff] %v190
                %v192 = vld [vmem:[%s174 + $0x80] sm:$0xff]
                %193 = vst [vmem:[%s175 + $0x40] sm:$0xff] %v192
                %v194 = vld [vmem:[%s174 + $0x88] sm:$0xff]
                %195 = vst [vmem:[%s175 + $0x48] sm:$0xff] %v194
                %v196 = vld [vmem:[%s174 + $0xa0] sm:$0xff]
                %197 = vst [vmem:[%s175 + $0x50] sm:$0xff] %v196
                %v198 = vld [vmem:[%s174 + $0xa8] sm:$0xff]
                %199 = vst [vmem:[%s175 + $0x58] sm:$0xff] %v198
                %v200 = vld [vmem:[%s174 + $0xc0] sm:$0xff]
                %201 = vst [vmem:[%s175 + $0x60] sm:$0xff] %v200
                %v202 = vld [vmem:[%s174 + $0xc8] sm:$0xff]
                %203 = vst [vmem:[%s175 + $0x68] sm:$0xff] %v202
                %v204 = vld [vmem:[%s174 + $0xe0] sm:$0xff]
                %205 = vst [vmem:[%s175 + $0x70] sm:$0xff] %v204
                %v206 = vld [vmem:[%s174 + $0xe8] sm:$0xff]
                %207 = vst [vmem:[%s175 + $0x78] sm:$0xff] %v206
                %v208 = vld [vmem:[%s174 + $0x100] sm:$0xff]
                %209 = vst [vmem:[%s175 + $0x80] sm:$0xff] %v208
                %v210 = vld [vmem:[%s174 + $0x108] sm:$0xff]
                %211 = vst [vmem:[%s175 + $0x88] sm:$0xff] %v210
                %v212 = vld [vmem:[%s174 + $0x120] sm:$0xff]
                %213 = vst [vmem:[%s175 + $0x90] sm:$0xff] %v212
                %v214 = vld [vmem:[%s174 + $0x128] sm:$0xff]
                %215 = vst [vmem:[%s175 + $0x98] sm:$0xff] %v214
                %v216 = vld [vmem:[%s174 + $0x140] sm:$0xff]
                %217 = vst [vmem:[%s175 + $0xa0] sm:$0xff] %v216
                %v218 = vld [vmem:[%s174 + $0x148] sm:$0xff]
                %219 = vst [vmem:[%s175 + $0xa8] sm:$0xff] %v218
                %v220 = vld [vmem:[%s174 + $0x160] sm:$0xff]
                %221 = vst [vmem:[%s175 + $0xb0] sm:$0xff] %v220
                %v222 = vld [vmem:[%s174 + $0x168] sm:$0xff]
                %223 = vst [vmem:[%s175 + $0xb8] sm:$0xff] %v222
                %v224 = vld [vmem:[%s174 + $0x180] sm:$0xff]
                %225 = vst [vmem:[%s175 + $0xc0] sm:$0xff] %v224
                %v226 = vld [vmem:[%s174 + $0x188] sm:$0xff]
                %227 = vst [vmem:[%s175 + $0xc8] sm:$0xff] %v226
                %v228 = vld [vmem:[%s174 + $0x1a0] sm:$0xff]
                %229 = vst [vmem:[%s175 + $0xd0] sm:$0xff] %v228
                %v230 = vld [vmem:[%s174 + $0x1a8] sm:$0xff]
                %231 = vst [vmem:[%s175 + $0xd8] sm:$0xff] %v230
                %v232 = vld [vmem:[%s174 + $0x1c0] sm:$0xff]
                %233 = vst [vmem:[%s175 + $0xe0] sm:$0xff] %v232
                %v234 = vld [vmem:[%s174 + $0x1c8] sm:$0xff]
                %235 = vst [vmem:[%s175 + $0xe8] sm:$0xff] %v234
                %v236 = vld [vmem:[%s174 + $0x1e0] sm:$0xff]
                %237 = vst [vmem:[%s175 + $0xf0] sm:$0xff] %v236
                %v238 = vld [vmem:[%s174 + $0x1e8] sm:$0xff]
                %239 = vst [vmem:[%s175 + $0xf8] sm:$0xff] %v238
                %v240 = vld [vmem:[%s174 + $0x200] sm:$0xff]
                %241 = vst [vmem:[%s175 + $0x100] sm:$0xff] %v240
                %v242 = vld [vmem:[%s174 + $0x208] sm:$0xff]
                %243 = vst [vmem:[%s175 + $0x108] sm:$0xff] %v242
                %v244 = vld [vmem:[%s174 + $0x220] sm:$0xff]
                %245 = vst [vmem:[%s175 + $0x110] sm:$0xff] %v244
                %v246 = vld [vmem:[%s174 + $0x228] sm:$0xff]
                %247 = vst [vmem:[%s175 + $0x118] sm:$0xff] %v246
                %v248 = vld [vmem:[%s174 + $0x240] sm:$0xff]
                %249 = vst [vmem:[%s175 + $0x120] sm:$0xff] %v248
                %v250 = vld [vmem:[%s174 + $0x248] sm:$0xff]
                %251 = vst [vmem:[%s175 + $0x128] sm:$0xff] %v250
                %v252 = vld [vmem:[%s174 + $0x260] sm:$0xff]
                %253 = vst [vmem:[%s175 + $0x130] sm:$0xff] %v252
                %v254 = vld [vmem:[%s174 + $0x268] sm:$0xff]
                %255 = vst [vmem:[%s175 + $0x138] sm:$0xff] %v254
                %v256 = vld [vmem:[%s174 + $0x280] sm:$0xff]
                %257 = vst [vmem:[%s175 + $0x140] sm:$0xff] %v256
                %v258 = vld [vmem:[%s174 + $0x288] sm:$0xff]
                %259 = vst [vmem:[%s175 + $0x148] sm:$0xff] %v258
                %v260 = vld [vmem:[%s174 + $0x2a0] sm:$0xff]
                %261 = vst [vmem:[%s175 + $0x150] sm:$0xff] %v260
                %v262 = vld [vmem:[%s174 + $0x2a8] sm:$0xff]
                %263 = vst [vmem:[%s175 + $0x158] sm:$0xff] %v262
                %v264 = vld [vmem:[%s174 + $0x2c0] sm:$0xff]
                %265 = vst [vmem:[%s175 + $0x160] sm:$0xff] %v264
                %v266 = vld [vmem:[%s174 + $0x2c8] sm:$0xff]
                %267 = vst [vmem:[%s175 + $0x168] sm:$0xff] %v266
                %v268 = vld [vmem:[%s174 + $0x2e0] sm:$0xff]
                %269 = vst [vmem:[%s175 + $0x170] sm:$0xff] %v268
                %v270 = vld [vmem:[%s174 + $0x2e8] sm:$0xff]
                %271 = vst [vmem:[%s175 + $0x178] sm:$0xff] %v270
                %v272 = vld [vmem:[%s174 + $0x300] sm:$0xff]
                %273 = vst [vmem:[%s175 + $0x180] sm:$0xff] %v272
                %v274 = vld [vmem:[%s174 + $0x308] sm:$0xff]
                %275 = vst [vmem:[%s175 + $0x188] sm:$0xff] %v274
                %v276 = vld [vmem:[%s174 + $0x320] sm:$0xff]
                %277 = vst [vmem:[%s175 + $0x190] sm:$0xff] %v276
                %v278 = vld [vmem:[%s174 + $0x328] sm:$0xff]
                %279 = vst [vmem:[%s175 + $0x198] sm:$0xff] %v278
                %v280 = vld [vmem:[%s174 + $0x340] sm:$0xff]
                %281 = vst [vmem:[%s175 + $0x1a0] sm:$0xff] %v280
                %v282 = vld [vmem:[%s174 + $0x348] sm:$0xff]
                %283 = vst [vmem:[%s175 + $0x1a8] sm:$0xff] %v282
                %v284 = vld [vmem:[%s174 + $0x360] sm:$0xff]
                %285 = vst [vmem:[%s175 + $0x1b0] sm:$0xff] %v284
                %v286 = vld [vmem:[%s174 + $0x368] sm:$0xff]
                %287 = vst [vmem:[%s175 + $0x1b8] sm:$0xff] %v286
                %v288 = vld [vmem:[%s174 + $0x380] sm:$0xff]
                %289 = vst [vmem:[%s175 + $0x1c0] sm:$0xff] %v288
                %v290 = vld [vmem:[%s174 + $0x388] sm:$0xff]
                %291 = vst [vmem:[%s175 + $0x1c8] sm:$0xff] %v290
                %v292 = vld [vmem:[%s174 + $0x3a0] sm:$0xff]
                %293 = vst [vmem:[%s175 + $0x1d0] sm:$0xff] %v292
                %v294 = vld [vmem:[%s174 + $0x3a8] sm:$0xff]
                %295 = vst [vmem:[%s175 + $0x1d8] sm:$0xff] %v294
                %v296 = vld [vmem:[%s174 + $0x3c0] sm:$0xff]
                %297 = vst [vmem:[%s175 + $0x1e0] sm:$0xff] %v296
                %v298 = vld [vmem:[%s174 + $0x3c8] sm:$0xff]
                %299 = vst [vmem:[%s175 + $0x1e8] sm:$0xff] %v298
                %v300 = vld [vmem:[%s174 + $0x3e0] sm:$0xff]
                %301 = vst [vmem:[%s175 + $0x1f0] sm:$0xff] %v300
                %v302 = vld [vmem:[%s174 + $0x3e8] sm:$0xff]
                %303 = vst [vmem:[%s175 + $0x1f8] sm:$0xff] %v302
              $region37: #{attack_forward.3} parent=31 // loop_footer
                %s173 = sadd.s32 1, %s169
              $region38: #{attack_forward.3} parent=31 // loop_footer_branch
                %168 = sbr.rel target = $region34
              $region39: #{attack_forward.3} parent=31 // loop_exit
                _
            $region32: #{attack_forward.3} parent=27 // pred_fallthru
              _
            // Predicated region
            $region40: #{attack_forward.3} parent=27 // pred_check
              _
            $region41: #{attack_forward.3} parent=27 // pred_check_branch
              %305 = sbr.rel target = $region43
            $region42: #{attack_forward.3} parent=27 // pred_region
              _
            $region43: #{attack_forward.3} parent=27 // pred_fallthru
              _
          $region28: #{attack_forward.3} parent=23 // pred_fallthru
            _
          %306 = vnop
        $region24: #{attack_forward.3} parent=15 // pred_fallthru
          _
        // Predicated region
        $region44: #{attack_forward.3} parent=15 // pred_check
          %p307 = pneg %p93
        $region45: #{attack_forward.3} parent=15 // pred_check_branch
          %309 = sbr.rel (%p307) target = $region47
        $region46: #{attack_forward.3} parent=15 // pred_region
          %s310 = smul.u32 64, %s16
          %p311 = scmp.lt.s32.totalorder %s310, 127
          %s312 = scalar_select %p311, %s310, 127
          %s313 = smul.addr %s312, 8
          %s314 = scalar_lea.vmem %s2, %s313
          %s315 = smul.u32 64, %s16
        $region47: #{attack_forward.3} parent=15 // pred_fallthru
          _
      $region16: #{attack_forward.3} parent=5 // pred_fallthru
        _
      %p316 = scmp.le.s32.totalorder 1, %s9
      %p317 = scmp.lt.s32.totalorder %s9, 5
      %p318 = pnand %p316, %p317
      %p319 = pneg %p318
      // Predicated region
      $region48: #{attack_forward.3} parent=5 // pred_check
        _
      $region49: #{attack_forward.3} parent=5 // pred_check_branch
        %321 = sbr.rel (%p318) target = $region51
      $region50: #{attack_forward.3} parent=5 // pred_region
        %s322 = ssub.s32 %s9, 1
        %s323 = sand.u32 %s60, 1
        %s324 = sand.u32 %s60, 1
        %s325 = smul.addr %s324, 512
        %s326 = scalar_lea.vmem [#allocation5], %s325
        // Predicated region
        $region52: #{attack_forward.3} parent=50 // pred_check
          %p327 = pneg %p73
        $region53: #{attack_forward.3} parent=50 // pred_check_branch
          %329 = sbr.rel (%p327) target = $region55
        $region54: #{attack_forward.3} parent=50 // pred_region
          _
        $region55: #{attack_forward.3} parent=50 // pred_fallthru
          _
        %s330 = smul.u32 64, %s18
        %p331 = scmp.lt.s32.totalorder %s330, 127
        %s332 = scalar_select %p331, %s330, 127
        %s333 = smul.addr %s332, 2
        %s334 = smul.addr %s333, 4
        %s335 = scalar_lea.vmem %s0, %s334
        %p336 = pneg %p47
        %p337 = pneg %p44
        %s338 = sand.u32 %s60, 1
        %s339 = sand.u32 %s60, 1
        %s340 = smul.addr %s339, 512
        %s341 = scalar_lea.vmem [#allocation5], %s340
        %p342 = pneg %p73
        %p343 = pneg %p70
        %s344 = smul.u32 64, %s18
        %p345 = scmp.lt.s32.totalorder %s344, 127
        %s346 = scalar_select %p345, %s344, 127
        %s347 = smul.addr %s346, 8
        %s348 = scalar_lea.vmem %s2, %s347
        %p349 = pneg %p99
        %p350 = pneg %p96
        %p351 = pneg %p125
        %p352 = pneg %p122
        %p353 = scmp.lt.s32.totalorder %s18, 1
        %s354 = scalar_select %p353, %s18, 1
        %s355 = smul.addr %s354, 8
        %s356 = scalar_lea.vmem %s3, %s355
        %s357 = smul.u32 64, %s18
        %p358 = scmp.lt.s32.totalorder %s357, 127
        %s359 = scalar_select %p358, %s357, 127
        %s360 = smul.addr %s359, 2
        %s361 = smul.addr %s360, 4
        %s362 = scalar_lea.vmem %s0, %s361
        %s363 = smul.u32 64, %s18
        %s364 = smul.u32 4, %s19
        %s365 = smul.u32 64, %s18
        %p366 = scmp.lt.s32.totalorder %s365, 127
        %s367 = scalar_select %p366, %s365, 127
        %s368 = smul.addr %s367, 8
        %s369 = scalar_lea.vmem %s2, %s368
        %s370 = smul.u32 64, %s18
        %p371 = scmp.lt.s32.totalorder %s18, 1
        %s372 = scalar_select %p371, %s18, 1
        %s373 = smul.addr %s372, 8
        %s374 = scalar_lea.vmem %s3, %s373
        %p375 = scmp.eq.s32.totalorder %s19, 0
        // Predicated region
        $region56: #{attack_forward.3} parent=50 // pred_check
          %p376 = pneg %p375
        $region57: #{attack_forward.3} parent=50 // pred_check_branch
          %378 = sbr.rel (%p376) target = $region59
        $region58: #{attack_forward.3} parent=50 // pred_region
          %vm379 = vcmask 7168
          %380 = vst.msk [vmem:[#allocation2] sm:$0xff] %vm379, -inf
          %381 = vst.msk [vmem:[#allocation2 + $0x8] sm:$0xff] %vm379, -inf
          %382 = vst.msk [vmem:[#allocation2 + $0x10] sm:$0xff] %vm379, -inf
          %383 = vst.msk [vmem:[#allocation2 + $0x18] sm:$0xff] %vm379, -inf
          %384 = vst.msk [vmem:[#allocation2 + $0x20] sm:$0xff] %vm379, -inf
          %385 = vst.msk [vmem:[#allocation2 + $0x28] sm:$0xff] %vm379, -inf
          %386 = vst.msk [vmem:[#allocation2 + $0x30] sm:$0xff] %vm379, -inf
          %387 = vst.msk [vmem:[#allocation2 + $0x38] sm:$0xff] %vm379, -inf
          %388 = vst.msk [vmem:[#allocation2 + $0x40] sm:$0xff] %vm379, -inf
          %389 = vst.msk [vmem:[#allocation2 + $0x48] sm:$0xff] %vm379, -inf
          %390 = vst.msk [vmem:[#allocation2 + $0x50] sm:$0xff] %vm379, -inf
          %391 = vst.msk [vmem:[#allocation2 + $0x58] sm:$0xff] %vm379, -inf
          %392 = vst.msk [vmem:[#allocation2 + $0x60] sm:$0xff] %vm379, -inf
          %393 = vst.msk [vmem:[#allocation2 + $0x68] sm:$0xff] %vm379, -inf
          %394 = vst.msk [vmem:[#allocation2 + $0x70] sm:$0xff] %vm379, -inf
          %395 = vst.msk [vmem:[#allocation2 + $0x78] sm:$0xff] %vm379, -inf
          %396 = vst.msk [vmem:[#allocation2 + $0x80] sm:$0xff] %vm379, -inf
          %397 = vst.msk [vmem:[#allocation2 + $0x88] sm:$0xff] %vm379, -inf
          %398 = vst.msk [vmem:[#allocation2 + $0x90] sm:$0xff] %vm379, -inf
          %399 = vst.msk [vmem:[#allocation2 + $0x98] sm:$0xff] %vm379, -inf
          %400 = vst.msk [vmem:[#allocation2 + $0xa0] sm:$0xff] %vm379, -inf
          %401 = vst.msk [vmem:[#allocation2 + $0xa8] sm:$0xff] %vm379, -inf
          %402 = vst.msk [vmem:[#allocation2 + $0xb0] sm:$0xff] %vm379, -inf
          %403 = vst.msk [vmem:[#allocation2 + $0xb8] sm:$0xff] %vm379, -inf
          %404 = vst.msk [vmem:[#allocation2 + $0xc0] sm:$0xff] %vm379, -inf
          %405 = vst.msk [vmem:[#allocation2 + $0xc8] sm:$0xff] %vm379, -inf
          %406 = vst.msk [vmem:[#allocation2 + $0xd0] sm:$0xff] %vm379, -inf
          %407 = vst.msk [vmem:[#allocation2 + $0xd8] sm:$0xff] %vm379, -inf
          %408 = vst.msk [vmem:[#allocation2 + $0xe0] sm:$0xff] %vm379, -inf
          %409 = vst.msk [vmem:[#allocation2 + $0xe8] sm:$0xff] %vm379, -inf
          %410 = vst.msk [vmem:[#allocation2 + $0xf0] sm:$0xff] %vm379, -inf
          %411 = vst.msk [vmem:[#allocation2 + $0xf8] sm:$0xff] %vm379, -inf
          %412 = vst.msk [vmem:[#allocation2 + $0x100] sm:$0xff] %vm379, -inf
          %413 = vst.msk [vmem:[#allocation2 + $0x108] sm:$0xff] %vm379, -inf
          %414 = vst.msk [vmem:[#allocation2 + $0x110] sm:$0xff] %vm379, -inf
          %415 = vst.msk [vmem:[#allocation2 + $0x118] sm:$0xff] %vm379, -inf
          %416 = vst.msk [vmem:[#allocation2 + $0x120] sm:$0xff] %vm379, -inf
          %417 = vst.msk [vmem:[#allocation2 + $0x128] sm:$0xff] %vm379, -inf
          %418 = vst.msk [vmem:[#allocation2 + $0x130] sm:$0xff] %vm379, -inf
          %419 = vst.msk [vmem:[#allocation2 + $0x138] sm:$0xff] %vm379, -inf
          %420 = vst.msk [vmem:[#allocation2 + $0x140] sm:$0xff] %vm379, -inf
          %421 = vst.msk [vmem:[#allocation2 + $0x148] sm:$0xff] %vm379, -inf
          %422 = vst.msk [vmem:[#allocation2 + $0x150] sm:$0xff] %vm379, -inf
          %423 = vst.msk [vmem:[#allocation2 + $0x158] sm:$0xff] %vm379, -inf
          %424 = vst.msk [vmem:[#allocation2 + $0x160] sm:$0xff] %vm379, -inf
          %425 = vst.msk [vmem:[#allocation2 + $0x168] sm:$0xff] %vm379, -inf
          %426 = vst.msk [vmem:[#allocation2 + $0x170] sm:$0xff] %vm379, -inf
          %427 = vst.msk [vmem:[#allocation2 + $0x178] sm:$0xff] %vm379, -inf
          %428 = vst.msk [vmem:[#allocation2 + $0x180] sm:$0xff] %vm379, -inf
          %429 = vst.msk [vmem:[#allocation2 + $0x188] sm:$0xff] %vm379, -inf
          %430 = vst.msk [vmem:[#allocation2 + $0x190] sm:$0xff] %vm379, -inf
          %431 = vst.msk [vmem:[#allocation2 + $0x198] sm:$0xff] %vm379, -inf
          %432 = vst.msk [vmem:[#allocation2 + $0x1a0] sm:$0xff] %vm379, -inf
          %433 = vst.msk [vmem:[#allocation2 + $0x1a8] sm:$0xff] %vm379, -inf
          %434 = vst.msk [vmem:[#allocation2 + $0x1b0] sm:$0xff] %vm379, -inf
          %435 = vst.msk [vmem:[#allocation2 + $0x1b8] sm:$0xff] %vm379, -inf
          %436 = vst.msk [vmem:[#allocation2 + $0x1c0] sm:$0xff] %vm379, -inf
          %437 = vst.msk [vmem:[#allocation2 + $0x1c8] sm:$0xff] %vm379, -inf
          %438 = vst.msk [vmem:[#allocation2 + $0x1d0] sm:$0xff] %vm379, -inf
          %439 = vst.msk [vmem:[#allocation2 + $0x1d8] sm:$0xff] %vm379, -inf
          %440 = vst.msk [vmem:[#allocation2 + $0x1e0] sm:$0xff] %vm379, -inf
          %441 = vst.msk [vmem:[#allocation2 + $0x1e8] sm:$0xff] %vm379, -inf
          %442 = vst.msk [vmem:[#allocation2 + $0x1f0] sm:$0xff] %vm379, -inf
          %443 = vst.msk [vmem:[#allocation2 + $0x1f8] sm:$0xff] %vm379, -inf
          %444 = vst.msk [vmem:[#allocation3] sm:$0xff] %vm379, 0.0
          %445 = vst.msk [vmem:[#allocation3 + $0x8] sm:$0xff] %vm379, 0.0
          %446 = vst.msk [vmem:[#allocation3 + $0x10] sm:$0xff] %vm379, 0.0
          %447 = vst.msk [vmem:[#allocation3 + $0x18] sm:$0xff] %vm379, 0.0
          %448 = vst.msk [vmem:[#allocation3 + $0x20] sm:$0xff] %vm379, 0.0
          %449 = vst.msk [vmem:[#allocation3 + $0x28] sm:$0xff] %vm379, 0.0
          %450 = vst.msk [vmem:[#allocation3 + $0x30] sm:$0xff] %vm379, 0.0
          %451 = vst.msk [vmem:[#allocation3 + $0x38] sm:$0xff] %vm379, 0.0
          %452 = vst.msk [vmem:[#allocation3 + $0x40] sm:$0xff] %vm379, 0.0
          %453 = vst.msk [vmem:[#allocation3 + $0x48] sm:$0xff] %vm379, 0.0
          %454 = vst.msk [vmem:[#allocation3 + $0x50] sm:$0xff] %vm379, 0.0
          %455 = vst.msk [vmem:[#allocation3 + $0x58] sm:$0xff] %vm379, 0.0
          %456 = vst.msk [vmem:[#allocation3 + $0x60] sm:$0xff] %vm379, 0.0
          %457 = vst.msk [vmem:[#allocation3 + $0x68] sm:$0xff] %vm379, 0.0
          %458 = vst.msk [vmem:[#allocation3 + $0x70] sm:$0xff] %vm379, 0.0
          %459 = vst.msk [vmem:[#allocation3 + $0x78] sm:$0xff] %vm379, 0.0
          %460 = vst.msk [vmem:[#allocation3 + $0x80] sm:$0xff] %vm379, 0.0
          %461 = vst.msk [vmem:[#allocation3 + $0x88] sm:$0xff] %vm379, 0.0
          %462 = vst.msk [vmem:[#allocation3 + $0x90] sm:$0xff] %vm379, 0.0
          %463 = vst.msk [vmem:[#allocation3 + $0x98] sm:$0xff] %vm379, 0.0
          %464 = vst.msk [vmem:[#allocation3 + $0xa0] sm:$0xff] %vm379, 0.0
          %465 = vst.msk [vmem:[#allocation3 + $0xa8] sm:$0xff] %vm379, 0.0
          %466 = vst.msk [vmem:[#allocation3 + $0xb0] sm:$0xff] %vm379, 0.0
          %467 = vst.msk [vmem:[#allocation3 + $0xb8] sm:$0xff] %vm379, 0.0
          %468 = vst.msk [vmem:[#allocation3 + $0xc0] sm:$0xff] %vm379, 0.0
          %469 = vst.msk [vmem:[#allocation3 + $0xc8] sm:$0xff] %vm379, 0.0
          %470 = vst.msk [vmem:[#allocation3 + $0xd0] sm:$0xff] %vm379, 0.0
          %471 = vst.msk [vmem:[#allocation3 + $0xd8] sm:$0xff] %vm379, 0.0
          %472 = vst.msk [vmem:[#allocation3 + $0xe0] sm:$0xff] %vm379, 0.0
          %473 = vst.msk [vmem:[#allocation3 + $0xe8] sm:$0xff] %vm379, 0.0
          %474 = vst.msk [vmem:[#allocation3 + $0xf0] sm:$0xff] %vm379, 0.0
          %475 = vst.msk [vmem:[#allocation3 + $0xf8] sm:$0xff] %vm379, 0.0
          %476 = vst.msk [vmem:[#allocation3 + $0x100] sm:$0xff] %vm379, 0.0
          %477 = vst.msk [vmem:[#allocation3 + $0x108] sm:$0xff] %vm379, 0.0
          %478 = vst.msk [vmem:[#allocation3 + $0x110] sm:$0xff] %vm379, 0.0
          %479 = vst.msk [vmem:[#allocation3 + $0x118] sm:$0xff] %vm379, 0.0
          %480 = vst.msk [vmem:[#allocation3 + $0x120] sm:$0xff] %vm379, 0.0
          %481 = vst.msk [vmem:[#allocation3 + $0x128] sm:$0xff] %vm379, 0.0
          %482 = vst.msk [vmem:[#allocation3 + $0x130] sm:$0xff] %vm379, 0.0
          %483 = vst.msk [vmem:[#allocation3 + $0x138] sm:$0xff] %vm379, 0.0
          %484 = vst.msk [vmem:[#allocation3 + $0x140] sm:$0xff] %vm379, 0.0
          %485 = vst.msk [vmem:[#allocation3 + $0x148] sm:$0xff] %vm379, 0.0
          %486 = vst.msk [vmem:[#allocation3 + $0x150] sm:$0xff] %vm379, 0.0
          %487 = vst.msk [vmem:[#allocation3 + $0x158] sm:$0xff] %vm379, 0.0
          %488 = vst.msk [vmem:[#allocation3 + $0x160] sm:$0xff] %vm379, 0.0
          %489 = vst.msk [vmem:[#allocation3 + $0x168] sm:$0xff] %vm379, 0.0
          %490 = vst.msk [vmem:[#allocation3 + $0x170] sm:$0xff] %vm379, 0.0
          %491 = vst.msk [vmem:[#allocation3 + $0x178] sm:$0xff] %vm379, 0.0
          %492 = vst.msk [vmem:[#allocation3 + $0x180] sm:$0xff] %vm379, 0.0
          %493 = vst.msk [vmem:[#allocation3 + $0x188] sm:$0xff] %vm379, 0.0
          %494 = vst.msk [vmem:[#allocation3 + $0x190] sm:$0xff] %vm379, 0.0
          %495 = vst.msk [vmem:[#allocation3 + $0x198] sm:$0xff] %vm379, 0.0
          %496 = vst.msk [vmem:[#allocation3 + $0x1a0] sm:$0xff] %vm379, 0.0
          %497 = vst.msk [vmem:[#allocation3 + $0x1a8] sm:$0xff] %vm379, 0.0
          %498 = vst.msk [vmem:[#allocation3 + $0x1b0] sm:$0xff] %vm379, 0.0
          %499 = vst.msk [vmem:[#allocation3 + $0x1b8] sm:$0xff] %vm379, 0.0
          %500 = vst.msk [vmem:[#allocation3 + $0x1c0] sm:$0xff] %vm379, 0.0
          %501 = vst.msk [vmem:[#allocation3 + $0x1c8] sm:$0xff] %vm379, 0.0
          %502 = vst.msk [vmem:[#allocation3 + $0x1d0] sm:$0xff] %vm379, 0.0
          %503 = vst.msk [vmem:[#allocation3 + $0x1d8] sm:$0xff] %vm379, 0.0
          %504 = vst.msk [vmem:[#allocation3 + $0x1e0] sm:$0xff] %vm379, 0.0
          %505 = vst.msk [vmem:[#allocation3 + $0x1e8] sm:$0xff] %vm379, 0.0
          %506 = vst.msk [vmem:[#allocation3 + $0x1f0] sm:$0xff] %vm379, 0.0
          %507 = vst.msk [vmem:[#allocation3 + $0x1f8] sm:$0xff] %vm379, 0.0
          %508 = vst.msk [vmem:[#allocation4] sm:$0xff] %vm379, 0.0
          %509 = vst.msk [vmem:[#allocation4 + $0x8] sm:$0xff] %vm379, 0.0
          %510 = vst.msk [vmem:[#allocation4 + $0x10] sm:$0xff] %vm379, 0.0
          %511 = vst.msk [vmem:[#allocation4 + $0x18] sm:$0xff] %vm379, 0.0
          %512 = vst.msk [vmem:[#allocation4 + $0x20] sm:$0xff] %vm379, 0.0
          %513 = vst.msk [vmem:[#allocation4 + $0x28] sm:$0xff] %vm379, 0.0
          %514 = vst.msk [vmem:[#allocation4 + $0x30] sm:$0xff] %vm379, 0.0
          %515 = vst.msk [vmem:[#allocation4 + $0x38] sm:$0xff] %vm379, 0.0
          %516 = vst.msk [vmem:[#allocation4 + $0x40] sm:$0xff] %vm379, 0.0
          %517 = vst.msk [vmem:[#allocation4 + $0x48] sm:$0xff] %vm379, 0.0
          %518 = vst.msk [vmem:[#allocation4 + $0x50] sm:$0xff] %vm379, 0.0
          %519 = vst.msk [vmem:[#allocation4 + $0x58] sm:$0xff] %vm379, 0.0
          %520 = vst.msk [vmem:[#allocation4 + $0x60] sm:$0xff] %vm379, 0.0
          %521 = vst.msk [vmem:[#allocation4 + $0x68] sm:$0xff] %vm379, 0.0
          %522 = vst.msk [vmem:[#allocation4 + $0x70] sm:$0xff] %vm379, 0.0
          %523 = vst.msk [vmem:[#allocation4 + $0x78] sm:$0xff] %vm379, 0.0
          %524 = vst.msk [vmem:[#allocation4 + $0x80] sm:$0xff] %vm379, 0.0
          %525 = vst.msk [vmem:[#allocation4 + $0x88] sm:$0xff] %vm379, 0.0
          %526 = vst.msk [vmem:[#allocation4 + $0x90] sm:$0xff] %vm379, 0.0
          %527 = vst.msk [vmem:[#allocation4 + $0x98] sm:$0xff] %vm379, 0.0
          %528 = vst.msk [vmem:[#allocation4 + $0xa0] sm:$0xff] %vm379, 0.0
          %529 = vst.msk [vmem:[#allocation4 + $0xa8] sm:$0xff] %vm379, 0.0
          %530 = vst.msk [vmem:[#allocation4 + $0xb0] sm:$0xff] %vm379, 0.0
          %531 = vst.msk [vmem:[#allocation4 + $0xb8] sm:$0xff] %vm379, 0.0
          %532 = vst.msk [vmem:[#allocation4 + $0xc0] sm:$0xff] %vm379, 0.0
          %533 = vst.msk [vmem:[#allocation4 + $0xc8] sm:$0xff] %vm379, 0.0
          %534 = vst.msk [vmem:[#allocation4 + $0xd0] sm:$0xff] %vm379, 0.0
          %535 = vst.msk [vmem:[#allocation4 + $0xd8] sm:$0xff] %vm379, 0.0
          %536 = vst.msk [vmem:[#allocation4 + $0xe0] sm:$0xff] %vm379, 0.0
          %537 = vst.msk [vmem:[#allocation4 + $0xe8] sm:$0xff] %vm379, 0.0
          %538 = vst.msk [vmem:[#allocation4 + $0xf0] sm:$0xff] %vm379, 0.0
          %539 = vst.msk [vmem:[#allocation4 + $0xf8] sm:$0xff] %vm379, 0.0
          %540 = vst.msk [vmem:[#allocation4 + $0x100] sm:$0xff] %vm379, 0.0
          %541 = vst.msk [vmem:[#allocation4 + $0x108] sm:$0xff] %vm379, 0.0
          %542 = vst.msk [vmem:[#allocation4 + $0x110] sm:$0xff] %vm379, 0.0
          %543 = vst.msk [vmem:[#allocation4 + $0x118] sm:$0xff] %vm379, 0.0
          %544 = vst.msk [vmem:[#allocation4 + $0x120] sm:$0xff] %vm379, 0.0
          %545 = vst.msk [vmem:[#allocation4 + $0x128] sm:$0xff] %vm379, 0.0
          %546 = vst.msk [vmem:[#allocation4 + $0x130] sm:$0xff] %vm379, 0.0
          %547 = vst.msk [vmem:[#allocation4 + $0x138] sm:$0xff] %vm379, 0.0
          %548 = vst.msk [vmem:[#allocation4 + $0x140] sm:$0xff] %vm379, 0.0
          %549 = vst.msk [vmem:[#allocation4 + $0x148] sm:$0xff] %vm379, 0.0
          %550 = vst.msk [vmem:[#allocation4 + $0x150] sm:$0xff] %vm379, 0.0
          %551 = vst.msk [vmem:[#allocation4 + $0x158] sm:$0xff] %vm379, 0.0
          %552 = vst.msk [vmem:[#allocation4 + $0x160] sm:$0xff] %vm379, 0.0
          %553 = vst.msk [vmem:[#allocation4 + $0x168] sm:$0xff] %vm379, 0.0
          %554 = vst.msk [vmem:[#allocation4 + $0x170] sm:$0xff] %vm379, 0.0
          %555 = vst.msk [vmem:[#allocation4 + $0x178] sm:$0xff] %vm379, 0.0
          %556 = vst.msk [vmem:[#allocation4 + $0x180] sm:$0xff] %vm379, 0.0
          %557 = vst.msk [vmem:[#allocation4 + $0x188] sm:$0xff] %vm379, 0.0
          %558 = vst.msk [vmem:[#allocation4 + $0x190] sm:$0xff] %vm379, 0.0
          %559 = vst.msk [vmem:[#allocation4 + $0x198] sm:$0xff] %vm379, 0.0
          %560 = vst.msk [vmem:[#allocation4 + $0x1a0] sm:$0xff] %vm379, 0.0
          %561 = vst.msk [vmem:[#allocation4 + $0x1a8] sm:$0xff] %vm379, 0.0
          %562 = vst.msk [vmem:[#allocation4 + $0x1b0] sm:$0xff] %vm379, 0.0
          %563 = vst.msk [vmem:[#allocation4 + $0x1b8] sm:$0xff] %vm379, 0.0
          %564 = vst.msk [vmem:[#allocation4 + $0x1c0] sm:$0xff] %vm379, 0.0
          %565 = vst.msk [vmem:[#allocation4 + $0x1c8] sm:$0xff] %vm379, 0.0
          %566 = vst.msk [vmem:[#allocation4 + $0x1d0] sm:$0xff] %vm379, 0.0
          %567 = vst.msk [vmem:[#allocation4 + $0x1d8] sm:$0xff] %vm379, 0.0
          %568 = vst.msk [vmem:[#allocation4 + $0x1e0] sm:$0xff] %vm379, 0.0
          %569 = vst.msk [vmem:[#allocation4 + $0x1e8] sm:$0xff] %vm379, 0.0
          %570 = vst.msk [vmem:[#allocation4 + $0x1f0] sm:$0xff] %vm379, 0.0
          %571 = vst.msk [vmem:[#allocation4 + $0x1f8] sm:$0xff] %vm379, 0.0
        $region59: #{attack_forward.3} parent=50 // pred_fallthru
          _
        %v572 = vld [vmem:[%s362] sm:$0xff]
        %v573 = vld [vmem:[%s362 + $0x8] sm:$0xff]
        %v574 = vld [vmem:[%s362 + $0x10] sm:$0xff]
        %v575 = vld [vmem:[%s362 + $0x18] sm:$0xff]
        %v576 = vld [vmem:[%s362 + $0x20] sm:$0xff]
        %v577 = vld [vmem:[%s362 + $0x28] sm:$0xff]
        %v578 = vld [vmem:[%s362 + $0x30] sm:$0xff]
        %v579 = vld [vmem:[%s362 + $0x38] sm:$0xff]
        %v580 = vld [vmem:[%s362 + $0x40] sm:$0xff]
        %v581 = vld [vmem:[%s362 + $0x48] sm:$0xff]
        %v582 = vld [vmem:[%s362 + $0x50] sm:$0xff]
        %v583 = vld [vmem:[%s362 + $0x58] sm:$0xff]
        %v584 = vld [vmem:[%s362 + $0x60] sm:$0xff]
        %v585 = vld [vmem:[%s362 + $0x68] sm:$0xff]
        %v586 = vld [vmem:[%s362 + $0x70] sm:$0xff]
        %v587 = vld [vmem:[%s362 + $0x78] sm:$0xff]
        %v588 = vld [vmem:[%s362 + $0x80] sm:$0xff]
        %v589 = vld [vmem:[%s362 + $0x88] sm:$0xff]
        %v590 = vld [vmem:[%s362 + $0x90] sm:$0xff]
        %v591 = vld [vmem:[%s362 + $0x98] sm:$0xff]
        %v592 = vld [vmem:[%s362 + $0xa0] sm:$0xff]
        %v593 = vld [vmem:[%s362 + $0xa8] sm:$0xff]
        %v594 = vld [vmem:[%s362 + $0xb0] sm:$0xff]
        %v595 = vld [vmem:[%s362 + $0xb8] sm:$0xff]
        %v596 = vld [vmem:[%s362 + $0xc0] sm:$0xff]
        %v597 = vld [vmem:[%s362 + $0xc8] sm:$0xff]
        %v598 = vld [vmem:[%s362 + $0xd0] sm:$0xff]
        %v599 = vld [vmem:[%s362 + $0xd8] sm:$0xff]
        %v600 = vld [vmem:[%s362 + $0xe0] sm:$0xff]
        %v601 = vld [vmem:[%s362 + $0xe8] sm:$0xff]
        %v602 = vld [vmem:[%s362 + $0xf0] sm:$0xff]
        %v603 = vld [vmem:[%s362 + $0xf8] sm:$0xff]
        %v604 = vld [vmem:[%s362 + $0x100] sm:$0xff]
        %v605 = vld [vmem:[%s362 + $0x108] sm:$0xff]
        %v606 = vld [vmem:[%s362 + $0x110] sm:$0xff]
        %v607 = vld [vmem:[%s362 + $0x118] sm:$0xff]
        %v608 = vld [vmem:[%s362 + $0x120] sm:$0xff]
        %v609 = vld [vmem:[%s362 + $0x128] sm:$0xff]
        %v610 = vld [vmem:[%s362 + $0x130] sm:$0xff]
        %v611 = vld [vmem:[%s362 + $0x138] sm:$0xff]
        %v612 = vld [vmem:[%s362 + $0x140] sm:$0xff]
        %v613 = vld [vmem:[%s362 + $0x148] sm:$0xff]
        %v614 = vld [vmem:[%s362 + $0x150] sm:$0xff]
        %v615 = vld [vmem:[%s362 + $0x158] sm:$0xff]
        %v616 = vld [vmem:[%s362 + $0x160] sm:$0xff]
        %v617 = vld [vmem:[%s362 + $0x168] sm:$0xff]
        %v618 = vld [vmem:[%s362 + $0x170] sm:$0xff]
        %v619 = vld [vmem:[%s362 + $0x178] sm:$0xff]
        %v620 = vld [vmem:[%s362 + $0x180] sm:$0xff]
        %v621 = vld [vmem:[%s362 + $0x188] sm:$0xff]
        %v622 = vld [vmem:[%s362 + $0x190] sm:$0xff]
        %v623 = vld [vmem:[%s362 + $0x198] sm:$0xff]
        %v624 = vld [vmem:[%s362 + $0x1a0] sm:$0xff]
        %v625 = vld [vmem:[%s362 + $0x1a8] sm:$0xff]
        %v626 = vld [vmem:[%s362 + $0x1b0] sm:$0xff]
        %v627 = vld [vmem:[%s362 + $0x1b8] sm:$0xff]
        %v628 = vld [vmem:[%s362 + $0x1c0] sm:$0xff]
        %v629 = vld [vmem:[%s362 + $0x1c8] sm:$0xff]
        %v630 = vld [vmem:[%s362 + $0x1d0] sm:$0xff]
        %v631 = vld [vmem:[%s362 + $0x1d8] sm:$0xff]
        %v632 = vld [vmem:[%s362 + $0x1e0] sm:$0xff]
        %v633 = vld [vmem:[%s362 + $0x1e8] sm:$0xff]
        %v634 = vld [vmem:[%s362 + $0x1f0] sm:$0xff]
        %v635 = vld [vmem:[%s362 + $0x1f8] sm:$0xff]
        %v636 = vld [vmem:[%s326] sm:$0xff]
        %v637 = vld [vmem:[%s326 + $0x8] sm:$0xff]
        %v638 = vld [vmem:[%s326 + $0x10] sm:$0xff]
        %v639 = vld [vmem:[%s326 + $0x18] sm:$0xff]
        %v640 = vld [vmem:[%s326 + $0x20] sm:$0xff]
        %v641 = vld [vmem:[%s326 + $0x28] sm:$0xff]
        %v642 = vld [vmem:[%s326 + $0x30] sm:$0xff]
        %v643 = vld [vmem:[%s326 + $0x38] sm:$0xff]
        %v644 = vld [vmem:[%s326 + $0x40] sm:$0xff]
        %v645 = vld [vmem:[%s326 + $0x48] sm:$0xff]
        %v646 = vld [vmem:[%s326 + $0x50] sm:$0xff]
        %v647 = vld [vmem:[%s326 + $0x58] sm:$0xff]
        %v648 = vld [vmem:[%s326 + $0x60] sm:$0xff]
        %v649 = vld [vmem:[%s326 + $0x68] sm:$0xff]
        %v650 = vld [vmem:[%s326 + $0x70] sm:$0xff]
        %v651 = vld [vmem:[%s326 + $0x78] sm:$0xff]
        %v652 = vld [vmem:[%s326 + $0x80] sm:$0xff]
        %v653 = vld [vmem:[%s326 + $0x88] sm:$0xff]
        %v654 = vld [vmem:[%s326 + $0x90] sm:$0xff]
        %v655 = vld [vmem:[%s326 + $0x98] sm:$0xff]
        %v656 = vld [vmem:[%s326 + $0xa0] sm:$0xff]
        %v657 = vld [vmem:[%s326 + $0xa8] sm:$0xff]
        %v658 = vld [vmem:[%s326 + $0xb0] sm:$0xff]
        %v659 = vld [vmem:[%s326 + $0xb8] sm:$0xff]
        %v660 = vld [vmem:[%s326 + $0xc0] sm:$0xff]
        %v661 = vld [vmem:[%s326 + $0xc8] sm:$0xff]
        %v662 = vld [vmem:[%s326 + $0xd0] sm:$0xff]
        %v663 = vld [vmem:[%s326 + $0xd8] sm:$0xff]
        %v664 = vld [vmem:[%s326 + $0xe0] sm:$0xff]
        %v665 = vld [vmem:[%s326 + $0xe8] sm:$0xff]
        %v666 = vld [vmem:[%s326 + $0xf0] sm:$0xff]
        %v667 = vld [vmem:[%s326 + $0xf8] sm:$0xff]
        %v668 = vld [vmem:[%s326 + $0x100] sm:$0xff]
        %v669 = vld [vmem:[%s326 + $0x108] sm:$0xff]
        %v670 = vld [vmem:[%s326 + $0x110] sm:$0xff]
        %v671 = vld [vmem:[%s326 + $0x118] sm:$0xff]
        %v672 = vld [vmem:[%s326 + $0x120] sm:$0xff]
        %v673 = vld [vmem:[%s326 + $0x128] sm:$0xff]
        %v674 = vld [vmem:[%s326 + $0x130] sm:$0xff]
        %v675 = vld [vmem:[%s326 + $0x138] sm:$0xff]
        %v676 = vld [vmem:[%s326 + $0x140] sm:$0xff]
        %v677 = vld [vmem:[%s326 + $0x148] sm:$0xff]
        %v678 = vld [vmem:[%s326 + $0x150] sm:$0xff]
        %v679 = vld [vmem:[%s326 + $0x158] sm:$0xff]
        %v680 = vld [vmem:[%s326 + $0x160] sm:$0xff]
        %v681 = vld [vmem:[%s326 + $0x168] sm:$0xff]
        %v682 = vld [vmem:[%s326 + $0x170] sm:$0xff]
        %v683 = vld [vmem:[%s326 + $0x178] sm:$0xff]
        %v684 = vld [vmem:[%s326 + $0x180] sm:$0xff]
        %v685 = vld [vmem:[%s326 + $0x188] sm:$0xff]
        %v686 = vld [vmem:[%s326 + $0x190] sm:$0xff]
        %v687 = vld [vmem:[%s326 + $0x198] sm:$0xff]
        %v688 = vld [vmem:[%s326 + $0x1a0] sm:$0xff]
        %v689 = vld [vmem:[%s326 + $0x1a8] sm:$0xff]
        %v690 = vld [vmem:[%s326 + $0x1b0] sm:$0xff]
        %v691 = vld [vmem:[%s326 + $0x1b8] sm:$0xff]
        %v692 = vld [vmem:[%s326 + $0x1c0] sm:$0xff]
        %v693 = vld [vmem:[%s326 + $0x1c8] sm:$0xff]
        %v694 = vld [vmem:[%s326 + $0x1d0] sm:$0xff]
        %v695 = vld [vmem:[%s326 + $0x1d8] sm:$0xff]
        %v696 = vld [vmem:[%s326 + $0x1e0] sm:$0xff]
        %v697 = vld [vmem:[%s326 + $0x1e8] sm:$0xff]
        %v698 = vld [vmem:[%s326 + $0x1f0] sm:$0xff]
        %v699 = vld [vmem:[%s326 + $0x1f8] sm:$0xff]
        %v764 = vunpack.c.l.b16 %v572
        %v765 = vunpack.c.h.b16 %v572
        %v766 = vunpack.c.l.b16 %v573
        %v767 = vunpack.c.h.b16 %v573
        %v768 = vunpack.c.l.b16 %v574
        %v769 = vunpack.c.h.b16 %v574
        %v770 = vunpack.c.l.b16 %v575
        %v771 = vunpack.c.h.b16 %v575
        %v772 = vunpack.c.l.b16 %v576
        %v773 = vunpack.c.h.b16 %v576
        %v774 = vunpack.c.l.b16 %v577
        %v775 = vunpack.c.h.b16 %v577
        %v776 = vunpack.c.l.b16 %v578
        %v777 = vunpack.c.h.b16 %v578
        %v778 = vunpack.c.l.b16 %v579
        %v779 = vunpack.c.h.b16 %v579
        %v780 = vunpack.c.l.b16 %v580
        %v781 = vunpack.c.h.b16 %v580
        %v782 = vunpack.c.l.b16 %v581
        %v783 = vunpack.c.h.b16 %v581
        %v784 = vunpack.c.l.b16 %v582
        %v785 = vunpack.c.h.b16 %v582
        %v786 = vunpack.c.l.b16 %v583
        %v787 = vunpack.c.h.b16 %v583
        %v788 = vunpack.c.l.b16 %v584
        %v789 = vunpack.c.h.b16 %v584
        %v790 = vunpack.c.l.b16 %v585
        %v791 = vunpack.c.h.b16 %v585
        %v792 = vunpack.c.l.b16 %v586
        %v793 = vunpack.c.h.b16 %v586
        %v794 = vunpack.c.l.b16 %v587
        %v795 = vunpack.c.h.b16 %v587
        %v796 = vunpack.c.l.b16 %v588
        %v797 = vunpack.c.h.b16 %v588
        %v798 = vunpack.c.l.b16 %v589
        %v799 = vunpack.c.h.b16 %v589
        %v800 = vunpack.c.l.b16 %v590
        %v801 = vunpack.c.h.b16 %v590
        %v802 = vunpack.c.l.b16 %v591
        %v803 = vunpack.c.h.b16 %v591
        %v804 = vunpack.c.l.b16 %v592
        %v805 = vunpack.c.h.b16 %v592
        %v806 = vunpack.c.l.b16 %v593
        %v807 = vunpack.c.h.b16 %v593
        %v808 = vunpack.c.l.b16 %v594
        %v809 = vunpack.c.h.b16 %v594
        %v810 = vunpack.c.l.b16 %v595
        %v811 = vunpack.c.h.b16 %v595
        %v812 = vunpack.c.l.b16 %v596
        %v813 = vunpack.c.h.b16 %v596
        %v814 = vunpack.c.l.b16 %v597
        %v815 = vunpack.c.h.b16 %v597
        %v816 = vunpack.c.l.b16 %v598
        %v817 = vunpack.c.h.b16 %v598
        %v818 = vunpack.c.l.b16 %v599
        %v819 = vunpack.c.h.b16 %v599
        %v820 = vunpack.c.l.b16 %v600
        %v821 = vunpack.c.h.b16 %v600
        %v822 = vunpack.c.l.b16 %v601
        %v823 = vunpack.c.h.b16 %v601
        %v824 = vunpack.c.l.b16 %v602
        %v825 = vunpack.c.h.b16 %v602
        %v826 = vunpack.c.l.b16 %v603
        %v827 = vunpack.c.h.b16 %v603
        %v828 = vunpack.c.l.b16 %v604
        %v829 = vunpack.c.h.b16 %v604
        %v830 = vunpack.c.l.b16 %v605
        %v831 = vunpack.c.h.b16 %v605
        %v832 = vunpack.c.l.b16 %v606
        %v833 = vunpack.c.h.b16 %v606
        %v834 = vunpack.c.l.b16 %v607
        %v835 = vunpack.c.h.b16 %v607
        %v836 = vunpack.c.l.b16 %v608
        %v837 = vunpack.c.h.b16 %v608
        %v838 = vunpack.c.l.b16 %v609
        %v839 = vunpack.c.h.b16 %v609
        %v840 = vunpack.c.l.b16 %v610
        %v841 = vunpack.c.h.b16 %v610
        %v842 = vunpack.c.l.b16 %v611
        %v843 = vunpack.c.h.b16 %v611
        %v844 = vunpack.c.l.b16 %v612
        %v845 = vunpack.c.h.b16 %v612
        %v846 = vunpack.c.l.b16 %v613
        %v847 = vunpack.c.h.b16 %v613
        %v848 = vunpack.c.l.b16 %v614
        %v849 = vunpack.c.h.b16 %v614
        %v850 = vunpack.c.l.b16 %v615
        %v851 = vunpack.c.h.b16 %v615
        %v852 = vunpack.c.l.b16 %v616
        %v853 = vunpack.c.h.b16 %v616
        %v854 = vunpack.c.l.b16 %v617
        %v855 = vunpack.c.h.b16 %v617
        %v856 = vunpack.c.l.b16 %v618
        %v857 = vunpack.c.h.b16 %v618
        %v858 = vunpack.c.l.b16 %v619
        %v859 = vunpack.c.h.b16 %v619
        %v860 = vunpack.c.l.b16 %v620
        %v861 = vunpack.c.h.b16 %v620
        %v862 = vunpack.c.l.b16 %v621
        %v863 = vunpack.c.h.b16 %v621
        %v864 = vunpack.c.l.b16 %v622
        %v865 = vunpack.c.h.b16 %v622
        %v866 = vunpack.c.l.b16 %v623
        %v867 = vunpack.c.h.b16 %v623
        %v868 = vunpack.c.l.b16 %v624
        %v869 = vunpack.c.h.b16 %v624
        %v870 = vunpack.c.l.b16 %v625
        %v871 = vunpack.c.h.b16 %v625
        %v872 = vunpack.c.l.b16 %v626
        %v873 = vunpack.c.h.b16 %v626
        %v874 = vunpack.c.l.b16 %v627
        %v875 = vunpack.c.h.b16 %v627
        %v876 = vunpack.c.l.b16 %v628
        %v877 = vunpack.c.h.b16 %v628
        %v878 = vunpack.c.l.b16 %v629
        %v879 = vunpack.c.h.b16 %v629
        %v880 = vunpack.c.l.b16 %v630
        %v881 = vunpack.c.h.b16 %v630
        %v882 = vunpack.c.l.b16 %v631
        %v883 = vunpack.c.h.b16 %v631
        %v884 = vunpack.c.l.b16 %v632
        %v885 = vunpack.c.h.b16 %v632
        %v886 = vunpack.c.l.b16 %v633
        %v887 = vunpack.c.h.b16 %v633
        %v888 = vunpack.c.l.b16 %v634
        %v889 = vunpack.c.h.b16 %v634
        %v890 = vunpack.c.l.b16 %v635
        %v891 = vunpack.c.h.b16 %v635
        %v892 = vpack.c.b16 %v766, %v764
        %v893 = vpack.c.b16 %v767, %v765
        %v894 = vpack.c.b16 %v770, %v768
        %v895 = vpack.c.b16 %v771, %v769
        %v896 = vpack.c.b16 %v774, %v772
        %v897 = vpack.c.b16 %v775, %v773
        %v898 = vpack.c.b16 %v778, %v776
        %v899 = vpack.c.b16 %v779, %v777
        %v900 = vpack.c.b16 %v782, %v780
        %v901 = vpack.c.b16 %v783, %v781
        %v902 = vpack.c.b16 %v786, %v784
        %v903 = vpack.c.b16 %v787, %v785
        %v904 = vpack.c.b16 %v790, %v788
        %v905 = vpack.c.b16 %v791, %v789
        %v906 = vpack.c.b16 %v794, %v792
        %v907 = vpack.c.b16 %v795, %v793
        %v908 = vpack.c.b16 %v798, %v796
        %v909 = vpack.c.b16 %v799, %v797
        %v910 = vpack.c.b16 %v802, %v800
        %v911 = vpack.c.b16 %v803, %v801
        %v912 = vpack.c.b16 %v806, %v804
        %v913 = vpack.c.b16 %v807, %v805
        %v914 = vpack.c.b16 %v810, %v808
        %v915 = vpack.c.b16 %v811, %v809
        %v916 = vpack.c.b16 %v814, %v812
        %v917 = vpack.c.b16 %v815, %v813
        %v918 = vpack.c.b16 %v818, %v816
        %v919 = vpack.c.b16 %v819, %v817
        %v920 = vpack.c.b16 %v822, %v820
        %v921 = vpack.c.b16 %v823, %v821
        %v922 = vpack.c.b16 %v826, %v824
        %v923 = vpack.c.b16 %v827, %v825
        %v924 = vpack.c.b16 %v830, %v828
        %v925 = vpack.c.b16 %v831, %v829
        %v926 = vpack.c.b16 %v834, %v832
        %v927 = vpack.c.b16 %v835, %v833
        %v928 = vpack.c.b16 %v838, %v836
        %v929 = vpack.c.b16 %v839, %v837
        %v930 = vpack.c.b16 %v842, %v840
        %v931 = vpack.c.b16 %v843, %v841
        %v932 = vpack.c.b16 %v846, %v844
        %v933 = vpack.c.b16 %v847, %v845
        %v934 = vpack.c.b16 %v850, %v848
        %v935 = vpack.c.b16 %v851, %v849
        %v936 = vpack.c.b16 %v854, %v852
        %v937 = vpack.c.b16 %v855, %v853
        %v938 = vpack.c.b16 %v858, %v856
        %v939 = vpack.c.b16 %v859, %v857
        %v940 = vpack.c.b16 %v862, %v860
        %v941 = vpack.c.b16 %v863, %v861
        %v942 = vpack.c.b16 %v866, %v864
        %v943 = vpack.c.b16 %v867, %v865
        %v944 = vpack.c.b16 %v870, %v868
        %v945 = vpack.c.b16 %v871, %v869
        %v946 = vpack.c.b16 %v874, %v872
        %v947 = vpack.c.b16 %v875, %v873
        %v948 = vpack.c.b16 %v878, %v876
        %v949 = vpack.c.b16 %v879, %v877
        %v950 = vpack.c.b16 %v882, %v880
        %v951 = vpack.c.b16 %v883, %v881
        %v952 = vpack.c.b16 %v886, %v884
        %v953 = vpack.c.b16 %v887, %v885
        %v954 = vpack.c.b16 %v890, %v888
        %v955 = vpack.c.b16 %v891, %v889
        %v1084 = vunpack.c.l.b16 %v636
        %v1085 = vunpack.c.h.b16 %v636
        %v1086 = vunpack.c.l.b16 %v637
        %v1087 = vunpack.c.h.b16 %v637
        %v1088 = vunpack.c.l.b16 %v638
        %v1089 = vunpack.c.h.b16 %v638
        %v1090 = vunpack.c.l.b16 %v639
        %v1091 = vunpack.c.h.b16 %v639
        %v1092 = vunpack.c.l.b16 %v640
        %v1093 = vunpack.c.h.b16 %v640
        %v1094 = vunpack.c.l.b16 %v641
        %v1095 = vunpack.c.h.b16 %v641
        %v1096 = vunpack.c.l.b16 %v642
        %v1097 = vunpack.c.h.b16 %v642
        %v1098 = vunpack.c.l.b16 %v643
        %v1099 = vunpack.c.h.b16 %v643
        %v1100 = vunpack.c.l.b16 %v644
        %v1101 = vunpack.c.h.b16 %v644
        %v1102 = vunpack.c.l.b16 %v645
        %v1103 = vunpack.c.h.b16 %v645
        %v1104 = vunpack.c.l.b16 %v646
        %v1105 = vunpack.c.h.b16 %v646
        %v1106 = vunpack.c.l.b16 %v647
        %v1107 = vunpack.c.h.b16 %v647
        %v1108 = vunpack.c.l.b16 %v648
        %v1109 = vunpack.c.h.b16 %v648
        %v1110 = vunpack.c.l.b16 %v649
        %v1111 = vunpack.c.h.b16 %v649
        %v1112 = vunpack.c.l.b16 %v650
        %v1113 = vunpack.c.h.b16 %v650
        %v1114 = vunpack.c.l.b16 %v651
        %v1115 = vunpack.c.h.b16 %v651
        %v1116 = vunpack.c.l.b16 %v652
        %v1117 = vunpack.c.h.b16 %v652
        %v1118 = vunpack.c.l.b16 %v653
        %v1119 = vunpack.c.h.b16 %v653
        %v1120 = vunpack.c.l.b16 %v654
        %v1121 = vunpack.c.h.b16 %v654
        %v1122 = vunpack.c.l.b16 %v655
        %v1123 = vunpack.c.h.b16 %v655
        %v1124 = vunpack.c.l.b16 %v656
        %v1125 = vunpack.c.h.b16 %v656
        %v1126 = vunpack.c.l.b16 %v657
        %v1127 = vunpack.c.h.b16 %v657
        %v1128 = vunpack.c.l.b16 %v658
        %v1129 = vunpack.c.h.b16 %v658
        %v1130 = vunpack.c.l.b16 %v659
        %v1131 = vunpack.c.h.b16 %v659
        %v1132 = vunpack.c.l.b16 %v660
        %v1133 = vunpack.c.h.b16 %v660
        %v1134 = vunpack.c.l.b16 %v661
        %v1135 = vunpack.c.h.b16 %v661
        %v1136 = vunpack.c.l.b16 %v662
        %v1137 = vunpack.c.h.b16 %v662
        %v1138 = vunpack.c.l.b16 %v663
        %v1139 = vunpack.c.h.b16 %v663
        %v1140 = vunpack.c.l.b16 %v664
        %v1141 = vunpack.c.h.b16 %v664
        %v1142 = vunpack.c.l.b16 %v665
        %v1143 = vunpack.c.h.b16 %v665
        %v1144 = vunpack.c.l.b16 %v666
        %v1145 = vunpack.c.h.b16 %v666
        %v1146 = vunpack.c.l.b16 %v667
        %v1147 = vunpack.c.h.b16 %v667
        %v1148 = vunpack.c.l.b16 %v668
        %v1149 = vunpack.c.h.b16 %v668
        %v1150 = vunpack.c.l.b16 %v669
        %v1151 = vunpack.c.h.b16 %v669
        %v1152 = vunpack.c.l.b16 %v670
        %v1153 = vunpack.c.h.b16 %v670
        %v1154 = vunpack.c.l.b16 %v671
        %v1155 = vunpack.c.h.b16 %v671
        %v1156 = vunpack.c.l.b16 %v672
        %v1157 = vunpack.c.h.b16 %v672
        %v1158 = vunpack.c.l.b16 %v673
        %v1159 = vunpack.c.h.b16 %v673
        %v1160 = vunpack.c.l.b16 %v674
        %v1161 = vunpack.c.h.b16 %v674
        %v1162 = vunpack.c.l.b16 %v675
        %v1163 = vunpack.c.h.b16 %v675
        %v1164 = vunpack.c.l.b16 %v676
        %v1165 = vunpack.c.h.b16 %v676
        %v1166 = vunpack.c.l.b16 %v677
        %v1167 = vunpack.c.h.b16 %v677
        %v1168 = vunpack.c.l.b16 %v678
        %v1169 = vunpack.c.h.b16 %v678
        %v1170 = vunpack.c.l.b16 %v679
        %v1171 = vunpack.c.h.b16 %v679
        %v1172 = vunpack.c.l.b16 %v680
        %v1173 = vunpack.c.h.b16 %v680
        %v1174 = vunpack.c.l.b16 %v681
        %v1175 = vunpack.c.h.b16 %v681
        %v1176 = vunpack.c.l.b16 %v682
        %v1177 = vunpack.c.h.b16 %v682
        %v1178 = vunpack.c.l.b16 %v683
        %v1179 = vunpack.c.h.b16 %v683
        %v1180 = vunpack.c.l.b16 %v684
        %v1181 = vunpack.c.h.b16 %v684
        %v1182 = vunpack.c.l.b16 %v685
        %v1183 = vunpack.c.h.b16 %v685
        %v1184 = vunpack.c.l.b16 %v686
        %v1185 = vunpack.c.h.b16 %v686
        %v1186 = vunpack.c.l.b16 %v687
        %v1187 = vunpack.c.h.b16 %v687
        %v1188 = vunpack.c.l.b16 %v688
        %v1189 = vunpack.c.h.b16 %v688
        %v1190 = vunpack.c.l.b16 %v689
        %v1191 = vunpack.c.h.b16 %v689
        %v1192 = vunpack.c.l.b16 %v690
        %v1193 = vunpack.c.h.b16 %v690
        %v1194 = vunpack.c.l.b16 %v691
        %v1195 = vunpack.c.h.b16 %v691
        %v1196 = vunpack.c.l.b16 %v692
        %v1197 = vunpack.c.h.b16 %v692
        %v1198 = vunpack.c.l.b16 %v693
        %v1199 = vunpack.c.h.b16 %v693
        %v1200 = vunpack.c.l.b16 %v694
        %v1201 = vunpack.c.h.b16 %v694
        %v1202 = vunpack.c.l.b16 %v695
        %v1203 = vunpack.c.h.b16 %v695
        %v1204 = vunpack.c.l.b16 %v696
        %v1205 = vunpack.c.h.b16 %v696
        %v1206 = vunpack.c.l.b16 %v697
        %v1207 = vunpack.c.h.b16 %v697
        %v1208 = vunpack.c.l.b16 %v698
        %v1209 = vunpack.c.h.b16 %v698
        %v1210 = vunpack.c.l.b16 %v699
        %v1211 = vunpack.c.h.b16 %v699
        %v1212 = vpack.c.b16 %v1088, %v1084
        %v1213 = vpack.c.b16 %v1089, %v1085
        %v1214 = vpack.c.b16 %v1090, %v1086
        %v1215 = vpack.c.b16 %v1091, %v1087
        %v1216 = vpack.c.b16 %v1096, %v1092
        %v1217 = vpack.c.b16 %v1097, %v1093
        %v1218 = vpack.c.b16 %v1098, %v1094
        %v1219 = vpack.c.b16 %v1099, %v1095
        %v1220 = vpack.c.b16 %v1104, %v1100
        %v1221 = vpack.c.b16 %v1105, %v1101
        %v1222 = vpack.c.b16 %v1106, %v1102
        %v1223 = vpack.c.b16 %v1107, %v1103
        %v1224 = vpack.c.b16 %v1112, %v1108
        %v1225 = vpack.c.b16 %v1113, %v1109
        %v1226 = vpack.c.b16 %v1114, %v1110
        %v1227 = vpack.c.b16 %v1115, %v1111
        %v1228 = vpack.c.b16 %v1120, %v1116
        %v1229 = vpack.c.b16 %v1121, %v1117
        %v1230 = vpack.c.b16 %v1122, %v1118
        %v1231 = vpack.c.b16 %v1123, %v1119
        %v1232 = vpack.c.b16 %v1128, %v1124
        %v1233 = vpack.c.b16 %v1129, %v1125
        %v1234 = vpack.c.b16 %v1130, %v1126
        %v1235 = vpack.c.b16 %v1131, %v1127
        %v1236 = vpack.c.b16 %v1136, %v1132
        %v1237 = vpack.c.b16 %v1137, %v1133
        %v1238 = vpack.c.b16 %v1138, %v1134
        %v1239 = vpack.c.b16 %v1139, %v1135
        %v1240 = vpack.c.b16 %v1144, %v1140
        %v1241 = vpack.c.b16 %v1145, %v1141
        %v1242 = vpack.c.b16 %v1146, %v1142
        %v1243 = vpack.c.b16 %v1147, %v1143
        %v1244 = vpack.c.b16 %v1152, %v1148
        %v1245 = vpack.c.b16 %v1153, %v1149
        %v1246 = vpack.c.b16 %v1154, %v1150
        %v1247 = vpack.c.b16 %v1155, %v1151
        %v1248 = vpack.c.b16 %v1160, %v1156
        %v1249 = vpack.c.b16 %v1161, %v1157
        %v1250 = vpack.c.b16 %v1162, %v1158
        %v1251 = vpack.c.b16 %v1163, %v1159
        %v1252 = vpack.c.b16 %v1168, %v1164
        %v1253 = vpack.c.b16 %v1169, %v1165
        %v1254 = vpack.c.b16 %v1170, %v1166
        %v1255 = vpack.c.b16 %v1171, %v1167
        %v1256 = vpack.c.b16 %v1176, %v1172
        %v1257 = vpack.c.b16 %v1177, %v1173
        %v1258 = vpack.c.b16 %v1178, %v1174
        %v1259 = vpack.c.b16 %v1179, %v1175
        %v1260 = vpack.c.b16 %v1184, %v1180
        %v1261 = vpack.c.b16 %v1185, %v1181
        %v1262 = vpack.c.b16 %v1186, %v1182
        %v1263 = vpack.c.b16 %v1187, %v1183
        %v1264 = vpack.c.b16 %v1192, %v1188
        %v1265 = vpack.c.b16 %v1193, %v1189
        %v1266 = vpack.c.b16 %v1194, %v1190
        %v1267 = vpack.c.b16 %v1195, %v1191
        %v1268 = vpack.c.b16 %v1200, %v1196
        %v1269 = vpack.c.b16 %v1201, %v1197
        %v1270 = vpack.c.b16 %v1202, %v1198
        %v1271 = vpack.c.b16 %v1203, %v1199
        %v1272 = vpack.c.b16 %v1208, %v1204
        %v1273 = vpack.c.b16 %v1209, %v1205
        %v1274 = vpack.c.b16 %v1210, %v1206
        %v1275 = vpack.c.b16 %v1211, %v1207
        %1340 = vmatpush.bf16.msra.mxu0 %v1240
        %1341 = vmatpush.bf16.msra.mxu0 %v1236
        %1342 = vmatpush.bf16.msra.mxu0 %v1232
        %1343 = vmatpush.bf16.msra.mxu0 %v1228
        %1344 = vmatpush.bf16.msra.mxu0 %v1224
        %1345 = vmatpush.bf16.msra.mxu0 %v1220
        %1346 = vmatpush.bf16.msra.mxu0 %v1216
        %1347 = vmatpush.bf16.msra.mxu0 %v1212
        %1348 = vmatmul.bf16.gmra.mxu0 %v892
        %v1349 = vpop.f32.mrf.mxu0
        %v1350 = vadd.f32 0.0, %v1349
        %v1351 = vpop.f32.mrf.mxu0
        %v1352 = vadd.f32 0.0, %v1351
        %1353 = vmatmul.bf16.gmra.mxu0 %v894
        %v1354 = vpop.f32.mrf.mxu0
        %v1355 = vadd.f32 0.0, %v1354
        %v1356 = vpop.f32.mrf.mxu0
        %v1357 = vadd.f32 0.0, %v1356
        %1358 = vmatmul.bf16.gmra.mxu0 %v896
        %v1359 = vpop.f32.mrf.mxu0
        %v1360 = vadd.f32 0.0, %v1359
        %v1361 = vpop.f32.mrf.mxu0
        %v1362 = vadd.f32 0.0, %v1361
        %1363 = vmatmul.bf16.gmra.mxu0 %v898
        %v1364 = vpop.f32.mrf.mxu0
        %v1365 = vadd.f32 0.0, %v1364
        %v1366 = vpop.f32.mrf.mxu0
        %v1367 = vadd.f32 0.0, %v1366
        %1368 = vmatmul.bf16.gmra.mxu0 %v900
        %v1369 = vpop.f32.mrf.mxu0
        %v1370 = vadd.f32 0.0, %v1369
        %v1371 = vpop.f32.mrf.mxu0
        %v1372 = vadd.f32 0.0, %v1371
        %1373 = vmatmul.bf16.gmra.mxu0 %v902
        %v1374 = vpop.f32.mrf.mxu0
        %v1375 = vadd.f32 0.0, %v1374
        %v1376 = vpop.f32.mrf.mxu0
        %v1377 = vadd.f32 0.0, %v1376
        %1378 = vmatmul.bf16.gmra.mxu0 %v904
        %v1379 = vpop.f32.mrf.mxu0
        %v1380 = vadd.f32 0.0, %v1379
        %v1381 = vpop.f32.mrf.mxu0
        %v1382 = vadd.f32 0.0, %v1381
        %1383 = vmatmul.bf16.gmra.mxu0 %v906
        %v1384 = vpop.f32.mrf.mxu0
        %v1385 = vadd.f32 0.0, %v1384
        %v1386 = vpop.f32.mrf.mxu0
        %v1387 = vadd.f32 0.0, %v1386
        %1388 = vmatmul.bf16.gmra.mxu0 %v908
        %v1389 = vpop.f32.mrf.mxu0
        %v1390 = vadd.f32 0.0, %v1389
        %v1391 = vpop.f32.mrf.mxu0
        %v1392 = vadd.f32 0.0, %v1391
        %1393 = vmatmul.bf16.gmra.mxu0 %v910
        %v1394 = vpop.f32.mrf.mxu0
        %v1395 = vadd.f32 0.0, %v1394
        %v1396 = vpop.f32.mrf.mxu0
        %v1397 = vadd.f32 0.0, %v1396
        %1398 = vmatmul.bf16.gmra.mxu0 %v912
        %v1399 = vpop.f32.mrf.mxu0
        %v1400 = vadd.f32 0.0, %v1399
        %v1401 = vpop.f32.mrf.mxu0
        %v1402 = vadd.f32 0.0, %v1401
        %1403 = vmatmul.bf16.gmra.mxu0 %v914
        %v1404 = vpop.f32.mrf.mxu0
        %v1405 = vadd.f32 0.0, %v1404
        %v1406 = vpop.f32.mrf.mxu0
        %v1407 = vadd.f32 0.0, %v1406
        %1408 = vmatmul.bf16.gmra.mxu0 %v916
        %v1409 = vpop.f32.mrf.mxu0
        %v1410 = vadd.f32 0.0, %v1409
        %v1411 = vpop.f32.mrf.mxu0
        %v1412 = vadd.f32 0.0, %v1411
        %1413 = vmatmul.bf16.gmra.mxu0 %v918
        %v1414 = vpop.f32.mrf.mxu0
        %v1415 = vadd.f32 0.0, %v1414
        %v1416 = vpop.f32.mrf.mxu0
        %v1417 = vadd.f32 0.0, %v1416
        %1418 = vmatmul.bf16.gmra.mxu0 %v920
        %v1419 = vpop.f32.mrf.mxu0
        %v1420 = vadd.f32 0.0, %v1419
        %v1421 = vpop.f32.mrf.mxu0
        %v1422 = vadd.f32 0.0, %v1421
        %1423 = vmatmul.bf16.gmra.mxu0 %v922
        %v1424 = vpop.f32.mrf.mxu0
        %v1425 = vadd.f32 0.0, %v1424
        %v1426 = vpop.f32.mrf.mxu0
        %v1427 = vadd.f32 0.0, %v1426
        %1428 = vmatmul.bf16.gmra.mxu0 %v924
        %v1429 = vpop.f32.mrf.mxu0
        %v1430 = vadd.f32 0.0, %v1429
        %v1431 = vpop.f32.mrf.mxu0
        %v1432 = vadd.f32 0.0, %v1431
        %1433 = vmatmul.bf16.gmra.mxu0 %v926
        %v1434 = vpop.f32.mrf.mxu0
        %v1435 = vadd.f32 0.0, %v1434
        %v1436 = vpop.f32.mrf.mxu0
        %v1437 = vadd.f32 0.0, %v1436
        %1438 = vmatmul.bf16.gmra.mxu0 %v928
        %v1439 = vpop.f32.mrf.mxu0
        %v1440 = vadd.f32 0.0, %v1439
        %v1441 = vpop.f32.mrf.mxu0
        %v1442 = vadd.f32 0.0, %v1441
        %1443 = vmatmul.bf16.gmra.mxu0 %v930
        %v1444 = vpop.f32.mrf.mxu0
        %v1445 = vadd.f32 0.0, %v1444
        %v1446 = vpop.f32.mrf.mxu0
        %v1447 = vadd.f32 0.0, %v1446
        %1448 = vmatmul.bf16.gmra.mxu0 %v932
        %v1449 = vpop.f32.mrf.mxu0
        %v1450 = vadd.f32 0.0, %v1449
        %v1451 = vpop.f32.mrf.mxu0
        %v1452 = vadd.f32 0.0, %v1451
        %1453 = vmatmul.bf16.gmra.mxu0 %v934
        %v1454 = vpop.f32.mrf.mxu0
        %v1455 = vadd.f32 0.0, %v1454
        %v1456 = vpop.f32.mrf.mxu0
        %v1457 = vadd.f32 0.0, %v1456
        %1458 = vmatmul.bf16.gmra.mxu0 %v936
        %v1459 = vpop.f32.mrf.mxu0
        %v1460 = vadd.f32 0.0, %v1459
        %v1461 = vpop.f32.mrf.mxu0
        %v1462 = vadd.f32 0.0, %v1461
        %1463 = vmatmul.bf16.gmra.mxu0 %v938
        %v1464 = vpop.f32.mrf.mxu0
        %v1465 = vadd.f32 0.0, %v1464
        %v1466 = vpop.f32.mrf.mxu0
        %v1467 = vadd.f32 0.0, %v1466
        %1468 = vmatmul.bf16.gmra.mxu0 %v940
        %v1469 = vpop.f32.mrf.mxu0
        %v1470 = vadd.f32 0.0, %v1469
        %v1471 = vpop.f32.mrf.mxu0
        %v1472 = vadd.f32 0.0, %v1471
        %1473 = vmatmul.bf16.gmra.mxu0 %v942
        %v1474 = vpop.f32.mrf.mxu0
        %v1475 = vadd.f32 0.0, %v1474
        %v1476 = vpop.f32.mrf.mxu0
        %v1477 = vadd.f32 0.0, %v1476
        %1478 = vmatmul.bf16.gmra.mxu0 %v944
        %v1479 = vpop.f32.mrf.mxu0
        %v1480 = vadd.f32 0.0, %v1479
        %v1481 = vpop.f32.mrf.mxu0
        %v1482 = vadd.f32 0.0, %v1481
        %1483 = vmatmul.bf16.gmra.mxu0 %v946
        %v1484 = vpop.f32.mrf.mxu0
        %v1485 = vadd.f32 0.0, %v1484
        %v1486 = vpop.f32.mrf.mxu0
        %v1487 = vadd.f32 0.0, %v1486
        %1488 = vmatmul.bf16.gmra.mxu0 %v948
        %v1489 = vpop.f32.mrf.mxu0
        %v1490 = vadd.f32 0.0, %v1489
        %v1491 = vpop.f32.mrf.mxu0
        %v1492 = vadd.f32 0.0, %v1491
        %1493 = vmatmul.bf16.gmra.mxu0 %v950
        %v1494 = vpop.f32.mrf.mxu0
        %v1495 = vadd.f32 0.0, %v1494
        %v1496 = vpop.f32.mrf.mxu0
        %v1497 = vadd.f32 0.0, %v1496
        %1498 = vmatmul.bf16.gmra.mxu0 %v952
        %v1499 = vpop.f32.mrf.mxu0
        %v1500 = vadd.f32 0.0, %v1499
        %v1501 = vpop.f32.mrf.mxu0
        %v1502 = vadd.f32 0.0, %v1501
        %1503 = vmatmul.bf16.gmra.mxu0 %v954
        %v1504 = vpop.f32.mrf.mxu0
        %v1505 = vadd.f32 0.0, %v1504
        %v1506 = vpop.f32.mrf.mxu0
        %v1507 = vadd.f32 0.0, %v1506
        %1508 = vdwg.mxu0
        %1509 = vmatpush.bf16.msra.mxu0 %v1272
        %1510 = vmatpush.bf16.msra.mxu0 %v1268
        %1511 = vmatpush.bf16.msra.mxu0 %v1264
        %1512 = vmatpush.bf16.msra.mxu0 %v1260
        %1513 = vmatpush.bf16.msra.mxu0 %v1256
        %1514 = vmatpush.bf16.msra.mxu0 %v1252
        %1515 = vmatpush.bf16.msra.mxu0 %v1248
        %1516 = vmatpush.bf16.msra.mxu0 %v1244
        %1517 = vmatmul.bf16.gmra.mxu0 %v893
        %v1518 = vpop.f32.mrf.mxu0
        %v1519 = vadd.f32 %v1350, %v1518
        %v1520 = vpop.f32.mrf.mxu0
        %v1521 = vadd.f32 %v1352, %v1520
        %1522 = vmatmul.bf16.gmra.mxu0 %v895
        %v1523 = vpop.f32.mrf.mxu0
        %v1524 = vadd.f32 %v1355, %v1523
        %v1525 = vpop.f32.mrf.mxu0
        %v1526 = vadd.f32 %v1357, %v1525
        %1527 = vmatmul.bf16.gmra.mxu0 %v897
        %v1528 = vpop.f32.mrf.mxu0
        %v1529 = vadd.f32 %v1360, %v1528
        %v1530 = vpop.f32.mrf.mxu0
        %v1531 = vadd.f32 %v1362, %v1530
        %1532 = vmatmul.bf16.gmra.mxu0 %v899
        %v1533 = vpop.f32.mrf.mxu0
        %v1534 = vadd.f32 %v1365, %v1533
        %v1535 = vpop.f32.mrf.mxu0
        %v1536 = vadd.f32 %v1367, %v1535
        %1537 = vmatmul.bf16.gmra.mxu0 %v901
        %v1538 = vpop.f32.mrf.mxu0
        %v1539 = vadd.f32 %v1370, %v1538
        %v1540 = vpop.f32.mrf.mxu0
        %v1541 = vadd.f32 %v1372, %v1540
        %1542 = vmatmul.bf16.gmra.mxu0 %v903
        %v1543 = vpop.f32.mrf.mxu0
        %v1544 = vadd.f32 %v1375, %v1543
        %v1545 = vpop.f32.mrf.mxu0
        %v1546 = vadd.f32 %v1377, %v1545
        %1547 = vmatmul.bf16.gmra.mxu0 %v905
        %v1548 = vpop.f32.mrf.mxu0
        %v1549 = vadd.f32 %v1380, %v1548
        %v1550 = vpop.f32.mrf.mxu0
        %v1551 = vadd.f32 %v1382, %v1550
        %1552 = vmatmul.bf16.gmra.mxu0 %v907
        %v1553 = vpop.f32.mrf.mxu0
        %v1554 = vadd.f32 %v1385, %v1553
        %v1555 = vpop.f32.mrf.mxu0
        %v1556 = vadd.f32 %v1387, %v1555
        %1557 = vmatmul.bf16.gmra.mxu0 %v909
        %v1558 = vpop.f32.mrf.mxu0
        %v1559 = vadd.f32 %v1390, %v1558
        %v1560 = vpop.f32.mrf.mxu0
        %v1561 = vadd.f32 %v1392, %v1560
        %1562 = vmatmul.bf16.gmra.mxu0 %v911
        %v1563 = vpop.f32.mrf.mxu0
        %v1564 = vadd.f32 %v1395, %v1563
        %v1565 = vpop.f32.mrf.mxu0
        %v1566 = vadd.f32 %v1397, %v1565
        %1567 = vmatmul.bf16.gmra.mxu0 %v913
        %v1568 = vpop.f32.mrf.mxu0
        %v1569 = vadd.f32 %v1400, %v1568
        %v1570 = vpop.f32.mrf.mxu0
        %v1571 = vadd.f32 %v1402, %v1570
        %1572 = vmatmul.bf16.gmra.mxu0 %v915
        %v1573 = vpop.f32.mrf.mxu0
        %v1574 = vadd.f32 %v1405, %v1573
        %v1575 = vpop.f32.mrf.mxu0
        %v1576 = vadd.f32 %v1407, %v1575
        %1577 = vmatmul.bf16.gmra.mxu0 %v917
        %v1578 = vpop.f32.mrf.mxu0
        %v1579 = vadd.f32 %v1410, %v1578
        %v1580 = vpop.f32.mrf.mxu0
        %v1581 = vadd.f32 %v1412, %v1580
        %1582 = vmatmul.bf16.gmra.mxu0 %v919
        %v1583 = vpop.f32.mrf.mxu0
        %v1584 = vadd.f32 %v1415, %v1583
        %v1585 = vpop.f32.mrf.mxu0
        %v1586 = vadd.f32 %v1417, %v1585
        %1587 = vmatmul.bf16.gmra.mxu0 %v921
        %v1588 = vpop.f32.mrf.mxu0
        %v1589 = vadd.f32 %v1420, %v1588
        %v1590 = vpop.f32.mrf.mxu0
        %v1591 = vadd.f32 %v1422, %v1590
        %1592 = vmatmul.bf16.gmra.mxu0 %v923
        %v1593 = vpop.f32.mrf.mxu0
        %v1594 = vadd.f32 %v1425, %v1593
        %v1595 = vpop.f32.mrf.mxu0
        %v1596 = vadd.f32 %v1427, %v1595
        %1597 = vmatmul.bf16.gmra.mxu0 %v925
        %v1598 = vpop.f32.mrf.mxu0
        %v1599 = vadd.f32 %v1430, %v1598
        %v1600 = vpop.f32.mrf.mxu0
        %v1601 = vadd.f32 %v1432, %v1600
        %1602 = vmatmul.bf16.gmra.mxu0 %v927
        %v1603 = vpop.f32.mrf.mxu0
        %v1604 = vadd.f32 %v1435, %v1603
        %v1605 = vpop.f32.mrf.mxu0
        %v1606 = vadd.f32 %v1437, %v1605
        %1607 = vmatmul.bf16.gmra.mxu0 %v929
        %v1608 = vpop.f32.mrf.mxu0
        %v1609 = vadd.f32 %v1440, %v1608
        %v1610 = vpop.f32.mrf.mxu0
        %v1611 = vadd.f32 %v1442, %v1610
        %1612 = vmatmul.bf16.gmra.mxu0 %v931
        %v1613 = vpop.f32.mrf.mxu0
        %v1614 = vadd.f32 %v1445, %v1613
        %v1615 = vpop.f32.mrf.mxu0
        %v1616 = vadd.f32 %v1447, %v1615
        %1617 = vmatmul.bf16.gmra.mxu0 %v933
        %v1618 = vpop.f32.mrf.mxu0
        %v1619 = vadd.f32 %v1450, %v1618
        %v1620 = vpop.f32.mrf.mxu0
        %v1621 = vadd.f32 %v1452, %v1620
        %1622 = vmatmul.bf16.gmra.mxu0 %v935
        %v1623 = vpop.f32.mrf.mxu0
        %v1624 = vadd.f32 %v1455, %v1623
        %v1625 = vpop.f32.mrf.mxu0
        %v1626 = vadd.f32 %v1457, %v1625
        %1627 = vmatmul.bf16.gmra.mxu0 %v937
        %v1628 = vpop.f32.mrf.mxu0
        %v1629 = vadd.f32 %v1460, %v1628
        %v1630 = vpop.f32.mrf.mxu0
        %v1631 = vadd.f32 %v1462, %v1630
        %1632 = vmatmul.bf16.gmra.mxu0 %v939
        %v1633 = vpop.f32.mrf.mxu0
        %v1634 = vadd.f32 %v1465, %v1633
        %v1635 = vpop.f32.mrf.mxu0
        %v1636 = vadd.f32 %v1467, %v1635
        %1637 = vmatmul.bf16.gmra.mxu0 %v941
        %v1638 = vpop.f32.mrf.mxu0
        %v1639 = vadd.f32 %v1470, %v1638
        %v1640 = vpop.f32.mrf.mxu0
        %v1641 = vadd.f32 %v1472, %v1640
        %1642 = vmatmul.bf16.gmra.mxu0 %v943
        %v1643 = vpop.f32.mrf.mxu0
        %v1644 = vadd.f32 %v1475, %v1643
        %v1645 = vpop.f32.mrf.mxu0
        %v1646 = vadd.f32 %v1477, %v1645
        %1647 = vmatmul.bf16.gmra.mxu0 %v945
        %v1648 = vpop.f32.mrf.mxu0
        %v1649 = vadd.f32 %v1480, %v1648
        %v1650 = vpop.f32.mrf.mxu0
        %v1651 = vadd.f32 %v1482, %v1650
        %1652 = vmatmul.bf16.gmra.mxu0 %v947
        %v1653 = vpop.f32.mrf.mxu0
        %v1654 = vadd.f32 %v1485, %v1653
        %v1655 = vpop.f32.mrf.mxu0
        %v1656 = vadd.f32 %v1487, %v1655
        %1657 = vmatmul.bf16.gmra.mxu0 %v949
        %v1658 = vpop.f32.mrf.mxu0
        %v1659 = vadd.f32 %v1490, %v1658
        %v1660 = vpop.f32.mrf.mxu0
        %v1661 = vadd.f32 %v1492, %v1660
        %1662 = vmatmul.bf16.gmra.mxu0 %v951
        %v1663 = vpop.f32.mrf.mxu0
        %v1664 = vadd.f32 %v1495, %v1663
        %v1665 = vpop.f32.mrf.mxu0
        %v1666 = vadd.f32 %v1497, %v1665
        %1667 = vmatmul.bf16.gmra.mxu0 %v953
        %v1668 = vpop.f32.mrf.mxu0
        %v1669 = vadd.f32 %v1500, %v1668
        %v1670 = vpop.f32.mrf.mxu0
        %v1671 = vadd.f32 %v1502, %v1670
        %1672 = vmatmul.bf16.gmra.mxu0 %v955
        %v1673 = vpop.f32.mrf.mxu0
        %v1674 = vadd.f32 %v1505, %v1673
        %v1675 = vpop.f32.mrf.mxu0
        %v1676 = vadd.f32 %v1507, %v1675
        %1677 = vdwg.mxu0
        %1678 = vmatpush.bf16.msra.mxu0 %v1241
        %1679 = vmatpush.bf16.msra.mxu0 %v1237
        %1680 = vmatpush.bf16.msra.mxu0 %v1233
        %1681 = vmatpush.bf16.msra.mxu0 %v1229
        %1682 = vmatpush.bf16.msra.mxu0 %v1225
        %1683 = vmatpush.bf16.msra.mxu0 %v1221
        %1684 = vmatpush.bf16.msra.mxu0 %v1217
        %1685 = vmatpush.bf16.msra.mxu0 %v1213
        %1686 = vmatmul.bf16.gmra.mxu0 %v892
        %v1687 = vpop.f32.mrf.mxu0
        %v1688 = vadd.f32 0.0, %v1687
        %v1689 = vpop.f32.mrf.mxu0
        %v1690 = vadd.f32 0.0, %v1689
        %1691 = vmatmul.bf16.gmra.mxu0 %v894
        %v1692 = vpop.f32.mrf.mxu0
        %v1693 = vadd.f32 0.0, %v1692
        %v1694 = vpop.f32.mrf.mxu0
        %v1695 = vadd.f32 0.0, %v1694
        %1696 = vmatmul.bf16.gmra.mxu0 %v896
        %v1697 = vpop.f32.mrf.mxu0
        %v1698 = vadd.f32 0.0, %v1697
        %v1699 = vpop.f32.mrf.mxu0
        %v1700 = vadd.f32 0.0, %v1699
        %1701 = vmatmul.bf16.gmra.mxu0 %v898
        %v1702 = vpop.f32.mrf.mxu0
        %v1703 = vadd.f32 0.0, %v1702
        %v1704 = vpop.f32.mrf.mxu0
        %v1705 = vadd.f32 0.0, %v1704
        %1706 = vmatmul.bf16.gmra.mxu0 %v900
        %v1707 = vpop.f32.mrf.mxu0
        %v1708 = vadd.f32 0.0, %v1707
        %v1709 = vpop.f32.mrf.mxu0
        %v1710 = vadd.f32 0.0, %v1709
        %1711 = vmatmul.bf16.gmra.mxu0 %v902
        %v1712 = vpop.f32.mrf.mxu0
        %v1713 = vadd.f32 0.0, %v1712
        %v1714 = vpop.f32.mrf.mxu0
        %v1715 = vadd.f32 0.0, %v1714
        %1716 = vmatmul.bf16.gmra.mxu0 %v904
        %v1717 = vpop.f32.mrf.mxu0
        %v1718 = vadd.f32 0.0, %v1717
        %v1719 = vpop.f32.mrf.mxu0
        %v1720 = vadd.f32 0.0, %v1719
        %1721 = vmatmul.bf16.gmra.mxu0 %v906
        %v1722 = vpop.f32.mrf.mxu0
        %v1723 = vadd.f32 0.0, %v1722
        %v1724 = vpop.f32.mrf.mxu0
        %v1725 = vadd.f32 0.0, %v1724
        %1726 = vmatmul.bf16.gmra.mxu0 %v908
        %v1727 = vpop.f32.mrf.mxu0
        %v1728 = vadd.f32 0.0, %v1727
        %v1729 = vpop.f32.mrf.mxu0
        %v1730 = vadd.f32 0.0, %v1729
        %1731 = vmatmul.bf16.gmra.mxu0 %v910
        %v1732 = vpop.f32.mrf.mxu0
        %v1733 = vadd.f32 0.0, %v1732
        %v1734 = vpop.f32.mrf.mxu0
        %v1735 = vadd.f32 0.0, %v1734
        %1736 = vmatmul.bf16.gmra.mxu0 %v912
        %v1737 = vpop.f32.mrf.mxu0
        %v1738 = vadd.f32 0.0, %v1737
        %v1739 = vpop.f32.mrf.mxu0
        %v1740 = vadd.f32 0.0, %v1739
        %1741 = vmatmul.bf16.gmra.mxu0 %v914
        %v1742 = vpop.f32.mrf.mxu0
        %v1743 = vadd.f32 0.0, %v1742
        %v1744 = vpop.f32.mrf.mxu0
        %v1745 = vadd.f32 0.0, %v1744
        %1746 = vmatmul.bf16.gmra.mxu0 %v916
        %v1747 = vpop.f32.mrf.mxu0
        %v1748 = vadd.f32 0.0, %v1747
        %v1749 = vpop.f32.mrf.mxu0
        %v1750 = vadd.f32 0.0, %v1749
        %1751 = vmatmul.bf16.gmra.mxu0 %v918
        %v1752 = vpop.f32.mrf.mxu0
        %v1753 = vadd.f32 0.0, %v1752
        %v1754 = vpop.f32.mrf.mxu0
        %v1755 = vadd.f32 0.0, %v1754
        %1756 = vmatmul.bf16.gmra.mxu0 %v920
        %v1757 = vpop.f32.mrf.mxu0
        %v1758 = vadd.f32 0.0, %v1757
        %v1759 = vpop.f32.mrf.mxu0
        %v1760 = vadd.f32 0.0, %v1759
        %1761 = vmatmul.bf16.gmra.mxu0 %v922
        %v1762 = vpop.f32.mrf.mxu0
        %v1763 = vadd.f32 0.0, %v1762
        %v1764 = vpop.f32.mrf.mxu0
        %v1765 = vadd.f32 0.0, %v1764
        %1766 = vmatmul.bf16.gmra.mxu0 %v924
        %v1767 = vpop.f32.mrf.mxu0
        %v1768 = vadd.f32 0.0, %v1767
        %v1769 = vpop.f32.mrf.mxu0
        %v1770 = vadd.f32 0.0, %v1769
        %1771 = vmatmul.bf16.gmra.mxu0 %v926
        %v1772 = vpop.f32.mrf.mxu0
        %v1773 = vadd.f32 0.0, %v1772
        %v1774 = vpop.f32.mrf.mxu0
        %v1775 = vadd.f32 0.0, %v1774
        %1776 = vmatmul.bf16.gmra.mxu0 %v928
        %v1777 = vpop.f32.mrf.mxu0
        %v1778 = vadd.f32 0.0, %v1777
        %v1779 = vpop.f32.mrf.mxu0
        %v1780 = vadd.f32 0.0, %v1779
        %1781 = vmatmul.bf16.gmra.mxu0 %v930
        %v1782 = vpop.f32.mrf.mxu0
        %v1783 = vadd.f32 0.0, %v1782
        %v1784 = vpop.f32.mrf.mxu0
        %v1785 = vadd.f32 0.0, %v1784
        %1786 = vmatmul.bf16.gmra.mxu0 %v932
        %v1787 = vpop.f32.mrf.mxu0
        %v1788 = vadd.f32 0.0, %v1787
        %v1789 = vpop.f32.mrf.mxu0
        %v1790 = vadd.f32 0.0, %v1789
        %1791 = vmatmul.bf16.gmra.mxu0 %v934
        %v1792 = vpop.f32.mrf.mxu0
        %v1793 = vadd.f32 0.0, %v1792
        %v1794 = vpop.f32.mrf.mxu0
        %v1795 = vadd.f32 0.0, %v1794
        %1796 = vmatmul.bf16.gmra.mxu0 %v936
        %v1797 = vpop.f32.mrf.mxu0
        %v1798 = vadd.f32 0.0, %v1797
        %v1799 = vpop.f32.mrf.mxu0
        %v1800 = vadd.f32 0.0, %v1799
        %1801 = vmatmul.bf16.gmra.mxu0 %v938
        %v1802 = vpop.f32.mrf.mxu0
        %v1803 = vadd.f32 0.0, %v1802
        %v1804 = vpop.f32.mrf.mxu0
        %v1805 = vadd.f32 0.0, %v1804
        %1806 = vmatmul.bf16.gmra.mxu0 %v940
        %v1807 = vpop.f32.mrf.mxu0
        %v1808 = vadd.f32 0.0, %v1807
        %v1809 = vpop.f32.mrf.mxu0
        %v1810 = vadd.f32 0.0, %v1809
        %1811 = vmatmul.bf16.gmra.mxu0 %v942
        %v1812 = vpop.f32.mrf.mxu0
        %v1813 = vadd.f32 0.0, %v1812
        %v1814 = vpop.f32.mrf.mxu0
        %v1815 = vadd.f32 0.0, %v1814
        %1816 = vmatmul.bf16.gmra.mxu0 %v944
        %v1817 = vpop.f32.mrf.mxu0
        %v1818 = vadd.f32 0.0, %v1817
        %v1819 = vpop.f32.mrf.mxu0
        %v1820 = vadd.f32 0.0, %v1819
        %1821 = vmatmul.bf16.gmra.mxu0 %v946
        %v1822 = vpop.f32.mrf.mxu0
        %v1823 = vadd.f32 0.0, %v1822
        %v1824 = vpop.f32.mrf.mxu0
        %v1825 = vadd.f32 0.0, %v1824
        %1826 = vmatmul.bf16.gmra.mxu0 %v948
        %v1827 = vpop.f32.mrf.mxu0
        %v1828 = vadd.f32 0.0, %v1827
        %v1829 = vpop.f32.mrf.mxu0
        %v1830 = vadd.f32 0.0, %v1829
        %1831 = vmatmul.bf16.gmra.mxu0 %v950
        %v1832 = vpop.f32.mrf.mxu0
        %v1833 = vadd.f32 0.0, %v1832
        %v1834 = vpop.f32.mrf.mxu0
        %v1835 = vadd.f32 0.0, %v1834
        %1836 = vmatmul.bf16.gmra.mxu0 %v952
        %v1837 = vpop.f32.mrf.mxu0
        %v1838 = vadd.f32 0.0, %v1837
        %v1839 = vpop.f32.mrf.mxu0
        %v1840 = vadd.f32 0.0, %v1839
        %1841 = vmatmul.bf16.gmra.mxu0 %v954
        %v1842 = vpop.f32.mrf.mxu0
        %v1843 = vadd.f32 0.0, %v1842
        %v1844 = vpop.f32.mrf.mxu0
        %v1845 = vadd.f32 0.0, %v1844
        %1846 = vdwg.mxu0
        %1847 = vmatpush.bf16.msra.mxu0 %v1273
        %1848 = vmatpush.bf16.msra.mxu0 %v1269
        %1849 = vmatpush.bf16.msra.mxu0 %v1265
        %1850 = vmatpush.bf16.msra.mxu0 %v1261
        %1851 = vmatpush.bf16.msra.mxu0 %v1257
        %1852 = vmatpush.bf16.msra.mxu0 %v1253
        %1853 = vmatpush.bf16.msra.mxu0 %v1249
        %1854 = vmatpush.bf16.msra.mxu0 %v1245
        %1855 = vmatmul.bf16.gmra.mxu0 %v893
        %v1856 = vpop.f32.mrf.mxu0
        %v1857 = vadd.f32 %v1688, %v1856
        %v1858 = vpop.f32.mrf.mxu0
        %v1859 = vadd.f32 %v1690, %v1858
        %1860 = vmatmul.bf16.gmra.mxu0 %v895
        %v1861 = vpop.f32.mrf.mxu0
        %v1862 = vadd.f32 %v1693, %v1861
        %v1863 = vpop.f32.mrf.mxu0
        %v1864 = vadd.f32 %v1695, %v1863
        %1865 = vmatmul.bf16.gmra.mxu0 %v897
        %v1866 = vpop.f32.mrf.mxu0
        %v1867 = vadd.f32 %v1698, %v1866
        %v1868 = vpop.f32.mrf.mxu0
        %v1869 = vadd.f32 %v1700, %v1868
        %1870 = vmatmul.bf16.gmra.mxu0 %v899
        %v1871 = vpop.f32.mrf.mxu0
        %v1872 = vadd.f32 %v1703, %v1871
        %v1873 = vpop.f32.mrf.mxu0
        %v1874 = vadd.f32 %v1705, %v1873
        %1875 = vmatmul.bf16.gmra.mxu0 %v901
        %v1876 = vpop.f32.mrf.mxu0
        %v1877 = vadd.f32 %v1708, %v1876
        %v1878 = vpop.f32.mrf.mxu0
        %v1879 = vadd.f32 %v1710, %v1878
        %1880 = vmatmul.bf16.gmra.mxu0 %v903
        %v1881 = vpop.f32.mrf.mxu0
        %v1882 = vadd.f32 %v1713, %v1881
        %v1883 = vpop.f32.mrf.mxu0
        %v1884 = vadd.f32 %v1715, %v1883
        %1885 = vmatmul.bf16.gmra.mxu0 %v905
        %v1886 = vpop.f32.mrf.mxu0
        %v1887 = vadd.f32 %v1718, %v1886
        %v1888 = vpop.f32.mrf.mxu0
        %v1889 = vadd.f32 %v1720, %v1888
        %1890 = vmatmul.bf16.gmra.mxu0 %v907
        %v1891 = vpop.f32.mrf.mxu0
        %v1892 = vadd.f32 %v1723, %v1891
        %v1893 = vpop.f32.mrf.mxu0
        %v1894 = vadd.f32 %v1725, %v1893
        %1895 = vmatmul.bf16.gmra.mxu0 %v909
        %v1896 = vpop.f32.mrf.mxu0
        %v1897 = vadd.f32 %v1728, %v1896
        %v1898 = vpop.f32.mrf.mxu0
        %v1899 = vadd.f32 %v1730, %v1898
        %1900 = vmatmul.bf16.gmra.mxu0 %v911
        %v1901 = vpop.f32.mrf.mxu0
        %v1902 = vadd.f32 %v1733, %v1901
        %v1903 = vpop.f32.mrf.mxu0
        %v1904 = vadd.f32 %v1735, %v1903
        %1905 = vmatmul.bf16.gmra.mxu0 %v913
        %v1906 = vpop.f32.mrf.mxu0
        %v1907 = vadd.f32 %v1738, %v1906
        %v1908 = vpop.f32.mrf.mxu0
        %v1909 = vadd.f32 %v1740, %v1908
        %1910 = vmatmul.bf16.gmra.mxu0 %v915
        %v1911 = vpop.f32.mrf.mxu0
        %v1912 = vadd.f32 %v1743, %v1911
        %v1913 = vpop.f32.mrf.mxu0
        %v1914 = vadd.f32 %v1745, %v1913
        %1915 = vmatmul.bf16.gmra.mxu0 %v917
        %v1916 = vpop.f32.mrf.mxu0
        %v1917 = vadd.f32 %v1748, %v1916
        %v1918 = vpop.f32.mrf.mxu0
        %v1919 = vadd.f32 %v1750, %v1918
        %1920 = vmatmul.bf16.gmra.mxu0 %v919
        %v1921 = vpop.f32.mrf.mxu0
        %v1922 = vadd.f32 %v1753, %v1921
        %v1923 = vpop.f32.mrf.mxu0
        %v1924 = vadd.f32 %v1755, %v1923
        %1925 = vmatmul.bf16.gmra.mxu0 %v921
        %v1926 = vpop.f32.mrf.mxu0
        %v1927 = vadd.f32 %v1758, %v1926
        %v1928 = vpop.f32.mrf.mxu0
        %v1929 = vadd.f32 %v1760, %v1928
        %1930 = vmatmul.bf16.gmra.mxu0 %v923
        %v1931 = vpop.f32.mrf.mxu0
        %v1932 = vadd.f32 %v1763, %v1931
        %v1933 = vpop.f32.mrf.mxu0
        %v1934 = vadd.f32 %v1765, %v1933
        %1935 = vmatmul.bf16.gmra.mxu0 %v925
        %v1936 = vpop.f32.mrf.mxu0
        %v1937 = vadd.f32 %v1768, %v1936
        %v1938 = vpop.f32.mrf.mxu0
        %v1939 = vadd.f32 %v1770, %v1938
        %1940 = vmatmul.bf16.gmra.mxu0 %v927
        %v1941 = vpop.f32.mrf.mxu0
        %v1942 = vadd.f32 %v1773, %v1941
        %v1943 = vpop.f32.mrf.mxu0
        %v1944 = vadd.f32 %v1775, %v1943
        %1945 = vmatmul.bf16.gmra.mxu0 %v929
        %v1946 = vpop.f32.mrf.mxu0
        %v1947 = vadd.f32 %v1778, %v1946
        %v1948 = vpop.f32.mrf.mxu0
        %v1949 = vadd.f32 %v1780, %v1948
        %1950 = vmatmul.bf16.gmra.mxu0 %v931
        %v1951 = vpop.f32.mrf.mxu0
        %v1952 = vadd.f32 %v1783, %v1951
        %v1953 = vpop.f32.mrf.mxu0
        %v1954 = vadd.f32 %v1785, %v1953
        %1955 = vmatmul.bf16.gmra.mxu0 %v933
        %v1956 = vpop.f32.mrf.mxu0
        %v1957 = vadd.f32 %v1788, %v1956
        %v1958 = vpop.f32.mrf.mxu0
        %v1959 = vadd.f32 %v1790, %v1958
        %1960 = vmatmul.bf16.gmra.mxu0 %v935
        %v1961 = vpop.f32.mrf.mxu0
        %v1962 = vadd.f32 %v1793, %v1961
        %v1963 = vpop.f32.mrf.mxu0
        %v1964 = vadd.f32 %v1795, %v1963
        %1965 = vmatmul.bf16.gmra.mxu0 %v937
        %v1966 = vpop.f32.mrf.mxu0
        %v1967 = vadd.f32 %v1798, %v1966
        %v1968 = vpop.f32.mrf.mxu0
        %v1969 = vadd.f32 %v1800, %v1968
        %1970 = vmatmul.bf16.gmra.mxu0 %v939
        %v1971 = vpop.f32.mrf.mxu0
        %v1972 = vadd.f32 %v1803, %v1971
        %v1973 = vpop.f32.mrf.mxu0
        %v1974 = vadd.f32 %v1805, %v1973
        %1975 = vmatmul.bf16.gmra.mxu0 %v941
        %v1976 = vpop.f32.mrf.mxu0
        %v1977 = vadd.f32 %v1808, %v1976
        %v1978 = vpop.f32.mrf.mxu0
        %v1979 = vadd.f32 %v1810, %v1978
        %1980 = vmatmul.bf16.gmra.mxu0 %v943
        %v1981 = vpop.f32.mrf.mxu0
        %v1982 = vadd.f32 %v1813, %v1981
        %v1983 = vpop.f32.mrf.mxu0
        %v1984 = vadd.f32 %v1815, %v1983
        %1985 = vmatmul.bf16.gmra.mxu0 %v945
        %v1986 = vpop.f32.mrf.mxu0
        %v1987 = vadd.f32 %v1818, %v1986
        %v1988 = vpop.f32.mrf.mxu0
        %v1989 = vadd.f32 %v1820, %v1988
        %1990 = vmatmul.bf16.gmra.mxu0 %v947
        %v1991 = vpop.f32.mrf.mxu0
        %v1992 = vadd.f32 %v1823, %v1991
        %v1993 = vpop.f32.mrf.mxu0
        %v1994 = vadd.f32 %v1825, %v1993
        %1995 = vmatmul.bf16.gmra.mxu0 %v949
        %v1996 = vpop.f32.mrf.mxu0
        %v1997 = vadd.f32 %v1828, %v1996
        %v1998 = vpop.f32.mrf.mxu0
        %v1999 = vadd.f32 %v1830, %v1998
        %2000 = vmatmul.bf16.gmra.mxu0 %v951
        %v2001 = vpop.f32.mrf.mxu0
        %v2002 = vadd.f32 %v1833, %v2001
        %v2003 = vpop.f32.mrf.mxu0
        %v2004 = vadd.f32 %v1835, %v2003
        %2005 = vmatmul.bf16.gmra.mxu0 %v953
        %v2006 = vpop.f32.mrf.mxu0
        %v2007 = vadd.f32 %v1838, %v2006
        %v2008 = vpop.f32.mrf.mxu0
        %v2009 = vadd.f32 %v1840, %v2008
        %2010 = vmatmul.bf16.gmra.mxu0 %v955
        %v2011 = vpop.f32.mrf.mxu0
        %v2012 = vadd.f32 %v1843, %v2011
        %v2013 = vpop.f32.mrf.mxu0
        %v2014 = vadd.f32 %v1845, %v2013
        %2015 = vdwg.mxu0
        %2016 = vmatpush.bf16.msra.mxu0 %v1242
        %2017 = vmatpush.bf16.msra.mxu0 %v1238
        %2018 = vmatpush.bf16.msra.mxu0 %v1234
        %2019 = vmatpush.bf16.msra.mxu0 %v1230
        %2020 = vmatpush.bf16.msra.mxu0 %v1226
        %2021 = vmatpush.bf16.msra.mxu0 %v1222
        %2022 = vmatpush.bf16.msra.mxu0 %v1218
        %2023 = vmatpush.bf16.msra.mxu0 %v1214
        %2024 = vmatmul.bf16.gmra.mxu0 %v892
        %v2025 = vpop.f32.mrf.mxu0
        %v2026 = vadd.f32 0.0, %v2025
        %v2027 = vpop.f32.mrf.mxu0
        %v2028 = vadd.f32 0.0, %v2027
        %2029 = vmatmul.bf16.gmra.mxu0 %v894
        %v2030 = vpop.f32.mrf.mxu0
        %v2031 = vadd.f32 0.0, %v2030
        %v2032 = vpop.f32.mrf.mxu0
        %v2033 = vadd.f32 0.0, %v2032
        %2034 = vmatmul.bf16.gmra.mxu0 %v896
        %v2035 = vpop.f32.mrf.mxu0
        %v2036 = vadd.f32 0.0, %v2035
        %v2037 = vpop.f32.mrf.mxu0
        %v2038 = vadd.f32 0.0, %v2037
        %2039 = vmatmul.bf16.gmra.mxu0 %v898
        %v2040 = vpop.f32.mrf.mxu0
        %v2041 = vadd.f32 0.0, %v2040
        %v2042 = vpop.f32.mrf.mxu0
        %v2043 = vadd.f32 0.0, %v2042
        %2044 = vmatmul.bf16.gmra.mxu0 %v900
        %v2045 = vpop.f32.mrf.mxu0
        %v2046 = vadd.f32 0.0, %v2045
        %v2047 = vpop.f32.mrf.mxu0
        %v2048 = vadd.f32 0.0, %v2047
        %2049 = vmatmul.bf16.gmra.mxu0 %v902
        %v2050 = vpop.f32.mrf.mxu0
        %v2051 = vadd.f32 0.0, %v2050
        %v2052 = vpop.f32.mrf.mxu0
        %v2053 = vadd.f32 0.0, %v2052
        %2054 = vmatmul.bf16.gmra.mxu0 %v904
        %v2055 = vpop.f32.mrf.mxu0
        %v2056 = vadd.f32 0.0, %v2055
        %v2057 = vpop.f32.mrf.mxu0
        %v2058 = vadd.f32 0.0, %v2057
        %2059 = vmatmul.bf16.gmra.mxu0 %v906
        %v2060 = vpop.f32.mrf.mxu0
        %v2061 = vadd.f32 0.0, %v2060
        %v2062 = vpop.f32.mrf.mxu0
        %v2063 = vadd.f32 0.0, %v2062
        %2064 = vmatmul.bf16.gmra.mxu0 %v908
        %v2065 = vpop.f32.mrf.mxu0
        %v2066 = vadd.f32 0.0, %v2065
        %v2067 = vpop.f32.mrf.mxu0
        %v2068 = vadd.f32 0.0, %v2067
        %2069 = vmatmul.bf16.gmra.mxu0 %v910
        %v2070 = vpop.f32.mrf.mxu0
        %v2071 = vadd.f32 0.0, %v2070
        %v2072 = vpop.f32.mrf.mxu0
        %v2073 = vadd.f32 0.0, %v2072
        %2074 = vmatmul.bf16.gmra.mxu0 %v912
        %v2075 = vpop.f32.mrf.mxu0
        %v2076 = vadd.f32 0.0, %v2075
        %v2077 = vpop.f32.mrf.mxu0
        %v2078 = vadd.f32 0.0, %v2077
        %2079 = vmatmul.bf16.gmra.mxu0 %v914
        %v2080 = vpop.f32.mrf.mxu0
        %v2081 = vadd.f32 0.0, %v2080
        %v2082 = vpop.f32.mrf.mxu0
        %v2083 = vadd.f32 0.0, %v2082
        %2084 = vmatmul.bf16.gmra.mxu0 %v916
        %v2085 = vpop.f32.mrf.mxu0
        %v2086 = vadd.f32 0.0, %v2085
        %v2087 = vpop.f32.mrf.mxu0
        %v2088 = vadd.f32 0.0, %v2087
        %2089 = vmatmul.bf16.gmra.mxu0 %v918
        %v2090 = vpop.f32.mrf.mxu0
        %v2091 = vadd.f32 0.0, %v2090
        %v2092 = vpop.f32.mrf.mxu0
        %v2093 = vadd.f32 0.0, %v2092
        %2094 = vmatmul.bf16.gmra.mxu0 %v920
        %v2095 = vpop.f32.mrf.mxu0
        %v2096 = vadd.f32 0.0, %v2095
        %v2097 = vpop.f32.mrf.mxu0
        %v2098 = vadd.f32 0.0, %v2097
        %2099 = vmatmul.bf16.gmra.mxu0 %v922
        %v2100 = vpop.f32.mrf.mxu0
        %v2101 = vadd.f32 0.0, %v2100
        %v2102 = vpop.f32.mrf.mxu0
        %v2103 = vadd.f32 0.0, %v2102
        %2104 = vmatmul.bf16.gmra.mxu0 %v924
        %v2105 = vpop.f32.mrf.mxu0
        %v2106 = vadd.f32 0.0, %v2105
        %v2107 = vpop.f32.mrf.mxu0
        %v2108 = vadd.f32 0.0, %v2107
        %2109 = vmatmul.bf16.gmra.mxu0 %v926
        %v2110 = vpop.f32.mrf.mxu0
        %v2111 = vadd.f32 0.0, %v2110
        %v2112 = vpop.f32.mrf.mxu0
        %v2113 = vadd.f32 0.0, %v2112
        %2114 = vmatmul.bf16.gmra.mxu0 %v928
        %v2115 = vpop.f32.mrf.mxu0
        %v2116 = vadd.f32 0.0, %v2115
        %v2117 = vpop.f32.mrf.mxu0
        %v2118 = vadd.f32 0.0, %v2117
        %2119 = vmatmul.bf16.gmra.mxu0 %v930
        %v2120 = vpop.f32.mrf.mxu0
        %v2121 = vadd.f32 0.0, %v2120
        %v2122 = vpop.f32.mrf.mxu0
        %v2123 = vadd.f32 0.0, %v2122
        %2124 = vmatmul.bf16.gmra.mxu0 %v932
        %v2125 = vpop.f32.mrf.mxu0
        %v2126 = vadd.f32 0.0, %v2125
        %v2127 = vpop.f32.mrf.mxu0
        %v2128 = vadd.f32 0.0, %v2127
        %2129 = vmatmul.bf16.gmra.mxu0 %v934
        %v2130 = vpop.f32.mrf.mxu0
        %v2131 = vadd.f32 0.0, %v2130
        %v2132 = vpop.f32.mrf.mxu0
        %v2133 = vadd.f32 0.0, %v2132
        %2134 = vmatmul.bf16.gmra.mxu0 %v936
        %v2135 = vpop.f32.mrf.mxu0
        %v2136 = vadd.f32 0.0, %v2135
        %v2137 = vpop.f32.mrf.mxu0
        %v2138 = vadd.f32 0.0, %v2137
        %2139 = vmatmul.bf16.gmra.mxu0 %v938
        %v2140 = vpop.f32.mrf.mxu0
        %v2141 = vadd.f32 0.0, %v2140
        %v2142 = vpop.f32.mrf.mxu0
        %v2143 = vadd.f32 0.0, %v2142
        %2144 = vmatmul.bf16.gmra.mxu0 %v940
        %v2145 = vpop.f32.mrf.mxu0
        %v2146 = vadd.f32 0.0, %v2145
        %v2147 = vpop.f32.mrf.mxu0
        %v2148 = vadd.f32 0.0, %v2147
        %2149 = vmatmul.bf16.gmra.mxu0 %v942
        %v2150 = vpop.f32.mrf.mxu0
        %v2151 = vadd.f32 0.0, %v2150
        %v2152 = vpop.f32.mrf.mxu0
        %v2153 = vadd.f32 0.0, %v2152
        %2154 = vmatmul.bf16.gmra.mxu0 %v944
        %v2155 = vpop.f32.mrf.mxu0
        %v2156 = vadd.f32 0.0, %v2155
        %v2157 = vpop.f32.mrf.mxu0
        %v2158 = vadd.f32 0.0, %v2157
        %2159 = vmatmul.bf16.gmra.mxu0 %v946
        %v2160 = vpop.f32.mrf.mxu0
        %v2161 = vadd.f32 0.0, %v2160
        %v2162 = vpop.f32.mrf.mxu0
        %v2163 = vadd.f32 0.0, %v2162
        %2164 = vmatmul.bf16.gmra.mxu0 %v948
        %v2165 = vpop.f32.mrf.mxu0
        %v2166 = vadd.f32 0.0, %v2165
        %v2167 = vpop.f32.mrf.mxu0
        %v2168 = vadd.f32 0.0, %v2167
        %2169 = vmatmul.bf16.gmra.mxu0 %v950
        %v2170 = vpop.f32.mrf.mxu0
        %v2171 = vadd.f32 0.0, %v2170
        %v2172 = vpop.f32.mrf.mxu0
        %v2173 = vadd.f32 0.0, %v2172
        %2174 = vmatmul.bf16.gmra.mxu0 %v952
        %v2175 = vpop.f32.mrf.mxu0
        %v2176 = vadd.f32 0.0, %v2175
        %v2177 = vpop.f32.mrf.mxu0
        %v2178 = vadd.f32 0.0, %v2177
        %2179 = vmatmul.bf16.gmra.mxu0 %v954
        %v2180 = vpop.f32.mrf.mxu0
        %v2181 = vadd.f32 0.0, %v2180
        %v2182 = vpop.f32.mrf.mxu0
        %v2183 = vadd.f32 0.0, %v2182
        %2184 = vdwg.mxu0
        %2185 = vmatpush.bf16.msra.mxu0 %v1274
        %2186 = vmatpush.bf16.msra.mxu0 %v1270
        %2187 = vmatpush.bf16.msra.mxu0 %v1266
        %2188 = vmatpush.bf16.msra.mxu0 %v1262
        %2189 = vmatpush.bf16.msra.mxu0 %v1258
        %2190 = vmatpush.bf16.msra.mxu0 %v1254
        %2191 = vmatpush.bf16.msra.mxu0 %v1250
        %2192 = vmatpush.bf16.msra.mxu0 %v1246
        %2193 = vmatmul.bf16.gmra.mxu0 %v893
        %v2194 = vpop.f32.mrf.mxu0
        %v2195 = vadd.f32 %v2026, %v2194
        %v2196 = vpop.f32.mrf.mxu0
        %v2197 = vadd.f32 %v2028, %v2196
        %2198 = vmatmul.bf16.gmra.mxu0 %v895
        %v2199 = vpop.f32.mrf.mxu0
        %v2200 = vadd.f32 %v2031, %v2199
        %v2201 = vpop.f32.mrf.mxu0
        %v2202 = vadd.f32 %v2033, %v2201
        %2203 = vmatmul.bf16.gmra.mxu0 %v897
        %v2204 = vpop.f32.mrf.mxu0
        %v2205 = vadd.f32 %v2036, %v2204
        %v2206 = vpop.f32.mrf.mxu0
        %v2207 = vadd.f32 %v2038, %v2206
        %2208 = vmatmul.bf16.gmra.mxu0 %v899
        %v2209 = vpop.f32.mrf.mxu0
        %v2210 = vadd.f32 %v2041, %v2209
        %v2211 = vpop.f32.mrf.mxu0
        %v2212 = vadd.f32 %v2043, %v2211
        %2213 = vmatmul.bf16.gmra.mxu0 %v901
        %v2214 = vpop.f32.mrf.mxu0
        %v2215 = vadd.f32 %v2046, %v2214
        %v2216 = vpop.f32.mrf.mxu0
        %v2217 = vadd.f32 %v2048, %v2216
        %2218 = vmatmul.bf16.gmra.mxu0 %v903
        %v2219 = vpop.f32.mrf.mxu0
        %v2220 = vadd.f32 %v2051, %v2219
        %v2221 = vpop.f32.mrf.mxu0
        %v2222 = vadd.f32 %v2053, %v2221
        %2223 = vmatmul.bf16.gmra.mxu0 %v905
        %v2224 = vpop.f32.mrf.mxu0
        %v2225 = vadd.f32 %v2056, %v2224
        %v2226 = vpop.f32.mrf.mxu0
        %v2227 = vadd.f32 %v2058, %v2226
        %2228 = vmatmul.bf16.gmra.mxu0 %v907
        %v2229 = vpop.f32.mrf.mxu0
        %v2230 = vadd.f32 %v2061, %v2229
        %v2231 = vpop.f32.mrf.mxu0
        %v2232 = vadd.f32 %v2063, %v2231
        %2233 = vmatmul.bf16.gmra.mxu0 %v909
        %v2234 = vpop.f32.mrf.mxu0
        %v2235 = vadd.f32 %v2066, %v2234
        %v2236 = vpop.f32.mrf.mxu0
        %v2237 = vadd.f32 %v2068, %v2236
        %2238 = vmatmul.bf16.gmra.mxu0 %v911
        %v2239 = vpop.f32.mrf.mxu0
        %v2240 = vadd.f32 %v2071, %v2239
        %v2241 = vpop.f32.mrf.mxu0
        %v2242 = vadd.f32 %v2073, %v2241
        %2243 = vmatmul.bf16.gmra.mxu0 %v913
        %v2244 = vpop.f32.mrf.mxu0
        %v2245 = vadd.f32 %v2076, %v2244
        %v2246 = vpop.f32.mrf.mxu0
        %v2247 = vadd.f32 %v2078, %v2246
        %2248 = vmatmul.bf16.gmra.mxu0 %v915
        %v2249 = vpop.f32.mrf.mxu0
        %v2250 = vadd.f32 %v2081, %v2249
        %v2251 = vpop.f32.mrf.mxu0
        %v2252 = vadd.f32 %v2083, %v2251
        %2253 = vmatmul.bf16.gmra.mxu0 %v917
        %v2254 = vpop.f32.mrf.mxu0
        %v2255 = vadd.f32 %v2086, %v2254
        %v2256 = vpop.f32.mrf.mxu0
        %v2257 = vadd.f32 %v2088, %v2256
        %2258 = vmatmul.bf16.gmra.mxu0 %v919
        %v2259 = vpop.f32.mrf.mxu0
        %v2260 = vadd.f32 %v2091, %v2259
        %v2261 = vpop.f32.mrf.mxu0
        %v2262 = vadd.f32 %v2093, %v2261
        %2263 = vmatmul.bf16.gmra.mxu0 %v921
        %v2264 = vpop.f32.mrf.mxu0
        %v2265 = vadd.f32 %v2096, %v2264
        %v2266 = vpop.f32.mrf.mxu0
        %v2267 = vadd.f32 %v2098, %v2266
        %2268 = vmatmul.bf16.gmra.mxu0 %v923
        %v2269 = vpop.f32.mrf.mxu0
        %v2270 = vadd.f32 %v2101, %v2269
        %v2271 = vpop.f32.mrf.mxu0
        %v2272 = vadd.f32 %v2103, %v2271
        %2273 = vmatmul.bf16.gmra.mxu0 %v925
        %v2274 = vpop.f32.mrf.mxu0
        %v2275 = vadd.f32 %v2106, %v2274
        %v2276 = vpop.f32.mrf.mxu0
        %v2277 = vadd.f32 %v2108, %v2276
        %2278 = vmatmul.bf16.gmra.mxu0 %v927
        %v2279 = vpop.f32.mrf.mxu0
        %v2280 = vadd.f32 %v2111, %v2279
        %v2281 = vpop.f32.mrf.mxu0
        %v2282 = vadd.f32 %v2113, %v2281
        %2283 = vmatmul.bf16.gmra.mxu0 %v929
        %v2284 = vpop.f32.mrf.mxu0
        %v2285 = vadd.f32 %v2116, %v2284
        %v2286 = vpop.f32.mrf.mxu0
        %v2287 = vadd.f32 %v2118, %v2286
        %2288 = vmatmul.bf16.gmra.mxu0 %v931
        %v2289 = vpop.f32.mrf.mxu0
        %v2290 = vadd.f32 %v2121, %v2289
        %v2291 = vpop.f32.mrf.mxu0
        %v2292 = vadd.f32 %v2123, %v2291
        %2293 = vmatmul.bf16.gmra.mxu0 %v933
        %v2294 = vpop.f32.mrf.mxu0
        %v2295 = vadd.f32 %v2126, %v2294
        %v2296 = vpop.f32.mrf.mxu0
        %v2297 = vadd.f32 %v2128, %v2296
        %2298 = vmatmul.bf16.gmra.mxu0 %v935
        %v2299 = vpop.f32.mrf.mxu0
        %v2300 = vadd.f32 %v2131, %v2299
        %v2301 = vpop.f32.mrf.mxu0
        %v2302 = vadd.f32 %v2133, %v2301
        %2303 = vmatmul.bf16.gmra.mxu0 %v937
        %v2304 = vpop.f32.mrf.mxu0
        %v2305 = vadd.f32 %v2136, %v2304
        %v2306 = vpop.f32.mrf.mxu0
        %v2307 = vadd.f32 %v2138, %v2306
        %2308 = vmatmul.bf16.gmra.mxu0 %v939
        %v2309 = vpop.f32.mrf.mxu0
        %v2310 = vadd.f32 %v2141, %v2309
        %v2311 = vpop.f32.mrf.mxu0
        %v2312 = vadd.f32 %v2143, %v2311
        %2313 = vmatmul.bf16.gmra.mxu0 %v941
        %v2314 = vpop.f32.mrf.mxu0
        %v2315 = vadd.f32 %v2146, %v2314
        %v2316 = vpop.f32.mrf.mxu0
        %v2317 = vadd.f32 %v2148, %v2316
        %2318 = vmatmul.bf16.gmra.mxu0 %v943
        %v2319 = vpop.f32.mrf.mxu0
        %v2320 = vadd.f32 %v2151, %v2319
        %v2321 = vpop.f32.mrf.mxu0
        %v2322 = vadd.f32 %v2153, %v2321
        %2323 = vmatmul.bf16.gmra.mxu0 %v945
        %v2324 = vpop.f32.mrf.mxu0
        %v2325 = vadd.f32 %v2156, %v2324
        %v2326 = vpop.f32.mrf.mxu0
        %v2327 = vadd.f32 %v2158, %v2326
        %2328 = vmatmul.bf16.gmra.mxu0 %v947
        %v2329 = vpop.f32.mrf.mxu0
        %v2330 = vadd.f32 %v2161, %v2329
        %v2331 = vpop.f32.mrf.mxu0
        %v2332 = vadd.f32 %v2163, %v2331
        %2333 = vmatmul.bf16.gmra.mxu0 %v949
        %v2334 = vpop.f32.mrf.mxu0
        %v2335 = vadd.f32 %v2166, %v2334
        %v2336 = vpop.f32.mrf.mxu0
        %v2337 = vadd.f32 %v2168, %v2336
        %2338 = vmatmul.bf16.gmra.mxu0 %v951
        %v2339 = vpop.f32.mrf.mxu0
        %v2340 = vadd.f32 %v2171, %v2339
        %v2341 = vpop.f32.mrf.mxu0
        %v2342 = vadd.f32 %v2173, %v2341
        %2343 = vmatmul.bf16.gmra.mxu0 %v953
        %v2344 = vpop.f32.mrf.mxu0
        %v2345 = vadd.f32 %v2176, %v2344
        %v2346 = vpop.f32.mrf.mxu0
        %v2347 = vadd.f32 %v2178, %v2346
        %2348 = vmatmul.bf16.gmra.mxu0 %v955
        %v2349 = vpop.f32.mrf.mxu0
        %v2350 = vadd.f32 %v2181, %v2349
        %v2351 = vpop.f32.mrf.mxu0
        %v2352 = vadd.f32 %v2183, %v2351
        %2353 = vdwg.mxu0
        %2354 = vmatpush.bf16.msra.mxu0 %v1243
        %2355 = vmatpush.bf16.msra.mxu0 %v1239
        %2356 = vmatpush.bf16.msra.mxu0 %v1235
        %2357 = vmatpush.bf16.msra.mxu0 %v1231
        %2358 = vmatpush.bf16.msra.mxu0 %v1227
        %2359 = vmatpush.bf16.msra.mxu0 %v1223
        %2360 = vmatpush.bf16.msra.mxu0 %v1219
        %2361 = vmatpush.bf16.msra.mxu0 %v1215
        %2362 = vmatmul.bf16.gmra.mxu0 %v892
        %v2363 = vpop.f32.mrf.mxu0
        %v2364 = vadd.f32 0.0, %v2363
        %v2365 = vpop.f32.mrf.mxu0
        %v2366 = vadd.f32 0.0, %v2365
        %2367 = vmatmul.bf16.gmra.mxu0 %v894
        %v2368 = vpop.f32.mrf.mxu0
        %v2369 = vadd.f32 0.0, %v2368
        %v2370 = vpop.f32.mrf.mxu0
        %v2371 = vadd.f32 0.0, %v2370
        %2372 = vmatmul.bf16.gmra.mxu0 %v896
        %v2373 = vpop.f32.mrf.mxu0
        %v2374 = vadd.f32 0.0, %v2373
        %v2375 = vpop.f32.mrf.mxu0
        %v2376 = vadd.f32 0.0, %v2375
        %2377 = vmatmul.bf16.gmra.mxu0 %v898
        %v2378 = vpop.f32.mrf.mxu0
        %v2379 = vadd.f32 0.0, %v2378
        %v2380 = vpop.f32.mrf.mxu0
        %v2381 = vadd.f32 0.0, %v2380
        %2382 = vmatmul.bf16.gmra.mxu0 %v900
        %v2383 = vpop.f32.mrf.mxu0
        %v2384 = vadd.f32 0.0, %v2383
        %v2385 = vpop.f32.mrf.mxu0
        %v2386 = vadd.f32 0.0, %v2385
        %2387 = vmatmul.bf16.gmra.mxu0 %v902
        %v2388 = vpop.f32.mrf.mxu0
        %v2389 = vadd.f32 0.0, %v2388
        %v2390 = vpop.f32.mrf.mxu0
        %v2391 = vadd.f32 0.0, %v2390
        %2392 = vmatmul.bf16.gmra.mxu0 %v904
        %v2393 = vpop.f32.mrf.mxu0
        %v2394 = vadd.f32 0.0, %v2393
        %v2395 = vpop.f32.mrf.mxu0
        %v2396 = vadd.f32 0.0, %v2395
        %2397 = vmatmul.bf16.gmra.mxu0 %v906
        %v2398 = vpop.f32.mrf.mxu0
        %v2399 = vadd.f32 0.0, %v2398
        %v2400 = vpop.f32.mrf.mxu0
        %v2401 = vadd.f32 0.0, %v2400
        %2402 = vmatmul.bf16.gmra.mxu0 %v908
        %v2403 = vpop.f32.mrf.mxu0
        %v2404 = vadd.f32 0.0, %v2403
        %v2405 = vpop.f32.mrf.mxu0
        %v2406 = vadd.f32 0.0, %v2405
        %2407 = vmatmul.bf16.gmra.mxu0 %v910
        %v2408 = vpop.f32.mrf.mxu0
        %v2409 = vadd.f32 0.0, %v2408
        %v2410 = vpop.f32.mrf.mxu0
        %v2411 = vadd.f32 0.0, %v2410
        %2412 = vmatmul.bf16.gmra.mxu0 %v912
        %v2413 = vpop.f32.mrf.mxu0
        %v2414 = vadd.f32 0.0, %v2413
        %v2415 = vpop.f32.mrf.mxu0
        %v2416 = vadd.f32 0.0, %v2415
        %2417 = vmatmul.bf16.gmra.mxu0 %v914
        %v2418 = vpop.f32.mrf.mxu0
        %v2419 = vadd.f32 0.0, %v2418
        %v2420 = vpop.f32.mrf.mxu0
        %v2421 = vadd.f32 0.0, %v2420
        %2422 = vmatmul.bf16.gmra.mxu0 %v916
        %v2423 = vpop.f32.mrf.mxu0
        %v2424 = vadd.f32 0.0, %v2423
        %v2425 = vpop.f32.mrf.mxu0
        %v2426 = vadd.f32 0.0, %v2425
        %2427 = vmatmul.bf16.gmra.mxu0 %v918
        %v2428 = vpop.f32.mrf.mxu0
        %v2429 = vadd.f32 0.0, %v2428
        %v2430 = vpop.f32.mrf.mxu0
        %v2431 = vadd.f32 0.0, %v2430
        %2432 = vmatmul.bf16.gmra.mxu0 %v920
        %v2433 = vpop.f32.mrf.mxu0
        %v2434 = vadd.f32 0.0, %v2433
        %v2435 = vpop.f32.mrf.mxu0
        %v2436 = vadd.f32 0.0, %v2435
        %2437 = vmatmul.bf16.gmra.mxu0 %v922
        %v2438 = vpop.f32.mrf.mxu0
        %v2439 = vadd.f32 0.0, %v2438
        %v2440 = vpop.f32.mrf.mxu0
        %v2441 = vadd.f32 0.0, %v2440
        %2442 = vmatmul.bf16.gmra.mxu0 %v924
        %v2443 = vpop.f32.mrf.mxu0
        %v2444 = vadd.f32 0.0, %v2443
        %v2445 = vpop.f32.mrf.mxu0
        %v2446 = vadd.f32 0.0, %v2445
        %2447 = vmatmul.bf16.gmra.mxu0 %v926
        %v2448 = vpop.f32.mrf.mxu0
        %v2449 = vadd.f32 0.0, %v2448
        %v2450 = vpop.f32.mrf.mxu0
        %v2451 = vadd.f32 0.0, %v2450
        %2452 = vmatmul.bf16.gmra.mxu0 %v928
        %v2453 = vpop.f32.mrf.mxu0
        %v2454 = vadd.f32 0.0, %v2453
        %v2455 = vpop.f32.mrf.mxu0
        %v2456 = vadd.f32 0.0, %v2455
        %2457 = vmatmul.bf16.gmra.mxu0 %v930
        %v2458 = vpop.f32.mrf.mxu0
        %v2459 = vadd.f32 0.0, %v2458
        %v2460 = vpop.f32.mrf.mxu0
        %v2461 = vadd.f32 0.0, %v2460
        %2462 = vmatmul.bf16.gmra.mxu0 %v932
        %v2463 = vpop.f32.mrf.mxu0
        %v2464 = vadd.f32 0.0, %v2463
        %v2465 = vpop.f32.mrf.mxu0
        %v2466 = vadd.f32 0.0, %v2465
        %2467 = vmatmul.bf16.gmra.mxu0 %v934
        %v2468 = vpop.f32.mrf.mxu0
        %v2469 = vadd.f32 0.0, %v2468
        %v2470 = vpop.f32.mrf.mxu0
        %v2471 = vadd.f32 0.0, %v2470
        %2472 = vmatmul.bf16.gmra.mxu0 %v936
        %v2473 = vpop.f32.mrf.mxu0
        %v2474 = vadd.f32 0.0, %v2473
        %v2475 = vpop.f32.mrf.mxu0
        %v2476 = vadd.f32 0.0, %v2475
        %2477 = vmatmul.bf16.gmra.mxu0 %v938
        %v2478 = vpop.f32.mrf.mxu0
        %v2479 = vadd.f32 0.0, %v2478
        %v2480 = vpop.f32.mrf.mxu0
        %v2481 = vadd.f32 0.0, %v2480
        %2482 = vmatmul.bf16.gmra.mxu0 %v940
        %v2483 = vpop.f32.mrf.mxu0
        %v2484 = vadd.f32 0.0, %v2483
        %v2485 = vpop.f32.mrf.mxu0
        %v2486 = vadd.f32 0.0, %v2485
        %2487 = vmatmul.bf16.gmra.mxu0 %v942
        %v2488 = vpop.f32.mrf.mxu0
        %v2489 = vadd.f32 0.0, %v2488
        %v2490 = vpop.f32.mrf.mxu0
        %v2491 = vadd.f32 0.0, %v2490
        %2492 = vmatmul.bf16.gmra.mxu0 %v944
        %v2493 = vpop.f32.mrf.mxu0
        %v2494 = vadd.f32 0.0, %v2493
        %v2495 = vpop.f32.mrf.mxu0
        %v2496 = vadd.f32 0.0, %v2495
        %2497 = vmatmul.bf16.gmra.mxu0 %v946
        %v2498 = vpop.f32.mrf.mxu0
        %v2499 = vadd.f32 0.0, %v2498
        %v2500 = vpop.f32.mrf.mxu0
        %v2501 = vadd.f32 0.0, %v2500
        %2502 = vmatmul.bf16.gmra.mxu0 %v948
        %v2503 = vpop.f32.mrf.mxu0
        %v2504 = vadd.f32 0.0, %v2503
        %v2505 = vpop.f32.mrf.mxu0
        %v2506 = vadd.f32 0.0, %v2505
        %2507 = vmatmul.bf16.gmra.mxu0 %v950
        %v2508 = vpop.f32.mrf.mxu0
        %v2509 = vadd.f32 0.0, %v2508
        %v2510 = vpop.f32.mrf.mxu0
        %v2511 = vadd.f32 0.0, %v2510
        %2512 = vmatmul.bf16.gmra.mxu0 %v952
        %v2513 = vpop.f32.mrf.mxu0
        %v2514 = vadd.f32 0.0, %v2513
        %v2515 = vpop.f32.mrf.mxu0
        %v2516 = vadd.f32 0.0, %v2515
        %2517 = vmatmul.bf16.gmra.mxu0 %v954
        %v2518 = vpop.f32.mrf.mxu0
        %v2519 = vadd.f32 0.0, %v2518
        %v2520 = vpop.f32.mrf.mxu0
        %v2521 = vadd.f32 0.0, %v2520
        %2522 = vdwg.mxu0
        %2523 = vmatpush.bf16.msra.mxu0 %v1275
        %2524 = vmatpush.bf16.msra.mxu0 %v1271
        %2525 = vmatpush.bf16.msra.mxu0 %v1267
        %2526 = vmatpush.bf16.msra.mxu0 %v1263
        %2527 = vmatpush.bf16.msra.mxu0 %v1259
        %2528 = vmatpush.bf16.msra.mxu0 %v1255
        %2529 = vmatpush.bf16.msra.mxu0 %v1251
        %2530 = vmatpush.bf16.msra.mxu0 %v1247
        %2531 = vmatmul.bf16.gmra.mxu0 %v893
        %v2532 = vpop.f32.mrf.mxu0
        %v2533 = vadd.f32 %v2364, %v2532
        %v2534 = vpop.f32.mrf.mxu0
        %v2535 = vadd.f32 %v2366, %v2534
        %2536 = vmatmul.bf16.gmra.mxu0 %v895
        %v2537 = vpop.f32.mrf.mxu0
        %v2538 = vadd.f32 %v2369, %v2537
        %v2539 = vpop.f32.mrf.mxu0
        %v2540 = vadd.f32 %v2371, %v2539
        %2541 = vmatmul.bf16.gmra.mxu0 %v897
        %v2542 = vpop.f32.mrf.mxu0
        %v2543 = vadd.f32 %v2374, %v2542
        %v2544 = vpop.f32.mrf.mxu0
        %v2545 = vadd.f32 %v2376, %v2544
        %2546 = vmatmul.bf16.gmra.mxu0 %v899
        %v2547 = vpop.f32.mrf.mxu0
        %v2548 = vadd.f32 %v2379, %v2547
        %v2549 = vpop.f32.mrf.mxu0
        %v2550 = vadd.f32 %v2381, %v2549
        %2551 = vmatmul.bf16.gmra.mxu0 %v901
        %v2552 = vpop.f32.mrf.mxu0
        %v2553 = vadd.f32 %v2384, %v2552
        %v2554 = vpop.f32.mrf.mxu0
        %v2555 = vadd.f32 %v2386, %v2554
        %2556 = vmatmul.bf16.gmra.mxu0 %v903
        %v2557 = vpop.f32.mrf.mxu0
        %v2558 = vadd.f32 %v2389, %v2557
        %v2559 = vpop.f32.mrf.mxu0
        %v2560 = vadd.f32 %v2391, %v2559
        %2561 = vmatmul.bf16.gmra.mxu0 %v905
        %v2562 = vpop.f32.mrf.mxu0
        %v2563 = vadd.f32 %v2394, %v2562
        %v2564 = vpop.f32.mrf.mxu0
        %v2565 = vadd.f32 %v2396, %v2564
        %2566 = vmatmul.bf16.gmra.mxu0 %v907
        %v2567 = vpop.f32.mrf.mxu0
        %v2568 = vadd.f32 %v2399, %v2567
        %v2569 = vpop.f32.mrf.mxu0
        %v2570 = vadd.f32 %v2401, %v2569
        %2571 = vmatmul.bf16.gmra.mxu0 %v909
        %v2572 = vpop.f32.mrf.mxu0
        %v2573 = vadd.f32 %v2404, %v2572
        %v2574 = vpop.f32.mrf.mxu0
        %v2575 = vadd.f32 %v2406, %v2574
        %2576 = vmatmul.bf16.gmra.mxu0 %v911
        %v2577 = vpop.f32.mrf.mxu0
        %v2578 = vadd.f32 %v2409, %v2577
        %v2579 = vpop.f32.mrf.mxu0
        %v2580 = vadd.f32 %v2411, %v2579
        %2581 = vmatmul.bf16.gmra.mxu0 %v913
        %v2582 = vpop.f32.mrf.mxu0
        %v2583 = vadd.f32 %v2414, %v2582
        %v2584 = vpop.f32.mrf.mxu0
        %v2585 = vadd.f32 %v2416, %v2584
        %2586 = vmatmul.bf16.gmra.mxu0 %v915
        %v2587 = vpop.f32.mrf.mxu0
        %v2588 = vadd.f32 %v2419, %v2587
        %v2589 = vpop.f32.mrf.mxu0
        %v2590 = vadd.f32 %v2421, %v2589
        %2591 = vmatmul.bf16.gmra.mxu0 %v917
        %v2592 = vpop.f32.mrf.mxu0
        %v2593 = vadd.f32 %v2424, %v2592
        %v2594 = vpop.f32.mrf.mxu0
        %v2595 = vadd.f32 %v2426, %v2594
        %2596 = vmatmul.bf16.gmra.mxu0 %v919
        %v2597 = vpop.f32.mrf.mxu0
        %v2598 = vadd.f32 %v2429, %v2597
        %v2599 = vpop.f32.mrf.mxu0
        %v2600 = vadd.f32 %v2431, %v2599
        %2601 = vmatmul.bf16.gmra.mxu0 %v921
        %v2602 = vpop.f32.mrf.mxu0
        %v2603 = vadd.f32 %v2434, %v2602
        %v2604 = vpop.f32.mrf.mxu0
        %v2605 = vadd.f32 %v2436, %v2604
        %2606 = vmatmul.bf16.gmra.mxu0 %v923
        %v2607 = vpop.f32.mrf.mxu0
        %v2608 = vadd.f32 %v2439, %v2607
        %v2609 = vpop.f32.mrf.mxu0
        %v2610 = vadd.f32 %v2441, %v2609
        %2611 = vmatmul.bf16.gmra.mxu0 %v925
        %v2612 = vpop.f32.mrf.mxu0
        %v2613 = vadd.f32 %v2444, %v2612
        %v2614 = vpop.f32.mrf.mxu0
        %v2615 = vadd.f32 %v2446, %v2614
        %2616 = vmatmul.bf16.gmra.mxu0 %v927
        %v2617 = vpop.f32.mrf.mxu0
        %v2618 = vadd.f32 %v2449, %v2617
        %v2619 = vpop.f32.mrf.mxu0
        %v2620 = vadd.f32 %v2451, %v2619
        %2621 = vmatmul.bf16.gmra.mxu0 %v929
        %v2622 = vpop.f32.mrf.mxu0
        %v2623 = vadd.f32 %v2454, %v2622
        %v2624 = vpop.f32.mrf.mxu0
        %v2625 = vadd.f32 %v2456, %v2624
        %2626 = vmatmul.bf16.gmra.mxu0 %v931
        %v2627 = vpop.f32.mrf.mxu0
        %v2628 = vadd.f32 %v2459, %v2627
        %v2629 = vpop.f32.mrf.mxu0
        %v2630 = vadd.f32 %v2461, %v2629
        %2631 = vmatmul.bf16.gmra.mxu0 %v933
        %v2632 = vpop.f32.mrf.mxu0
        %v2633 = vadd.f32 %v2464, %v2632
        %v2634 = vpop.f32.mrf.mxu0
        %v2635 = vadd.f32 %v2466, %v2634
        %2636 = vmatmul.bf16.gmra.mxu0 %v935
        %v2637 = vpop.f32.mrf.mxu0
        %v2638 = vadd.f32 %v2469, %v2637
        %v2639 = vpop.f32.mrf.mxu0
        %v2640 = vadd.f32 %v2471, %v2639
        %2641 = vmatmul.bf16.gmra.mxu0 %v937
        %v2642 = vpop.f32.mrf.mxu0
        %v2643 = vadd.f32 %v2474, %v2642
        %v2644 = vpop.f32.mrf.mxu0
        %v2645 = vadd.f32 %v2476, %v2644
        %2646 = vmatmul.bf16.gmra.mxu0 %v939
        %v2647 = vpop.f32.mrf.mxu0
        %v2648 = vadd.f32 %v2479, %v2647
        %v2649 = vpop.f32.mrf.mxu0
        %v2650 = vadd.f32 %v2481, %v2649
        %2651 = vmatmul.bf16.gmra.mxu0 %v941
        %v2652 = vpop.f32.mrf.mxu0
        %v2653 = vadd.f32 %v2484, %v2652
        %v2654 = vpop.f32.mrf.mxu0
        %v2655 = vadd.f32 %v2486, %v2654
        %2656 = vmatmul.bf16.gmra.mxu0 %v943
        %v2657 = vpop.f32.mrf.mxu0
        %v2658 = vadd.f32 %v2489, %v2657
        %v2659 = vpop.f32.mrf.mxu0
        %v2660 = vadd.f32 %v2491, %v2659
        %2661 = vmatmul.bf16.gmra.mxu0 %v945
        %v2662 = vpop.f32.mrf.mxu0
        %v2663 = vadd.f32 %v2494, %v2662
        %v2664 = vpop.f32.mrf.mxu0
        %v2665 = vadd.f32 %v2496, %v2664
        %2666 = vmatmul.bf16.gmra.mxu0 %v947
        %v2667 = vpop.f32.mrf.mxu0
        %v2668 = vadd.f32 %v2499, %v2667
        %v2669 = vpop.f32.mrf.mxu0
        %v2670 = vadd.f32 %v2501, %v2669
        %2671 = vmatmul.bf16.gmra.mxu0 %v949
        %v2672 = vpop.f32.mrf.mxu0
        %v2673 = vadd.f32 %v2504, %v2672
        %v2674 = vpop.f32.mrf.mxu0
        %v2675 = vadd.f32 %v2506, %v2674
        %2676 = vmatmul.bf16.gmra.mxu0 %v951
        %v2677 = vpop.f32.mrf.mxu0
        %v2678 = vadd.f32 %v2509, %v2677
        %v2679 = vpop.f32.mrf.mxu0
        %v2680 = vadd.f32 %v2511, %v2679
        %2681 = vmatmul.bf16.gmra.mxu0 %v953
        %v2682 = vpop.f32.mrf.mxu0
        %v2683 = vadd.f32 %v2514, %v2682
        %v2684 = vpop.f32.mrf.mxu0
        %v2685 = vadd.f32 %v2516, %v2684
        %2686 = vmatmul.bf16.gmra.mxu0 %v955
        %v2687 = vpop.f32.mrf.mxu0
        %v2688 = vadd.f32 %v2519, %v2687
        %v2689 = vpop.f32.mrf.mxu0
        %v2690 = vadd.f32 %v2521, %v2689
        %2691 = vdwg.mxu0
        %v2692 = vlaneseq
        %v2693 = vand.u32 %v2692, 127
        %v2694 = vadd.s32 %v2693, 128
        %v2695 = vadd.s32 %v2693, 256
        %v2696 = vadd.s32 %v2693, 384
        %s2697 = smul.u32 %s19, 512
        %s2698 = ssub.s32 640, %s2697
        %v2699 = vstv %s2698
        %vm2700 = vcmp.lt.s32.totalorder %v2693, %v2699
        %vm2701 = vcmp.lt.s32.totalorder %v2694, %v2699
        %vm2702 = vcmp.lt.s32.totalorder %v2695, %v2699
        %vm2703 = vcmp.lt.s32.totalorder %v2696, %v2699
        %v2704 = vsel %vm2700, %v1519, -1e+30
        %v2705 = vsel %vm2701, %v1857, -1e+30
        %v2706 = vsel %vm2702, %v2195, -1e+30
        %v2707 = vsel %vm2703, %v2533, -1e+30
        %v2708 = vsel %vm2700, %v1521, -1e+30
        %v2709 = vsel %vm2701, %v1859, -1e+30
        %v2710 = vsel %vm2702, %v2197, -1e+30
        %v2711 = vsel %vm2703, %v2535, -1e+30
        %v2712 = vsel %vm2700, %v1524, -1e+30
        %v2713 = vsel %vm2701, %v1862, -1e+30
        %v2714 = vsel %vm2702, %v2200, -1e+30
        %v2715 = vsel %vm2703, %v2538, -1e+30
        %v2716 = vsel %vm2700, %v1526, -1e+30
        %v2717 = vsel %vm2701, %v1864, -1e+30
        %v2718 = vsel %vm2702, %v2202, -1e+30
        %v2719 = vsel %vm2703, %v2540, -1e+30
        %v2720 = vsel %vm2700, %v1529, -1e+30
        %v2721 = vsel %vm2701, %v1867, -1e+30
        %v2722 = vsel %vm2702, %v2205, -1e+30
        %v2723 = vsel %vm2703, %v2543, -1e+30
        %v2724 = vsel %vm2700, %v1531, -1e+30
        %v2725 = vsel %vm2701, %v1869, -1e+30
        %v2726 = vsel %vm2702, %v2207, -1e+30
        %v2727 = vsel %vm2703, %v2545, -1e+30
        %v2728 = vsel %vm2700, %v1534, -1e+30
        %v2729 = vsel %vm2701, %v1872, -1e+30
        %v2730 = vsel %vm2702, %v2210, -1e+30
        %v2731 = vsel %vm2703, %v2548, -1e+30
        %v2732 = vsel %vm2700, %v1536, -1e+30
        %v2733 = vsel %vm2701, %v1874, -1e+30
        %v2734 = vsel %vm2702, %v2212, -1e+30
        %v2735 = vsel %vm2703, %v2550, -1e+30
        %v2736 = vsel %vm2700, %v1539, -1e+30
        %v2737 = vsel %vm2701, %v1877, -1e+30
        %v2738 = vsel %vm2702, %v2215, -1e+30
        %v2739 = vsel %vm2703, %v2553, -1e+30
        %v2740 = vsel %vm2700, %v1541, -1e+30
        %v2741 = vsel %vm2701, %v1879, -1e+30
        %v2742 = vsel %vm2702, %v2217, -1e+30
        %v2743 = vsel %vm2703, %v2555, -1e+30
        %v2744 = vsel %vm2700, %v1544, -1e+30
        %v2745 = vsel %vm2701, %v1882, -1e+30
        %v2746 = vsel %vm2702, %v2220, -1e+30
        %v2747 = vsel %vm2703, %v2558, -1e+30
        %v2748 = vsel %vm2700, %v1546, -1e+30
        %v2749 = vsel %vm2701, %v1884, -1e+30
        %v2750 = vsel %vm2702, %v2222, -1e+30
        %v2751 = vsel %vm2703, %v2560, -1e+30
        %v2752 = vsel %vm2700, %v1549, -1e+30
        %v2753 = vsel %vm2701, %v1887, -1e+30
        %v2754 = vsel %vm2702, %v2225, -1e+30
        %v2755 = vsel %vm2703, %v2563, -1e+30
        %v2756 = vsel %vm2700, %v1551, -1e+30
        %v2757 = vsel %vm2701, %v1889, -1e+30
        %v2758 = vsel %vm2702, %v2227, -1e+30
        %v2759 = vsel %vm2703, %v2565, -1e+30
        %v2760 = vsel %vm2700, %v1554, -1e+30
        %v2761 = vsel %vm2701, %v1892, -1e+30
        %v2762 = vsel %vm2702, %v2230, -1e+30
        %v2763 = vsel %vm2703, %v2568, -1e+30
        %v2764 = vsel %vm2700, %v1556, -1e+30
        %v2765 = vsel %vm2701, %v1894, -1e+30
        %v2766 = vsel %vm2702, %v2232, -1e+30
        %v2767 = vsel %vm2703, %v2570, -1e+30
        %v2768 = vsel %vm2700, %v1559, -1e+30
        %v2769 = vsel %vm2701, %v1897, -1e+30
        %v2770 = vsel %vm2702, %v2235, -1e+30
        %v2771 = vsel %vm2703, %v2573, -1e+30
        %v2772 = vsel %vm2700, %v1561, -1e+30
        %v2773 = vsel %vm2701, %v1899, -1e+30
        %v2774 = vsel %vm2702, %v2237, -1e+30
        %v2775 = vsel %vm2703, %v2575, -1e+30
        %v2776 = vsel %vm2700, %v1564, -1e+30
        %v2777 = vsel %vm2701, %v1902, -1e+30
        %v2778 = vsel %vm2702, %v2240, -1e+30
        %v2779 = vsel %vm2703, %v2578, -1e+30
        %v2780 = vsel %vm2700, %v1566, -1e+30
        %v2781 = vsel %vm2701, %v1904, -1e+30
        %v2782 = vsel %vm2702, %v2242, -1e+30
        %v2783 = vsel %vm2703, %v2580, -1e+30
        %v2784 = vsel %vm2700, %v1569, -1e+30
        %v2785 = vsel %vm2701, %v1907, -1e+30
        %v2786 = vsel %vm2702, %v2245, -1e+30
        %v2787 = vsel %vm2703, %v2583, -1e+30
        %v2788 = vsel %vm2700, %v1571, -1e+30
        %v2789 = vsel %vm2701, %v1909, -1e+30
        %v2790 = vsel %vm2702, %v2247, -1e+30
        %v2791 = vsel %vm2703, %v2585, -1e+30
        %v2792 = vsel %vm2700, %v1574, -1e+30
        %v2793 = vsel %vm2701, %v1912, -1e+30
        %v2794 = vsel %vm2702, %v2250, -1e+30
        %v2795 = vsel %vm2703, %v2588, -1e+30
        %v2796 = vsel %vm2700, %v1576, -1e+30
        %v2797 = vsel %vm2701, %v1914, -1e+30
        %v2798 = vsel %vm2702, %v2252, -1e+30
        %v2799 = vsel %vm2703, %v2590, -1e+30
        %v2800 = vsel %vm2700, %v1579, -1e+30
        %v2801 = vsel %vm2701, %v1917, -1e+30
        %v2802 = vsel %vm2702, %v2255, -1e+30
        %v2803 = vsel %vm2703, %v2593, -1e+30
        %v2804 = vsel %vm2700, %v1581, -1e+30
        %v2805 = vsel %vm2701, %v1919, -1e+30
        %v2806 = vsel %vm2702, %v2257, -1e+30
        %v2807 = vsel %vm2703, %v2595, -1e+30
        %v2808 = vsel %vm2700, %v1584, -1e+30
        %v2809 = vsel %vm2701, %v1922, -1e+30
        %v2810 = vsel %vm2702, %v2260, -1e+30
        %v2811 = vsel %vm2703, %v2598, -1e+30
        %v2812 = vsel %vm2700, %v1586, -1e+30
        %v2813 = vsel %vm2701, %v1924, -1e+30
        %v2814 = vsel %vm2702, %v2262, -1e+30
        %v2815 = vsel %vm2703, %v2600, -1e+30
        %v2816 = vsel %vm2700, %v1589, -1e+30
        %v2817 = vsel %vm2701, %v1927, -1e+30
        %v2818 = vsel %vm2702, %v2265, -1e+30
        %v2819 = vsel %vm2703, %v2603, -1e+30
        %v2820 = vsel %vm2700, %v1591, -1e+30
        %v2821 = vsel %vm2701, %v1929, -1e+30
        %v2822 = vsel %vm2702, %v2267, -1e+30
        %v2823 = vsel %vm2703, %v2605, -1e+30
        %v2824 = vsel %vm2700, %v1594, -1e+30
        %v2825 = vsel %vm2701, %v1932, -1e+30
        %v2826 = vsel %vm2702, %v2270, -1e+30
        %v2827 = vsel %vm2703, %v2608, -1e+30
        %v2828 = vsel %vm2700, %v1596, -1e+30
        %v2829 = vsel %vm2701, %v1934, -1e+30
        %v2830 = vsel %vm2702, %v2272, -1e+30
        %v2831 = vsel %vm2703, %v2610, -1e+30
        %v2832 = vsel %vm2700, %v1599, -1e+30
        %v2833 = vsel %vm2701, %v1937, -1e+30
        %v2834 = vsel %vm2702, %v2275, -1e+30
        %v2835 = vsel %vm2703, %v2613, -1e+30
        %v2836 = vsel %vm2700, %v1601, -1e+30
        %v2837 = vsel %vm2701, %v1939, -1e+30
        %v2838 = vsel %vm2702, %v2277, -1e+30
        %v2839 = vsel %vm2703, %v2615, -1e+30
        %v2840 = vsel %vm2700, %v1604, -1e+30
        %v2841 = vsel %vm2701, %v1942, -1e+30
        %v2842 = vsel %vm2702, %v2280, -1e+30
        %v2843 = vsel %vm2703, %v2618, -1e+30
        %v2844 = vsel %vm2700, %v1606, -1e+30
        %v2845 = vsel %vm2701, %v1944, -1e+30
        %v2846 = vsel %vm2702, %v2282, -1e+30
        %v2847 = vsel %vm2703, %v2620, -1e+30
        %v2848 = vsel %vm2700, %v1609, -1e+30
        %v2849 = vsel %vm2701, %v1947, -1e+30
        %v2850 = vsel %vm2702, %v2285, -1e+30
        %v2851 = vsel %vm2703, %v2623, -1e+30
        %v2852 = vsel %vm2700, %v1611, -1e+30
        %v2853 = vsel %vm2701, %v1949, -1e+30
        %v2854 = vsel %vm2702, %v2287, -1e+30
        %v2855 = vsel %vm2703, %v2625, -1e+30
        %v2856 = vsel %vm2700, %v1614, -1e+30
        %v2857 = vsel %vm2701, %v1952, -1e+30
        %v2858 = vsel %vm2702, %v2290, -1e+30
        %v2859 = vsel %vm2703, %v2628, -1e+30
        %v2860 = vsel %vm2700, %v1616, -1e+30
        %v2861 = vsel %vm2701, %v1954, -1e+30
        %v2862 = vsel %vm2702, %v2292, -1e+30
        %v2863 = vsel %vm2703, %v2630, -1e+30
        %v2864 = vsel %vm2700, %v1619, -1e+30
        %v2865 = vsel %vm2701, %v1957, -1e+30
        %v2866 = vsel %vm2702, %v2295, -1e+30
        %v2867 = vsel %vm2703, %v2633, -1e+30
        %v2868 = vsel %vm2700, %v1621, -1e+30
        %v2869 = vsel %vm2701, %v1959, -1e+30
        %v2870 = vsel %vm2702, %v2297, -1e+30
        %v2871 = vsel %vm2703, %v2635, -1e+30
        %v2872 = vsel %vm2700, %v1624, -1e+30
        %v2873 = vsel %vm2701, %v1962, -1e+30
        %v2874 = vsel %vm2702, %v2300, -1e+30
        %v2875 = vsel %vm2703, %v2638, -1e+30
        %v2876 = vsel %vm2700, %v1626, -1e+30
        %v2877 = vsel %vm2701, %v1964, -1e+30
        %v2878 = vsel %vm2702, %v2302, -1e+30
        %v2879 = vsel %vm2703, %v2640, -1e+30
        %v2880 = vsel %vm2700, %v1629, -1e+30
        %v2881 = vsel %vm2701, %v1967, -1e+30
        %v2882 = vsel %vm2702, %v2305, -1e+30
        %v2883 = vsel %vm2703, %v2643, -1e+30
        %v2884 = vsel %vm2700, %v1631, -1e+30
        %v2885 = vsel %vm2701, %v1969, -1e+30
        %v2886 = vsel %vm2702, %v2307, -1e+30
        %v2887 = vsel %vm2703, %v2645, -1e+30
        %v2888 = vsel %vm2700, %v1634, -1e+30
        %v2889 = vsel %vm2701, %v1972, -1e+30
        %v2890 = vsel %vm2702, %v2310, -1e+30
        %v2891 = vsel %vm2703, %v2648, -1e+30
        %v2892 = vsel %vm2700, %v1636, -1e+30
        %v2893 = vsel %vm2701, %v1974, -1e+30
        %v2894 = vsel %vm2702, %v2312, -1e+30
        %v2895 = vsel %vm2703, %v2650, -1e+30
        %v2896 = vsel %vm2700, %v1639, -1e+30
        %v2897 = vsel %vm2701, %v1977, -1e+30
        %v2898 = vsel %vm2702, %v2315, -1e+30
        %v2899 = vsel %vm2703, %v2653, -1e+30
        %v2900 = vsel %vm2700, %v1641, -1e+30
        %v2901 = vsel %vm2701, %v1979, -1e+30
        %v2902 = vsel %vm2702, %v2317, -1e+30
        %v2903 = vsel %vm2703, %v2655, -1e+30
        %v2904 = vsel %vm2700, %v1644, -1e+30
        %v2905 = vsel %vm2701, %v1982, -1e+30
        %v2906 = vsel %vm2702, %v2320, -1e+30
        %v2907 = vsel %vm2703, %v2658, -1e+30
        %v2908 = vsel %vm2700, %v1646, -1e+30
        %v2909 = vsel %vm2701, %v1984, -1e+30
        %v2910 = vsel %vm2702, %v2322, -1e+30
        %v2911 = vsel %vm2703, %v2660, -1e+30
        %v2912 = vsel %vm2700, %v1649, -1e+30
        %v2913 = vsel %vm2701, %v1987, -1e+30
        %v2914 = vsel %vm2702, %v2325, -1e+30
        %v2915 = vsel %vm2703, %v2663, -1e+30
        %v2916 = vsel %vm2700, %v1651, -1e+30
        %v2917 = vsel %vm2701, %v1989, -1e+30
        %v2918 = vsel %vm2702, %v2327, -1e+30
        %v2919 = vsel %vm2703, %v2665, -1e+30
        %v2920 = vsel %vm2700, %v1654, -1e+30
        %v2921 = vsel %vm2701, %v1992, -1e+30
        %v2922 = vsel %vm2702, %v2330, -1e+30
        %v2923 = vsel %vm2703, %v2668, -1e+30
        %v2924 = vsel %vm2700, %v1656, -1e+30
        %v2925 = vsel %vm2701, %v1994, -1e+30
        %v2926 = vsel %vm2702, %v2332, -1e+30
        %v2927 = vsel %vm2703, %v2670, -1e+30
        %v2928 = vsel %vm2700, %v1659, -1e+30
        %v2929 = vsel %vm2701, %v1997, -1e+30
        %v2930 = vsel %vm2702, %v2335, -1e+30
        %v2931 = vsel %vm2703, %v2673, -1e+30
        %v2932 = vsel %vm2700, %v1661, -1e+30
        %v2933 = vsel %vm2701, %v1999, -1e+30
        %v2934 = vsel %vm2702, %v2337, -1e+30
        %v2935 = vsel %vm2703, %v2675, -1e+30
        %v2936 = vsel %vm2700, %v1664, -1e+30
        %v2937 = vsel %vm2701, %v2002, -1e+30
        %v2938 = vsel %vm2702, %v2340, -1e+30
        %v2939 = vsel %vm2703, %v2678, -1e+30
        %v2940 = vsel %vm2700, %v1666, -1e+30
        %v2941 = vsel %vm2701, %v2004, -1e+30
        %v2942 = vsel %vm2702, %v2342, -1e+30
        %v2943 = vsel %vm2703, %v2680, -1e+30
        %v2944 = vsel %vm2700, %v1669, -1e+30
        %v2945 = vsel %vm2701, %v2007, -1e+30
        %v2946 = vsel %vm2702, %v2345, -1e+30
        %v2947 = vsel %vm2703, %v2683, -1e+30
        %v2948 = vsel %vm2700, %v1671, -1e+30
        %v2949 = vsel %vm2701, %v2009, -1e+30
        %v2950 = vsel %vm2702, %v2347, -1e+30
        %v2951 = vsel %vm2703, %v2685, -1e+30
        %v2952 = vsel %vm2700, %v1674, -1e+30
        %v2953 = vsel %vm2701, %v2012, -1e+30
        %v2954 = vsel %vm2702, %v2350, -1e+30
        %v2955 = vsel %vm2703, %v2688, -1e+30
        %v2956 = vsel %vm2700, %v1676, -1e+30
        %v2957 = vsel %vm2701, %v2014, -1e+30
        %v2958 = vsel %vm2702, %v2352, -1e+30
        %v2959 = vsel %vm2703, %v2690, -1e+30
        %v2960 = vld [vmem:[%s369] sm:$0xff]
        %v2961 = vld [vmem:[%s369 + $0x8] sm:$0xff]
        %v2962 = vld [vmem:[%s369 + $0x10] sm:$0xff]
        %v2963 = vld [vmem:[%s369 + $0x18] sm:$0xff]
        %v2964 = vld [vmem:[%s369 + $0x20] sm:$0xff]
        %v2965 = vld [vmem:[%s369 + $0x28] sm:$0xff]
        %v2966 = vld [vmem:[%s369 + $0x30] sm:$0xff]
        %v2967 = vld [vmem:[%s369 + $0x38] sm:$0xff]
        %v2968 = vld [vmem:[%s369 + $0x40] sm:$0xff]
        %v2969 = vld [vmem:[%s369 + $0x48] sm:$0xff]
        %v2970 = vld [vmem:[%s369 + $0x50] sm:$0xff]
        %v2971 = vld [vmem:[%s369 + $0x58] sm:$0xff]
        %v2972 = vld [vmem:[%s369 + $0x60] sm:$0xff]
        %v2973 = vld [vmem:[%s369 + $0x68] sm:$0xff]
        %v2974 = vld [vmem:[%s369 + $0x70] sm:$0xff]
        %v2975 = vld [vmem:[%s369 + $0x78] sm:$0xff]
        %v2976 = vld [vmem:[%s369 + $0x80] sm:$0xff]
        %v2977 = vld [vmem:[%s369 + $0x88] sm:$0xff]
        %v2978 = vld [vmem:[%s369 + $0x90] sm:$0xff]
        %v2979 = vld [vmem:[%s369 + $0x98] sm:$0xff]
        %v2980 = vld [vmem:[%s369 + $0xa0] sm:$0xff]
        %v2981 = vld [vmem:[%s369 + $0xa8] sm:$0xff]
        %v2982 = vld [vmem:[%s369 + $0xb0] sm:$0xff]
        %v2983 = vld [vmem:[%s369 + $0xb8] sm:$0xff]
        %v2984 = vld [vmem:[%s369 + $0xc0] sm:$0xff]
        %v2985 = vld [vmem:[%s369 + $0xc8] sm:$0xff]
        %v2986 = vld [vmem:[%s369 + $0xd0] sm:$0xff]
        %v2987 = vld [vmem:[%s369 + $0xd8] sm:$0xff]
        %v2988 = vld [vmem:[%s369 + $0xe0] sm:$0xff]
        %v2989 = vld [vmem:[%s369 + $0xe8] sm:$0xff]
        %v2990 = vld [vmem:[%s369 + $0xf0] sm:$0xff]
        %v2991 = vld [vmem:[%s369 + $0xf8] sm:$0xff]
        %v2992 = vld [vmem:[%s369 + $0x100] sm:$0xff]
        %v2993 = vld [vmem:[%s369 + $0x108] sm:$0xff]
        %v2994 = vld [vmem:[%s369 + $0x110] sm:$0xff]
        %v2995 = vld [vmem:[%s369 + $0x118] sm:$0xff]
        %v2996 = vld [vmem:[%s369 + $0x120] sm:$0xff]
        %v2997 = vld [vmem:[%s369 + $0x128] sm:$0xff]
        %v2998 = vld [vmem:[%s369 + $0x130] sm:$0xff]
        %v2999 = vld [vmem:[%s369 + $0x138] sm:$0xff]
        %v3000 = vld [vmem:[%s369 + $0x140] sm:$0xff]
        %v3001 = vld [vmem:[%s369 + $0x148] sm:$0xff]
        %v3002 = vld [vmem:[%s369 + $0x150] sm:$0xff]
        %v3003 = vld [vmem:[%s369 + $0x158] sm:$0xff]
        %v3004 = vld [vmem:[%s369 + $0x160] sm:$0xff]
        %v3005 = vld [vmem:[%s369 + $0x168] sm:$0xff]
        %v3006 = vld [vmem:[%s369 + $0x170] sm:$0xff]
        %v3007 = vld [vmem:[%s369 + $0x178] sm:$0xff]
        %v3008 = vld [vmem:[%s369 + $0x180] sm:$0xff]
        %v3009 = vld [vmem:[%s369 + $0x188] sm:$0xff]
        %v3010 = vld [vmem:[%s369 + $0x190] sm:$0xff]
        %v3011 = vld [vmem:[%s369 + $0x198] sm:$0xff]
        %v3012 = vld [vmem:[%s369 + $0x1a0] sm:$0xff]
        %v3013 = vld [vmem:[%s369 + $0x1a8] sm:$0xff]
        %v3014 = vld [vmem:[%s369 + $0x1b0] sm:$0xff]
        %v3015 = vld [vmem:[%s369 + $0x1b8] sm:$0xff]
        %v3016 = vld [vmem:[%s369 + $0x1c0] sm:$0xff]
        %v3017 = vld [vmem:[%s369 + $0x1c8] sm:$0xff]
        %v3018 = vld [vmem:[%s369 + $0x1d0] sm:$0xff]
        %v3019 = vld [vmem:[%s369 + $0x1d8] sm:$0xff]
        %v3020 = vld [vmem:[%s369 + $0x1e0] sm:$0xff]
        %v3021 = vld [vmem:[%s369 + $0x1e8] sm:$0xff]
        %v3022 = vld [vmem:[%s369 + $0x1f0] sm:$0xff]
        %v3023 = vld [vmem:[%s369 + $0x1f8] sm:$0xff]
        %v3024 = vstv %s2697
        %v3025 = vsub.s32 %v2960, %v3024
        %v3026 = vsub.s32 %v2961, %v3024
        %v3027 = vsub.s32 %v2962, %v3024
        %v3028 = vsub.s32 %v2963, %v3024
        %v3029 = vsub.s32 %v2964, %v3024
        %v3030 = vsub.s32 %v2965, %v3024
        %v3031 = vsub.s32 %v2966, %v3024
        %v3032 = vsub.s32 %v2967, %v3024
        %v3033 = vsub.s32 %v2968, %v3024
        %v3034 = vsub.s32 %v2969, %v3024
        %v3035 = vsub.s32 %v2970, %v3024
        %v3036 = vsub.s32 %v2971, %v3024
        %v3037 = vsub.s32 %v2972, %v3024
        %v3038 = vsub.s32 %v2973, %v3024
        %v3039 = vsub.s32 %v2974, %v3024
        %v3040 = vsub.s32 %v2975, %v3024
        %v3041 = vsub.s32 %v2976, %v3024
        %v3042 = vsub.s32 %v2977, %v3024
        %v3043 = vsub.s32 %v2978, %v3024
        %v3044 = vsub.s32 %v2979, %v3024
        %v3045 = vsub.s32 %v2980, %v3024
        %v3046 = vsub.s32 %v2981, %v3024
        %v3047 = vsub.s32 %v2982, %v3024
        %v3048 = vsub.s32 %v2983, %v3024
        %v3049 = vsub.s32 %v2984, %v3024
        %v3050 = vsub.s32 %v2985, %v3024
        %v3051 = vsub.s32 %v2986, %v3024
        %v3052 = vsub.s32 %v2987, %v3024
        %v3053 = vsub.s32 %v2988, %v3024
        %v3054 = vsub.s32 %v2989, %v3024
        %v3055 = vsub.s32 %v2990, %v3024
        %v3056 = vsub.s32 %v2991, %v3024
        %v3057 = vsub.s32 %v2992, %v3024
        %v3058 = vsub.s32 %v2993, %v3024
        %v3059 = vsub.s32 %v2994, %v3024
        %v3060 = vsub.s32 %v2995, %v3024
        %v3061 = vsub.s32 %v2996, %v3024
        %v3062 = vsub.s32 %v2997, %v3024
        %v3063 = vsub.s32 %v2998, %v3024
        %v3064 = vsub.s32 %v2999, %v3024
        %v3065 = vsub.s32 %v3000, %v3024
        %v3066 = vsub.s32 %v3001, %v3024
        %v3067 = vsub.s32 %v3002, %v3024
        %v3068 = vsub.s32 %v3003, %v3024
        %v3069 = vsub.s32 %v3004, %v3024
        %v3070 = vsub.s32 %v3005, %v3024
        %v3071 = vsub.s32 %v3006, %v3024
        %v3072 = vsub.s32 %v3007, %v3024
        %v3073 = vsub.s32 %v3008, %v3024
        %v3074 = vsub.s32 %v3009, %v3024
        %v3075 = vsub.s32 %v3010, %v3024
        %v3076 = vsub.s32 %v3011, %v3024
        %v3077 = vsub.s32 %v3012, %v3024
        %v3078 = vsub.s32 %v3013, %v3024
        %v3079 = vsub.s32 %v3014, %v3024
        %v3080 = vsub.s32 %v3015, %v3024
        %v3081 = vsub.s32 %v3016, %v3024
        %v3082 = vsub.s32 %v3017, %v3024
        %v3083 = vsub.s32 %v3018, %v3024
        %v3084 = vsub.s32 %v3019, %v3024
        %v3085 = vsub.s32 %v3020, %v3024
        %v3086 = vsub.s32 %v3021, %v3024
        %v3087 = vsub.s32 %v3022, %v3024
        %v3088 = vsub.s32 %v3023, %v3024
        %v3089 = vld [vmem:[#allocation4] sm:$0xff]
        %v3090 = vld [vmem:[#allocation4 + $0x8] sm:$0xff]
        %v3091 = vld [vmem:[#allocation4 + $0x10] sm:$0xff]
        %v3092 = vld [vmem:[#allocation4 + $0x18] sm:$0xff]
        %v3093 = vld [vmem:[#allocation4 + $0x20] sm:$0xff]
        %v3094 = vld [vmem:[#allocation4 + $0x28] sm:$0xff]
        %v3095 = vld [vmem:[#allocation4 + $0x30] sm:$0xff]
        %v3096 = vld [vmem:[#allocation4 + $0x38] sm:$0xff]
        %v3097 = vld [vmem:[#allocation4 + $0x40] sm:$0xff]
        %v3098 = vld [vmem:[#allocation4 + $0x48] sm:$0xff]
        %v3099 = vld [vmem:[#allocation4 + $0x50] sm:$0xff]
        %v3100 = vld [vmem:[#allocation4 + $0x58] sm:$0xff]
        %v3101 = vld [vmem:[#allocation4 + $0x60] sm:$0xff]
        %v3102 = vld [vmem:[#allocation4 + $0x68] sm:$0xff]
        %v3103 = vld [vmem:[#allocation4 + $0x70] sm:$0xff]
        %v3104 = vld [vmem:[#allocation4 + $0x78] sm:$0xff]
        %v3105 = vld [vmem:[#allocation4 + $0x80] sm:$0xff]
        %v3106 = vld [vmem:[#allocation4 + $0x88] sm:$0xff]
        %v3107 = vld [vmem:[#allocation4 + $0x90] sm:$0xff]
        %v3108 = vld [vmem:[#allocation4 + $0x98] sm:$0xff]
        %v3109 = vld [vmem:[#allocation4 + $0xa0] sm:$0xff]
        %v3110 = vld [vmem:[#allocation4 + $0xa8] sm:$0xff]
        %v3111 = vld [vmem:[#allocation4 + $0xb0] sm:$0xff]
        %v3112 = vld [vmem:[#allocation4 + $0xb8] sm:$0xff]
        %v3113 = vld [vmem:[#allocation4 + $0xc0] sm:$0xff]
        %v3114 = vld [vmem:[#allocation4 + $0xc8] sm:$0xff]
        %v3115 = vld [vmem:[#allocation4 + $0xd0] sm:$0xff]
        %v3116 = vld [vmem:[#allocation4 + $0xd8] sm:$0xff]
        %v3117 = vld [vmem:[#allocation4 + $0xe0] sm:$0xff]
        %v3118 = vld [vmem:[#allocation4 + $0xe8] sm:$0xff]
        %v3119 = vld [vmem:[#allocation4 + $0xf0] sm:$0xff]
        %v3120 = vld [vmem:[#allocation4 + $0xf8] sm:$0xff]
        %v3121 = vld [vmem:[#allocation4 + $0x100] sm:$0xff]
        %v3122 = vld [vmem:[#allocation4 + $0x108] sm:$0xff]
        %v3123 = vld [vmem:[#allocation4 + $0x110] sm:$0xff]
        %v3124 = vld [vmem:[#allocation4 + $0x118] sm:$0xff]
        %v3125 = vld [vmem:[#allocation4 + $0x120] sm:$0xff]
        %v3126 = vld [vmem:[#allocation4 + $0x128] sm:$0xff]
        %v3127 = vld [vmem:[#allocation4 + $0x130] sm:$0xff]
        %v3128 = vld [vmem:[#allocation4 + $0x138] sm:$0xff]
        %v3129 = vld [vmem:[#allocation4 + $0x140] sm:$0xff]
        %v3130 = vld [vmem:[#allocation4 + $0x148] sm:$0xff]
        %v3131 = vld [vmem:[#allocation4 + $0x150] sm:$0xff]
        %v3132 = vld [vmem:[#allocation4 + $0x158] sm:$0xff]
        %v3133 = vld [vmem:[#allocation4 + $0x160] sm:$0xff]
        %v3134 = vld [vmem:[#allocation4 + $0x168] sm:$0xff]
        %v3135 = vld [vmem:[#allocation4 + $0x170] sm:$0xff]
        %v3136 = vld [vmem:[#allocation4 + $0x178] sm:$0xff]
        %v3137 = vld [vmem:[#allocation4 + $0x180] sm:$0xff]
        %v3138 = vld [vmem:[#allocation4 + $0x188] sm:$0xff]
        %v3139 = vld [vmem:[#allocation4 + $0x190] sm:$0xff]
        %v3140 = vld [vmem:[#allocation4 + $0x198] sm:$0xff]
        %v3141 = vld [vmem:[#allocation4 + $0x1a0] sm:$0xff]
        %v3142 = vld [vmem:[#allocation4 + $0x1a8] sm:$0xff]
        %v3143 = vld [vmem:[#allocation4 + $0x1b0] sm:$0xff]
        %v3144 = vld [vmem:[#allocation4 + $0x1b8] sm:$0xff]
        %v3145 = vld [vmem:[#allocation4 + $0x1c0] sm:$0xff]
        %v3146 = vld [vmem:[#allocation4 + $0x1c8] sm:$0xff]
        %v3147 = vld [vmem:[#allocation4 + $0x1d0] sm:$0xff]
        %v3148 = vld [vmem:[#allocation4 + $0x1d8] sm:$0xff]
        %v3149 = vld [vmem:[#allocation4 + $0x1e0] sm:$0xff]
        %v3150 = vld [vmem:[#allocation4 + $0x1e8] sm:$0xff]
        %v3151 = vld [vmem:[#allocation4 + $0x1f0] sm:$0xff]
        %v3152 = vld [vmem:[#allocation4 + $0x1f8] sm:$0xff]
        %3153 = vset.pattern.permute.xlu0 0
        %3154 = vperm.xlu0 %3153, %v3025
        %v3155 = vpop.permute.xlu0 %3154
        %3156 = vset.pattern.permute.xlu0 0
        %3157 = vperm.xlu0 %3156, %v3026
        %v3158 = vpop.permute.xlu0 %3157
        %3159 = vset.pattern.permute.xlu0 0
        %3160 = vperm.xlu0 %3159, %v3027
        %v3161 = vpop.permute.xlu0 %3160
        %3162 = vset.pattern.permute.xlu0 0
        %3163 = vperm.xlu0 %3162, %v3028
        %v3164 = vpop.permute.xlu0 %3163
        %3165 = vset.pattern.permute.xlu0 0
        %3166 = vperm.xlu0 %3165, %v3029
        %v3167 = vpop.permute.xlu0 %3166
        %3168 = vset.pattern.permute.xlu0 0
        %3169 = vperm.xlu0 %3168, %v3030
        %v3170 = vpop.permute.xlu0 %3169
        %3171 = vset.pattern.permute.xlu0 0
        %3172 = vperm.xlu0 %3171, %v3031
        %v3173 = vpop.permute.xlu0 %3172
        %3174 = vset.pattern.permute.xlu0 0
        %3175 = vperm.xlu0 %3174, %v3032
        %v3176 = vpop.permute.xlu0 %3175
        %3177 = vset.pattern.permute.xlu0 0
        %3178 = vperm.xlu0 %3177, %v3033
        %v3179 = vpop.permute.xlu0 %3178
        %3180 = vset.pattern.permute.xlu0 0
        %3181 = vperm.xlu0 %3180, %v3034
        %v3182 = vpop.permute.xlu0 %3181
        %3183 = vset.pattern.permute.xlu0 0
        %3184 = vperm.xlu0 %3183, %v3035
        %v3185 = vpop.permute.xlu0 %3184
        %3186 = vset.pattern.permute.xlu0 0
        %3187 = vperm.xlu0 %3186, %v3036
        %v3188 = vpop.permute.xlu0 %3187
        %3189 = vset.pattern.permute.xlu0 0
        %3190 = vperm.xlu0 %3189, %v3037
        %v3191 = vpop.permute.xlu0 %3190
        %3192 = vset.pattern.permute.xlu0 0
        %3193 = vperm.xlu0 %3192, %v3038
        %v3194 = vpop.permute.xlu0 %3193
        %3195 = vset.pattern.permute.xlu0 0
        %3196 = vperm.xlu0 %3195, %v3039
        %v3197 = vpop.permute.xlu0 %3196
        %3198 = vset.pattern.permute.xlu0 0
        %3199 = vperm.xlu0 %3198, %v3040
        %v3200 = vpop.permute.xlu0 %3199
        %3201 = vset.pattern.permute.xlu0 0
        %3202 = vperm.xlu0 %3201, %v3041
        %v3203 = vpop.permute.xlu0 %3202
        %3204 = vset.pattern.permute.xlu0 0
        %3205 = vperm.xlu0 %3204, %v3042
        %v3206 = vpop.permute.xlu0 %3205
        %3207 = vset.pattern.permute.xlu0 0
        %3208 = vperm.xlu0 %3207, %v3043
        %v3209 = vpop.permute.xlu0 %3208
        %3210 = vset.pattern.permute.xlu0 0
        %3211 = vperm.xlu0 %3210, %v3044
        %v3212 = vpop.permute.xlu0 %3211
        %3213 = vset.pattern.permute.xlu0 0
        %3214 = vperm.xlu0 %3213, %v3045
        %v3215 = vpop.permute.xlu0 %3214
        %3216 = vset.pattern.permute.xlu0 0
        %3217 = vperm.xlu0 %3216, %v3046
        %v3218 = vpop.permute.xlu0 %3217
        %3219 = vset.pattern.permute.xlu0 0
        %3220 = vperm.xlu0 %3219, %v3047
        %v3221 = vpop.permute.xlu0 %3220
        %3222 = vset.pattern.permute.xlu0 0
        %3223 = vperm.xlu0 %3222, %v3048
        %v3224 = vpop.permute.xlu0 %3223
        %3225 = vset.pattern.permute.xlu0 0
        %3226 = vperm.xlu0 %3225, %v3049
        %v3227 = vpop.permute.xlu0 %3226
        %3228 = vset.pattern.permute.xlu0 0
        %3229 = vperm.xlu0 %3228, %v3050
        %v3230 = vpop.permute.xlu0 %3229
        %3231 = vset.pattern.permute.xlu0 0
        %3232 = vperm.xlu0 %3231, %v3051
        %v3233 = vpop.permute.xlu0 %3232
        %3234 = vset.pattern.permute.xlu0 0
        %3235 = vperm.xlu0 %3234, %v3052
        %v3236 = vpop.permute.xlu0 %3235
        %3237 = vset.pattern.permute.xlu0 0
        %3238 = vperm.xlu0 %3237, %v3053
        %v3239 = vpop.permute.xlu0 %3238
        %3240 = vset.pattern.permute.xlu0 0
        %3241 = vperm.xlu0 %3240, %v3054
        %v3242 = vpop.permute.xlu0 %3241
        %3243 = vset.pattern.permute.xlu0 0
        %3244 = vperm.xlu0 %3243, %v3055
        %v3245 = vpop.permute.xlu0 %3244
        %3246 = vset.pattern.permute.xlu0 0
        %3247 = vperm.xlu0 %3246, %v3056
        %v3248 = vpop.permute.xlu0 %3247
        %3249 = vset.pattern.permute.xlu0 0
        %3250 = vperm.xlu0 %3249, %v3057
        %v3251 = vpop.permute.xlu0 %3250
        %3252 = vset.pattern.permute.xlu0 0
        %3253 = vperm.xlu0 %3252, %v3058
        %v3254 = vpop.permute.xlu0 %3253
        %3255 = vset.pattern.permute.xlu0 0
        %3256 = vperm.xlu0 %3255, %v3059
        %v3257 = vpop.permute.xlu0 %3256
        %3258 = vset.pattern.permute.xlu0 0
        %3259 = vperm.xlu0 %3258, %v3060
        %v3260 = vpop.permute.xlu0 %3259
        %3261 = vset.pattern.permute.xlu0 0
        %3262 = vperm.xlu0 %3261, %v3061
        %v3263 = vpop.permute.xlu0 %3262
        %3264 = vset.pattern.permute.xlu0 0
        %3265 = vperm.xlu0 %3264, %v3062
        %v3266 = vpop.permute.xlu0 %3265
        %3267 = vset.pattern.permute.xlu0 0
        %3268 = vperm.xlu0 %3267, %v3063
        %v3269 = vpop.permute.xlu0 %3268
        %3270 = vset.pattern.permute.xlu0 0
        %3271 = vperm.xlu0 %3270, %v3064
        %v3272 = vpop.permute.xlu0 %3271
        %3273 = vset.pattern.permute.xlu0 0
        %3274 = vperm.xlu0 %3273, %v3065
        %v3275 = vpop.permute.xlu0 %3274
        %3276 = vset.pattern.permute.xlu0 0
        %3277 = vperm.xlu0 %3276, %v3066
        %v3278 = vpop.permute.xlu0 %3277
        %3279 = vset.pattern.permute.xlu0 0
        %3280 = vperm.xlu0 %3279, %v3067
        %v3281 = vpop.permute.xlu0 %3280
        %3282 = vset.pattern.permute.xlu0 0
        %3283 = vperm.xlu0 %3282, %v3068
        %v3284 = vpop.permute.xlu0 %3283
        %3285 = vset.pattern.permute.xlu0 0
        %3286 = vperm.xlu0 %3285, %v3069
        %v3287 = vpop.permute.xlu0 %3286
        %3288 = vset.pattern.permute.xlu0 0
        %3289 = vperm.xlu0 %3288, %v3070
        %v3290 = vpop.permute.xlu0 %3289
        %3291 = vset.pattern.permute.xlu0 0
        %3292 = vperm.xlu0 %3291, %v3071
        %v3293 = vpop.permute.xlu0 %3292
        %3294 = vset.pattern.permute.xlu0 0
        %3295 = vperm.xlu0 %3294, %v3072
        %v3296 = vpop.permute.xlu0 %3295
        %3297 = vset.pattern.permute.xlu0 0
        %3298 = vperm.xlu0 %3297, %v3073
        %v3299 = vpop.permute.xlu0 %3298
        %3300 = vset.pattern.permute.xlu0 0
        %3301 = vperm.xlu0 %3300, %v3074
        %v3302 = vpop.permute.xlu0 %3301
        %3303 = vset.pattern.permute.xlu0 0
        %3304 = vperm.xlu0 %3303, %v3075
        %v3305 = vpop.permute.xlu0 %3304
        %3306 = vset.pattern.permute.xlu0 0
        %3307 = vperm.xlu0 %3306, %v3076
        %v3308 = vpop.permute.xlu0 %3307
        %3309 = vset.pattern.permute.xlu0 0
        %3310 = vperm.xlu0 %3309, %v3077
        %v3311 = vpop.permute.xlu0 %3310
        %3312 = vset.pattern.permute.xlu0 0
        %3313 = vperm.xlu0 %3312, %v3078
        %v3314 = vpop.permute.xlu0 %3313
        %3315 = vset.pattern.permute.xlu0 0
        %3316 = vperm.xlu0 %3315, %v3079
        %v3317 = vpop.permute.xlu0 %3316
        %3318 = vset.pattern.permute.xlu0 0
        %3319 = vperm.xlu0 %3318, %v3080
        %v3320 = vpop.permute.xlu0 %3319
        %3321 = vset.pattern.permute.xlu0 0
        %3322 = vperm.xlu0 %3321, %v3081
        %v3323 = vpop.permute.xlu0 %3322
        %3324 = vset.pattern.permute.xlu0 0
        %3325 = vperm.xlu0 %3324, %v3082
        %v3326 = vpop.permute.xlu0 %3325
        %3327 = vset.pattern.permute.xlu0 0
        %3328 = vperm.xlu0 %3327, %v3083
        %v3329 = vpop.permute.xlu0 %3328
        %3330 = vset.pattern.permute.xlu0 0
        %3331 = vperm.xlu0 %3330, %v3084
        %v3332 = vpop.permute.xlu0 %3331
        %3333 = vset.pattern.permute.xlu0 0
        %3334 = vperm.xlu0 %3333, %v3085
        %v3335 = vpop.permute.xlu0 %3334
        %3336 = vset.pattern.permute.xlu0 0
        %3337 = vperm.xlu0 %3336, %v3086
        %v3338 = vpop.permute.xlu0 %3337
        %3339 = vset.pattern.permute.xlu0 0
        %3340 = vperm.xlu0 %3339, %v3087
        %v3341 = vpop.permute.xlu0 %3340
        %3342 = vset.pattern.permute.xlu0 0
        %3343 = vperm.xlu0 %3342, %v3088
        %v3344 = vpop.permute.xlu0 %3343
        %vm3345 = vcmp.eq.s32.totalorder %v2693, %v3155
        %vm3346 = vcmp.eq.s32.totalorder %v2694, %v3155
        %vm3347 = vcmp.eq.s32.totalorder %v2695, %v3155
        %vm3348 = vcmp.eq.s32.totalorder %v2696, %v3155
        %vm3349 = vcmp.eq.s32.totalorder %v2693, %v3158
        %vm3350 = vcmp.eq.s32.totalorder %v2694, %v3158
        %vm3351 = vcmp.eq.s32.totalorder %v2695, %v3158
        %vm3352 = vcmp.eq.s32.totalorder %v2696, %v3158
        %vm3353 = vcmp.eq.s32.totalorder %v2693, %v3161
        %vm3354 = vcmp.eq.s32.totalorder %v2694, %v3161
        %vm3355 = vcmp.eq.s32.totalorder %v2695, %v3161
        %vm3356 = vcmp.eq.s32.totalorder %v2696, %v3161
        %vm3357 = vcmp.eq.s32.totalorder %v2693, %v3164
        %vm3358 = vcmp.eq.s32.totalorder %v2694, %v3164
        %vm3359 = vcmp.eq.s32.totalorder %v2695, %v3164
        %vm3360 = vcmp.eq.s32.totalorder %v2696, %v3164
        %vm3361 = vcmp.eq.s32.totalorder %v2693, %v3167
        %vm3362 = vcmp.eq.s32.totalorder %v2694, %v3167
        %vm3363 = vcmp.eq.s32.totalorder %v2695, %v3167
        %vm3364 = vcmp.eq.s32.totalorder %v2696, %v3167
        %vm3365 = vcmp.eq.s32.totalorder %v2693, %v3170
        %vm3366 = vcmp.eq.s32.totalorder %v2694, %v3170
        %vm3367 = vcmp.eq.s32.totalorder %v2695, %v3170
        %vm3368 = vcmp.eq.s32.totalorder %v2696, %v3170
        %vm3369 = vcmp.eq.s32.totalorder %v2693, %v3173
        %vm3370 = vcmp.eq.s32.totalorder %v2694, %v3173
        %vm3371 = vcmp.eq.s32.totalorder %v2695, %v3173
        %vm3372 = vcmp.eq.s32.totalorder %v2696, %v3173
        %vm3373 = vcmp.eq.s32.totalorder %v2693, %v3176
        %vm3374 = vcmp.eq.s32.totalorder %v2694, %v3176
        %vm3375 = vcmp.eq.s32.totalorder %v2695, %v3176
        %vm3376 = vcmp.eq.s32.totalorder %v2696, %v3176
        %vm3377 = vcmp.eq.s32.totalorder %v2693, %v3179
        %vm3378 = vcmp.eq.s32.totalorder %v2694, %v3179
        %vm3379 = vcmp.eq.s32.totalorder %v2695, %v3179
        %vm3380 = vcmp.eq.s32.totalorder %v2696, %v3179
        %vm3381 = vcmp.eq.s32.totalorder %v2693, %v3182
        %vm3382 = vcmp.eq.s32.totalorder %v2694, %v3182
        %vm3383 = vcmp.eq.s32.totalorder %v2695, %v3182
        %vm3384 = vcmp.eq.s32.totalorder %v2696, %v3182
        %vm3385 = vcmp.eq.s32.totalorder %v2693, %v3185
        %vm3386 = vcmp.eq.s32.totalorder %v2694, %v3185
        %vm3387 = vcmp.eq.s32.totalorder %v2695, %v3185
        %vm3388 = vcmp.eq.s32.totalorder %v2696, %v3185
        %vm3389 = vcmp.eq.s32.totalorder %v2693, %v3188
        %vm3390 = vcmp.eq.s32.totalorder %v2694, %v3188
        %vm3391 = vcmp.eq.s32.totalorder %v2695, %v3188
        %vm3392 = vcmp.eq.s32.totalorder %v2696, %v3188
        %vm3393 = vcmp.eq.s32.totalorder %v2693, %v3191
        %vm3394 = vcmp.eq.s32.totalorder %v2694, %v3191
        %vm3395 = vcmp.eq.s32.totalorder %v2695, %v3191
        %vm3396 = vcmp.eq.s32.totalorder %v2696, %v3191
        %vm3397 = vcmp.eq.s32.totalorder %v2693, %v3194
        %vm3398 = vcmp.eq.s32.totalorder %v2694, %v3194
        %vm3399 = vcmp.eq.s32.totalorder %v2695, %v3194
        %vm3400 = vcmp.eq.s32.totalorder %v2696, %v3194
        %vm3401 = vcmp.eq.s32.totalorder %v2693, %v3197
        %vm3402 = vcmp.eq.s32.totalorder %v2694, %v3197
        %vm3403 = vcmp.eq.s32.totalorder %v2695, %v3197
        %vm3404 = vcmp.eq.s32.totalorder %v2696, %v3197
        %vm3405 = vcmp.eq.s32.totalorder %v2693, %v3200
        %vm3406 = vcmp.eq.s32.totalorder %v2694, %v3200
        %vm3407 = vcmp.eq.s32.totalorder %v2695, %v3200
        %vm3408 = vcmp.eq.s32.totalorder %v2696, %v3200
        %vm3409 = vcmp.eq.s32.totalorder %v2693, %v3203
        %vm3410 = vcmp.eq.s32.totalorder %v2694, %v3203
        %vm3411 = vcmp.eq.s32.totalorder %v2695, %v3203
        %vm3412 = vcmp.eq.s32.totalorder %v2696, %v3203
        %vm3413 = vcmp.eq.s32.totalorder %v2693, %v3206
        %vm3414 = vcmp.eq.s32.totalorder %v2694, %v3206
        %vm3415 = vcmp.eq.s32.totalorder %v2695, %v3206
        %vm3416 = vcmp.eq.s32.totalorder %v2696, %v3206
        %vm3417 = vcmp.eq.s32.totalorder %v2693, %v3209
        %vm3418 = vcmp.eq.s32.totalorder %v2694, %v3209
        %vm3419 = vcmp.eq.s32.totalorder %v2695, %v3209
        %vm3420 = vcmp.eq.s32.totalorder %v2696, %v3209
        %vm3421 = vcmp.eq.s32.totalorder %v2693, %v3212
        %vm3422 = vcmp.eq.s32.totalorder %v2694, %v3212
        %vm3423 = vcmp.eq.s32.totalorder %v2695, %v3212
        %vm3424 = vcmp.eq.s32.totalorder %v2696, %v3212
        %vm3425 = vcmp.eq.s32.totalorder %v2693, %v3215
        %vm3426 = vcmp.eq.s32.totalorder %v2694, %v3215
        %vm3427 = vcmp.eq.s32.totalorder %v2695, %v3215
        %vm3428 = vcmp.eq.s32.totalorder %v2696, %v3215
        %vm3429 = vcmp.eq.s32.totalorder %v2693, %v3218
        %vm3430 = vcmp.eq.s32.totalorder %v2694, %v3218
        %vm3431 = vcmp.eq.s32.totalorder %v2695, %v3218
        %vm3432 = vcmp.eq.s32.totalorder %v2696, %v3218
        %vm3433 = vcmp.eq.s32.totalorder %v2693, %v3221
        %vm3434 = vcmp.eq.s32.totalorder %v2694, %v3221
        %vm3435 = vcmp.eq.s32.totalorder %v2695, %v3221
        %vm3436 = vcmp.eq.s32.totalorder %v2696, %v3221
        %vm3437 = vcmp.eq.s32.totalorder %v2693, %v3224
        %vm3438 = vcmp.eq.s32.totalorder %v2694, %v3224
        %vm3439 = vcmp.eq.s32.totalorder %v2695, %v3224
        %vm3440 = vcmp.eq.s32.totalorder %v2696, %v3224
        %vm3441 = vcmp.eq.s32.totalorder %v2693, %v3227
        %vm3442 = vcmp.eq.s32.totalorder %v2694, %v3227
        %vm3443 = vcmp.eq.s32.totalorder %v2695, %v3227
        %vm3444 = vcmp.eq.s32.totalorder %v2696, %v3227
        %vm3445 = vcmp.eq.s32.totalorder %v2693, %v3230
        %vm3446 = vcmp.eq.s32.totalorder %v2694, %v3230
        %vm3447 = vcmp.eq.s32.totalorder %v2695, %v3230
        %vm3448 = vcmp.eq.s32.totalorder %v2696, %v3230
        %vm3449 = vcmp.eq.s32.totalorder %v2693, %v3233
        %vm3450 = vcmp.eq.s32.totalorder %v2694, %v3233
        %vm3451 = vcmp.eq.s32.totalorder %v2695, %v3233
        %vm3452 = vcmp.eq.s32.totalorder %v2696, %v3233
        %vm3453 = vcmp.eq.s32.totalorder %v2693, %v3236
        %vm3454 = vcmp.eq.s32.totalorder %v2694, %v3236
        %vm3455 = vcmp.eq.s32.totalorder %v2695, %v3236
        %vm3456 = vcmp.eq.s32.totalorder %v2696, %v3236
        %vm3457 = vcmp.eq.s32.totalorder %v2693, %v3239
        %vm3458 = vcmp.eq.s32.totalorder %v2694, %v3239
        %vm3459 = vcmp.eq.s32.totalorder %v2695, %v3239
        %vm3460 = vcmp.eq.s32.totalorder %v2696, %v3239
        %vm3461 = vcmp.eq.s32.totalorder %v2693, %v3242
        %vm3462 = vcmp.eq.s32.totalorder %v2694, %v3242
        %vm3463 = vcmp.eq.s32.totalorder %v2695, %v3242
        %vm3464 = vcmp.eq.s32.totalorder %v2696, %v3242
        %vm3465 = vcmp.eq.s32.totalorder %v2693, %v3245
        %vm3466 = vcmp.eq.s32.totalorder %v2694, %v3245
        %vm3467 = vcmp.eq.s32.totalorder %v2695, %v3245
        %vm3468 = vcmp.eq.s32.totalorder %v2696, %v3245
        %vm3469 = vcmp.eq.s32.totalorder %v2693, %v3248
        %vm3470 = vcmp.eq.s32.totalorder %v2694, %v3248
        %vm3471 = vcmp.eq.s32.totalorder %v2695, %v3248
        %vm3472 = vcmp.eq.s32.totalorder %v2696, %v3248
        %vm3473 = vcmp.eq.s32.totalorder %v2693, %v3251
        %vm3474 = vcmp.eq.s32.totalorder %v2694, %v3251
        %vm3475 = vcmp.eq.s32.totalorder %v2695, %v3251
        %vm3476 = vcmp.eq.s32.totalorder %v2696, %v3251
        %vm3477 = vcmp.eq.s32.totalorder %v2693, %v3254
        %vm3478 = vcmp.eq.s32.totalorder %v2694, %v3254
        %vm3479 = vcmp.eq.s32.totalorder %v2695, %v3254
        %vm3480 = vcmp.eq.s32.totalorder %v2696, %v3254
        %vm3481 = vcmp.eq.s32.totalorder %v2693, %v3257
        %vm3482 = vcmp.eq.s32.totalorder %v2694, %v3257
        %vm3483 = vcmp.eq.s32.totalorder %v2695, %v3257
        %vm3484 = vcmp.eq.s32.totalorder %v2696, %v3257
        %vm3485 = vcmp.eq.s32.totalorder %v2693, %v3260
        %vm3486 = vcmp.eq.s32.totalorder %v2694, %v3260
        %vm3487 = vcmp.eq.s32.totalorder %v2695, %v3260
        %vm3488 = vcmp.eq.s32.totalorder %v2696, %v3260
        %vm3489 = vcmp.eq.s32.totalorder %v2693, %v3263
        %vm3490 = vcmp.eq.s32.totalorder %v2694, %v3263
        %vm3491 = vcmp.eq.s32.totalorder %v2695, %v3263
        %vm3492 = vcmp.eq.s32.totalorder %v2696, %v3263
        %vm3493 = vcmp.eq.s32.totalorder %v2693, %v3266
        %vm3494 = vcmp.eq.s32.totalorder %v2694, %v3266
        %vm3495 = vcmp.eq.s32.totalorder %v2695, %v3266
        %vm3496 = vcmp.eq.s32.totalorder %v2696, %v3266
        %vm3497 = vcmp.eq.s32.totalorder %v2693, %v3269
        %vm3498 = vcmp.eq.s32.totalorder %v2694, %v3269
        %vm3499 = vcmp.eq.s32.totalorder %v2695, %v3269
        %vm3500 = vcmp.eq.s32.totalorder %v2696, %v3269
        %vm3501 = vcmp.eq.s32.totalorder %v2693, %v3272
        %vm3502 = vcmp.eq.s32.totalorder %v2694, %v3272
        %vm3503 = vcmp.eq.s32.totalorder %v2695, %v3272
        %vm3504 = vcmp.eq.s32.totalorder %v2696, %v3272
        %vm3505 = vcmp.eq.s32.totalorder %v2693, %v3275
        %vm3506 = vcmp.eq.s32.totalorder %v2694, %v3275
        %vm3507 = vcmp.eq.s32.totalorder %v2695, %v3275
        %vm3508 = vcmp.eq.s32.totalorder %v2696, %v3275
        %vm3509 = vcmp.eq.s32.totalorder %v2693, %v3278
        %vm3510 = vcmp.eq.s32.totalorder %v2694, %v3278
        %vm3511 = vcmp.eq.s32.totalorder %v2695, %v3278
        %vm3512 = vcmp.eq.s32.totalorder %v2696, %v3278
        %vm3513 = vcmp.eq.s32.totalorder %v2693, %v3281
        %vm3514 = vcmp.eq.s32.totalorder %v2694, %v3281
        %vm3515 = vcmp.eq.s32.totalorder %v2695, %v3281
        %vm3516 = vcmp.eq.s32.totalorder %v2696, %v3281
        %vm3517 = vcmp.eq.s32.totalorder %v2693, %v3284
        %vm3518 = vcmp.eq.s32.totalorder %v2694, %v3284
        %vm3519 = vcmp.eq.s32.totalorder %v2695, %v3284
        %vm3520 = vcmp.eq.s32.totalorder %v2696, %v3284
        %vm3521 = vcmp.eq.s32.totalorder %v2693, %v3287
        %vm3522 = vcmp.eq.s32.totalorder %v2694, %v3287
        %vm3523 = vcmp.eq.s32.totalorder %v2695, %v3287
        %vm3524 = vcmp.eq.s32.totalorder %v2696, %v3287
        %vm3525 = vcmp.eq.s32.totalorder %v2693, %v3290
        %vm3526 = vcmp.eq.s32.totalorder %v2694, %v3290
        %vm3527 = vcmp.eq.s32.totalorder %v2695, %v3290
        %vm3528 = vcmp.eq.s32.totalorder %v2696, %v3290
        %vm3529 = vcmp.eq.s32.totalorder %v2693, %v3293
        %vm3530 = vcmp.eq.s32.totalorder %v2694, %v3293
        %vm3531 = vcmp.eq.s32.totalorder %v2695, %v3293
        %vm3532 = vcmp.eq.s32.totalorder %v2696, %v3293
        %vm3533 = vcmp.eq.s32.totalorder %v2693, %v3296
        %vm3534 = vcmp.eq.s32.totalorder %v2694, %v3296
        %vm3535 = vcmp.eq.s32.totalorder %v2695, %v3296
        %vm3536 = vcmp.eq.s32.totalorder %v2696, %v3296
        %vm3537 = vcmp.eq.s32.totalorder %v2693, %v3299
        %vm3538 = vcmp.eq.s32.totalorder %v2694, %v3299
        %vm3539 = vcmp.eq.s32.totalorder %v2695, %v3299
        %vm3540 = vcmp.eq.s32.totalorder %v2696, %v3299
        %vm3541 = vcmp.eq.s32.totalorder %v2693, %v3302
        %vm3542 = vcmp.eq.s32.totalorder %v2694, %v3302
        %vm3543 = vcmp.eq.s32.totalorder %v2695, %v3302
        %vm3544 = vcmp.eq.s32.totalorder %v2696, %v3302
        %vm3545 = vcmp.eq.s32.totalorder %v2693, %v3305
        %vm3546 = vcmp.eq.s32.totalorder %v2694, %v3305
        %vm3547 = vcmp.eq.s32.totalorder %v2695, %v3305
        %vm3548 = vcmp.eq.s32.totalorder %v2696, %v3305
        %vm3549 = vcmp.eq.s32.totalorder %v2693, %v3308
        %vm3550 = vcmp.eq.s32.totalorder %v2694, %v3308
        %vm3551 = vcmp.eq.s32.totalorder %v2695, %v3308
        %vm3552 = vcmp.eq.s32.totalorder %v2696, %v3308
        %vm3553 = vcmp.eq.s32.totalorder %v2693, %v3311
        %vm3554 = vcmp.eq.s32.totalorder %v2694, %v3311
        %vm3555 = vcmp.eq.s32.totalorder %v2695, %v3311
        %vm3556 = vcmp.eq.s32.totalorder %v2696, %v3311
        %vm3557 = vcmp.eq.s32.totalorder %v2693, %v3314
        %vm3558 = vcmp.eq.s32.totalorder %v2694, %v3314
        %vm3559 = vcmp.eq.s32.totalorder %v2695, %v3314
        %vm3560 = vcmp.eq.s32.totalorder %v2696, %v3314
        %vm3561 = vcmp.eq.s32.totalorder %v2693, %v3317
        %vm3562 = vcmp.eq.s32.totalorder %v2694, %v3317
        %vm3563 = vcmp.eq.s32.totalorder %v2695, %v3317
        %vm3564 = vcmp.eq.s32.totalorder %v2696, %v3317
        %vm3565 = vcmp.eq.s32.totalorder %v2693, %v3320
        %vm3566 = vcmp.eq.s32.totalorder %v2694, %v3320
        %vm3567 = vcmp.eq.s32.totalorder %v2695, %v3320
        %vm3568 = vcmp.eq.s32.totalorder %v2696, %v3320
        %vm3569 = vcmp.eq.s32.totalorder %v2693, %v3323
        %vm3570 = vcmp.eq.s32.totalorder %v2694, %v3323
        %vm3571 = vcmp.eq.s32.totalorder %v2695, %v3323
        %vm3572 = vcmp.eq.s32.totalorder %v2696, %v3323
        %vm3573 = vcmp.eq.s32.totalorder %v2693, %v3326
        %vm3574 = vcmp.eq.s32.totalorder %v2694, %v3326
        %vm3575 = vcmp.eq.s32.totalorder %v2695, %v3326
        %vm3576 = vcmp.eq.s32.totalorder %v2696, %v3326
        %vm3577 = vcmp.eq.s32.totalorder %v2693, %v3329
        %vm3578 = vcmp.eq.s32.totalorder %v2694, %v3329
        %vm3579 = vcmp.eq.s32.totalorder %v2695, %v3329
        %vm3580 = vcmp.eq.s32.totalorder %v2696, %v3329
        %vm3581 = vcmp.eq.s32.totalorder %v2693, %v3332
        %vm3582 = vcmp.eq.s32.totalorder %v2694, %v3332
        %vm3583 = vcmp.eq.s32.totalorder %v2695, %v3332
        %vm3584 = vcmp.eq.s32.totalorder %v2696, %v3332
        %vm3585 = vcmp.eq.s32.totalorder %v2693, %v3335
        %vm3586 = vcmp.eq.s32.totalorder %v2694, %v3335
        %vm3587 = vcmp.eq.s32.totalorder %v2695, %v3335
        %vm3588 = vcmp.eq.s32.totalorder %v2696, %v3335
        %vm3589 = vcmp.eq.s32.totalorder %v2693, %v3338
        %vm3590 = vcmp.eq.s32.totalorder %v2694, %v3338
        %vm3591 = vcmp.eq.s32.totalorder %v2695, %v3338
        %vm3592 = vcmp.eq.s32.totalorder %v2696, %v3338
        %vm3593 = vcmp.eq.s32.totalorder %v2693, %v3341
        %vm3594 = vcmp.eq.s32.totalorder %v2694, %v3341
        %vm3595 = vcmp.eq.s32.totalorder %v2695, %v3341
        %vm3596 = vcmp.eq.s32.totalorder %v2696, %v3341
        %vm3597 = vcmp.eq.s32.totalorder %v2693, %v3344
        %vm3598 = vcmp.eq.s32.totalorder %v2694, %v3344
        %vm3599 = vcmp.eq.s32.totalorder %v2695, %v3344
        %vm3600 = vcmp.eq.s32.totalorder %v2696, %v3344
        %v3601 = vsel %vm3345, %v2704, 0.0
        %v3602 = vsel %vm3346, %v2705, 0.0
        %v3603 = vsel %vm3347, %v2706, 0.0
        %v3604 = vsel %vm3348, %v2707, 0.0
        %v3605 = vsel %vm3349, %v2708, 0.0
        %v3606 = vsel %vm3350, %v2709, 0.0
        %v3607 = vsel %vm3351, %v2710, 0.0
        %v3608 = vsel %vm3352, %v2711, 0.0
        %v3609 = vsel %vm3353, %v2712, 0.0
        %v3610 = vsel %vm3354, %v2713, 0.0
        %v3611 = vsel %vm3355, %v2714, 0.0
        %v3612 = vsel %vm3356, %v2715, 0.0
        %v3613 = vsel %vm3357, %v2716, 0.0
        %v3614 = vsel %vm3358, %v2717, 0.0
        %v3615 = vsel %vm3359, %v2718, 0.0
        %v3616 = vsel %vm3360, %v2719, 0.0
        %v3617 = vsel %vm3361, %v2720, 0.0
        %v3618 = vsel %vm3362, %v2721, 0.0
        %v3619 = vsel %vm3363, %v2722, 0.0
        %v3620 = vsel %vm3364, %v2723, 0.0
        %v3621 = vsel %vm3365, %v2724, 0.0
        %v3622 = vsel %vm3366, %v2725, 0.0
        %v3623 = vsel %vm3367, %v2726, 0.0
        %v3624 = vsel %vm3368, %v2727, 0.0
        %v3625 = vsel %vm3369, %v2728, 0.0
        %v3626 = vsel %vm3370, %v2729, 0.0
        %v3627 = vsel %vm3371, %v2730, 0.0
        %v3628 = vsel %vm3372, %v2731, 0.0
        %v3629 = vsel %vm3373, %v2732, 0.0
        %v3630 = vsel %vm3374, %v2733, 0.0
        %v3631 = vsel %vm3375, %v2734, 0.0
        %v3632 = vsel %vm3376, %v2735, 0.0
        %v3633 = vsel %vm3377, %v2736, 0.0
        %v3634 = vsel %vm3378, %v2737, 0.0
        %v3635 = vsel %vm3379, %v2738, 0.0
        %v3636 = vsel %vm3380, %v2739, 0.0
        %v3637 = vsel %vm3381, %v2740, 0.0
        %v3638 = vsel %vm3382, %v2741, 0.0
        %v3639 = vsel %vm3383, %v2742, 0.0
        %v3640 = vsel %vm3384, %v2743, 0.0
        %v3641 = vsel %vm3385, %v2744, 0.0
        %v3642 = vsel %vm3386, %v2745, 0.0
        %v3643 = vsel %vm3387, %v2746, 0.0
        %v3644 = vsel %vm3388, %v2747, 0.0
        %v3645 = vsel %vm3389, %v2748, 0.0
        %v3646 = vsel %vm3390, %v2749, 0.0
        %v3647 = vsel %vm3391, %v2750, 0.0
        %v3648 = vsel %vm3392, %v2751, 0.0
        %v3649 = vsel %vm3393, %v2752, 0.0
        %v3650 = vsel %vm3394, %v2753, 0.0
        %v3651 = vsel %vm3395, %v2754, 0.0
        %v3652 = vsel %vm3396, %v2755, 0.0
        %v3653 = vsel %vm3397, %v2756, 0.0
        %v3654 = vsel %vm3398, %v2757, 0.0
        %v3655 = vsel %vm3399, %v2758, 0.0
        %v3656 = vsel %vm3400, %v2759, 0.0
        %v3657 = vsel %vm3401, %v2760, 0.0
        %v3658 = vsel %vm3402, %v2761, 0.0
        %v3659 = vsel %vm3403, %v2762, 0.0
        %v3660 = vsel %vm3404, %v2763, 0.0
        %v3661 = vsel %vm3405, %v2764, 0.0
        %v3662 = vsel %vm3406, %v2765, 0.0
        %v3663 = vsel %vm3407, %v2766, 0.0
        %v3664 = vsel %vm3408, %v2767, 0.0
        %v3665 = vsel %vm3409, %v2768, 0.0
        %v3666 = vsel %vm3410, %v2769, 0.0
        %v3667 = vsel %vm3411, %v2770, 0.0
        %v3668 = vsel %vm3412, %v2771, 0.0
        %v3669 = vsel %vm3413, %v2772, 0.0
        %v3670 = vsel %vm3414, %v2773, 0.0
        %v3671 = vsel %vm3415, %v2774, 0.0
        %v3672 = vsel %vm3416, %v2775, 0.0
        %v3673 = vsel %vm3417, %v2776, 0.0
        %v3674 = vsel %vm3418, %v2777, 0.0
        %v3675 = vsel %vm3419, %v2778, 0.0
        %v3676 = vsel %vm3420, %v2779, 0.0
        %v3677 = vsel %vm3421, %v2780, 0.0
        %v3678 = vsel %vm3422, %v2781, 0.0
        %v3679 = vsel %vm3423, %v2782, 0.0
        %v3680 = vsel %vm3424, %v2783, 0.0
        %v3681 = vsel %vm3425, %v2784, 0.0
        %v3682 = vsel %vm3426, %v2785, 0.0
        %v3683 = vsel %vm3427, %v2786, 0.0
        %v3684 = vsel %vm3428, %v2787, 0.0
        %v3685 = vsel %vm3429, %v2788, 0.0
        %v3686 = vsel %vm3430, %v2789, 0.0
        %v3687 = vsel %vm3431, %v2790, 0.0
        %v3688 = vsel %vm3432, %v2791, 0.0
        %v3689 = vsel %vm3433, %v2792, 0.0
        %v3690 = vsel %vm3434, %v2793, 0.0
        %v3691 = vsel %vm3435, %v2794, 0.0
        %v3692 = vsel %vm3436, %v2795, 0.0
        %v3693 = vsel %vm3437, %v2796, 0.0
        %v3694 = vsel %vm3438, %v2797, 0.0
        %v3695 = vsel %vm3439, %v2798, 0.0
        %v3696 = vsel %vm3440, %v2799, 0.0
        %v3697 = vsel %vm3441, %v2800, 0.0
        %v3698 = vsel %vm3442, %v2801, 0.0
        %v3699 = vsel %vm3443, %v2802, 0.0
        %v3700 = vsel %vm3444, %v2803, 0.0
        %v3701 = vsel %vm3445, %v2804, 0.0
        %v3702 = vsel %vm3446, %v2805, 0.0
        %v3703 = vsel %vm3447, %v2806, 0.0
        %v3704 = vsel %vm3448, %v2807, 0.0
        %v3705 = vsel %vm3449, %v2808, 0.0
        %v3706 = vsel %vm3450, %v2809, 0.0
        %v3707 = vsel %vm3451, %v2810, 0.0
        %v3708 = vsel %vm3452, %v2811, 0.0
        %v3709 = vsel %vm3453, %v2812, 0.0
        %v3710 = vsel %vm3454, %v2813, 0.0
        %v3711 = vsel %vm3455, %v2814, 0.0
        %v3712 = vsel %vm3456, %v2815, 0.0
        %v3713 = vsel %vm3457, %v2816, 0.0
        %v3714 = vsel %vm3458, %v2817, 0.0
        %v3715 = vsel %vm3459, %v2818, 0.0
        %v3716 = vsel %vm3460, %v2819, 0.0
        %v3717 = vsel %vm3461, %v2820, 0.0
        %v3718 = vsel %vm3462, %v2821, 0.0
        %v3719 = vsel %vm3463, %v2822, 0.0
        %v3720 = vsel %vm3464, %v2823, 0.0
        %v3721 = vsel %vm3465, %v2824, 0.0
        %v3722 = vsel %vm3466, %v2825, 0.0
        %v3723 = vsel %vm3467, %v2826, 0.0
        %v3724 = vsel %vm3468, %v2827, 0.0
        %v3725 = vsel %vm3469, %v2828, 0.0
        %v3726 = vsel %vm3470, %v2829, 0.0
        %v3727 = vsel %vm3471, %v2830, 0.0
        %v3728 = vsel %vm3472, %v2831, 0.0
        %v3729 = vsel %vm3473, %v2832, 0.0
        %v3730 = vsel %vm3474, %v2833, 0.0
        %v3731 = vsel %vm3475, %v2834, 0.0
        %v3732 = vsel %vm3476, %v2835, 0.0
        %v3733 = vsel %vm3477, %v2836, 0.0
        %v3734 = vsel %vm3478, %v2837, 0.0
        %v3735 = vsel %vm3479, %v2838, 0.0
        %v3736 = vsel %vm3480, %v2839, 0.0
        %v3737 = vsel %vm3481, %v2840, 0.0
        %v3738 = vsel %vm3482, %v2841, 0.0
        %v3739 = vsel %vm3483, %v2842, 0.0
        %v3740 = vsel %vm3484, %v2843, 0.0
        %v3741 = vsel %vm3485, %v2844, 0.0
        %v3742 = vsel %vm3486, %v2845, 0.0
        %v3743 = vsel %vm3487, %v2846, 0.0
        %v3744 = vsel %vm3488, %v2847, 0.0
        %v3745 = vsel %vm3489, %v2848, 0.0
        %v3746 = vsel %vm3490, %v2849, 0.0
        %v3747 = vsel %vm3491, %v2850, 0.0
        %v3748 = vsel %vm3492, %v2851, 0.0
        %v3749 = vsel %vm3493, %v2852, 0.0
        %v3750 = vsel %vm3494, %v2853, 0.0
        %v3751 = vsel %vm3495, %v2854, 0.0
        %v3752 = vsel %vm3496, %v2855, 0.0
        %v3753 = vsel %vm3497, %v2856, 0.0
        %v3754 = vsel %vm3498, %v2857, 0.0
        %v3755 = vsel %vm3499, %v2858, 0.0
        %v3756 = vsel %vm3500, %v2859, 0.0
        %v3757 = vsel %vm3501, %v2860, 0.0
        %v3758 = vsel %vm3502, %v2861, 0.0
        %v3759 = vsel %vm3503, %v2862, 0.0
        %v3760 = vsel %vm3504, %v2863, 0.0
        %v3761 = vsel %vm3505, %v2864, 0.0
        %v3762 = vsel %vm3506, %v2865, 0.0
        %v3763 = vsel %vm3507, %v2866, 0.0
        %v3764 = vsel %vm3508, %v2867, 0.0
        %v3765 = vsel %vm3509, %v2868, 0.0
        %v3766 = vsel %vm3510, %v2869, 0.0
        %v3767 = vsel %vm3511, %v2870, 0.0
        %v3768 = vsel %vm3512, %v2871, 0.0
        %v3769 = vsel %vm3513, %v2872, 0.0
        %v3770 = vsel %vm3514, %v2873, 0.0
        %v3771 = vsel %vm3515, %v2874, 0.0
        %v3772 = vsel %vm3516, %v2875, 0.0
        %v3773 = vsel %vm3517, %v2876, 0.0
        %v3774 = vsel %vm3518, %v2877, 0.0
        %v3775 = vsel %vm3519, %v2878, 0.0
        %v3776 = vsel %vm3520, %v2879, 0.0
        %v3777 = vsel %vm3521, %v2880, 0.0
        %v3778 = vsel %vm3522, %v2881, 0.0
        %v3779 = vsel %vm3523, %v2882, 0.0
        %v3780 = vsel %vm3524, %v2883, 0.0
        %v3781 = vsel %vm3525, %v2884, 0.0
        %v3782 = vsel %vm3526, %v2885, 0.0
        %v3783 = vsel %vm3527, %v2886, 0.0
        %v3784 = vsel %vm3528, %v2887, 0.0
        %v3785 = vsel %vm3529, %v2888, 0.0
        %v3786 = vsel %vm3530, %v2889, 0.0
        %v3787 = vsel %vm3531, %v2890, 0.0
        %v3788 = vsel %vm3532, %v2891, 0.0
        %v3789 = vsel %vm3533, %v2892, 0.0
        %v3790 = vsel %vm3534, %v2893, 0.0
        %v3791 = vsel %vm3535, %v2894, 0.0
        %v3792 = vsel %vm3536, %v2895, 0.0
        %v3793 = vsel %vm3537, %v2896, 0.0
        %v3794 = vsel %vm3538, %v2897, 0.0
        %v3795 = vsel %vm3539, %v2898, 0.0
        %v3796 = vsel %vm3540, %v2899, 0.0
        %v3797 = vsel %vm3541, %v2900, 0.0
        %v3798 = vsel %vm3542, %v2901, 0.0
        %v3799 = vsel %vm3543, %v2902, 0.0
        %v3800 = vsel %vm3544, %v2903, 0.0
        %v3801 = vsel %vm3545, %v2904, 0.0
        %v3802 = vsel %vm3546, %v2905, 0.0
        %v3803 = vsel %vm3547, %v2906, 0.0
        %v3804 = vsel %vm3548, %v2907, 0.0
        %v3805 = vsel %vm3549, %v2908, 0.0
        %v3806 = vsel %vm3550, %v2909, 0.0
        %v3807 = vsel %vm3551, %v2910, 0.0
        %v3808 = vsel %vm3552, %v2911, 0.0
        %v3809 = vsel %vm3553, %v2912, 0.0
        %v3810 = vsel %vm3554, %v2913, 0.0
        %v3811 = vsel %vm3555, %v2914, 0.0
        %v3812 = vsel %vm3556, %v2915, 0.0
        %v3813 = vsel %vm3557, %v2916, 0.0
        %v3814 = vsel %vm3558, %v2917, 0.0
        %v3815 = vsel %vm3559, %v2918, 0.0
        %v3816 = vsel %vm3560, %v2919, 0.0
        %v3817 = vsel %vm3561, %v2920, 0.0
        %v3818 = vsel %vm3562, %v2921, 0.0
        %v3819 = vsel %vm3563, %v2922, 0.0
        %v3820 = vsel %vm3564, %v2923, 0.0
        %v3821 = vsel %vm3565, %v2924, 0.0
        %v3822 = vsel %vm3566, %v2925, 0.0
        %v3823 = vsel %vm3567, %v2926, 0.0
        %v3824 = vsel %vm3568, %v2927, 0.0
        %v3825 = vsel %vm3569, %v2928, 0.0
        %v3826 = vsel %vm3570, %v2929, 0.0
        %v3827 = vsel %vm3571, %v2930, 0.0
        %v3828 = vsel %vm3572, %v2931, 0.0
        %v3829 = vsel %vm3573, %v2932, 0.0
        %v3830 = vsel %vm3574, %v2933, 0.0
        %v3831 = vsel %vm3575, %v2934, 0.0
        %v3832 = vsel %vm3576, %v2935, 0.0
        %v3833 = vsel %vm3577, %v2936, 0.0
        %v3834 = vsel %vm3578, %v2937, 0.0
        %v3835 = vsel %vm3579, %v2938, 0.0
        %v3836 = vsel %vm3580, %v2939, 0.0
        %v3837 = vsel %vm3581, %v2940, 0.0
        %v3838 = vsel %vm3582, %v2941, 0.0
        %v3839 = vsel %vm3583, %v2942, 0.0
        %v3840 = vsel %vm3584, %v2943, 0.0
        %v3841 = vsel %vm3585, %v2944, 0.0
        %v3842 = vsel %vm3586, %v2945, 0.0
        %v3843 = vsel %vm3587, %v2946, 0.0
        %v3844 = vsel %vm3588, %v2947, 0.0
        %v3845 = vsel %vm3589, %v2948, 0.0
        %v3846 = vsel %vm3590, %v2949, 0.0
        %v3847 = vsel %vm3591, %v2950, 0.0
        %v3848 = vsel %vm3592, %v2951, 0.0
        %v3849 = vsel %vm3593, %v2952, 0.0
        %v3850 = vsel %vm3594, %v2953, 0.0
        %v3851 = vsel %vm3595, %v2954, 0.0
        %v3852 = vsel %vm3596, %v2955, 0.0
        %v3853 = vsel %vm3597, %v2956, 0.0
        %v3854 = vsel %vm3598, %v2957, 0.0
        %v3855 = vsel %vm3599, %v2958, 0.0
        %v3856 = vsel %vm3600, %v2959, 0.0
        %v3857 = vadd.f32 %v3601, %v3602
        %v3858 = vadd.f32 %v3857, %v3603
        %v3859 = vadd.f32 %v3858, %v3604
        %3860 = vadd.xlane.f32.xlu0 %v3859
        %v3861 = vpop.xlane.xlu0 %3860
        %v3862 = vadd.f32 %v3605, %v3606
        %v3863 = vadd.f32 %v3862, %v3607
        %v3864 = vadd.f32 %v3863, %v3608
        %3865 = vadd.xlane.f32.xlu0 %v3864
        %v3866 = vpop.xlane.xlu0 %3865
        %v3867 = vadd.f32 %v3609, %v3610
        %v3868 = vadd.f32 %v3867, %v3611
        %v3869 = vadd.f32 %v3868, %v3612
        %3870 = vadd.xlane.f32.xlu0 %v3869
        %v3871 = vpop.xlane.xlu0 %3870
        %v3872 = vadd.f32 %v3613, %v3614
        %v3873 = vadd.f32 %v3872, %v3615
        %v3874 = vadd.f32 %v3873, %v3616
        %3875 = vadd.xlane.f32.xlu0 %v3874
        %v3876 = vpop.xlane.xlu0 %3875
        %v3877 = vadd.f32 %v3617, %v3618
        %v3878 = vadd.f32 %v3877, %v3619
        %v3879 = vadd.f32 %v3878, %v3620
        %3880 = vadd.xlane.f32.xlu0 %v3879
        %v3881 = vpop.xlane.xlu0 %3880
        %v3882 = vadd.f32 %v3621, %v3622
        %v3883 = vadd.f32 %v3882, %v3623
        %v3884 = vadd.f32 %v3883, %v3624
        %3885 = vadd.xlane.f32.xlu0 %v3884
        %v3886 = vpop.xlane.xlu0 %3885
        %v3887 = vadd.f32 %v3625, %v3626
        %v3888 = vadd.f32 %v3887, %v3627
        %v3889 = vadd.f32 %v3888, %v3628
        %3890 = vadd.xlane.f32.xlu0 %v3889
        %v3891 = vpop.xlane.xlu0 %3890
        %v3892 = vadd.f32 %v3629, %v3630
        %v3893 = vadd.f32 %v3892, %v3631
        %v3894 = vadd.f32 %v3893, %v3632
        %3895 = vadd.xlane.f32.xlu0 %v3894
        %v3896 = vpop.xlane.xlu0 %3895
        %v3897 = vadd.f32 %v3633, %v3634
        %v3898 = vadd.f32 %v3897, %v3635
        %v3899 = vadd.f32 %v3898, %v3636
        %3900 = vadd.xlane.f32.xlu0 %v3899
        %v3901 = vpop.xlane.xlu0 %3900
        %v3902 = vadd.f32 %v3637, %v3638
        %v3903 = vadd.f32 %v3902, %v3639
        %v3904 = vadd.f32 %v3903, %v3640
        %3905 = vadd.xlane.f32.xlu0 %v3904
        %v3906 = vpop.xlane.xlu0 %3905
        %v3907 = vadd.f32 %v3641, %v3642
        %v3908 = vadd.f32 %v3907, %v3643
        %v3909 = vadd.f32 %v3908, %v3644
        %3910 = vadd.xlane.f32.xlu0 %v3909
        %v3911 = vpop.xlane.xlu0 %3910
        %v3912 = vadd.f32 %v3645, %v3646
        %v3913 = vadd.f32 %v3912, %v3647
        %v3914 = vadd.f32 %v3913, %v3648
        %3915 = vadd.xlane.f32.xlu0 %v3914
        %v3916 = vpop.xlane.xlu0 %3915
        %v3917 = vadd.f32 %v3649, %v3650
        %v3918 = vadd.f32 %v3917, %v3651
        %v3919 = vadd.f32 %v3918, %v3652
        %3920 = vadd.xlane.f32.xlu0 %v3919
        %v3921 = vpop.xlane.xlu0 %3920
        %v3922 = vadd.f32 %v3653, %v3654
        %v3923 = vadd.f32 %v3922, %v3655
        %v3924 = vadd.f32 %v3923, %v3656
        %3925 = vadd.xlane.f32.xlu0 %v3924
        %v3926 = vpop.xlane.xlu0 %3925
        %v3927 = vadd.f32 %v3657, %v3658
        %v3928 = vadd.f32 %v3927, %v3659
        %v3929 = vadd.f32 %v3928, %v3660
        %3930 = vadd.xlane.f32.xlu0 %v3929
        %v3931 = vpop.xlane.xlu0 %3930
        %v3932 = vadd.f32 %v3661, %v3662
        %v3933 = vadd.f32 %v3932, %v3663
        %v3934 = vadd.f32 %v3933, %v3664
        %3935 = vadd.xlane.f32.xlu0 %v3934
        %v3936 = vpop.xlane.xlu0 %3935
        %v3937 = vadd.f32 %v3665, %v3666
        %v3938 = vadd.f32 %v3937, %v3667
        %v3939 = vadd.f32 %v3938, %v3668
        %3940 = vadd.xlane.f32.xlu0 %v3939
        %v3941 = vpop.xlane.xlu0 %3940
        %v3942 = vadd.f32 %v3669, %v3670
        %v3943 = vadd.f32 %v3942, %v3671
        %v3944 = vadd.f32 %v3943, %v3672
        %3945 = vadd.xlane.f32.xlu0 %v3944
        %v3946 = vpop.xlane.xlu0 %3945
        %v3947 = vadd.f32 %v3673, %v3674
        %v3948 = vadd.f32 %v3947, %v3675
        %v3949 = vadd.f32 %v3948, %v3676
        %3950 = vadd.xlane.f32.xlu0 %v3949
        %v3951 = vpop.xlane.xlu0 %3950
        %v3952 = vadd.f32 %v3677, %v3678
        %v3953 = vadd.f32 %v3952, %v3679
        %v3954 = vadd.f32 %v3953, %v3680
        %3955 = vadd.xlane.f32.xlu0 %v3954
        %v3956 = vpop.xlane.xlu0 %3955
        %v3957 = vadd.f32 %v3681, %v3682
        %v3958 = vadd.f32 %v3957, %v3683
        %v3959 = vadd.f32 %v3958, %v3684
        %3960 = vadd.xlane.f32.xlu0 %v3959
        %v3961 = vpop.xlane.xlu0 %3960
        %v3962 = vadd.f32 %v3685, %v3686
        %v3963 = vadd.f32 %v3962, %v3687
        %v3964 = vadd.f32 %v3963, %v3688
        %3965 = vadd.xlane.f32.xlu0 %v3964
        %v3966 = vpop.xlane.xlu0 %3965
        %v3967 = vadd.f32 %v3689, %v3690
        %v3968 = vadd.f32 %v3967, %v3691
        %v3969 = vadd.f32 %v3968, %v3692
        %3970 = vadd.xlane.f32.xlu0 %v3969
        %v3971 = vpop.xlane.xlu0 %3970
        %v3972 = vadd.f32 %v3693, %v3694
        %v3973 = vadd.f32 %v3972, %v3695
        %v3974 = vadd.f32 %v3973, %v3696
        %3975 = vadd.xlane.f32.xlu0 %v3974
        %v3976 = vpop.xlane.xlu0 %3975
        %v3977 = vadd.f32 %v3697, %v3698
        %v3978 = vadd.f32 %v3977, %v3699
        %v3979 = vadd.f32 %v3978, %v3700
        %3980 = vadd.xlane.f32.xlu0 %v3979
        %v3981 = vpop.xlane.xlu0 %3980
        %v3982 = vadd.f32 %v3701, %v3702
        %v3983 = vadd.f32 %v3982, %v3703
        %v3984 = vadd.f32 %v3983, %v3704
        %3985 = vadd.xlane.f32.xlu0 %v3984
        %v3986 = vpop.xlane.xlu0 %3985
        %v3987 = vadd.f32 %v3705, %v3706
        %v3988 = vadd.f32 %v3987, %v3707
        %v3989 = vadd.f32 %v3988, %v3708
        %3990 = vadd.xlane.f32.xlu0 %v3989
        %v3991 = vpop.xlane.xlu0 %3990
        %v3992 = vadd.f32 %v3709, %v3710
        %v3993 = vadd.f32 %v3992, %v3711
        %v3994 = vadd.f32 %v3993, %v3712
        %3995 = vadd.xlane.f32.xlu0 %v3994
        %v3996 = vpop.xlane.xlu0 %3995
        %v3997 = vadd.f32 %v3713, %v3714
        %v3998 = vadd.f32 %v3997, %v3715
        %v3999 = vadd.f32 %v3998, %v3716
        %4000 = vadd.xlane.f32.xlu0 %v3999
        %v4001 = vpop.xlane.xlu0 %4000
        %v4002 = vadd.f32 %v3717, %v3718
        %v4003 = vadd.f32 %v4002, %v3719
        %v4004 = vadd.f32 %v4003, %v3720
        %4005 = vadd.xlane.f32.xlu0 %v4004
        %v4006 = vpop.xlane.xlu0 %4005
        %v4007 = vadd.f32 %v3721, %v3722
        %v4008 = vadd.f32 %v4007, %v3723
        %v4009 = vadd.f32 %v4008, %v3724
        %4010 = vadd.xlane.f32.xlu0 %v4009
        %v4011 = vpop.xlane.xlu0 %4010
        %v4012 = vadd.f32 %v3725, %v3726
        %v4013 = vadd.f32 %v4012, %v3727
        %v4014 = vadd.f32 %v4013, %v3728
        %4015 = vadd.xlane.f32.xlu0 %v4014
        %v4016 = vpop.xlane.xlu0 %4015
        %v4017 = vadd.f32 %v3729, %v3730
        %v4018 = vadd.f32 %v4017, %v3731
        %v4019 = vadd.f32 %v4018, %v3732
        %4020 = vadd.xlane.f32.xlu0 %v4019
        %v4021 = vpop.xlane.xlu0 %4020
        %v4022 = vadd.f32 %v3733, %v3734
        %v4023 = vadd.f32 %v4022, %v3735
        %v4024 = vadd.f32 %v4023, %v3736
        %4025 = vadd.xlane.f32.xlu0 %v4024
        %v4026 = vpop.xlane.xlu0 %4025
        %v4027 = vadd.f32 %v3737, %v3738
        %v4028 = vadd.f32 %v4027, %v3739
        %v4029 = vadd.f32 %v4028, %v3740
        %4030 = vadd.xlane.f32.xlu0 %v4029
        %v4031 = vpop.xlane.xlu0 %4030
        %v4032 = vadd.f32 %v3741, %v3742
        %v4033 = vadd.f32 %v4032, %v3743
        %v4034 = vadd.f32 %v4033, %v3744
        %4035 = vadd.xlane.f32.xlu0 %v4034
        %v4036 = vpop.xlane.xlu0 %4035
        %v4037 = vadd.f32 %v3745, %v3746
        %v4038 = vadd.f32 %v4037, %v3747
        %v4039 = vadd.f32 %v4038, %v3748
        %4040 = vadd.xlane.f32.xlu0 %v4039
        %v4041 = vpop.xlane.xlu0 %4040
        %v4042 = vadd.f32 %v3749, %v3750
        %v4043 = vadd.f32 %v4042, %v3751
        %v4044 = vadd.f32 %v4043, %v3752
        %4045 = vadd.xlane.f32.xlu0 %v4044
        %v4046 = vpop.xlane.xlu0 %4045
        %v4047 = vadd.f32 %v3753, %v3754
        %v4048 = vadd.f32 %v4047, %v3755
        %v4049 = vadd.f32 %v4048, %v3756
        %4050 = vadd.xlane.f32.xlu0 %v4049
        %v4051 = vpop.xlane.xlu0 %4050
        %v4052 = vadd.f32 %v3757, %v3758
        %v4053 = vadd.f32 %v4052, %v3759
        %v4054 = vadd.f32 %v4053, %v3760
        %4055 = vadd.xlane.f32.xlu0 %v4054
        %v4056 = vpop.xlane.xlu0 %4055
        %v4057 = vadd.f32 %v3761, %v3762
        %v4058 = vadd.f32 %v4057, %v3763
        %v4059 = vadd.f32 %v4058, %v3764
        %4060 = vadd.xlane.f32.xlu0 %v4059
        %v4061 = vpop.xlane.xlu0 %4060
        %v4062 = vadd.f32 %v3765, %v3766
        %v4063 = vadd.f32 %v4062, %v3767
        %v4064 = vadd.f32 %v4063, %v3768
        %4065 = vadd.xlane.f32.xlu0 %v4064
        %v4066 = vpop.xlane.xlu0 %4065
        %v4067 = vadd.f32 %v3769, %v3770
        %v4068 = vadd.f32 %v4067, %v3771
        %v4069 = vadd.f32 %v4068, %v3772
        %4070 = vadd.xlane.f32.xlu0 %v4069
        %v4071 = vpop.xlane.xlu0 %4070
        %v4072 = vadd.f32 %v3773, %v3774
        %v4073 = vadd.f32 %v4072, %v3775
        %v4074 = vadd.f32 %v4073, %v3776
        %4075 = vadd.xlane.f32.xlu0 %v4074
        %v4076 = vpop.xlane.xlu0 %4075
        %v4077 = vadd.f32 %v3777, %v3778
        %v4078 = vadd.f32 %v4077, %v3779
        %v4079 = vadd.f32 %v4078, %v3780
        %4080 = vadd.xlane.f32.xlu0 %v4079
        %v4081 = vpop.xlane.xlu0 %4080
        %v4082 = vadd.f32 %v3781, %v3782
        %v4083 = vadd.f32 %v4082, %v3783
        %v4084 = vadd.f32 %v4083, %v3784
        %4085 = vadd.xlane.f32.xlu0 %v4084
        %v4086 = vpop.xlane.xlu0 %4085
        %v4087 = vadd.f32 %v3785, %v3786
        %v4088 = vadd.f32 %v4087, %v3787
        %v4089 = vadd.f32 %v4088, %v3788
        %4090 = vadd.xlane.f32.xlu0 %v4089
        %v4091 = vpop.xlane.xlu0 %4090
        %v4092 = vadd.f32 %v3789, %v3790
        %v4093 = vadd.f32 %v4092, %v3791
        %v4094 = vadd.f32 %v4093, %v3792
        %4095 = vadd.xlane.f32.xlu0 %v4094
        %v4096 = vpop.xlane.xlu0 %4095
        %v4097 = vadd.f32 %v3793, %v3794
        %v4098 = vadd.f32 %v4097, %v3795
        %v4099 = vadd.f32 %v4098, %v3796
        %4100 = vadd.xlane.f32.xlu0 %v4099
        %v4101 = vpop.xlane.xlu0 %4100
        %v4102 = vadd.f32 %v3797, %v3798
        %v4103 = vadd.f32 %v4102, %v3799
        %v4104 = vadd.f32 %v4103, %v3800
        %4105 = vadd.xlane.f32.xlu0 %v4104
        %v4106 = vpop.xlane.xlu0 %4105
        %v4107 = vadd.f32 %v3801, %v3802
        %v4108 = vadd.f32 %v4107, %v3803
        %v4109 = vadd.f32 %v4108, %v3804
        %4110 = vadd.xlane.f32.xlu0 %v4109
        %v4111 = vpop.xlane.xlu0 %4110
        %v4112 = vadd.f32 %v3805, %v3806
        %v4113 = vadd.f32 %v4112, %v3807
        %v4114 = vadd.f32 %v4113, %v3808
        %4115 = vadd.xlane.f32.xlu0 %v4114
        %v4116 = vpop.xlane.xlu0 %4115
        %v4117 = vadd.f32 %v3809, %v3810
        %v4118 = vadd.f32 %v4117, %v3811
        %v4119 = vadd.f32 %v4118, %v3812
        %4120 = vadd.xlane.f32.xlu0 %v4119
        %v4121 = vpop.xlane.xlu0 %4120
        %v4122 = vadd.f32 %v3813, %v3814
        %v4123 = vadd.f32 %v4122, %v3815
        %v4124 = vadd.f32 %v4123, %v3816
        %4125 = vadd.xlane.f32.xlu0 %v4124
        %v4126 = vpop.xlane.xlu0 %4125
        %v4127 = vadd.f32 %v3817, %v3818
        %v4128 = vadd.f32 %v4127, %v3819
        %v4129 = vadd.f32 %v4128, %v3820
        %4130 = vadd.xlane.f32.xlu0 %v4129
        %v4131 = vpop.xlane.xlu0 %4130
        %v4132 = vadd.f32 %v3821, %v3822
        %v4133 = vadd.f32 %v4132, %v3823
        %v4134 = vadd.f32 %v4133, %v3824
        %4135 = vadd.xlane.f32.xlu0 %v4134
        %v4136 = vpop.xlane.xlu0 %4135
        %v4137 = vadd.f32 %v3825, %v3826
        %v4138 = vadd.f32 %v4137, %v3827
        %v4139 = vadd.f32 %v4138, %v3828
        %4140 = vadd.xlane.f32.xlu0 %v4139
        %v4141 = vpop.xlane.xlu0 %4140
        %v4142 = vadd.f32 %v3829, %v3830
        %v4143 = vadd.f32 %v4142, %v3831
        %v4144 = vadd.f32 %v4143, %v3832
        %4145 = vadd.xlane.f32.xlu0 %v4144
        %v4146 = vpop.xlane.xlu0 %4145
        %v4147 = vadd.f32 %v3833, %v3834
        %v4148 = vadd.f32 %v4147, %v3835
        %v4149 = vadd.f32 %v4148, %v3836
        %4150 = vadd.xlane.f32.xlu0 %v4149
        %v4151 = vpop.xlane.xlu0 %4150
        %v4152 = vadd.f32 %v3837, %v3838
        %v4153 = vadd.f32 %v4152, %v3839
        %v4154 = vadd.f32 %v4153, %v3840
        %4155 = vadd.xlane.f32.xlu0 %v4154
        %v4156 = vpop.xlane.xlu0 %4155
        %v4157 = vadd.f32 %v3841, %v3842
        %v4158 = vadd.f32 %v4157, %v3843
        %v4159 = vadd.f32 %v4158, %v3844
        %4160 = vadd.xlane.f32.xlu0 %v4159
        %v4161 = vpop.xlane.xlu0 %4160
        %v4162 = vadd.f32 %v3845, %v3846
        %v4163 = vadd.f32 %v4162, %v3847
        %v4164 = vadd.f32 %v4163, %v3848
        %4165 = vadd.xlane.f32.xlu0 %v4164
        %v4166 = vpop.xlane.xlu0 %4165
        %v4167 = vadd.f32 %v3849, %v3850
        %v4168 = vadd.f32 %v4167, %v3851
        %v4169 = vadd.f32 %v4168, %v3852
        %4170 = vadd.xlane.f32.xlu0 %v4169
        %v4171 = vpop.xlane.xlu0 %4170
        %v4172 = vadd.f32 %v3853, %v3854
        %v4173 = vadd.f32 %v4172, %v3855
        %v4174 = vadd.f32 %v4173, %v3856
        %4175 = vadd.xlane.f32.xlu0 %v4174
        %v4176 = vpop.xlane.xlu0 %4175
        %v4177 = vadd.f32 %v3089, %v3861
        %v4178 = vadd.f32 %v3090, %v3866
        %v4179 = vadd.f32 %v3091, %v3871
        %v4180 = vadd.f32 %v3092, %v3876
        %v4181 = vadd.f32 %v3093, %v3881
        %v4182 = vadd.f32 %v3094, %v3886
        %v4183 = vadd.f32 %v3095, %v3891
        %v4184 = vadd.f32 %v3096, %v3896
        %v4185 = vadd.f32 %v3097, %v3901
        %v4186 = vadd.f32 %v3098, %v3906
        %v4187 = vadd.f32 %v3099, %v3911
        %v4188 = vadd.f32 %v3100, %v3916
        %v4189 = vadd.f32 %v3101, %v3921
        %v4190 = vadd.f32 %v3102, %v3926
        %v4191 = vadd.f32 %v3103, %v3931
        %v4192 = vadd.f32 %v3104, %v3936
        %v4193 = vadd.f32 %v3105, %v3941
        %v4194 = vadd.f32 %v3106, %v3946
        %v4195 = vadd.f32 %v3107, %v3951
        %v4196 = vadd.f32 %v3108, %v3956
        %v4197 = vadd.f32 %v3109, %v3961
        %v4198 = vadd.f32 %v3110, %v3966
        %v4199 = vadd.f32 %v3111, %v3971
        %v4200 = vadd.f32 %v3112, %v3976
        %v4201 = vadd.f32 %v3113, %v3981
        %v4202 = vadd.f32 %v3114, %v3986
        %v4203 = vadd.f32 %v3115, %v3991
        %v4204 = vadd.f32 %v3116, %v3996
        %v4205 = vadd.f32 %v3117, %v4001
        %v4206 = vadd.f32 %v3118, %v4006
        %v4207 = vadd.f32 %v3119, %v4011
        %v4208 = vadd.f32 %v3120, %v4016
        %v4209 = vadd.f32 %v3121, %v4021
        %v4210 = vadd.f32 %v3122, %v4026
        %v4211 = vadd.f32 %v3123, %v4031
        %v4212 = vadd.f32 %v3124, %v4036
        %v4213 = vadd.f32 %v3125, %v4041
        %v4214 = vadd.f32 %v3126, %v4046
        %v4215 = vadd.f32 %v3127, %v4051
        %v4216 = vadd.f32 %v3128, %v4056
        %v4217 = vadd.f32 %v3129, %v4061
        %v4218 = vadd.f32 %v3130, %v4066
        %v4219 = vadd.f32 %v3131, %v4071
        %v4220 = vadd.f32 %v3132, %v4076
        %v4221 = vadd.f32 %v3133, %v4081
        %v4222 = vadd.f32 %v3134, %v4086
        %v4223 = vadd.f32 %v3135, %v4091
        %v4224 = vadd.f32 %v3136, %v4096
        %v4225 = vadd.f32 %v3137, %v4101
        %v4226 = vadd.f32 %v3138, %v4106
        %v4227 = vadd.f32 %v3139, %v4111
        %v4228 = vadd.f32 %v3140, %v4116
        %v4229 = vadd.f32 %v3141, %v4121
        %v4230 = vadd.f32 %v3142, %v4126
        %v4231 = vadd.f32 %v3143, %v4131
        %v4232 = vadd.f32 %v3144, %v4136
        %v4233 = vadd.f32 %v3145, %v4141
        %v4234 = vadd.f32 %v3146, %v4146
        %v4235 = vadd.f32 %v3147, %v4151
        %v4236 = vadd.f32 %v3148, %v4156
        %v4237 = vadd.f32 %v3149, %v4161
        %v4238 = vadd.f32 %v3150, %v4166
        %v4239 = vadd.f32 %v3151, %v4171
        %v4240 = vadd.f32 %v3152, %v4176
        %vm4241 = vcmask 7168
        %4242 = vst.msk [vmem:[#allocation4] sm:$0xff] %vm4241, %v4177
        %4243 = vst.msk [vmem:[#allocation4 + $0x8] sm:$0xff] %vm4241, %v4178
        %4244 = vst.msk [vmem:[#allocation4 + $0x10] sm:$0xff] %vm4241, %v4179
        %4245 = vst.msk [vmem:[#allocation4 + $0x18] sm:$0xff] %vm4241, %v4180
        %4246 = vst.msk [vmem:[#allocation4 + $0x20] sm:$0xff] %vm4241, %v4181
        %4247 = vst.msk [vmem:[#allocation4 + $0x28] sm:$0xff] %vm4241, %v4182
        %4248 = vst.msk [vmem:[#allocation4 + $0x30] sm:$0xff] %vm4241, %v4183
        %4249 = vst.msk [vmem:[#allocation4 + $0x38] sm:$0xff] %vm4241, %v4184
        %4250 = vst.msk [vmem:[#allocation4 + $0x40] sm:$0xff] %vm4241, %v4185
        %4251 = vst.msk [vmem:[#allocation4 + $0x48] sm:$0xff] %vm4241, %v4186
        %4252 = vst.msk [vmem:[#allocation4 + $0x50] sm:$0xff] %vm4241, %v4187
        %4253 = vst.msk [vmem:[#allocation4 + $0x58] sm:$0xff] %vm4241, %v4188
        %4254 = vst.msk [vmem:[#allocation4 + $0x60] sm:$0xff] %vm4241, %v4189
        %4255 = vst.msk [vmem:[#allocation4 + $0x68] sm:$0xff] %vm4241, %v4190
        %4256 = vst.msk [vmem:[#allocation4 + $0x70] sm:$0xff] %vm4241, %v4191
        %4257 = vst.msk [vmem:[#allocation4 + $0x78] sm:$0xff] %vm4241, %v4192
        %4258 = vst.msk [vmem:[#allocation4 + $0x80] sm:$0xff] %vm4241, %v4193
        %4259 = vst.msk [vmem:[#allocation4 + $0x88] sm:$0xff] %vm4241, %v4194
        %4260 = vst.msk [vmem:[#allocation4 + $0x90] sm:$0xff] %vm4241, %v4195
        %4261 = vst.msk [vmem:[#allocation4 + $0x98] sm:$0xff] %vm4241, %v4196
        %4262 = vst.msk [vmem:[#allocation4 + $0xa0] sm:$0xff] %vm4241, %v4197
        %4263 = vst.msk [vmem:[#allocation4 + $0xa8] sm:$0xff] %vm4241, %v4198
        %4264 = vst.msk [vmem:[#allocation4 + $0xb0] sm:$0xff] %vm4241, %v4199
        %4265 = vst.msk [vmem:[#allocation4 + $0xb8] sm:$0xff] %vm4241, %v4200
        %4266 = vst.msk [vmem:[#allocation4 + $0xc0] sm:$0xff] %vm4241, %v4201
        %4267 = vst.msk [vmem:[#allocation4 + $0xc8] sm:$0xff] %vm4241, %v4202
        %4268 = vst.msk [vmem:[#allocation4 + $0xd0] sm:$0xff] %vm4241, %v4203
        %4269 = vst.msk [vmem:[#allocation4 + $0xd8] sm:$0xff] %vm4241, %v4204
        %4270 = vst.msk [vmem:[#allocation4 + $0xe0] sm:$0xff] %vm4241, %v4205
        %4271 = vst.msk [vmem:[#allocation4 + $0xe8] sm:$0xff] %vm4241, %v4206
        %4272 = vst.msk [vmem:[#allocation4 + $0xf0] sm:$0xff] %vm4241, %v4207
        %4273 = vst.msk [vmem:[#allocation4 + $0xf8] sm:$0xff] %vm4241, %v4208
        %4274 = vst.msk [vmem:[#allocation4 + $0x100] sm:$0xff] %vm4241, %v4209
        %4275 = vst.msk [vmem:[#allocation4 + $0x108] sm:$0xff] %vm4241, %v4210
        %4276 = vst.msk [vmem:[#allocation4 + $0x110] sm:$0xff] %vm4241, %v4211
        %4277 = vst.msk [vmem:[#allocation4 + $0x118] sm:$0xff] %vm4241, %v4212
        %4278 = vst.msk [vmem:[#allocation4 + $0x120] sm:$0xff] %vm4241, %v4213
        %4279 = vst.msk [vmem:[#allocation4 + $0x128] sm:$0xff] %vm4241, %v4214
        %4280 = vst.msk [vmem:[#allocation4 + $0x130] sm:$0xff] %vm4241, %v4215
        %4281 = vst.msk [vmem:[#allocation4 + $0x138] sm:$0xff] %vm4241, %v4216
        %4282 = vst.msk [vmem:[#allocation4 + $0x140] sm:$0xff] %vm4241, %v4217
        %4283 = vst.msk [vmem:[#allocation4 + $0x148] sm:$0xff] %vm4241, %v4218
        %4284 = vst.msk [vmem:[#allocation4 + $0x150] sm:$0xff] %vm4241, %v4219
        %4285 = vst.msk [vmem:[#allocation4 + $0x158] sm:$0xff] %vm4241, %v4220
        %4286 = vst.msk [vmem:[#allocation4 + $0x160] sm:$0xff] %vm4241, %v4221
        %4287 = vst.msk [vmem:[#allocation4 + $0x168] sm:$0xff] %vm4241, %v4222
        %4288 = vst.msk [vmem:[#allocation4 + $0x170] sm:$0xff] %vm4241, %v4223
        %4289 = vst.msk [vmem:[#allocation4 + $0x178] sm:$0xff] %vm4241, %v4224
        %4290 = vst.msk [vmem:[#allocation4 + $0x180] sm:$0xff] %vm4241, %v4225
        %4291 = vst.msk [vmem:[#allocation4 + $0x188] sm:$0xff] %vm4241, %v4226
        %4292 = vst.msk [vmem:[#allocation4 + $0x190] sm:$0xff] %vm4241, %v4227
        %4293 = vst.msk [vmem:[#allocation4 + $0x198] sm:$0xff] %vm4241, %v4228
        %4294 = vst.msk [vmem:[#allocation4 + $0x1a0] sm:$0xff] %vm4241, %v4229
        %4295 = vst.msk [vmem:[#allocation4 + $0x1a8] sm:$0xff] %vm4241, %v4230
        %4296 = vst.msk [vmem:[#allocation4 + $0x1b0] sm:$0xff] %vm4241, %v4231
        %4297 = vst.msk [vmem:[#allocation4 + $0x1b8] sm:$0xff] %vm4241, %v4232
        %4298 = vst.msk [vmem:[#allocation4 + $0x1c0] sm:$0xff] %vm4241, %v4233
        %4299 = vst.msk [vmem:[#allocation4 + $0x1c8] sm:$0xff] %vm4241, %v4234
        %4300 = vst.msk [vmem:[#allocation4 + $0x1d0] sm:$0xff] %vm4241, %v4235
        %4301 = vst.msk [vmem:[#allocation4 + $0x1d8] sm:$0xff] %vm4241, %v4236
        %4302 = vst.msk [vmem:[#allocation4 + $0x1e0] sm:$0xff] %vm4241, %v4237
        %4303 = vst.msk [vmem:[#allocation4 + $0x1e8] sm:$0xff] %vm4241, %v4238
        %4304 = vst.msk [vmem:[#allocation4 + $0x1f0] sm:$0xff] %vm4241, %v4239
        %4305 = vst.msk [vmem:[#allocation4 + $0x1f8] sm:$0xff] %vm4241, %v4240
        %v4306 = vld [vmem:[#allocation2] sm:$0xff]
        %v4307 = vld [vmem:[#allocation2 + $0x8] sm:$0xff]
        %v4308 = vld [vmem:[#allocation2 + $0x10] sm:$0xff]
        %v4309 = vld [vmem:[#allocation2 + $0x18] sm:$0xff]
        %v4310 = vld [vmem:[#allocation2 + $0x20] sm:$0xff]
        %v4311 = vld [vmem:[#allocation2 + $0x28] sm:$0xff]
        %v4312 = vld [vmem:[#allocation2 + $0x30] sm:$0xff]
        %v4313 = vld [vmem:[#allocation2 + $0x38] sm:$0xff]
        %v4314 = vld [vmem:[#allocation2 + $0x40] sm:$0xff]
        %v4315 = vld [vmem:[#allocation2 + $0x48] sm:$0xff]
        %v4316 = vld [vmem:[#allocation2 + $0x50] sm:$0xff]
        %v4317 = vld [vmem:[#allocation2 + $0x58] sm:$0xff]
        %v4318 = vld [vmem:[#allocation2 + $0x60] sm:$0xff]
        %v4319 = vld [vmem:[#allocation2 + $0x68] sm:$0xff]
        %v4320 = vld [vmem:[#allocation2 + $0x70] sm:$0xff]
        %v4321 = vld [vmem:[#allocation2 + $0x78] sm:$0xff]
        %v4322 = vld [vmem:[#allocation2 + $0x80] sm:$0xff]
        %v4323 = vld [vmem:[#allocation2 + $0x88] sm:$0xff]
        %v4324 = vld [vmem:[#allocation2 + $0x90] sm:$0xff]
        %v4325 = vld [vmem:[#allocation2 + $0x98] sm:$0xff]
        %v4326 = vld [vmem:[#allocation2 + $0xa0] sm:$0xff]
        %v4327 = vld [vmem:[#allocation2 + $0xa8] sm:$0xff]
        %v4328 = vld [vmem:[#allocation2 + $0xb0] sm:$0xff]
        %v4329 = vld [vmem:[#allocation2 + $0xb8] sm:$0xff]
        %v4330 = vld [vmem:[#allocation2 + $0xc0] sm:$0xff]
        %v4331 = vld [vmem:[#allocation2 + $0xc8] sm:$0xff]
        %v4332 = vld [vmem:[#allocation2 + $0xd0] sm:$0xff]
        %v4333 = vld [vmem:[#allocation2 + $0xd8] sm:$0xff]
        %v4334 = vld [vmem:[#allocation2 + $0xe0] sm:$0xff]
        %v4335 = vld [vmem:[#allocation2 + $0xe8] sm:$0xff]
        %v4336 = vld [vmem:[#allocation2 + $0xf0] sm:$0xff]
        %v4337 = vld [vmem:[#allocation2 + $0xf8] sm:$0xff]
        %v4338 = vld [vmem:[#allocation2 + $0x100] sm:$0xff]
        %v4339 = vld [vmem:[#allocation2 + $0x108] sm:$0xff]
        %v4340 = vld [vmem:[#allocation2 + $0x110] sm:$0xff]
        %v4341 = vld [vmem:[#allocation2 + $0x118] sm:$0xff]
        %v4342 = vld [vmem:[#allocation2 + $0x120] sm:$0xff]
        %v4343 = vld [vmem:[#allocation2 + $0x128] sm:$0xff]
        %v4344 = vld [vmem:[#allocation2 + $0x130] sm:$0xff]
        %v4345 = vld [vmem:[#allocation2 + $0x138] sm:$0xff]
        %v4346 = vld [vmem:[#allocation2 + $0x140] sm:$0xff]
        %v4347 = vld [vmem:[#allocation2 + $0x148] sm:$0xff]
        %v4348 = vld [vmem:[#allocation2 + $0x150] sm:$0xff]
        %v4349 = vld [vmem:[#allocation2 + $0x158] sm:$0xff]
        %v4350 = vld [vmem:[#allocation2 + $0x160] sm:$0xff]
        %v4351 = vld [vmem:[#allocation2 + $0x168] sm:$0xff]
        %v4352 = vld [vmem:[#allocation2 + $0x170] sm:$0xff]
        %v4353 = vld [vmem:[#allocation2 + $0x178] sm:$0xff]
        %v4354 = vld [vmem:[#allocation2 + $0x180] sm:$0xff]
        %v4355 = vld [vmem:[#allocation2 + $0x188] sm:$0xff]
        %v4356 = vld [vmem:[#allocation2 + $0x190] sm:$0xff]
        %v4357 = vld [vmem:[#allocation2 + $0x198] sm:$0xff]
        %v4358 = vld [vmem:[#allocation2 + $0x1a0] sm:$0xff]
        %v4359 = vld [vmem:[#allocation2 + $0x1a8] sm:$0xff]
        %v4360 = vld [vmem:[#allocation2 + $0x1b0] sm:$0xff]
        %v4361 = vld [vmem:[#allocation2 + $0x1b8] sm:$0xff]
        %v4362 = vld [vmem:[#allocation2 + $0x1c0] sm:$0xff]
        %v4363 = vld [vmem:[#allocation2 + $0x1c8] sm:$0xff]
        %v4364 = vld [vmem:[#allocation2 + $0x1d0] sm:$0xff]
        %v4365 = vld [vmem:[#allocation2 + $0x1d8] sm:$0xff]
        %v4366 = vld [vmem:[#allocation2 + $0x1e0] sm:$0xff]
        %v4367 = vld [vmem:[#allocation2 + $0x1e8] sm:$0xff]
        %v4368 = vld [vmem:[#allocation2 + $0x1f0] sm:$0xff]
        %v4369 = vld [vmem:[#allocation2 + $0x1f8] sm:$0xff]
        %v4370 = vmax.f32 %v2704, %v2705
        %v4371 = vmax.f32 %v4370, %v2706
        %v4372 = vmax.f32 %v4371, %v2707
        %4373 = vmax.xlane.f32.xlu0 %v4372
        %v4374 = vpop.xlane.xlu0 %4373
        %v4375 = vmax.f32 %v2708, %v2709
        %v4376 = vmax.f32 %v4375, %v2710
        %v4377 = vmax.f32 %v4376, %v2711
        %4378 = vmax.xlane.f32.xlu0 %v4377
        %v4379 = vpop.xlane.xlu0 %4378
        %v4380 = vmax.f32 %v2712, %v2713
        %v4381 = vmax.f32 %v4380, %v2714
        %v4382 = vmax.f32 %v4381, %v2715
        %4383 = vmax.xlane.f32.xlu0 %v4382
        %v4384 = vpop.xlane.xlu0 %4383
        %v4385 = vmax.f32 %v2716, %v2717
        %v4386 = vmax.f32 %v4385, %v2718
        %v4387 = vmax.f32 %v4386, %v2719
        %4388 = vmax.xlane.f32.xlu0 %v4387
        %v4389 = vpop.xlane.xlu0 %4388
        %v4390 = vmax.f32 %v2720, %v2721
        %v4391 = vmax.f32 %v4390, %v2722
        %v4392 = vmax.f32 %v4391, %v2723
        %4393 = vmax.xlane.f32.xlu0 %v4392
        %v4394 = vpop.xlane.xlu0 %4393
        %v4395 = vmax.f32 %v2724, %v2725
        %v4396 = vmax.f32 %v4395, %v2726
        %v4397 = vmax.f32 %v4396, %v2727
        %4398 = vmax.xlane.f32.xlu0 %v4397
        %v4399 = vpop.xlane.xlu0 %4398
        %v4400 = vmax.f32 %v2728, %v2729
        %v4401 = vmax.f32 %v4400, %v2730
        %v4402 = vmax.f32 %v4401, %v2731
        %4403 = vmax.xlane.f32.xlu0 %v4402
        %v4404 = vpop.xlane.xlu0 %4403
        %v4405 = vmax.f32 %v2732, %v2733
        %v4406 = vmax.f32 %v4405, %v2734
        %v4407 = vmax.f32 %v4406, %v2735
        %4408 = vmax.xlane.f32.xlu0 %v4407
        %v4409 = vpop.xlane.xlu0 %4408
        %v4410 = vmax.f32 %v2736, %v2737
        %v4411 = vmax.f32 %v4410, %v2738
        %v4412 = vmax.f32 %v4411, %v2739
        %4413 = vmax.xlane.f32.xlu0 %v4412
        %v4414 = vpop.xlane.xlu0 %4413
        %v4415 = vmax.f32 %v2740, %v2741
        %v4416 = vmax.f32 %v4415, %v2742
        %v4417 = vmax.f32 %v4416, %v2743
        %4418 = vmax.xlane.f32.xlu0 %v4417
        %v4419 = vpop.xlane.xlu0 %4418
        %v4420 = vmax.f32 %v2744, %v2745
        %v4421 = vmax.f32 %v4420, %v2746
        %v4422 = vmax.f32 %v4421, %v2747
        %4423 = vmax.xlane.f32.xlu0 %v4422
        %v4424 = vpop.xlane.xlu0 %4423
        %v4425 = vmax.f32 %v2748, %v2749
        %v4426 = vmax.f32 %v4425, %v2750
        %v4427 = vmax.f32 %v4426, %v2751
        %4428 = vmax.xlane.f32.xlu0 %v4427
        %v4429 = vpop.xlane.xlu0 %4428
        %v4430 = vmax.f32 %v2752, %v2753
        %v4431 = vmax.f32 %v4430, %v2754
        %v4432 = vmax.f32 %v4431, %v2755
        %4433 = vmax.xlane.f32.xlu0 %v4432
        %v4434 = vpop.xlane.xlu0 %4433
        %v4435 = vmax.f32 %v2756, %v2757
        %v4436 = vmax.f32 %v4435, %v2758
        %v4437 = vmax.f32 %v4436, %v2759
        %4438 = vmax.xlane.f32.xlu0 %v4437
        %v4439 = vpop.xlane.xlu0 %4438
        %v4440 = vmax.f32 %v2760, %v2761
        %v4441 = vmax.f32 %v4440, %v2762
        %v4442 = vmax.f32 %v4441, %v2763
        %4443 = vmax.xlane.f32.xlu0 %v4442
        %v4444 = vpop.xlane.xlu0 %4443
        %v4445 = vmax.f32 %v2764, %v2765
        %v4446 = vmax.f32 %v4445, %v2766
        %v4447 = vmax.f32 %v4446, %v2767
        %4448 = vmax.xlane.f32.xlu0 %v4447
        %v4449 = vpop.xlane.xlu0 %4448
        %v4450 = vmax.f32 %v2768, %v2769
        %v4451 = vmax.f32 %v4450, %v2770
        %v4452 = vmax.f32 %v4451, %v2771
        %4453 = vmax.xlane.f32.xlu0 %v4452
        %v4454 = vpop.xlane.xlu0 %4453
        %v4455 = vmax.f32 %v2772, %v2773
        %v4456 = vmax.f32 %v4455, %v2774
        %v4457 = vmax.f32 %v4456, %v2775
        %4458 = vmax.xlane.f32.xlu0 %v4457
        %v4459 = vpop.xlane.xlu0 %4458
        %v4460 = vmax.f32 %v2776, %v2777
        %v4461 = vmax.f32 %v4460, %v2778
        %v4462 = vmax.f32 %v4461, %v2779
        %4463 = vmax.xlane.f32.xlu0 %v4462
        %v4464 = vpop.xlane.xlu0 %4463
        %v4465 = vmax.f32 %v2780, %v2781
        %v4466 = vmax.f32 %v4465, %v2782
        %v4467 = vmax.f32 %v4466, %v2783
        %4468 = vmax.xlane.f32.xlu0 %v4467
        %v4469 = vpop.xlane.xlu0 %4468
        %v4470 = vmax.f32 %v2784, %v2785
        %v4471 = vmax.f32 %v4470, %v2786
        %v4472 = vmax.f32 %v4471, %v2787
        %4473 = vmax.xlane.f32.xlu0 %v4472
        %v4474 = vpop.xlane.xlu0 %4473
        %v4475 = vmax.f32 %v2788, %v2789
        %v4476 = vmax.f32 %v4475, %v2790
        %v4477 = vmax.f32 %v4476, %v2791
        %4478 = vmax.xlane.f32.xlu0 %v4477
        %v4479 = vpop.xlane.xlu0 %4478
        %v4480 = vmax.f32 %v2792, %v2793
        %v4481 = vmax.f32 %v4480, %v2794
        %v4482 = vmax.f32 %v4481, %v2795
        %4483 = vmax.xlane.f32.xlu0 %v4482
        %v4484 = vpop.xlane.xlu0 %4483
        %v4485 = vmax.f32 %v2796, %v2797
        %v4486 = vmax.f32 %v4485, %v2798
        %v4487 = vmax.f32 %v4486, %v2799
        %4488 = vmax.xlane.f32.xlu0 %v4487
        %v4489 = vpop.xlane.xlu0 %4488
        %v4490 = vmax.f32 %v2800, %v2801
        %v4491 = vmax.f32 %v4490, %v2802
        %v4492 = vmax.f32 %v4491, %v2803
        %4493 = vmax.xlane.f32.xlu0 %v4492
        %v4494 = vpop.xlane.xlu0 %4493
        %v4495 = vmax.f32 %v2804, %v2805
        %v4496 = vmax.f32 %v4495, %v2806
        %v4497 = vmax.f32 %v4496, %v2807
        %4498 = vmax.xlane.f32.xlu0 %v4497
        %v4499 = vpop.xlane.xlu0 %4498
        %v4500 = vmax.f32 %v2808, %v2809
        %v4501 = vmax.f32 %v4500, %v2810
        %v4502 = vmax.f32 %v4501, %v2811
        %4503 = vmax.xlane.f32.xlu0 %v4502
        %v4504 = vpop.xlane.xlu0 %4503
        %v4505 = vmax.f32 %v2812, %v2813
        %v4506 = vmax.f32 %v4505, %v2814
        %v4507 = vmax.f32 %v4506, %v2815
        %4508 = vmax.xlane.f32.xlu0 %v4507
        %v4509 = vpop.xlane.xlu0 %4508
        %v4510 = vmax.f32 %v2816, %v2817
        %v4511 = vmax.f32 %v4510, %v2818
        %v4512 = vmax.f32 %v4511, %v2819
        %4513 = vmax.xlane.f32.xlu0 %v4512
        %v4514 = vpop.xlane.xlu0 %4513
        %v4515 = vmax.f32 %v2820, %v2821
        %v4516 = vmax.f32 %v4515, %v2822
        %v4517 = vmax.f32 %v4516, %v2823
        %4518 = vmax.xlane.f32.xlu0 %v4517
        %v4519 = vpop.xlane.xlu0 %4518
        %v4520 = vmax.f32 %v2824, %v2825
        %v4521 = vmax.f32 %v4520, %v2826
        %v4522 = vmax.f32 %v4521, %v2827
        %4523 = vmax.xlane.f32.xlu0 %v4522
        %v4524 = vpop.xlane.xlu0 %4523
        %v4525 = vmax.f32 %v2828, %v2829
        %v4526 = vmax.f32 %v4525, %v2830
        %v4527 = vmax.f32 %v4526, %v2831
        %4528 = vmax.xlane.f32.xlu0 %v4527
        %v4529 = vpop.xlane.xlu0 %4528
        %v4530 = vmax.f32 %v2832, %v2833
        %v4531 = vmax.f32 %v4530, %v2834
        %v4532 = vmax.f32 %v4531, %v2835
        %4533 = vmax.xlane.f32.xlu0 %v4532
        %v4534 = vpop.xlane.xlu0 %4533
        %v4535 = vmax.f32 %v2836, %v2837
        %v4536 = vmax.f32 %v4535, %v2838
        %v4537 = vmax.f32 %v4536, %v2839
        %4538 = vmax.xlane.f32.xlu0 %v4537
        %v4539 = vpop.xlane.xlu0 %4538
        %v4540 = vmax.f32 %v2840, %v2841
        %v4541 = vmax.f32 %v4540, %v2842
        %v4542 = vmax.f32 %v4541, %v2843
        %4543 = vmax.xlane.f32.xlu0 %v4542
        %v4544 = vpop.xlane.xlu0 %4543
        %v4545 = vmax.f32 %v2844, %v2845
        %v4546 = vmax.f32 %v4545, %v2846
        %v4547 = vmax.f32 %v4546, %v2847
        %4548 = vmax.xlane.f32.xlu0 %v4547
        %v4549 = vpop.xlane.xlu0 %4548
        %v4550 = vmax.f32 %v2848, %v2849
        %v4551 = vmax.f32 %v4550, %v2850
        %v4552 = vmax.f32 %v4551, %v2851
        %4553 = vmax.xlane.f32.xlu0 %v4552
        %v4554 = vpop.xlane.xlu0 %4553
        %v4555 = vmax.f32 %v2852, %v2853
        %v4556 = vmax.f32 %v4555, %v2854
        %v4557 = vmax.f32 %v4556, %v2855
        %4558 = vmax.xlane.f32.xlu0 %v4557
        %v4559 = vpop.xlane.xlu0 %4558
        %v4560 = vmax.f32 %v2856, %v2857
        %v4561 = vmax.f32 %v4560, %v2858
        %v4562 = vmax.f32 %v4561, %v2859
        %4563 = vmax.xlane.f32.xlu0 %v4562
        %v4564 = vpop.xlane.xlu0 %4563
        %v4565 = vmax.f32 %v2860, %v2861
        %v4566 = vmax.f32 %v4565, %v2862
        %v4567 = vmax.f32 %v4566, %v2863
        %4568 = vmax.xlane.f32.xlu0 %v4567
        %v4569 = vpop.xlane.xlu0 %4568
        %v4570 = vmax.f32 %v2864, %v2865
        %v4571 = vmax.f32 %v4570, %v2866
        %v4572 = vmax.f32 %v4571, %v2867
        %4573 = vmax.xlane.f32.xlu0 %v4572
        %v4574 = vpop.xlane.xlu0 %4573
        %v4575 = vmax.f32 %v2868, %v2869
        %v4576 = vmax.f32 %v4575, %v2870
        %v4577 = vmax.f32 %v4576, %v2871
        %4578 = vmax.xlane.f32.xlu0 %v4577
        %v4579 = vpop.xlane.xlu0 %4578
        %v4580 = vmax.f32 %v2872, %v2873
        %v4581 = vmax.f32 %v4580, %v2874
        %v4582 = vmax.f32 %v4581, %v2875
        %4583 = vmax.xlane.f32.xlu0 %v4582
        %v4584 = vpop.xlane.xlu0 %4583
        %v4585 = vmax.f32 %v2876, %v2877
        %v4586 = vmax.f32 %v4585, %v2878
        %v4587 = vmax.f32 %v4586, %v2879
        %4588 = vmax.xlane.f32.xlu0 %v4587
        %v4589 = vpop.xlane.xlu0 %4588
        %v4590 = vmax.f32 %v2880, %v2881
        %v4591 = vmax.f32 %v4590, %v2882
        %v4592 = vmax.f32 %v4591, %v2883
        %4593 = vmax.xlane.f32.xlu0 %v4592
        %v4594 = vpop.xlane.xlu0 %4593
        %v4595 = vmax.f32 %v2884, %v2885
        %v4596 = vmax.f32 %v4595, %v2886
        %v4597 = vmax.f32 %v4596, %v2887
        %4598 = vmax.xlane.f32.xlu0 %v4597
        %v4599 = vpop.xlane.xlu0 %4598
        %v4600 = vmax.f32 %v2888, %v2889
        %v4601 = vmax.f32 %v4600, %v2890
        %v4602 = vmax.f32 %v4601, %v2891
        %4603 = vmax.xlane.f32.xlu0 %v4602
        %v4604 = vpop.xlane.xlu0 %4603
        %v4605 = vmax.f32 %v2892, %v2893
        %v4606 = vmax.f32 %v4605, %v2894
        %v4607 = vmax.f32 %v4606, %v2895
        %4608 = vmax.xlane.f32.xlu0 %v4607
        %v4609 = vpop.xlane.xlu0 %4608
        %v4610 = vmax.f32 %v2896, %v2897
        %v4611 = vmax.f32 %v4610, %v2898
        %v4612 = vmax.f32 %v4611, %v2899
        %4613 = vmax.xlane.f32.xlu0 %v4612
        %v4614 = vpop.xlane.xlu0 %4613
        %v4615 = vmax.f32 %v2900, %v2901
        %v4616 = vmax.f32 %v4615, %v2902
        %v4617 = vmax.f32 %v4616, %v2903
        %4618 = vmax.xlane.f32.xlu0 %v4617
        %v4619 = vpop.xlane.xlu0 %4618
        %v4620 = vmax.f32 %v2904, %v2905
        %v4621 = vmax.f32 %v4620, %v2906
        %v4622 = vmax.f32 %v4621, %v2907
        %4623 = vmax.xlane.f32.xlu0 %v4622
        %v4624 = vpop.xlane.xlu0 %4623
        %v4625 = vmax.f32 %v2908, %v2909
        %v4626 = vmax.f32 %v4625, %v2910
        %v4627 = vmax.f32 %v4626, %v2911
        %4628 = vmax.xlane.f32.xlu0 %v4627
        %v4629 = vpop.xlane.xlu0 %4628
        %v4630 = vmax.f32 %v2912, %v2913
        %v4631 = vmax.f32 %v4630, %v2914
        %v4632 = vmax.f32 %v4631, %v2915
        %4633 = vmax.xlane.f32.xlu0 %v4632
        %v4634 = vpop.xlane.xlu0 %4633
        %v4635 = vmax.f32 %v2916, %v2917
        %v4636 = vmax.f32 %v4635, %v2918
        %v4637 = vmax.f32 %v4636, %v2919
        %4638 = vmax.xlane.f32.xlu0 %v4637
        %v4639 = vpop.xlane.xlu0 %4638
        %v4640 = vmax.f32 %v2920, %v2921
        %v4641 = vmax.f32 %v4640, %v2922
        %v4642 = vmax.f32 %v4641, %v2923
        %4643 = vmax.xlane.f32.xlu0 %v4642
        %v4644 = vpop.xlane.xlu0 %4643
        %v4645 = vmax.f32 %v2924, %v2925
        %v4646 = vmax.f32 %v4645, %v2926
        %v4647 = vmax.f32 %v4646, %v2927
        %4648 = vmax.xlane.f32.xlu0 %v4647
        %v4649 = vpop.xlane.xlu0 %4648
        %v4650 = vmax.f32 %v2928, %v2929
        %v4651 = vmax.f32 %v4650, %v2930
        %v4652 = vmax.f32 %v4651, %v2931
        %4653 = vmax.xlane.f32.xlu0 %v4652
        %v4654 = vpop.xlane.xlu0 %4653
        %v4655 = vmax.f32 %v2932, %v2933
        %v4656 = vmax.f32 %v4655, %v2934
        %v4657 = vmax.f32 %v4656, %v2935
        %4658 = vmax.xlane.f32.xlu0 %v4657
        %v4659 = vpop.xlane.xlu0 %4658
        %v4660 = vmax.f32 %v2936, %v2937
        %v4661 = vmax.f32 %v4660, %v2938
        %v4662 = vmax.f32 %v4661, %v2939
        %4663 = vmax.xlane.f32.xlu0 %v4662
        %v4664 = vpop.xlane.xlu0 %4663
        %v4665 = vmax.f32 %v2940, %v2941
        %v4666 = vmax.f32 %v4665, %v2942
        %v4667 = vmax.f32 %v4666, %v2943
        %4668 = vmax.xlane.f32.xlu0 %v4667
        %v4669 = vpop.xlane.xlu0 %4668
        %v4670 = vmax.f32 %v2944, %v2945
        %v4671 = vmax.f32 %v4670, %v2946
        %v4672 = vmax.f32 %v4671, %v2947
        %4673 = vmax.xlane.f32.xlu0 %v4672
        %v4674 = vpop.xlane.xlu0 %4673
        %v4675 = vmax.f32 %v2948, %v2949
        %v4676 = vmax.f32 %v4675, %v2950
        %v4677 = vmax.f32 %v4676, %v2951
        %4678 = vmax.xlane.f32.xlu0 %v4677
        %v4679 = vpop.xlane.xlu0 %4678
        %v4680 = vmax.f32 %v2952, %v2953
        %v4681 = vmax.f32 %v4680, %v2954
        %v4682 = vmax.f32 %v4681, %v2955
        %4683 = vmax.xlane.f32.xlu0 %v4682
        %v4684 = vpop.xlane.xlu0 %4683
        %v4685 = vmax.f32 %v2956, %v2957
        %v4686 = vmax.f32 %v4685, %v2958
        %v4687 = vmax.f32 %v4686, %v2959
        %4688 = vmax.xlane.f32.xlu0 %v4687
        %v4689 = vpop.xlane.xlu0 %4688
        %v4690 = vmax.f32 %v4306, %v4374
        %v4691 = vmax.f32 %v4307, %v4379
        %v4692 = vmax.f32 %v4308, %v4384
        %v4693 = vmax.f32 %v4309, %v4389
        %v4694 = vmax.f32 %v4310, %v4394
        %v4695 = vmax.f32 %v4311, %v4399
        %v4696 = vmax.f32 %v4312, %v4404
        %v4697 = vmax.f32 %v4313, %v4409
        %v4698 = vmax.f32 %v4314, %v4414
        %v4699 = vmax.f32 %v4315, %v4419
        %v4700 = vmax.f32 %v4316, %v4424
        %v4701 = vmax.f32 %v4317, %v4429
        %v4702 = vmax.f32 %v4318, %v4434
        %v4703 = vmax.f32 %v4319, %v4439
        %v4704 = vmax.f32 %v4320, %v4444
        %v4705 = vmax.f32 %v4321, %v4449
        %v4706 = vmax.f32 %v4322, %v4454
        %v4707 = vmax.f32 %v4323, %v4459
        %v4708 = vmax.f32 %v4324, %v4464
        %v4709 = vmax.f32 %v4325, %v4469
        %v4710 = vmax.f32 %v4326, %v4474
        %v4711 = vmax.f32 %v4327, %v4479
        %v4712 = vmax.f32 %v4328, %v4484
        %v4713 = vmax.f32 %v4329, %v4489
        %v4714 = vmax.f32 %v4330, %v4494
        %v4715 = vmax.f32 %v4331, %v4499
        %v4716 = vmax.f32 %v4332, %v4504
        %v4717 = vmax.f32 %v4333, %v4509
        %v4718 = vmax.f32 %v4334, %v4514
        %v4719 = vmax.f32 %v4335, %v4519
        %v4720 = vmax.f32 %v4336, %v4524
        %v4721 = vmax.f32 %v4337, %v4529
        %v4722 = vmax.f32 %v4338, %v4534
        %v4723 = vmax.f32 %v4339, %v4539
        %v4724 = vmax.f32 %v4340, %v4544
        %v4725 = vmax.f32 %v4341, %v4549
        %v4726 = vmax.f32 %v4342, %v4554
        %v4727 = vmax.f32 %v4343, %v4559
        %v4728 = vmax.f32 %v4344, %v4564
        %v4729 = vmax.f32 %v4345, %v4569
        %v4730 = vmax.f32 %v4346, %v4574
        %v4731 = vmax.f32 %v4347, %v4579
        %v4732 = vmax.f32 %v4348, %v4584
        %v4733 = vmax.f32 %v4349, %v4589
        %v4734 = vmax.f32 %v4350, %v4594
        %v4735 = vmax.f32 %v4351, %v4599
        %v4736 = vmax.f32 %v4352, %v4604
        %v4737 = vmax.f32 %v4353, %v4609
        %v4738 = vmax.f32 %v4354, %v4614
        %v4739 = vmax.f32 %v4355, %v4619
        %v4740 = vmax.f32 %v4356, %v4624
        %v4741 = vmax.f32 %v4357, %v4629
        %v4742 = vmax.f32 %v4358, %v4634
        %v4743 = vmax.f32 %v4359, %v4639
        %v4744 = vmax.f32 %v4360, %v4644
        %v4745 = vmax.f32 %v4361, %v4649
        %v4746 = vmax.f32 %v4362, %v4654
        %v4747 = vmax.f32 %v4363, %v4659
        %v4748 = vmax.f32 %v4364, %v4664
        %v4749 = vmax.f32 %v4365, %v4669
        %v4750 = vmax.f32 %v4366, %v4674
        %v4751 = vmax.f32 %v4367, %v4679
        %v4752 = vmax.f32 %v4368, %v4684
        %v4753 = vmax.f32 %v4369, %v4689
        %v4754 = vld [vmem:[#allocation3] sm:$0xff]
        %v4755 = vld [vmem:[#allocation3 + $0x8] sm:$0xff]
        %v4756 = vld [vmem:[#allocation3 + $0x10] sm:$0xff]
        %v4757 = vld [vmem:[#allocation3 + $0x18] sm:$0xff]
        %v4758 = vld [vmem:[#allocation3 + $0x20] sm:$0xff]
        %v4759 = vld [vmem:[#allocation3 + $0x28] sm:$0xff]
        %v4760 = vld [vmem:[#allocation3 + $0x30] sm:$0xff]
        %v4761 = vld [vmem:[#allocation3 + $0x38] sm:$0xff]
        %v4762 = vld [vmem:[#allocation3 + $0x40] sm:$0xff]
        %v4763 = vld [vmem:[#allocation3 + $0x48] sm:$0xff]
        %v4764 = vld [vmem:[#allocation3 + $0x50] sm:$0xff]
        %v4765 = vld [vmem:[#allocation3 + $0x58] sm:$0xff]
        %v4766 = vld [vmem:[#allocation3 + $0x60] sm:$0xff]
        %v4767 = vld [vmem:[#allocation3 + $0x68] sm:$0xff]
        %v4768 = vld [vmem:[#allocation3 + $0x70] sm:$0xff]
        %v4769 = vld [vmem:[#allocation3 + $0x78] sm:$0xff]
        %v4770 = vld [vmem:[#allocation3 + $0x80] sm:$0xff]
        %v4771 = vld [vmem:[#allocation3 + $0x88] sm:$0xff]
        %v4772 = vld [vmem:[#allocation3 + $0x90] sm:$0xff]
        %v4773 = vld [vmem:[#allocation3 + $0x98] sm:$0xff]
        %v4774 = vld [vmem:[#allocation3 + $0xa0] sm:$0xff]
        %v4775 = vld [vmem:[#allocation3 + $0xa8] sm:$0xff]
        %v4776 = vld [vmem:[#allocation3 + $0xb0] sm:$0xff]
        %v4777 = vld [vmem:[#allocation3 + $0xb8] sm:$0xff]
        %v4778 = vld [vmem:[#allocation3 + $0xc0] sm:$0xff]
        %v4779 = vld [vmem:[#allocation3 + $0xc8] sm:$0xff]
        %v4780 = vld [vmem:[#allocation3 + $0xd0] sm:$0xff]
        %v4781 = vld [vmem:[#allocation3 + $0xd8] sm:$0xff]
        %v4782 = vld [vmem:[#allocation3 + $0xe0] sm:$0xff]
        %v4783 = vld [vmem:[#allocation3 + $0xe8] sm:$0xff]
        %v4784 = vld [vmem:[#allocation3 + $0xf0] sm:$0xff]
        %v4785 = vld [vmem:[#allocation3 + $0xf8] sm:$0xff]
        %v4786 = vld [vmem:[#allocation3 + $0x100] sm:$0xff]
        %v4787 = vld [vmem:[#allocation3 + $0x108] sm:$0xff]
        %v4788 = vld [vmem:[#allocation3 + $0x110] sm:$0xff]
        %v4789 = vld [vmem:[#allocation3 + $0x118] sm:$0xff]
        %v4790 = vld [vmem:[#allocation3 + $0x120] sm:$0xff]
        %v4791 = vld [vmem:[#allocation3 + $0x128] sm:$0xff]
        %v4792 = vld [vmem:[#allocation3 + $0x130] sm:$0xff]
        %v4793 = vld [vmem:[#allocation3 + $0x138] sm:$0xff]
        %v4794 = vld [vmem:[#allocation3 + $0x140] sm:$0xff]
        %v4795 = vld [vmem:[#allocation3 + $0x148] sm:$0xff]
        %v4796 = vld [vmem:[#allocation3 + $0x150] sm:$0xff]
        %v4797 = vld [vmem:[#allocation3 + $0x158] sm:$0xff]
        %v4798 = vld [vmem:[#allocation3 + $0x160] sm:$0xff]
        %v4799 = vld [vmem:[#allocation3 + $0x168] sm:$0xff]
        %v4800 = vld [vmem:[#allocation3 + $0x170] sm:$0xff]
        %v4801 = vld [vmem:[#allocation3 + $0x178] sm:$0xff]
        %v4802 = vld [vmem:[#allocation3 + $0x180] sm:$0xff]
        %v4803 = vld [vmem:[#allocation3 + $0x188] sm:$0xff]
        %v4804 = vld [vmem:[#allocation3 + $0x190] sm:$0xff]
        %v4805 = vld [vmem:[#allocation3 + $0x198] sm:$0xff]
        %v4806 = vld [vmem:[#allocation3 + $0x1a0] sm:$0xff]
        %v4807 = vld [vmem:[#allocation3 + $0x1a8] sm:$0xff]
        %v4808 = vld [vmem:[#allocation3 + $0x1b0] sm:$0xff]
        %v4809 = vld [vmem:[#allocation3 + $0x1b8] sm:$0xff]
        %v4810 = vld [vmem:[#allocation3 + $0x1c0] sm:$0xff]
        %v4811 = vld [vmem:[#allocation3 + $0x1c8] sm:$0xff]
        %v4812 = vld [vmem:[#allocation3 + $0x1d0] sm:$0xff]
        %v4813 = vld [vmem:[#allocation3 + $0x1d8] sm:$0xff]
        %v4814 = vld [vmem:[#allocation3 + $0x1e0] sm:$0xff]
        %v4815 = vld [vmem:[#allocation3 + $0x1e8] sm:$0xff]
        %v4816 = vld [vmem:[#allocation3 + $0x1f0] sm:$0xff]
        %v4817 = vld [vmem:[#allocation3 + $0x1f8] sm:$0xff]
        %v4818 = vsub.f32 %v4306, %v4690
        %v4819 = vsub.f32 %v4307, %v4691
        %v4820 = vsub.f32 %v4308, %v4692
        %v4821 = vsub.f32 %v4309, %v4693
        %v4822 = vsub.f32 %v4310, %v4694
        %v4823 = vsub.f32 %v4311, %v4695
        %v4824 = vsub.f32 %v4312, %v4696
        %v4825 = vsub.f32 %v4313, %v4697
        %v4826 = vsub.f32 %v4314, %v4698
        %v4827 = vsub.f32 %v4315, %v4699
        %v4828 = vsub.f32 %v4316, %v4700
        %v4829 = vsub.f32 %v4317, %v4701
        %v4830 = vsub.f32 %v4318, %v4702
        %v4831 = vsub.f32 %v4319, %v4703
        %v4832 = vsub.f32 %v4320, %v4704
        %v4833 = vsub.f32 %v4321, %v4705
        %v4834 = vsub.f32 %v4322, %v4706
        %v4835 = vsub.f32 %v4323, %v4707
        %v4836 = vsub.f32 %v4324, %v4708
        %v4837 = vsub.f32 %v4325, %v4709
        %v4838 = vsub.f32 %v4326, %v4710
        %v4839 = vsub.f32 %v4327, %v4711
        %v4840 = vsub.f32 %v4328, %v4712
        %v4841 = vsub.f32 %v4329, %v4713
        %v4842 = vsub.f32 %v4330, %v4714
        %v4843 = vsub.f32 %v4331, %v4715
        %v4844 = vsub.f32 %v4332, %v4716
        %v4845 = vsub.f32 %v4333, %v4717
        %v4846 = vsub.f32 %v4334, %v4718
        %v4847 = vsub.f32 %v4335, %v4719
        %v4848 = vsub.f32 %v4336, %v4720
        %v4849 = vsub.f32 %v4337, %v4721
        %v4850 = vsub.f32 %v4338, %v4722
        %v4851 = vsub.f32 %v4339, %v4723
        %v4852 = vsub.f32 %v4340, %v4724
        %v4853 = vsub.f32 %v4341, %v4725
        %v4854 = vsub.f32 %v4342, %v4726
        %v4855 = vsub.f32 %v4343, %v4727
        %v4856 = vsub.f32 %v4344, %v4728
        %v4857 = vsub.f32 %v4345, %v4729
        %v4858 = vsub.f32 %v4346, %v4730
        %v4859 = vsub.f32 %v4347, %v4731
        %v4860 = vsub.f32 %v4348, %v4732
        %v4861 = vsub.f32 %v4349, %v4733
        %v4862 = vsub.f32 %v4350, %v4734
        %v4863 = vsub.f32 %v4351, %v4735
        %v4864 = vsub.f32 %v4352, %v4736
        %v4865 = vsub.f32 %v4353, %v4737
        %v4866 = vsub.f32 %v4354, %v4738
        %v4867 = vsub.f32 %v4355, %v4739
        %v4868 = vsub.f32 %v4356, %v4740
        %v4869 = vsub.f32 %v4357, %v4741
        %v4870 = vsub.f32 %v4358, %v4742
        %v4871 = vsub.f32 %v4359, %v4743
        %v4872 = vsub.f32 %v4360, %v4744
        %v4873 = vsub.f32 %v4361, %v4745
        %v4874 = vsub.f32 %v4362, %v4746
        %v4875 = vsub.f32 %v4363, %v4747
        %v4876 = vsub.f32 %v4364, %v4748
        %v4877 = vsub.f32 %v4365, %v4749
        %v4878 = vsub.f32 %v4366, %v4750
        %v4879 = vsub.f32 %v4367, %v4751
        %v4880 = vsub.f32 %v4368, %v4752
        %v4881 = vsub.f32 %v4369, %v4753
        %v4882 = vmul.f32 %v4818, 1.442695
        %v4883 = vpow.pop %v4882
        %v4884 = vmul.f32 %v4819, 1.442695
        %v4885 = vpow.pop %v4884
        %v4886 = vmul.f32 %v4820, 1.442695
        %v4887 = vpow.pop %v4886
        %v4888 = vmul.f32 %v4821, 1.442695
        %v4889 = vpow.pop %v4888
        %v4890 = vmul.f32 %v4822, 1.442695
        %v4891 = vpow.pop %v4890
        %v4892 = vmul.f32 %v4823, 1.442695
        %v4893 = vpow.pop %v4892
        %v4894 = vmul.f32 %v4824, 1.442695
        %v4895 = vpow.pop %v4894
        %v4896 = vmul.f32 %v4825, 1.442695
        %v4897 = vpow.pop %v4896
        %v4898 = vmul.f32 %v4826, 1.442695
        %v4899 = vpow.pop %v4898
        %v4900 = vmul.f32 %v4827, 1.442695
        %v4901 = vpow.pop %v4900
        %v4902 = vmul.f32 %v4828, 1.442695
        %v4903 = vpow.pop %v4902
        %v4904 = vmul.f32 %v4829, 1.442695
        %v4905 = vpow.pop %v4904
        %v4906 = vmul.f32 %v4830, 1.442695
        %v4907 = vpow.pop %v4906
        %v4908 = vmul.f32 %v4831, 1.442695
        %v4909 = vpow.pop %v4908
        %v4910 = vmul.f32 %v4832, 1.442695
        %v4911 = vpow.pop %v4910
        %v4912 = vmul.f32 %v4833, 1.442695
        %v4913 = vpow.pop %v4912
        %v4914 = vmul.f32 %v4834, 1.442695
        %v4915 = vpow.pop %v4914
        %v4916 = vmul.f32 %v4835, 1.442695
        %v4917 = vpow.pop %v4916
        %v4918 = vmul.f32 %v4836, 1.442695
        %v4919 = vpow.pop %v4918
        %v4920 = vmul.f32 %v4837, 1.442695
        %v4921 = vpow.pop %v4920
        %v4922 = vmul.f32 %v4838, 1.442695
        %v4923 = vpow.pop %v4922
        %v4924 = vmul.f32 %v4839, 1.442695
        %v4925 = vpow.pop %v4924
        %v4926 = vmul.f32 %v4840, 1.442695
        %v4927 = vpow.pop %v4926
        %v4928 = vmul.f32 %v4841, 1.442695
        %v4929 = vpow.pop %v4928
        %v4930 = vmul.f32 %v4842, 1.442695
        %v4931 = vpow.pop %v4930
        %v4932 = vmul.f32 %v4843, 1.442695
        %v4933 = vpow.pop %v4932
        %v4934 = vmul.f32 %v4844, 1.442695
        %v4935 = vpow.pop %v4934
        %v4936 = vmul.f32 %v4845, 1.442695
        %v4937 = vpow.pop %v4936
        %v4938 = vmul.f32 %v4846, 1.442695
        %v4939 = vpow.pop %v4938
        %v4940 = vmul.f32 %v4847, 1.442695
        %v4941 = vpow.pop %v4940
        %v4942 = vmul.f32 %v4848, 1.442695
        %v4943 = vpow.pop %v4942
        %v4944 = vmul.f32 %v4849, 1.442695
        %v4945 = vpow.pop %v4944
        %v4946 = vmul.f32 %v4850, 1.442695
        %v4947 = vpow.pop %v4946
        %v4948 = vmul.f32 %v4851, 1.442695
        %v4949 = vpow.pop %v4948
        %v4950 = vmul.f32 %v4852, 1.442695
        %v4951 = vpow.pop %v4950
        %v4952 = vmul.f32 %v4853, 1.442695
        %v4953 = vpow.pop %v4952
        %v4954 = vmul.f32 %v4854, 1.442695
        %v4955 = vpow.pop %v4954
        %v4956 = vmul.f32 %v4855, 1.442695
        %v4957 = vpow.pop %v4956
        %v4958 = vmul.f32 %v4856, 1.442695
        %v4959 = vpow.pop %v4958
        %v4960 = vmul.f32 %v4857, 1.442695
        %v4961 = vpow.pop %v4960
        %v4962 = vmul.f32 %v4858, 1.442695
        %v4963 = vpow.pop %v4962
        %v4964 = vmul.f32 %v4859, 1.442695
        %v4965 = vpow.pop %v4964
        %v4966 = vmul.f32 %v4860, 1.442695
        %v4967 = vpow.pop %v4966
        %v4968 = vmul.f32 %v4861, 1.442695
        %v4969 = vpow.pop %v4968
        %v4970 = vmul.f32 %v4862, 1.442695
        %v4971 = vpow.pop %v4970
        %v4972 = vmul.f32 %v4863, 1.442695
        %v4973 = vpow.pop %v4972
        %v4974 = vmul.f32 %v4864, 1.442695
        %v4975 = vpow.pop %v4974
        %v4976 = vmul.f32 %v4865, 1.442695
        %v4977 = vpow.pop %v4976
        %v4978 = vmul.f32 %v4866, 1.442695
        %v4979 = vpow.pop %v4978
        %v4980 = vmul.f32 %v4867, 1.442695
        %v4981 = vpow.pop %v4980
        %v4982 = vmul.f32 %v4868, 1.442695
        %v4983 = vpow.pop %v4982
        %v4984 = vmul.f32 %v4869, 1.442695
        %v4985 = vpow.pop %v4984
        %v4986 = vmul.f32 %v4870, 1.442695
        %v4987 = vpow.pop %v4986
        %v4988 = vmul.f32 %v4871, 1.442695
        %v4989 = vpow.pop %v4988
        %v4990 = vmul.f32 %v4872, 1.442695
        %v4991 = vpow.pop %v4990
        %v4992 = vmul.f32 %v4873, 1.442695
        %v4993 = vpow.pop %v4992
        %v4994 = vmul.f32 %v4874, 1.442695
        %v4995 = vpow.pop %v4994
        %v4996 = vmul.f32 %v4875, 1.442695
        %v4997 = vpow.pop %v4996
        %v4998 = vmul.f32 %v4876, 1.442695
        %v4999 = vpow.pop %v4998
        %v5000 = vmul.f32 %v4877, 1.442695
        %v5001 = vpow.pop %v5000
        %v5002 = vmul.f32 %v4878, 1.442695
        %v5003 = vpow.pop %v5002
        %v5004 = vmul.f32 %v4879, 1.442695
        %v5005 = vpow.pop %v5004
        %v5006 = vmul.f32 %v4880, 1.442695
        %v5007 = vpow.pop %v5006
        %v5008 = vmul.f32 %v4881, 1.442695
        %v5009 = vpow.pop %v5008
        %v5010 = vmul.f32 %v4754, %v4883
        %v5011 = vmul.f32 %v4755, %v4885
        %v5012 = vmul.f32 %v4756, %v4887
        %v5013 = vmul.f32 %v4757, %v4889
        %v5014 = vmul.f32 %v4758, %v4891
        %v5015 = vmul.f32 %v4759, %v4893
        %v5016 = vmul.f32 %v4760, %v4895
        %v5017 = vmul.f32 %v4761, %v4897
        %v5018 = vmul.f32 %v4762, %v4899
        %v5019 = vmul.f32 %v4763, %v4901
        %v5020 = vmul.f32 %v4764, %v4903
        %v5021 = vmul.f32 %v4765, %v4905
        %v5022 = vmul.f32 %v4766, %v4907
        %v5023 = vmul.f32 %v4767, %v4909
        %v5024 = vmul.f32 %v4768, %v4911
        %v5025 = vmul.f32 %v4769, %v4913
        %v5026 = vmul.f32 %v4770, %v4915
        %v5027 = vmul.f32 %v4771, %v4917
        %v5028 = vmul.f32 %v4772, %v4919
        %v5029 = vmul.f32 %v4773, %v4921
        %v5030 = vmul.f32 %v4774, %v4923
        %v5031 = vmul.f32 %v4775, %v4925
        %v5032 = vmul.f32 %v4776, %v4927
        %v5033 = vmul.f32 %v4777, %v4929
        %v5034 = vmul.f32 %v4778, %v4931
        %v5035 = vmul.f32 %v4779, %v4933
        %v5036 = vmul.f32 %v4780, %v4935
        %v5037 = vmul.f32 %v4781, %v4937
        %v5038 = vmul.f32 %v4782, %v4939
        %v5039 = vmul.f32 %v4783, %v4941
        %v5040 = vmul.f32 %v4784, %v4943
        %v5041 = vmul.f32 %v4785, %v4945
        %v5042 = vmul.f32 %v4786, %v4947
        %v5043 = vmul.f32 %v4787, %v4949
        %v5044 = vmul.f32 %v4788, %v4951
        %v5045 = vmul.f32 %v4789, %v4953
        %v5046 = vmul.f32 %v4790, %v4955
        %v5047 = vmul.f32 %v4791, %v4957
        %v5048 = vmul.f32 %v4792, %v4959
        %v5049 = vmul.f32 %v4793, %v4961
        %v5050 = vmul.f32 %v4794, %v4963
        %v5051 = vmul.f32 %v4795, %v4965
        %v5052 = vmul.f32 %v4796, %v4967
        %v5053 = vmul.f32 %v4797, %v4969
        %v5054 = vmul.f32 %v4798, %v4971
        %v5055 = vmul.f32 %v4799, %v4973
        %v5056 = vmul.f32 %v4800, %v4975
        %v5057 = vmul.f32 %v4801, %v4977
        %v5058 = vmul.f32 %v4802, %v4979
        %v5059 = vmul.f32 %v4803, %v4981
        %v5060 = vmul.f32 %v4804, %v4983
        %v5061 = vmul.f32 %v4805, %v4985
        %v5062 = vmul.f32 %v4806, %v4987
        %v5063 = vmul.f32 %v4807, %v4989
        %v5064 = vmul.f32 %v4808, %v4991
        %v5065 = vmul.f32 %v4809, %v4993
        %v5066 = vmul.f32 %v4810, %v4995
        %v5067 = vmul.f32 %v4811, %v4997
        %v5068 = vmul.f32 %v4812, %v4999
        %v5069 = vmul.f32 %v4813, %v5001
        %v5070 = vmul.f32 %v4814, %v5003
        %v5071 = vmul.f32 %v4815, %v5005
        %v5072 = vmul.f32 %v4816, %v5007
        %v5073 = vmul.f32 %v4817, %v5009
        %5075 = vset.pattern.permute.xlu0 0
        %5076 = vperm.xlu0 %5075, %v4690
        %v5077 = vpop.permute.xlu0 %5076
        %5080 = vset.pattern.permute.xlu0 0
        %5081 = vperm.xlu0 %5080, %v4691
        %v5082 = vpop.permute.xlu0 %5081
        %5085 = vset.pattern.permute.xlu0 0
        %5086 = vperm.xlu0 %5085, %v4692
        %v5087 = vpop.permute.xlu0 %5086
        %5090 = vset.pattern.permute.xlu0 0
        %5091 = vperm.xlu0 %5090, %v4693
        %v5092 = vpop.permute.xlu0 %5091
        %5095 = vset.pattern.permute.xlu0 0
        %5096 = vperm.xlu0 %5095, %v4694
        %v5097 = vpop.permute.xlu0 %5096
        %5100 = vset.pattern.permute.xlu0 0
        %5101 = vperm.xlu0 %5100, %v4695
        %v5102 = vpop.permute.xlu0 %5101
        %5105 = vset.pattern.permute.xlu0 0
        %5106 = vperm.xlu0 %5105, %v4696
        %v5107 = vpop.permute.xlu0 %5106
        %5110 = vset.pattern.permute.xlu0 0
        %5111 = vperm.xlu0 %5110, %v4697
        %v5112 = vpop.permute.xlu0 %5111
        %5115 = vset.pattern.permute.xlu0 0
        %5116 = vperm.xlu0 %5115, %v4698
        %v5117 = vpop.permute.xlu0 %5116
        %5120 = vset.pattern.permute.xlu0 0
        %5121 = vperm.xlu0 %5120, %v4699
        %v5122 = vpop.permute.xlu0 %5121
        %5125 = vset.pattern.permute.xlu0 0
        %5126 = vperm.xlu0 %5125, %v4700
        %v5127 = vpop.permute.xlu0 %5126
        %5130 = vset.pattern.permute.xlu0 0
        %5131 = vperm.xlu0 %5130, %v4701
        %v5132 = vpop.permute.xlu0 %5131
        %5135 = vset.pattern.permute.xlu0 0
        %5136 = vperm.xlu0 %5135, %v4702
        %v5137 = vpop.permute.xlu0 %5136
        %5140 = vset.pattern.permute.xlu0 0
        %5141 = vperm.xlu0 %5140, %v4703
        %v5142 = vpop.permute.xlu0 %5141
        %5145 = vset.pattern.permute.xlu0 0
        %5146 = vperm.xlu0 %5145, %v4704
        %v5147 = vpop.permute.xlu0 %5146
        %5150 = vset.pattern.permute.xlu0 0
        %5151 = vperm.xlu0 %5150, %v4705
        %v5152 = vpop.permute.xlu0 %5151
        %5155 = vset.pattern.permute.xlu0 0
        %5156 = vperm.xlu0 %5155, %v4706
        %v5157 = vpop.permute.xlu0 %5156
        %5160 = vset.pattern.permute.xlu0 0
        %5161 = vperm.xlu0 %5160, %v4707
        %v5162 = vpop.permute.xlu0 %5161
        %5165 = vset.pattern.permute.xlu0 0
        %5166 = vperm.xlu0 %5165, %v4708
        %v5167 = vpop.permute.xlu0 %5166
        %5170 = vset.pattern.permute.xlu0 0
        %5171 = vperm.xlu0 %5170, %v4709
        %v5172 = vpop.permute.xlu0 %5171
        %5175 = vset.pattern.permute.xlu0 0
        %5176 = vperm.xlu0 %5175, %v4710
        %v5177 = vpop.permute.xlu0 %5176
        %5180 = vset.pattern.permute.xlu0 0
        %5181 = vperm.xlu0 %5180, %v4711
        %v5182 = vpop.permute.xlu0 %5181
        %5185 = vset.pattern.permute.xlu0 0
        %5186 = vperm.xlu0 %5185, %v4712
        %v5187 = vpop.permute.xlu0 %5186
        %5190 = vset.pattern.permute.xlu0 0
        %5191 = vperm.xlu0 %5190, %v4713
        %v5192 = vpop.permute.xlu0 %5191
        %5195 = vset.pattern.permute.xlu0 0
        %5196 = vperm.xlu0 %5195, %v4714
        %v5197 = vpop.permute.xlu0 %5196
        %5200 = vset.pattern.permute.xlu0 0
        %5201 = vperm.xlu0 %5200, %v4715
        %v5202 = vpop.permute.xlu0 %5201
        %5205 = vset.pattern.permute.xlu0 0
        %5206 = vperm.xlu0 %5205, %v4716
        %v5207 = vpop.permute.xlu0 %5206
        %5210 = vset.pattern.permute.xlu0 0
        %5211 = vperm.xlu0 %5210, %v4717
        %v5212 = vpop.permute.xlu0 %5211
        %5215 = vset.pattern.permute.xlu0 0
        %5216 = vperm.xlu0 %5215, %v4718
        %v5217 = vpop.permute.xlu0 %5216
        %5220 = vset.pattern.permute.xlu0 0
        %5221 = vperm.xlu0 %5220, %v4719
        %v5222 = vpop.permute.xlu0 %5221
        %5225 = vset.pattern.permute.xlu0 0
        %5226 = vperm.xlu0 %5225, %v4720
        %v5227 = vpop.permute.xlu0 %5226
        %5230 = vset.pattern.permute.xlu0 0
        %5231 = vperm.xlu0 %5230, %v4721
        %v5232 = vpop.permute.xlu0 %5231
        %5235 = vset.pattern.permute.xlu0 0
        %5236 = vperm.xlu0 %5235, %v4722
        %v5237 = vpop.permute.xlu0 %5236
        %5240 = vset.pattern.permute.xlu0 0
        %5241 = vperm.xlu0 %5240, %v4723
        %v5242 = vpop.permute.xlu0 %5241
        %5245 = vset.pattern.permute.xlu0 0
        %5246 = vperm.xlu0 %5245, %v4724
        %v5247 = vpop.permute.xlu0 %5246
        %5250 = vset.pattern.permute.xlu0 0
        %5251 = vperm.xlu0 %5250, %v4725
        %v5252 = vpop.permute.xlu0 %5251
        %5255 = vset.pattern.permute.xlu0 0
        %5256 = vperm.xlu0 %5255, %v4726
        %v5257 = vpop.permute.xlu0 %5256
        %5260 = vset.pattern.permute.xlu0 0
        %5261 = vperm.xlu0 %5260, %v4727
        %v5262 = vpop.permute.xlu0 %5261
        %5265 = vset.pattern.permute.xlu0 0
        %5266 = vperm.xlu0 %5265, %v4728
        %v5267 = vpop.permute.xlu0 %5266
        %5270 = vset.pattern.permute.xlu0 0
        %5271 = vperm.xlu0 %5270, %v4729
        %v5272 = vpop.permute.xlu0 %5271
        %5275 = vset.pattern.permute.xlu0 0
        %5276 = vperm.xlu0 %5275, %v4730
        %v5277 = vpop.permute.xlu0 %5276
        %5280 = vset.pattern.permute.xlu0 0
        %5281 = vperm.xlu0 %5280, %v4731
        %v5282 = vpop.permute.xlu0 %5281
        %5285 = vset.pattern.permute.xlu0 0
        %5286 = vperm.xlu0 %5285, %v4732
        %v5287 = vpop.permute.xlu0 %5286
        %5290 = vset.pattern.permute.xlu0 0
        %5291 = vperm.xlu0 %5290, %v4733
        %v5292 = vpop.permute.xlu0 %5291
        %5295 = vset.pattern.permute.xlu0 0
        %5296 = vperm.xlu0 %5295, %v4734
        %v5297 = vpop.permute.xlu0 %5296
        %5300 = vset.pattern.permute.xlu0 0
        %5301 = vperm.xlu0 %5300, %v4735
        %v5302 = vpop.permute.xlu0 %5301
        %5305 = vset.pattern.permute.xlu0 0
        %5306 = vperm.xlu0 %5305, %v4736
        %v5307 = vpop.permute.xlu0 %5306
        %5310 = vset.pattern.permute.xlu0 0
        %5311 = vperm.xlu0 %5310, %v4737
        %v5312 = vpop.permute.xlu0 %5311
        %5315 = vset.pattern.permute.xlu0 0
        %5316 = vperm.xlu0 %5315, %v4738
        %v5317 = vpop.permute.xlu0 %5316
        %5320 = vset.pattern.permute.xlu0 0
        %5321 = vperm.xlu0 %5320, %v4739
        %v5322 = vpop.permute.xlu0 %5321
        %5325 = vset.pattern.permute.xlu0 0
        %5326 = vperm.xlu0 %5325, %v4740
        %v5327 = vpop.permute.xlu0 %5326
        %5330 = vset.pattern.permute.xlu0 0
        %5331 = vperm.xlu0 %5330, %v4741
        %v5332 = vpop.permute.xlu0 %5331
        %5335 = vset.pattern.permute.xlu0 0
        %5336 = vperm.xlu0 %5335, %v4742
        %v5337 = vpop.permute.xlu0 %5336
        %5340 = vset.pattern.permute.xlu0 0
        %5341 = vperm.xlu0 %5340, %v4743
        %v5342 = vpop.permute.xlu0 %5341
        %5345 = vset.pattern.permute.xlu0 0
        %5346 = vperm.xlu0 %5345, %v4744
        %v5347 = vpop.permute.xlu0 %5346
        %5350 = vset.pattern.permute.xlu0 0
        %5351 = vperm.xlu0 %5350, %v4745
        %v5352 = vpop.permute.xlu0 %5351
        %5355 = vset.pattern.permute.xlu0 0
        %5356 = vperm.xlu0 %5355, %v4746
        %v5357 = vpop.permute.xlu0 %5356
        %5360 = vset.pattern.permute.xlu0 0
        %5361 = vperm.xlu0 %5360, %v4747
        %v5362 = vpop.permute.xlu0 %5361
        %5365 = vset.pattern.permute.xlu0 0
        %5366 = vperm.xlu0 %5365, %v4748
        %v5367 = vpop.permute.xlu0 %5366
        %5370 = vset.pattern.permute.xlu0 0
        %5371 = vperm.xlu0 %5370, %v4749
        %v5372 = vpop.permute.xlu0 %5371
        %5375 = vset.pattern.permute.xlu0 0
        %5376 = vperm.xlu0 %5375, %v4750
        %v5377 = vpop.permute.xlu0 %5376
        %5380 = vset.pattern.permute.xlu0 0
        %5381 = vperm.xlu0 %5380, %v4751
        %v5382 = vpop.permute.xlu0 %5381
        %5385 = vset.pattern.permute.xlu0 0
        %5386 = vperm.xlu0 %5385, %v4752
        %v5387 = vpop.permute.xlu0 %5386
        %5390 = vset.pattern.permute.xlu0 0
        %5391 = vperm.xlu0 %5390, %v4753
        %v5392 = vpop.permute.xlu0 %5391
        %v5394 = vsub.f32 %v2704, %v5077
        %v5395 = vsub.f32 %v2705, %v5077
        %v5396 = vsub.f32 %v2706, %v5077
        %v5397 = vsub.f32 %v2707, %v5077
        %v5398 = vsub.f32 %v2708, %v5082
        %v5399 = vsub.f32 %v2709, %v5082
        %v5400 = vsub.f32 %v2710, %v5082
        %v5401 = vsub.f32 %v2711, %v5082
        %v5402 = vsub.f32 %v2712, %v5087
        %v5403 = vsub.f32 %v2713, %v5087
        %v5404 = vsub.f32 %v2714, %v5087
        %v5405 = vsub.f32 %v2715, %v5087
        %v5406 = vsub.f32 %v2716, %v5092
        %v5407 = vsub.f32 %v2717, %v5092
        %v5408 = vsub.f32 %v2718, %v5092
        %v5409 = vsub.f32 %v2719, %v5092
        %v5410 = vsub.f32 %v2720, %v5097
        %v5411 = vsub.f32 %v2721, %v5097
        %v5412 = vsub.f32 %v2722, %v5097
        %v5413 = vsub.f32 %v2723, %v5097
        %v5414 = vsub.f32 %v2724, %v5102
        %v5415 = vsub.f32 %v2725, %v5102
        %v5416 = vsub.f32 %v2726, %v5102
        %v5417 = vsub.f32 %v2727, %v5102
        %v5418 = vsub.f32 %v2728, %v5107
        %v5419 = vsub.f32 %v2729, %v5107
        %v5420 = vsub.f32 %v2730, %v5107
        %v5421 = vsub.f32 %v2731, %v5107
        %v5422 = vsub.f32 %v2732, %v5112
        %v5423 = vsub.f32 %v2733, %v5112
        %v5424 = vsub.f32 %v2734, %v5112
        %v5425 = vsub.f32 %v2735, %v5112
        %v5426 = vsub.f32 %v2736, %v5117
        %v5427 = vsub.f32 %v2737, %v5117
        %v5428 = vsub.f32 %v2738, %v5117
        %v5429 = vsub.f32 %v2739, %v5117
        %v5430 = vsub.f32 %v2740, %v5122
        %v5431 = vsub.f32 %v2741, %v5122
        %v5432 = vsub.f32 %v2742, %v5122
        %v5433 = vsub.f32 %v2743, %v5122
        %v5434 = vsub.f32 %v2744, %v5127
        %v5435 = vsub.f32 %v2745, %v5127
        %v5436 = vsub.f32 %v2746, %v5127
        %v5437 = vsub.f32 %v2747, %v5127
        %v5438 = vsub.f32 %v2748, %v5132
        %v5439 = vsub.f32 %v2749, %v5132
        %v5440 = vsub.f32 %v2750, %v5132
        %v5441 = vsub.f32 %v2751, %v5132
        %v5442 = vsub.f32 %v2752, %v5137
        %v5443 = vsub.f32 %v2753, %v5137
        %v5444 = vsub.f32 %v2754, %v5137
        %v5445 = vsub.f32 %v2755, %v5137
        %v5446 = vsub.f32 %v2756, %v5142
        %v5447 = vsub.f32 %v2757, %v5142
        %v5448 = vsub.f32 %v2758, %v5142
        %v5449 = vsub.f32 %v2759, %v5142
        %v5450 = vsub.f32 %v2760, %v5147
        %v5451 = vsub.f32 %v2761, %v5147
        %v5452 = vsub.f32 %v2762, %v5147
        %v5453 = vsub.f32 %v2763, %v5147
        %v5454 = vsub.f32 %v2764, %v5152
        %v5455 = vsub.f32 %v2765, %v5152
        %v5456 = vsub.f32 %v2766, %v5152
        %v5457 = vsub.f32 %v2767, %v5152
        %v5458 = vsub.f32 %v2768, %v5157
        %v5459 = vsub.f32 %v2769, %v5157
        %v5460 = vsub.f32 %v2770, %v5157
        %v5461 = vsub.f32 %v2771, %v5157
        %v5462 = vsub.f32 %v2772, %v5162
        %v5463 = vsub.f32 %v2773, %v5162
        %v5464 = vsub.f32 %v2774, %v5162
        %v5465 = vsub.f32 %v2775, %v5162
        %v5466 = vsub.f32 %v2776, %v5167
        %v5467 = vsub.f32 %v2777, %v5167
        %v5468 = vsub.f32 %v2778, %v5167
        %v5469 = vsub.f32 %v2779, %v5167
        %v5470 = vsub.f32 %v2780, %v5172
        %v5471 = vsub.f32 %v2781, %v5172
        %v5472 = vsub.f32 %v2782, %v5172
        %v5473 = vsub.f32 %v2783, %v5172
        %v5474 = vsub.f32 %v2784, %v5177
        %v5475 = vsub.f32 %v2785, %v5177
        %v5476 = vsub.f32 %v2786, %v5177
        %v5477 = vsub.f32 %v2787, %v5177
        %v5478 = vsub.f32 %v2788, %v5182
        %v5479 = vsub.f32 %v2789, %v5182
        %v5480 = vsub.f32 %v2790, %v5182
        %v5481 = vsub.f32 %v2791, %v5182
        %v5482 = vsub.f32 %v2792, %v5187
        %v5483 = vsub.f32 %v2793, %v5187
        %v5484 = vsub.f32 %v2794, %v5187
        %v5485 = vsub.f32 %v2795, %v5187
        %v5486 = vsub.f32 %v2796, %v5192
        %v5487 = vsub.f32 %v2797, %v5192
        %v5488 = vsub.f32 %v2798, %v5192
        %v5489 = vsub.f32 %v2799, %v5192
        %v5490 = vsub.f32 %v2800, %v5197
        %v5491 = vsub.f32 %v2801, %v5197
        %v5492 = vsub.f32 %v2802, %v5197
        %v5493 = vsub.f32 %v2803, %v5197
        %v5494 = vsub.f32 %v2804, %v5202
        %v5495 = vsub.f32 %v2805, %v5202
        %v5496 = vsub.f32 %v2806, %v5202
        %v5497 = vsub.f32 %v2807, %v5202
        %v5498 = vsub.f32 %v2808, %v5207
        %v5499 = vsub.f32 %v2809, %v5207
        %v5500 = vsub.f32 %v2810, %v5207
        %v5501 = vsub.f32 %v2811, %v5207
        %v5502 = vsub.f32 %v2812, %v5212
        %v5503 = vsub.f32 %v2813, %v5212
        %v5504 = vsub.f32 %v2814, %v5212
        %v5505 = vsub.f32 %v2815, %v5212
        %v5506 = vsub.f32 %v2816, %v5217
        %v5507 = vsub.f32 %v2817, %v5217
        %v5508 = vsub.f32 %v2818, %v5217
        %v5509 = vsub.f32 %v2819, %v5217
        %v5510 = vsub.f32 %v2820, %v5222
        %v5511 = vsub.f32 %v2821, %v5222
        %v5512 = vsub.f32 %v2822, %v5222
        %v5513 = vsub.f32 %v2823, %v5222
        %v5514 = vsub.f32 %v2824, %v5227
        %v5515 = vsub.f32 %v2825, %v5227
        %v5516 = vsub.f32 %v2826, %v5227
        %v5517 = vsub.f32 %v2827, %v5227
        %v5518 = vsub.f32 %v2828, %v5232
        %v5519 = vsub.f32 %v2829, %v5232
        %v5520 = vsub.f32 %v2830, %v5232
        %v5521 = vsub.f32 %v2831, %v5232
        %v5522 = vsub.f32 %v2832, %v5237
        %v5523 = vsub.f32 %v2833, %v5237
        %v5524 = vsub.f32 %v2834, %v5237
        %v5525 = vsub.f32 %v2835, %v5237
        %v5526 = vsub.f32 %v2836, %v5242
        %v5527 = vsub.f32 %v2837, %v5242
        %v5528 = vsub.f32 %v2838, %v5242
        %v5529 = vsub.f32 %v2839, %v5242
        %v5530 = vsub.f32 %v2840, %v5247
        %v5531 = vsub.f32 %v2841, %v5247
        %v5532 = vsub.f32 %v2842, %v5247
        %v5533 = vsub.f32 %v2843, %v5247
        %v5534 = vsub.f32 %v2844, %v5252
        %v5535 = vsub.f32 %v2845, %v5252
        %v5536 = vsub.f32 %v2846, %v5252
        %v5537 = vsub.f32 %v2847, %v5252
        %v5538 = vsub.f32 %v2848, %v5257
        %v5539 = vsub.f32 %v2849, %v5257
        %v5540 = vsub.f32 %v2850, %v5257
        %v5541 = vsub.f32 %v2851, %v5257
        %v5542 = vsub.f32 %v2852, %v5262
        %v5543 = vsub.f32 %v2853, %v5262
        %v5544 = vsub.f32 %v2854, %v5262
        %v5545 = vsub.f32 %v2855, %v5262
        %v5546 = vsub.f32 %v2856, %v5267
        %v5547 = vsub.f32 %v2857, %v5267
        %v5548 = vsub.f32 %v2858, %v5267
        %v5549 = vsub.f32 %v2859, %v5267
        %v5550 = vsub.f32 %v2860, %v5272
        %v5551 = vsub.f32 %v2861, %v5272
        %v5552 = vsub.f32 %v2862, %v5272
        %v5553 = vsub.f32 %v2863, %v5272
        %v5554 = vsub.f32 %v2864, %v5277
        %v5555 = vsub.f32 %v2865, %v5277
        %v5556 = vsub.f32 %v2866, %v5277
        %v5557 = vsub.f32 %v2867, %v5277
        %v5558 = vsub.f32 %v2868, %v5282
        %v5559 = vsub.f32 %v2869, %v5282
        %v5560 = vsub.f32 %v2870, %v5282
        %v5561 = vsub.f32 %v2871, %v5282
        %v5562 = vsub.f32 %v2872, %v5287
        %v5563 = vsub.f32 %v2873, %v5287
        %v5564 = vsub.f32 %v2874, %v5287
        %v5565 = vsub.f32 %v2875, %v5287
        %v5566 = vsub.f32 %v2876, %v5292
        %v5567 = vsub.f32 %v2877, %v5292
        %v5568 = vsub.f32 %v2878, %v5292
        %v5569 = vsub.f32 %v2879, %v5292
        %v5570 = vsub.f32 %v2880, %v5297
        %v5571 = vsub.f32 %v2881, %v5297
        %v5572 = vsub.f32 %v2882, %v5297
        %v5573 = vsub.f32 %v2883, %v5297
        %v5574 = vsub.f32 %v2884, %v5302
        %v5575 = vsub.f32 %v2885, %v5302
        %v5576 = vsub.f32 %v2886, %v5302
        %v5577 = vsub.f32 %v2887, %v5302
        %v5578 = vsub.f32 %v2888, %v5307
        %v5579 = vsub.f32 %v2889, %v5307
        %v5580 = vsub.f32 %v2890, %v5307
        %v5581 = vsub.f32 %v2891, %v5307
        %v5582 = vsub.f32 %v2892, %v5312
        %v5583 = vsub.f32 %v2893, %v5312
        %v5584 = vsub.f32 %v2894, %v5312
        %v5585 = vsub.f32 %v2895, %v5312
        %v5586 = vsub.f32 %v2896, %v5317
        %v5587 = vsub.f32 %v2897, %v5317
        %v5588 = vsub.f32 %v2898, %v5317
        %v5589 = vsub.f32 %v2899, %v5317
        %v5590 = vsub.f32 %v2900, %v5322
        %v5591 = vsub.f32 %v2901, %v5322
        %v5592 = vsub.f32 %v2902, %v5322
        %v5593 = vsub.f32 %v2903, %v5322
        %v5594 = vsub.f32 %v2904, %v5327
        %v5595 = vsub.f32 %v2905, %v5327
        %v5596 = vsub.f32 %v2906, %v5327
        %v5597 = vsub.f32 %v2907, %v5327
        %v5598 = vsub.f32 %v2908, %v5332
        %v5599 = vsub.f32 %v2909, %v5332
        %v5600 = vsub.f32 %v2910, %v5332
        %v5601 = vsub.f32 %v2911, %v5332
        %v5602 = vsub.f32 %v2912, %v5337
        %v5603 = vsub.f32 %v2913, %v5337
        %v5604 = vsub.f32 %v2914, %v5337
        %v5605 = vsub.f32 %v2915, %v5337
        %v5606 = vsub.f32 %v2916, %v5342
        %v5607 = vsub.f32 %v2917, %v5342
        %v5608 = vsub.f32 %v2918, %v5342
        %v5609 = vsub.f32 %v2919, %v5342
        %v5610 = vsub.f32 %v2920, %v5347
        %v5611 = vsub.f32 %v2921, %v5347
        %v5612 = vsub.f32 %v2922, %v5347
        %v5613 = vsub.f32 %v2923, %v5347
        %v5614 = vsub.f32 %v2924, %v5352
        %v5615 = vsub.f32 %v2925, %v5352
        %v5616 = vsub.f32 %v2926, %v5352
        %v5617 = vsub.f32 %v2927, %v5352
        %v5618 = vsub.f32 %v2928, %v5357
        %v5619 = vsub.f32 %v2929, %v5357
        %v5620 = vsub.f32 %v2930, %v5357
        %v5621 = vsub.f32 %v2931, %v5357
        %v5622 = vsub.f32 %v2932, %v5362
        %v5623 = vsub.f32 %v2933, %v5362
        %v5624 = vsub.f32 %v2934, %v5362
        %v5625 = vsub.f32 %v2935, %v5362
        %v5626 = vsub.f32 %v2936, %v5367
        %v5627 = vsub.f32 %v2937, %v5367
        %v5628 = vsub.f32 %v2938, %v5367
        %v5629 = vsub.f32 %v2939, %v5367
        %v5630 = vsub.f32 %v2940, %v5372
        %v5631 = vsub.f32 %v2941, %v5372
        %v5632 = vsub.f32 %v2942, %v5372
        %v5633 = vsub.f32 %v2943, %v5372
        %v5634 = vsub.f32 %v2944, %v5377
        %v5635 = vsub.f32 %v2945, %v5377
        %v5636 = vsub.f32 %v2946, %v5377
        %v5637 = vsub.f32 %v2947, %v5377
        %v5638 = vsub.f32 %v2948, %v5382
        %v5639 = vsub.f32 %v2949, %v5382
        %v5640 = vsub.f32 %v2950, %v5382
        %v5641 = vsub.f32 %v2951, %v5382
        %v5642 = vsub.f32 %v2952, %v5387
        %v5643 = vsub.f32 %v2953, %v5387
        %v5644 = vsub.f32 %v2954, %v5387
        %v5645 = vsub.f32 %v2955, %v5387
        %v5646 = vsub.f32 %v2956, %v5392
        %v5647 = vsub.f32 %v2957, %v5392
        %v5648 = vsub.f32 %v2958, %v5392
        %v5649 = vsub.f32 %v2959, %v5392
        %v5650 = vmul.f32 %v5394, 1.442695
        %v5651 = vpow.pop %v5650
        %v5652 = vmul.f32 %v5395, 1.442695
        %v5653 = vpow.pop %v5652
        %v5654 = vmul.f32 %v5396, 1.442695
        %v5655 = vpow.pop %v5654
        %v5656 = vmul.f32 %v5397, 1.442695
        %v5657 = vpow.pop %v5656
        %v5658 = vmul.f32 %v5398, 1.442695
        %v5659 = vpow.pop %v5658
        %v5660 = vmul.f32 %v5399, 1.442695
        %v5661 = vpow.pop %v5660
        %v5662 = vmul.f32 %v5400, 1.442695
        %v5663 = vpow.pop %v5662
        %v5664 = vmul.f32 %v5401, 1.442695
        %v5665 = vpow.pop %v5664
        %v5666 = vmul.f32 %v5402, 1.442695
        %v5667 = vpow.pop %v5666
        %v5668 = vmul.f32 %v5403, 1.442695
        %v5669 = vpow.pop %v5668
        %v5670 = vmul.f32 %v5404, 1.442695
        %v5671 = vpow.pop %v5670
        %v5672 = vmul.f32 %v5405, 1.442695
        %v5673 = vpow.pop %v5672
        %v5674 = vmul.f32 %v5406, 1.442695
        %v5675 = vpow.pop %v5674
        %v5676 = vmul.f32 %v5407, 1.442695
        %v5677 = vpow.pop %v5676
        %v5678 = vmul.f32 %v5408, 1.442695
        %v5679 = vpow.pop %v5678
        %v5680 = vmul.f32 %v5409, 1.442695
        %v5681 = vpow.pop %v5680
        %v5682 = vmul.f32 %v5410, 1.442695
        %v5683 = vpow.pop %v5682
        %v5684 = vmul.f32 %v5411, 1.442695
        %v5685 = vpow.pop %v5684
        %v5686 = vmul.f32 %v5412, 1.442695
        %v5687 = vpow.pop %v5686
        %v5688 = vmul.f32 %v5413, 1.442695
        %v5689 = vpow.pop %v5688
        %v5690 = vmul.f32 %v5414, 1.442695
        %v5691 = vpow.pop %v5690
        %v5692 = vmul.f32 %v5415, 1.442695
        %v5693 = vpow.pop %v5692
        %v5694 = vmul.f32 %v5416, 1.442695
        %v5695 = vpow.pop %v5694
        %v5696 = vmul.f32 %v5417, 1.442695
        %v5697 = vpow.pop %v5696
        %v5698 = vmul.f32 %v5418, 1.442695
        %v5699 = vpow.pop %v5698
        %v5700 = vmul.f32 %v5419, 1.442695
        %v5701 = vpow.pop %v5700
        %v5702 = vmul.f32 %v5420, 1.442695
        %v5703 = vpow.pop %v5702
        %v5704 = vmul.f32 %v5421, 1.442695
        %v5705 = vpow.pop %v5704
        %v5706 = vmul.f32 %v5422, 1.442695
        %v5707 = vpow.pop %v5706
        %v5708 = vmul.f32 %v5423, 1.442695
        %v5709 = vpow.pop %v5708
        %v5710 = vmul.f32 %v5424, 1.442695
        %v5711 = vpow.pop %v5710
        %v5712 = vmul.f32 %v5425, 1.442695
        %v5713 = vpow.pop %v5712
        %v5714 = vmul.f32 %v5426, 1.442695
        %v5715 = vpow.pop %v5714
        %v5716 = vmul.f32 %v5427, 1.442695
        %v5717 = vpow.pop %v5716
        %v5718 = vmul.f32 %v5428, 1.442695
        %v5719 = vpow.pop %v5718
        %v5720 = vmul.f32 %v5429, 1.442695
        %v5721 = vpow.pop %v5720
        %v5722 = vmul.f32 %v5430, 1.442695
        %v5723 = vpow.pop %v5722
        %v5724 = vmul.f32 %v5431, 1.442695
        %v5725 = vpow.pop %v5724
        %v5726 = vmul.f32 %v5432, 1.442695
        %v5727 = vpow.pop %v5726
        %v5728 = vmul.f32 %v5433, 1.442695
        %v5729 = vpow.pop %v5728
        %v5730 = vmul.f32 %v5434, 1.442695
        %v5731 = vpow.pop %v5730
        %v5732 = vmul.f32 %v5435, 1.442695
        %v5733 = vpow.pop %v5732
        %v5734 = vmul.f32 %v5436, 1.442695
        %v5735 = vpow.pop %v5734
        %v5736 = vmul.f32 %v5437, 1.442695
        %v5737 = vpow.pop %v5736
        %v5738 = vmul.f32 %v5438, 1.442695
        %v5739 = vpow.pop %v5738
        %v5740 = vmul.f32 %v5439, 1.442695
        %v5741 = vpow.pop %v5740
        %v5742 = vmul.f32 %v5440, 1.442695
        %v5743 = vpow.pop %v5742
        %v5744 = vmul.f32 %v5441, 1.442695
        %v5745 = vpow.pop %v5744
        %v5746 = vmul.f32 %v5442, 1.442695
        %v5747 = vpow.pop %v5746
        %v5748 = vmul.f32 %v5443, 1.442695
        %v5749 = vpow.pop %v5748
        %v5750 = vmul.f32 %v5444, 1.442695
        %v5751 = vpow.pop %v5750
        %v5752 = vmul.f32 %v5445, 1.442695
        %v5753 = vpow.pop %v5752
        %v5754 = vmul.f32 %v5446, 1.442695
        %v5755 = vpow.pop %v5754
        %v5756 = vmul.f32 %v5447, 1.442695
        %v5757 = vpow.pop %v5756
        %v5758 = vmul.f32 %v5448, 1.442695
        %v5759 = vpow.pop %v5758
        %v5760 = vmul.f32 %v5449, 1.442695
        %v5761 = vpow.pop %v5760
        %v5762 = vmul.f32 %v5450, 1.442695
        %v5763 = vpow.pop %v5762
        %v5764 = vmul.f32 %v5451, 1.442695
        %v5765 = vpow.pop %v5764
        %v5766 = vmul.f32 %v5452, 1.442695
        %v5767 = vpow.pop %v5766
        %v5768 = vmul.f32 %v5453, 1.442695
        %v5769 = vpow.pop %v5768
        %v5770 = vmul.f32 %v5454, 1.442695
        %v5771 = vpow.pop %v5770
        %v5772 = vmul.f32 %v5455, 1.442695
        %v5773 = vpow.pop %v5772
        %v5774 = vmul.f32 %v5456, 1.442695
        %v5775 = vpow.pop %v5774
        %v5776 = vmul.f32 %v5457, 1.442695
        %v5777 = vpow.pop %v5776
        %v5778 = vmul.f32 %v5458, 1.442695
        %v5779 = vpow.pop %v5778
        %v5780 = vmul.f32 %v5459, 1.442695
        %v5781 = vpow.pop %v5780
        %v5782 = vmul.f32 %v5460, 1.442695
        %v5783 = vpow.pop %v5782
        %v5784 = vmul.f32 %v5461, 1.442695
        %v5785 = vpow.pop %v5784
        %v5786 = vmul.f32 %v5462, 1.442695
        %v5787 = vpow.pop %v5786
        %v5788 = vmul.f32 %v5463, 1.442695
        %v5789 = vpow.pop %v5788
        %v5790 = vmul.f32 %v5464, 1.442695
        %v5791 = vpow.pop %v5790
        %v5792 = vmul.f32 %v5465, 1.442695
        %v5793 = vpow.pop %v5792
        %v5794 = vmul.f32 %v5466, 1.442695
        %v5795 = vpow.pop %v5794
        %v5796 = vmul.f32 %v5467, 1.442695
        %v5797 = vpow.pop %v5796
        %v5798 = vmul.f32 %v5468, 1.442695
        %v5799 = vpow.pop %v5798
        %v5800 = vmul.f32 %v5469, 1.442695
        %v5801 = vpow.pop %v5800
        %v5802 = vmul.f32 %v5470, 1.442695
        %v5803 = vpow.pop %v5802
        %v5804 = vmul.f32 %v5471, 1.442695
        %v5805 = vpow.pop %v5804
        %v5806 = vmul.f32 %v5472, 1.442695
        %v5807 = vpow.pop %v5806
        %v5808 = vmul.f32 %v5473, 1.442695
        %v5809 = vpow.pop %v5808
        %v5810 = vmul.f32 %v5474, 1.442695
        %v5811 = vpow.pop %v5810
        %v5812 = vmul.f32 %v5475, 1.442695
        %v5813 = vpow.pop %v5812
        %v5814 = vmul.f32 %v5476, 1.442695
        %v5815 = vpow.pop %v5814
        %v5816 = vmul.f32 %v5477, 1.442695
        %v5817 = vpow.pop %v5816
        %v5818 = vmul.f32 %v5478, 1.442695
        %v5819 = vpow.pop %v5818
        %v5820 = vmul.f32 %v5479, 1.442695
        %v5821 = vpow.pop %v5820
        %v5822 = vmul.f32 %v5480, 1.442695
        %v5823 = vpow.pop %v5822
        %v5824 = vmul.f32 %v5481, 1.442695
        %v5825 = vpow.pop %v5824
        %v5826 = vmul.f32 %v5482, 1.442695
        %v5827 = vpow.pop %v5826
        %v5828 = vmul.f32 %v5483, 1.442695
        %v5829 = vpow.pop %v5828
        %v5830 = vmul.f32 %v5484, 1.442695
        %v5831 = vpow.pop %v5830
        %v5832 = vmul.f32 %v5485, 1.442695
        %v5833 = vpow.pop %v5832
        %v5834 = vmul.f32 %v5486, 1.442695
        %v5835 = vpow.pop %v5834
        %v5836 = vmul.f32 %v5487, 1.442695
        %v5837 = vpow.pop %v5836
        %v5838 = vmul.f32 %v5488, 1.442695
        %v5839 = vpow.pop %v5838
        %v5840 = vmul.f32 %v5489, 1.442695
        %v5841 = vpow.pop %v5840
        %v5842 = vmul.f32 %v5490, 1.442695
        %v5843 = vpow.pop %v5842
        %v5844 = vmul.f32 %v5491, 1.442695
        %v5845 = vpow.pop %v5844
        %v5846 = vmul.f32 %v5492, 1.442695
        %v5847 = vpow.pop %v5846
        %v5848 = vmul.f32 %v5493, 1.442695
        %v5849 = vpow.pop %v5848
        %v5850 = vmul.f32 %v5494, 1.442695
        %v5851 = vpow.pop %v5850
        %v5852 = vmul.f32 %v5495, 1.442695
        %v5853 = vpow.pop %v5852
        %v5854 = vmul.f32 %v5496, 1.442695
        %v5855 = vpow.pop %v5854
        %v5856 = vmul.f32 %v5497, 1.442695
        %v5857 = vpow.pop %v5856
        %v5858 = vmul.f32 %v5498, 1.442695
        %v5859 = vpow.pop %v5858
        %v5860 = vmul.f32 %v5499, 1.442695
        %v5861 = vpow.pop %v5860
        %v5862 = vmul.f32 %v5500, 1.442695
        %v5863 = vpow.pop %v5862
        %v5864 = vmul.f32 %v5501, 1.442695
        %v5865 = vpow.pop %v5864
        %v5866 = vmul.f32 %v5502, 1.442695
        %v5867 = vpow.pop %v5866
        %v5868 = vmul.f32 %v5503, 1.442695
        %v5869 = vpow.pop %v5868
        %v5870 = vmul.f32 %v5504, 1.442695
        %v5871 = vpow.pop %v5870
        %v5872 = vmul.f32 %v5505, 1.442695
        %v5873 = vpow.pop %v5872
        %v5874 = vmul.f32 %v5506, 1.442695
        %v5875 = vpow.pop %v5874
        %v5876 = vmul.f32 %v5507, 1.442695
        %v5877 = vpow.pop %v5876
        %v5878 = vmul.f32 %v5508, 1.442695
        %v5879 = vpow.pop %v5878
        %v5880 = vmul.f32 %v5509, 1.442695
        %v5881 = vpow.pop %v5880
        %v5882 = vmul.f32 %v5510, 1.442695
        %v5883 = vpow.pop %v5882
        %v5884 = vmul.f32 %v5511, 1.442695
        %v5885 = vpow.pop %v5884
        %v5886 = vmul.f32 %v5512, 1.442695
        %v5887 = vpow.pop %v5886
        %v5888 = vmul.f32 %v5513, 1.442695
        %v5889 = vpow.pop %v5888
        %v5890 = vmul.f32 %v5514, 1.442695
        %v5891 = vpow.pop %v5890
        %v5892 = vmul.f32 %v5515, 1.442695
        %v5893 = vpow.pop %v5892
        %v5894 = vmul.f32 %v5516, 1.442695
        %v5895 = vpow.pop %v5894
        %v5896 = vmul.f32 %v5517, 1.442695
        %v5897 = vpow.pop %v5896
        %v5898 = vmul.f32 %v5518, 1.442695
        %v5899 = vpow.pop %v5898
        %v5900 = vmul.f32 %v5519, 1.442695
        %v5901 = vpow.pop %v5900
        %v5902 = vmul.f32 %v5520, 1.442695
        %v5903 = vpow.pop %v5902
        %v5904 = vmul.f32 %v5521, 1.442695
        %v5905 = vpow.pop %v5904
        %v5906 = vmul.f32 %v5522, 1.442695
        %v5907 = vpow.pop %v5906
        %v5908 = vmul.f32 %v5523, 1.442695
        %v5909 = vpow.pop %v5908
        %v5910 = vmul.f32 %v5524, 1.442695
        %v5911 = vpow.pop %v5910
        %v5912 = vmul.f32 %v5525, 1.442695
        %v5913 = vpow.pop %v5912
        %v5914 = vmul.f32 %v5526, 1.442695
        %v5915 = vpow.pop %v5914
        %v5916 = vmul.f32 %v5527, 1.442695
        %v5917 = vpow.pop %v5916
        %v5918 = vmul.f32 %v5528, 1.442695
        %v5919 = vpow.pop %v5918
        %v5920 = vmul.f32 %v5529, 1.442695
        %v5921 = vpow.pop %v5920
        %v5922 = vmul.f32 %v5530, 1.442695
        %v5923 = vpow.pop %v5922
        %v5924 = vmul.f32 %v5531, 1.442695
        %v5925 = vpow.pop %v5924
        %v5926 = vmul.f32 %v5532, 1.442695
        %v5927 = vpow.pop %v5926
        %v5928 = vmul.f32 %v5533, 1.442695
        %v5929 = vpow.pop %v5928
        %v5930 = vmul.f32 %v5534, 1.442695
        %v5931 = vpow.pop %v5930
        %v5932 = vmul.f32 %v5535, 1.442695
        %v5933 = vpow.pop %v5932
        %v5934 = vmul.f32 %v5536, 1.442695
        %v5935 = vpow.pop %v5934
        %v5936 = vmul.f32 %v5537, 1.442695
        %v5937 = vpow.pop %v5936
        %v5938 = vmul.f32 %v5538, 1.442695
        %v5939 = vpow.pop %v5938
        %v5940 = vmul.f32 %v5539, 1.442695
        %v5941 = vpow.pop %v5940
        %v5942 = vmul.f32 %v5540, 1.442695
        %v5943 = vpow.pop %v5942
        %v5944 = vmul.f32 %v5541, 1.442695
        %v5945 = vpow.pop %v5944
        %v5946 = vmul.f32 %v5542, 1.442695
        %v5947 = vpow.pop %v5946
        %v5948 = vmul.f32 %v5543, 1.442695
        %v5949 = vpow.pop %v5948
        %v5950 = vmul.f32 %v5544, 1.442695
        %v5951 = vpow.pop %v5950
        %v5952 = vmul.f32 %v5545, 1.442695
        %v5953 = vpow.pop %v5952
        %v5954 = vmul.f32 %v5546, 1.442695
        %v5955 = vpow.pop %v5954
        %v5956 = vmul.f32 %v5547, 1.442695
        %v5957 = vpow.pop %v5956
        %v5958 = vmul.f32 %v5548, 1.442695
        %v5959 = vpow.pop %v5958
        %v5960 = vmul.f32 %v5549, 1.442695
        %v5961 = vpow.pop %v5960
        %v5962 = vmul.f32 %v5550, 1.442695
        %v5963 = vpow.pop %v5962
        %v5964 = vmul.f32 %v5551, 1.442695
        %v5965 = vpow.pop %v5964
        %v5966 = vmul.f32 %v5552, 1.442695
        %v5967 = vpow.pop %v5966
        %v5968 = vmul.f32 %v5553, 1.442695
        %v5969 = vpow.pop %v5968
        %v5970 = vmul.f32 %v5554, 1.442695
        %v5971 = vpow.pop %v5970
        %v5972 = vmul.f32 %v5555, 1.442695
        %v5973 = vpow.pop %v5972
        %v5974 = vmul.f32 %v5556, 1.442695
        %v5975 = vpow.pop %v5974
        %v5976 = vmul.f32 %v5557, 1.442695
        %v5977 = vpow.pop %v5976
        %v5978 = vmul.f32 %v5558, 1.442695
        %v5979 = vpow.pop %v5978
        %v5980 = vmul.f32 %v5559, 1.442695
        %v5981 = vpow.pop %v5980
        %v5982 = vmul.f32 %v5560, 1.442695
        %v5983 = vpow.pop %v5982
        %v5984 = vmul.f32 %v5561, 1.442695
        %v5985 = vpow.pop %v5984
        %v5986 = vmul.f32 %v5562, 1.442695
        %v5987 = vpow.pop %v5986
        %v5988 = vmul.f32 %v5563, 1.442695
        %v5989 = vpow.pop %v5988
        %v5990 = vmul.f32 %v5564, 1.442695
        %v5991 = vpow.pop %v5990
        %v5992 = vmul.f32 %v5565, 1.442695
        %v5993 = vpow.pop %v5992
        %v5994 = vmul.f32 %v5566, 1.442695
        %v5995 = vpow.pop %v5994
        %v5996 = vmul.f32 %v5567, 1.442695
        %v5997 = vpow.pop %v5996
        %v5998 = vmul.f32 %v5568, 1.442695
        %v5999 = vpow.pop %v5998
        %v6000 = vmul.f32 %v5569, 1.442695
        %v6001 = vpow.pop %v6000
        %v6002 = vmul.f32 %v5570, 1.442695
        %v6003 = vpow.pop %v6002
        %v6004 = vmul.f32 %v5571, 1.442695
        %v6005 = vpow.pop %v6004
        %v6006 = vmul.f32 %v5572, 1.442695
        %v6007 = vpow.pop %v6006
        %v6008 = vmul.f32 %v5573, 1.442695
        %v6009 = vpow.pop %v6008
        %v6010 = vmul.f32 %v5574, 1.442695
        %v6011 = vpow.pop %v6010
        %v6012 = vmul.f32 %v5575, 1.442695
        %v6013 = vpow.pop %v6012
        %v6014 = vmul.f32 %v5576, 1.442695
        %v6015 = vpow.pop %v6014
        %v6016 = vmul.f32 %v5577, 1.442695
        %v6017 = vpow.pop %v6016
        %v6018 = vmul.f32 %v5578, 1.442695
        %v6019 = vpow.pop %v6018
        %v6020 = vmul.f32 %v5579, 1.442695
        %v6021 = vpow.pop %v6020
        %v6022 = vmul.f32 %v5580, 1.442695
        %v6023 = vpow.pop %v6022
        %v6024 = vmul.f32 %v5581, 1.442695
        %v6025 = vpow.pop %v6024
        %v6026 = vmul.f32 %v5582, 1.442695
        %v6027 = vpow.pop %v6026
        %v6028 = vmul.f32 %v5583, 1.442695
        %v6029 = vpow.pop %v6028
        %v6030 = vmul.f32 %v5584, 1.442695
        %v6031 = vpow.pop %v6030
        %v6032 = vmul.f32 %v5585, 1.442695
        %v6033 = vpow.pop %v6032
        %v6034 = vmul.f32 %v5586, 1.442695
        %v6035 = vpow.pop %v6034
        %v6036 = vmul.f32 %v5587, 1.442695
        %v6037 = vpow.pop %v6036
        %v6038 = vmul.f32 %v5588, 1.442695
        %v6039 = vpow.pop %v6038
        %v6040 = vmul.f32 %v5589, 1.442695
        %v6041 = vpow.pop %v6040
        %v6042 = vmul.f32 %v5590, 1.442695
        %v6043 = vpow.pop %v6042
        %v6044 = vmul.f32 %v5591, 1.442695
        %v6045 = vpow.pop %v6044
        %v6046 = vmul.f32 %v5592, 1.442695
        %v6047 = vpow.pop %v6046
        %v6048 = vmul.f32 %v5593, 1.442695
        %v6049 = vpow.pop %v6048
        %v6050 = vmul.f32 %v5594, 1.442695
        %v6051 = vpow.pop %v6050
        %v6052 = vmul.f32 %v5595, 1.442695
        %v6053 = vpow.pop %v6052
        %v6054 = vmul.f32 %v5596, 1.442695
        %v6055 = vpow.pop %v6054
        %v6056 = vmul.f32 %v5597, 1.442695
        %v6057 = vpow.pop %v6056
        %v6058 = vmul.f32 %v5598, 1.442695
        %v6059 = vpow.pop %v6058
        %v6060 = vmul.f32 %v5599, 1.442695
        %v6061 = vpow.pop %v6060
        %v6062 = vmul.f32 %v5600, 1.442695
        %v6063 = vpow.pop %v6062
        %v6064 = vmul.f32 %v5601, 1.442695
        %v6065 = vpow.pop %v6064
        %v6066 = vmul.f32 %v5602, 1.442695
        %v6067 = vpow.pop %v6066
        %v6068 = vmul.f32 %v5603, 1.442695
        %v6069 = vpow.pop %v6068
        %v6070 = vmul.f32 %v5604, 1.442695
        %v6071 = vpow.pop %v6070
        %v6072 = vmul.f32 %v5605, 1.442695
        %v6073 = vpow.pop %v6072
        %v6074 = vmul.f32 %v5606, 1.442695
        %v6075 = vpow.pop %v6074
        %v6076 = vmul.f32 %v5607, 1.442695
        %v6077 = vpow.pop %v6076
        %v6078 = vmul.f32 %v5608, 1.442695
        %v6079 = vpow.pop %v6078
        %v6080 = vmul.f32 %v5609, 1.442695
        %v6081 = vpow.pop %v6080
        %v6082 = vmul.f32 %v5610, 1.442695
        %v6083 = vpow.pop %v6082
        %v6084 = vmul.f32 %v5611, 1.442695
        %v6085 = vpow.pop %v6084
        %v6086 = vmul.f32 %v5612, 1.442695
        %v6087 = vpow.pop %v6086
        %v6088 = vmul.f32 %v5613, 1.442695
        %v6089 = vpow.pop %v6088
        %v6090 = vmul.f32 %v5614, 1.442695
        %v6091 = vpow.pop %v6090
        %v6092 = vmul.f32 %v5615, 1.442695
        %v6093 = vpow.pop %v6092
        %v6094 = vmul.f32 %v5616, 1.442695
        %v6095 = vpow.pop %v6094
        %v6096 = vmul.f32 %v5617, 1.442695
        %v6097 = vpow.pop %v6096
        %v6098 = vmul.f32 %v5618, 1.442695
        %v6099 = vpow.pop %v6098
        %v6100 = vmul.f32 %v5619, 1.442695
        %v6101 = vpow.pop %v6100
        %v6102 = vmul.f32 %v5620, 1.442695
        %v6103 = vpow.pop %v6102
        %v6104 = vmul.f32 %v5621, 1.442695
        %v6105 = vpow.pop %v6104
        %v6106 = vmul.f32 %v5622, 1.442695
        %v6107 = vpow.pop %v6106
        %v6108 = vmul.f32 %v5623, 1.442695
        %v6109 = vpow.pop %v6108
        %v6110 = vmul.f32 %v5624, 1.442695
        %v6111 = vpow.pop %v6110
        %v6112 = vmul.f32 %v5625, 1.442695
        %v6113 = vpow.pop %v6112
        %v6114 = vmul.f32 %v5626, 1.442695
        %v6115 = vpow.pop %v6114
        %v6116 = vmul.f32 %v5627, 1.442695
        %v6117 = vpow.pop %v6116
        %v6118 = vmul.f32 %v5628, 1.442695
        %v6119 = vpow.pop %v6118
        %v6120 = vmul.f32 %v5629, 1.442695
        %v6121 = vpow.pop %v6120
        %v6122 = vmul.f32 %v5630, 1.442695
        %v6123 = vpow.pop %v6122
        %v6124 = vmul.f32 %v5631, 1.442695
        %v6125 = vpow.pop %v6124
        %v6126 = vmul.f32 %v5632, 1.442695
        %v6127 = vpow.pop %v6126
        %v6128 = vmul.f32 %v5633, 1.442695
        %v6129 = vpow.pop %v6128
        %v6130 = vmul.f32 %v5634, 1.442695
        %v6131 = vpow.pop %v6130
        %v6132 = vmul.f32 %v5635, 1.442695
        %v6133 = vpow.pop %v6132
        %v6134 = vmul.f32 %v5636, 1.442695
        %v6135 = vpow.pop %v6134
        %v6136 = vmul.f32 %v5637, 1.442695
        %v6137 = vpow.pop %v6136
        %v6138 = vmul.f32 %v5638, 1.442695
        %v6139 = vpow.pop %v6138
        %v6140 = vmul.f32 %v5639, 1.442695
        %v6141 = vpow.pop %v6140
        %v6142 = vmul.f32 %v5640, 1.442695
        %v6143 = vpow.pop %v6142
        %v6144 = vmul.f32 %v5641, 1.442695
        %v6145 = vpow.pop %v6144
        %v6146 = vmul.f32 %v5642, 1.442695
        %v6147 = vpow.pop %v6146
        %v6148 = vmul.f32 %v5643, 1.442695
        %v6149 = vpow.pop %v6148
        %v6150 = vmul.f32 %v5644, 1.442695
        %v6151 = vpow.pop %v6150
        %v6152 = vmul.f32 %v5645, 1.442695
        %v6153 = vpow.pop %v6152
        %v6154 = vmul.f32 %v5646, 1.442695
        %v6155 = vpow.pop %v6154
        %v6156 = vmul.f32 %v5647, 1.442695
        %v6157 = vpow.pop %v6156
        %v6158 = vmul.f32 %v5648, 1.442695
        %v6159 = vpow.pop %v6158
        %v6160 = vmul.f32 %v5649, 1.442695
        %v6161 = vpow.pop %v6160
        %v6162 = vadd.f32 %v5651, %v5653
        %v6163 = vadd.f32 %v6162, %v5655
        %v6164 = vadd.f32 %v6163, %v5657
        %6165 = vadd.xlane.f32.xlu0 %v6164
        %v6166 = vpop.xlane.xlu0 %6165
        %v6167 = vadd.f32 %v5659, %v5661
        %v6168 = vadd.f32 %v6167, %v5663
        %v6169 = vadd.f32 %v6168, %v5665
        %6170 = vadd.xlane.f32.xlu0 %v6169
        %v6171 = vpop.xlane.xlu0 %6170
        %v6172 = vadd.f32 %v5667, %v5669
        %v6173 = vadd.f32 %v6172, %v5671
        %v6174 = vadd.f32 %v6173, %v5673
        %6175 = vadd.xlane.f32.xlu0 %v6174
        %v6176 = vpop.xlane.xlu0 %6175
        %v6177 = vadd.f32 %v5675, %v5677
        %v6178 = vadd.f32 %v6177, %v5679
        %v6179 = vadd.f32 %v6178, %v5681
        %6180 = vadd.xlane.f32.xlu0 %v6179
        %v6181 = vpop.xlane.xlu0 %6180
        %v6182 = vadd.f32 %v5683, %v5685
        %v6183 = vadd.f32 %v6182, %v5687
        %v6184 = vadd.f32 %v6183, %v5689
        %6185 = vadd.xlane.f32.xlu0 %v6184
        %v6186 = vpop.xlane.xlu0 %6185
        %v6187 = vadd.f32 %v5691, %v5693
        %v6188 = vadd.f32 %v6187, %v5695
        %v6189 = vadd.f32 %v6188, %v5697
        %6190 = vadd.xlane.f32.xlu0 %v6189
        %v6191 = vpop.xlane.xlu0 %6190
        %v6192 = vadd.f32 %v5699, %v5701
        %v6193 = vadd.f32 %v6192, %v5703
        %v6194 = vadd.f32 %v6193, %v5705
        %6195 = vadd.xlane.f32.xlu0 %v6194
        %v6196 = vpop.xlane.xlu0 %6195
        %v6197 = vadd.f32 %v5707, %v5709
        %v6198 = vadd.f32 %v6197, %v5711
        %v6199 = vadd.f32 %v6198, %v5713
        %6200 = vadd.xlane.f32.xlu0 %v6199
        %v6201 = vpop.xlane.xlu0 %6200
        %v6202 = vadd.f32 %v5715, %v5717
        %v6203 = vadd.f32 %v6202, %v5719
        %v6204 = vadd.f32 %v6203, %v5721
        %6205 = vadd.xlane.f32.xlu0 %v6204
        %v6206 = vpop.xlane.xlu0 %6205
        %v6207 = vadd.f32 %v5723, %v5725
        %v6208 = vadd.f32 %v6207, %v5727
        %v6209 = vadd.f32 %v6208, %v5729
        %6210 = vadd.xlane.f32.xlu0 %v6209
        %v6211 = vpop.xlane.xlu0 %6210
        %v6212 = vadd.f32 %v5731, %v5733
        %v6213 = vadd.f32 %v6212, %v5735
        %v6214 = vadd.f32 %v6213, %v5737
        %6215 = vadd.xlane.f32.xlu0 %v6214
        %v6216 = vpop.xlane.xlu0 %6215
        %v6217 = vadd.f32 %v5739, %v5741
        %v6218 = vadd.f32 %v6217, %v5743
        %v6219 = vadd.f32 %v6218, %v5745
        %6220 = vadd.xlane.f32.xlu0 %v6219
        %v6221 = vpop.xlane.xlu0 %6220
        %v6222 = vadd.f32 %v5747, %v5749
        %v6223 = vadd.f32 %v6222, %v5751
        %v6224 = vadd.f32 %v6223, %v5753
        %6225 = vadd.xlane.f32.xlu0 %v6224
        %v6226 = vpop.xlane.xlu0 %6225
        %v6227 = vadd.f32 %v5755, %v5757
        %v6228 = vadd.f32 %v6227, %v5759
        %v6229 = vadd.f32 %v6228, %v5761
        %6230 = vadd.xlane.f32.xlu0 %v6229
        %v6231 = vpop.xlane.xlu0 %6230
        %v6232 = vadd.f32 %v5763, %v5765
        %v6233 = vadd.f32 %v6232, %v5767
        %v6234 = vadd.f32 %v6233, %v5769
        %6235 = vadd.xlane.f32.xlu0 %v6234
        %v6236 = vpop.xlane.xlu0 %6235
        %v6237 = vadd.f32 %v5771, %v5773
        %v6238 = vadd.f32 %v6237, %v5775
        %v6239 = vadd.f32 %v6238, %v5777
        %6240 = vadd.xlane.f32.xlu0 %v6239
        %v6241 = vpop.xlane.xlu0 %6240
        %v6242 = vadd.f32 %v5779, %v5781
        %v6243 = vadd.f32 %v6242, %v5783
        %v6244 = vadd.f32 %v6243, %v5785
        %6245 = vadd.xlane.f32.xlu0 %v6244
        %v6246 = vpop.xlane.xlu0 %6245
        %v6247 = vadd.f32 %v5787, %v5789
        %v6248 = vadd.f32 %v6247, %v5791
        %v6249 = vadd.f32 %v6248, %v5793
        %6250 = vadd.xlane.f32.xlu0 %v6249
        %v6251 = vpop.xlane.xlu0 %6250
        %v6252 = vadd.f32 %v5795, %v5797
        %v6253 = vadd.f32 %v6252, %v5799
        %v6254 = vadd.f32 %v6253, %v5801
        %6255 = vadd.xlane.f32.xlu0 %v6254
        %v6256 = vpop.xlane.xlu0 %6255
        %v6257 = vadd.f32 %v5803, %v5805
        %v6258 = vadd.f32 %v6257, %v5807
        %v6259 = vadd.f32 %v6258, %v5809
        %6260 = vadd.xlane.f32.xlu0 %v6259
        %v6261 = vpop.xlane.xlu0 %6260
        %v6262 = vadd.f32 %v5811, %v5813
        %v6263 = vadd.f32 %v6262, %v5815
        %v6264 = vadd.f32 %v6263, %v5817
        %6265 = vadd.xlane.f32.xlu0 %v6264
        %v6266 = vpop.xlane.xlu0 %6265
        %v6267 = vadd.f32 %v5819, %v5821
        %v6268 = vadd.f32 %v6267, %v5823
        %v6269 = vadd.f32 %v6268, %v5825
        %6270 = vadd.xlane.f32.xlu0 %v6269
        %v6271 = vpop.xlane.xlu0 %6270
        %v6272 = vadd.f32 %v5827, %v5829
        %v6273 = vadd.f32 %v6272, %v5831
        %v6274 = vadd.f32 %v6273, %v5833
        %6275 = vadd.xlane.f32.xlu0 %v6274
        %v6276 = vpop.xlane.xlu0 %6275
        %v6277 = vadd.f32 %v5835, %v5837
        %v6278 = vadd.f32 %v6277, %v5839
        %v6279 = vadd.f32 %v6278, %v5841
        %6280 = vadd.xlane.f32.xlu0 %v6279
        %v6281 = vpop.xlane.xlu0 %6280
        %v6282 = vadd.f32 %v5843, %v5845
        %v6283 = vadd.f32 %v6282, %v5847
        %v6284 = vadd.f32 %v6283, %v5849
        %6285 = vadd.xlane.f32.xlu0 %v6284
        %v6286 = vpop.xlane.xlu0 %6285
        %v6287 = vadd.f32 %v5851, %v5853
        %v6288 = vadd.f32 %v6287, %v5855
        %v6289 = vadd.f32 %v6288, %v5857
        %6290 = vadd.xlane.f32.xlu0 %v6289
        %v6291 = vpop.xlane.xlu0 %6290
        %v6292 = vadd.f32 %v5859, %v5861
        %v6293 = vadd.f32 %v6292, %v5863
        %v6294 = vadd.f32 %v6293, %v5865
        %6295 = vadd.xlane.f32.xlu0 %v6294
        %v6296 = vpop.xlane.xlu0 %6295
        %v6297 = vadd.f32 %v5867, %v5869
        %v6298 = vadd.f32 %v6297, %v5871
        %v6299 = vadd.f32 %v6298, %v5873
        %6300 = vadd.xlane.f32.xlu0 %v6299
        %v6301 = vpop.xlane.xlu0 %6300
        %v6302 = vadd.f32 %v5875, %v5877
        %v6303 = vadd.f32 %v6302, %v5879
        %v6304 = vadd.f32 %v6303, %v5881
        %6305 = vadd.xlane.f32.xlu0 %v6304
        %v6306 = vpop.xlane.xlu0 %6305
        %v6307 = vadd.f32 %v5883, %v5885
        %v6308 = vadd.f32 %v6307, %v5887
        %v6309 = vadd.f32 %v6308, %v5889
        %6310 = vadd.xlane.f32.xlu0 %v6309
        %v6311 = vpop.xlane.xlu0 %6310
        %v6312 = vadd.f32 %v5891, %v5893
        %v6313 = vadd.f32 %v6312, %v5895
        %v6314 = vadd.f32 %v6313, %v5897
        %6315 = vadd.xlane.f32.xlu0 %v6314
        %v6316 = vpop.xlane.xlu0 %6315
        %v6317 = vadd.f32 %v5899, %v5901
        %v6318 = vadd.f32 %v6317, %v5903
        %v6319 = vadd.f32 %v6318, %v5905
        %6320 = vadd.xlane.f32.xlu0 %v6319
        %v6321 = vpop.xlane.xlu0 %6320
        %v6322 = vadd.f32 %v5907, %v5909
        %v6323 = vadd.f32 %v6322, %v5911
        %v6324 = vadd.f32 %v6323, %v5913
        %6325 = vadd.xlane.f32.xlu0 %v6324
        %v6326 = vpop.xlane.xlu0 %6325
        %v6327 = vadd.f32 %v5915, %v5917
        %v6328 = vadd.f32 %v6327, %v5919
        %v6329 = vadd.f32 %v6328, %v5921
        %6330 = vadd.xlane.f32.xlu0 %v6329
        %v6331 = vpop.xlane.xlu0 %6330
        %v6332 = vadd.f32 %v5923, %v5925
        %v6333 = vadd.f32 %v6332, %v5927
        %v6334 = vadd.f32 %v6333, %v5929
        %6335 = vadd.xlane.f32.xlu0 %v6334
        %v6336 = vpop.xlane.xlu0 %6335
        %v6337 = vadd.f32 %v5931, %v5933
        %v6338 = vadd.f32 %v6337, %v5935
        %v6339 = vadd.f32 %v6338, %v5937
        %6340 = vadd.xlane.f32.xlu0 %v6339
        %v6341 = vpop.xlane.xlu0 %6340
        %v6342 = vadd.f32 %v5939, %v5941
        %v6343 = vadd.f32 %v6342, %v5943
        %v6344 = vadd.f32 %v6343, %v5945
        %6345 = vadd.xlane.f32.xlu0 %v6344
        %v6346 = vpop.xlane.xlu0 %6345
        %v6347 = vadd.f32 %v5947, %v5949
        %v6348 = vadd.f32 %v6347, %v5951
        %v6349 = vadd.f32 %v6348, %v5953
        %6350 = vadd.xlane.f32.xlu0 %v6349
        %v6351 = vpop.xlane.xlu0 %6350
        %v6352 = vadd.f32 %v5955, %v5957
        %v6353 = vadd.f32 %v6352, %v5959
        %v6354 = vadd.f32 %v6353, %v5961
        %6355 = vadd.xlane.f32.xlu0 %v6354
        %v6356 = vpop.xlane.xlu0 %6355
        %v6357 = vadd.f32 %v5963, %v5965
        %v6358 = vadd.f32 %v6357, %v5967
        %v6359 = vadd.f32 %v6358, %v5969
        %6360 = vadd.xlane.f32.xlu0 %v6359
        %v6361 = vpop.xlane.xlu0 %6360
        %v6362 = vadd.f32 %v5971, %v5973
        %v6363 = vadd.f32 %v6362, %v5975
        %v6364 = vadd.f32 %v6363, %v5977
        %6365 = vadd.xlane.f32.xlu0 %v6364
        %v6366 = vpop.xlane.xlu0 %6365
        %v6367 = vadd.f32 %v5979, %v5981
        %v6368 = vadd.f32 %v6367, %v5983
        %v6369 = vadd.f32 %v6368, %v5985
        %6370 = vadd.xlane.f32.xlu0 %v6369
        %v6371 = vpop.xlane.xlu0 %6370
        %v6372 = vadd.f32 %v5987, %v5989
        %v6373 = vadd.f32 %v6372, %v5991
        %v6374 = vadd.f32 %v6373, %v5993
        %6375 = vadd.xlane.f32.xlu0 %v6374
        %v6376 = vpop.xlane.xlu0 %6375
        %v6377 = vadd.f32 %v5995, %v5997
        %v6378 = vadd.f32 %v6377, %v5999
        %v6379 = vadd.f32 %v6378, %v6001
        %6380 = vadd.xlane.f32.xlu0 %v6379
        %v6381 = vpop.xlane.xlu0 %6380
        %v6382 = vadd.f32 %v6003, %v6005
        %v6383 = vadd.f32 %v6382, %v6007
        %v6384 = vadd.f32 %v6383, %v6009
        %6385 = vadd.xlane.f32.xlu0 %v6384
        %v6386 = vpop.xlane.xlu0 %6385
        %v6387 = vadd.f32 %v6011, %v6013
        %v6388 = vadd.f32 %v6387, %v6015
        %v6389 = vadd.f32 %v6388, %v6017
        %6390 = vadd.xlane.f32.xlu0 %v6389
        %v6391 = vpop.xlane.xlu0 %6390
        %v6392 = vadd.f32 %v6019, %v6021
        %v6393 = vadd.f32 %v6392, %v6023
        %v6394 = vadd.f32 %v6393, %v6025
        %6395 = vadd.xlane.f32.xlu0 %v6394
        %v6396 = vpop.xlane.xlu0 %6395
        %v6397 = vadd.f32 %v6027, %v6029
        %v6398 = vadd.f32 %v6397, %v6031
        %v6399 = vadd.f32 %v6398, %v6033
        %6400 = vadd.xlane.f32.xlu0 %v6399
        %v6401 = vpop.xlane.xlu0 %6400
        %v6402 = vadd.f32 %v6035, %v6037
        %v6403 = vadd.f32 %v6402, %v6039
        %v6404 = vadd.f32 %v6403, %v6041
        %6405 = vadd.xlane.f32.xlu0 %v6404
        %v6406 = vpop.xlane.xlu0 %6405
        %v6407 = vadd.f32 %v6043, %v6045
        %v6408 = vadd.f32 %v6407, %v6047
        %v6409 = vadd.f32 %v6408, %v6049
        %6410 = vadd.xlane.f32.xlu0 %v6409
        %v6411 = vpop.xlane.xlu0 %6410
        %v6412 = vadd.f32 %v6051, %v6053
        %v6413 = vadd.f32 %v6412, %v6055
        %v6414 = vadd.f32 %v6413, %v6057
        %6415 = vadd.xlane.f32.xlu0 %v6414
        %v6416 = vpop.xlane.xlu0 %6415
        %v6417 = vadd.f32 %v6059, %v6061
        %v6418 = vadd.f32 %v6417, %v6063
        %v6419 = vadd.f32 %v6418, %v6065
        %6420 = vadd.xlane.f32.xlu0 %v6419
        %v6421 = vpop.xlane.xlu0 %6420
        %v6422 = vadd.f32 %v6067, %v6069
        %v6423 = vadd.f32 %v6422, %v6071
        %v6424 = vadd.f32 %v6423, %v6073
        %6425 = vadd.xlane.f32.xlu0 %v6424
        %v6426 = vpop.xlane.xlu0 %6425
        %v6427 = vadd.f32 %v6075, %v6077
        %v6428 = vadd.f32 %v6427, %v6079
        %v6429 = vadd.f32 %v6428, %v6081
        %6430 = vadd.xlane.f32.xlu0 %v6429
        %v6431 = vpop.xlane.xlu0 %6430
        %v6432 = vadd.f32 %v6083, %v6085
        %v6433 = vadd.f32 %v6432, %v6087
        %v6434 = vadd.f32 %v6433, %v6089
        %6435 = vadd.xlane.f32.xlu0 %v6434
        %v6436 = vpop.xlane.xlu0 %6435
        %v6437 = vadd.f32 %v6091, %v6093
        %v6438 = vadd.f32 %v6437, %v6095
        %v6439 = vadd.f32 %v6438, %v6097
        %6440 = vadd.xlane.f32.xlu0 %v6439
        %v6441 = vpop.xlane.xlu0 %6440
        %v6442 = vadd.f32 %v6099, %v6101
        %v6443 = vadd.f32 %v6442, %v6103
        %v6444 = vadd.f32 %v6443, %v6105
        %6445 = vadd.xlane.f32.xlu0 %v6444
        %v6446 = vpop.xlane.xlu0 %6445
        %v6447 = vadd.f32 %v6107, %v6109
        %v6448 = vadd.f32 %v6447, %v6111
        %v6449 = vadd.f32 %v6448, %v6113
        %6450 = vadd.xlane.f32.xlu0 %v6449
        %v6451 = vpop.xlane.xlu0 %6450
        %v6452 = vadd.f32 %v6115, %v6117
        %v6453 = vadd.f32 %v6452, %v6119
        %v6454 = vadd.f32 %v6453, %v6121
        %6455 = vadd.xlane.f32.xlu0 %v6454
        %v6456 = vpop.xlane.xlu0 %6455
        %v6457 = vadd.f32 %v6123, %v6125
        %v6458 = vadd.f32 %v6457, %v6127
        %v6459 = vadd.f32 %v6458, %v6129
        %6460 = vadd.xlane.f32.xlu0 %v6459
        %v6461 = vpop.xlane.xlu0 %6460
        %v6462 = vadd.f32 %v6131, %v6133
        %v6463 = vadd.f32 %v6462, %v6135
        %v6464 = vadd.f32 %v6463, %v6137
        %6465 = vadd.xlane.f32.xlu0 %v6464
        %v6466 = vpop.xlane.xlu0 %6465
        %v6467 = vadd.f32 %v6139, %v6141
        %v6468 = vadd.f32 %v6467, %v6143
        %v6469 = vadd.f32 %v6468, %v6145
        %6470 = vadd.xlane.f32.xlu0 %v6469
        %v6471 = vpop.xlane.xlu0 %6470
        %v6472 = vadd.f32 %v6147, %v6149
        %v6473 = vadd.f32 %v6472, %v6151
        %v6474 = vadd.f32 %v6473, %v6153
        %6475 = vadd.xlane.f32.xlu0 %v6474
        %v6476 = vpop.xlane.xlu0 %6475
        %v6477 = vadd.f32 %v6155, %v6157
        %v6478 = vadd.f32 %v6477, %v6159
        %v6479 = vadd.f32 %v6478, %v6161
        %6480 = vadd.xlane.f32.xlu0 %v6479
        %v6481 = vpop.xlane.xlu0 %6480
        %v6482 = vadd.f32 %v5010, %v6166
        %v6483 = vadd.f32 %v5011, %v6171
        %v6484 = vadd.f32 %v5012, %v6176
        %v6485 = vadd.f32 %v5013, %v6181
        %v6486 = vadd.f32 %v5014, %v6186
        %v6487 = vadd.f32 %v5015, %v6191
        %v6488 = vadd.f32 %v5016, %v6196
        %v6489 = vadd.f32 %v5017, %v6201
        %v6490 = vadd.f32 %v5018, %v6206
        %v6491 = vadd.f32 %v5019, %v6211
        %v6492 = vadd.f32 %v5020, %v6216
        %v6493 = vadd.f32 %v5021, %v6221
        %v6494 = vadd.f32 %v5022, %v6226
        %v6495 = vadd.f32 %v5023, %v6231
        %v6496 = vadd.f32 %v5024, %v6236
        %v6497 = vadd.f32 %v5025, %v6241
        %v6498 = vadd.f32 %v5026, %v6246
        %v6499 = vadd.f32 %v5027, %v6251
        %v6500 = vadd.f32 %v5028, %v6256
        %v6501 = vadd.f32 %v5029, %v6261
        %v6502 = vadd.f32 %v5030, %v6266
        %v6503 = vadd.f32 %v5031, %v6271
        %v6504 = vadd.f32 %v5032, %v6276
        %v6505 = vadd.f32 %v5033, %v6281
        %v6506 = vadd.f32 %v5034, %v6286
        %v6507 = vadd.f32 %v5035, %v6291
        %v6508 = vadd.f32 %v5036, %v6296
        %v6509 = vadd.f32 %v5037, %v6301
        %v6510 = vadd.f32 %v5038, %v6306
        %v6511 = vadd.f32 %v5039, %v6311
        %v6512 = vadd.f32 %v5040, %v6316
        %v6513 = vadd.f32 %v5041, %v6321
        %v6514 = vadd.f32 %v5042, %v6326
        %v6515 = vadd.f32 %v5043, %v6331
        %v6516 = vadd.f32 %v5044, %v6336
        %v6517 = vadd.f32 %v5045, %v6341
        %v6518 = vadd.f32 %v5046, %v6346
        %v6519 = vadd.f32 %v5047, %v6351
        %v6520 = vadd.f32 %v5048, %v6356
        %v6521 = vadd.f32 %v5049, %v6361
        %v6522 = vadd.f32 %v5050, %v6366
        %v6523 = vadd.f32 %v5051, %v6371
        %v6524 = vadd.f32 %v5052, %v6376
        %v6525 = vadd.f32 %v5053, %v6381
        %v6526 = vadd.f32 %v5054, %v6386
        %v6527 = vadd.f32 %v5055, %v6391
        %v6528 = vadd.f32 %v5056, %v6396
        %v6529 = vadd.f32 %v5057, %v6401
        %v6530 = vadd.f32 %v5058, %v6406
        %v6531 = vadd.f32 %v5059, %v6411
        %v6532 = vadd.f32 %v5060, %v6416
        %v6533 = vadd.f32 %v5061, %v6421
        %v6534 = vadd.f32 %v5062, %v6426
        %v6535 = vadd.f32 %v5063, %v6431
        %v6536 = vadd.f32 %v5064, %v6436
        %v6537 = vadd.f32 %v5065, %v6441
        %v6538 = vadd.f32 %v5066, %v6446
        %v6539 = vadd.f32 %v5067, %v6451
        %v6540 = vadd.f32 %v5068, %v6456
        %v6541 = vadd.f32 %v5069, %v6461
        %v6542 = vadd.f32 %v5070, %v6466
        %v6543 = vadd.f32 %v5071, %v6471
        %v6544 = vadd.f32 %v5072, %v6476
        %v6545 = vadd.f32 %v5073, %v6481
        %6546 = vst.msk [vmem:[#allocation3] sm:$0xff] %vm4241, %v6482
        %6547 = vst.msk [vmem:[#allocation3 + $0x8] sm:$0xff] %vm4241, %v6483
        %6548 = vst.msk [vmem:[#allocation3 + $0x10] sm:$0xff] %vm4241, %v6484
        %6549 = vst.msk [vmem:[#allocation3 + $0x18] sm:$0xff] %vm4241, %v6485
        %6550 = vst.msk [vmem:[#allocation3 + $0x20] sm:$0xff] %vm4241, %v6486
        %6551 = vst.msk [vmem:[#allocation3 + $0x28] sm:$0xff] %vm4241, %v6487
        %6552 = vst.msk [vmem:[#allocation3 + $0x30] sm:$0xff] %vm4241, %v6488
        %6553 = vst.msk [vmem:[#allocation3 + $0x38] sm:$0xff] %vm4241, %v6489
        %6554 = vst.msk [vmem:[#allocation3 + $0x40] sm:$0xff] %vm4241, %v6490
        %6555 = vst.msk [vmem:[#allocation3 + $0x48] sm:$0xff] %vm4241, %v6491
        %6556 = vst.msk [vmem:[#allocation3 + $0x50] sm:$0xff] %vm4241, %v6492
        %6557 = vst.msk [vmem:[#allocation3 + $0x58] sm:$0xff] %vm4241, %v6493
        %6558 = vst.msk [vmem:[#allocation3 + $0x60] sm:$0xff] %vm4241, %v6494
        %6559 = vst.msk [vmem:[#allocation3 + $0x68] sm:$0xff] %vm4241, %v6495
        %6560 = vst.msk [vmem:[#allocation3 + $0x70] sm:$0xff] %vm4241, %v6496
        %6561 = vst.msk [vmem:[#allocation3 + $0x78] sm:$0xff] %vm4241, %v6497
        %6562 = vst.msk [vmem:[#allocation3 + $0x80] sm:$0xff] %vm4241, %v6498
        %6563 = vst.msk [vmem:[#allocation3 + $0x88] sm:$0xff] %vm4241, %v6499
        %6564 = vst.msk [vmem:[#allocation3 + $0x90] sm:$0xff] %vm4241, %v6500
        %6565 = vst.msk [vmem:[#allocation3 + $0x98] sm:$0xff] %vm4241, %v6501
        %6566 = vst.msk [vmem:[#allocation3 + $0xa0] sm:$0xff] %vm4241, %v6502
        %6567 = vst.msk [vmem:[#allocation3 + $0xa8] sm:$0xff] %vm4241, %v6503
        %6568 = vst.msk [vmem:[#allocation3 + $0xb0] sm:$0xff] %vm4241, %v6504
        %6569 = vst.msk [vmem:[#allocation3 + $0xb8] sm:$0xff] %vm4241, %v6505
        %6570 = vst.msk [vmem:[#allocation3 + $0xc0] sm:$0xff] %vm4241, %v6506
        %6571 = vst.msk [vmem:[#allocation3 + $0xc8] sm:$0xff] %vm4241, %v6507
        %6572 = vst.msk [vmem:[#allocation3 + $0xd0] sm:$0xff] %vm4241, %v6508
        %6573 = vst.msk [vmem:[#allocation3 + $0xd8] sm:$0xff] %vm4241, %v6509
        %6574 = vst.msk [vmem:[#allocation3 + $0xe0] sm:$0xff] %vm4241, %v6510
        %6575 = vst.msk [vmem:[#allocation3 + $0xe8] sm:$0xff] %vm4241, %v6511
        %6576 = vst.msk [vmem:[#allocation3 + $0xf0] sm:$0xff] %vm4241, %v6512
        %6577 = vst.msk [vmem:[#allocation3 + $0xf8] sm:$0xff] %vm4241, %v6513
        %6578 = vst.msk [vmem:[#allocation3 + $0x100] sm:$0xff] %vm4241, %v6514
        %6579 = vst.msk [vmem:[#allocation3 + $0x108] sm:$0xff] %vm4241, %v6515
        %6580 = vst.msk [vmem:[#allocation3 + $0x110] sm:$0xff] %vm4241, %v6516
        %6581 = vst.msk [vmem:[#allocation3 + $0x118] sm:$0xff] %vm4241, %v6517
        %6582 = vst.msk [vmem:[#allocation3 + $0x120] sm:$0xff] %vm4241, %v6518
        %6583 = vst.msk [vmem:[#allocation3 + $0x128] sm:$0xff] %vm4241, %v6519
        %6584 = vst.msk [vmem:[#allocation3 + $0x130] sm:$0xff] %vm4241, %v6520
        %6585 = vst.msk [vmem:[#allocation3 + $0x138] sm:$0xff] %vm4241, %v6521
        %6586 = vst.msk [vmem:[#allocation3 + $0x140] sm:$0xff] %vm4241, %v6522
        %6587 = vst.msk [vmem:[#allocation3 + $0x148] sm:$0xff] %vm4241, %v6523
        %6588 = vst.msk [vmem:[#allocation3 + $0x150] sm:$0xff] %vm4241, %v6524
        %6589 = vst.msk [vmem:[#allocation3 + $0x158] sm:$0xff] %vm4241, %v6525
        %6590 = vst.msk [vmem:[#allocation3 + $0x160] sm:$0xff] %vm4241, %v6526
        %6591 = vst.msk [vmem:[#allocation3 + $0x168] sm:$0xff] %vm4241, %v6527
        %6592 = vst.msk [vmem:[#allocation3 + $0x170] sm:$0xff] %vm4241, %v6528
        %6593 = vst.msk [vmem:[#allocation3 + $0x178] sm:$0xff] %vm4241, %v6529
        %6594 = vst.msk [vmem:[#allocation3 + $0x180] sm:$0xff] %vm4241, %v6530
        %6595 = vst.msk [vmem:[#allocation3 + $0x188] sm:$0xff] %vm4241, %v6531
        %6596 = vst.msk [vmem:[#allocation3 + $0x190] sm:$0xff] %vm4241, %v6532
        %6597 = vst.msk [vmem:[#allocation3 + $0x198] sm:$0xff] %vm4241, %v6533
        %6598 = vst.msk [vmem:[#allocation3 + $0x1a0] sm:$0xff] %vm4241, %v6534
        %6599 = vst.msk [vmem:[#allocation3 + $0x1a8] sm:$0xff] %vm4241, %v6535
        %6600 = vst.msk [vmem:[#allocation3 + $0x1b0] sm:$0xff] %vm4241, %v6536
        %6601 = vst.msk [vmem:[#allocation3 + $0x1b8] sm:$0xff] %vm4241, %v6537
        %6602 = vst.msk [vmem:[#allocation3 + $0x1c0] sm:$0xff] %vm4241, %v6538
        %6603 = vst.msk [vmem:[#allocation3 + $0x1c8] sm:$0xff] %vm4241, %v6539
        %6604 = vst.msk [vmem:[#allocation3 + $0x1d0] sm:$0xff] %vm4241, %v6540
        %6605 = vst.msk [vmem:[#allocation3 + $0x1d8] sm:$0xff] %vm4241, %v6541
        %6606 = vst.msk [vmem:[#allocation3 + $0x1e0] sm:$0xff] %vm4241, %v6542
        %6607 = vst.msk [vmem:[#allocation3 + $0x1e8] sm:$0xff] %vm4241, %v6543
        %6608 = vst.msk [vmem:[#allocation3 + $0x1f0] sm:$0xff] %vm4241, %v6544
        %6609 = vst.msk [vmem:[#allocation3 + $0x1f8] sm:$0xff] %vm4241, %v6545
        %6610 = vst.msk [vmem:[#allocation2] sm:$0xff] %vm4241, %v4690
        %6611 = vst.msk [vmem:[#allocation2 + $0x8] sm:$0xff] %vm4241, %v4691
        %6612 = vst.msk [vmem:[#allocation2 + $0x10] sm:$0xff] %vm4241, %v4692
        %6613 = vst.msk [vmem:[#allocation2 + $0x18] sm:$0xff] %vm4241, %v4693
        %6614 = vst.msk [vmem:[#allocation2 + $0x20] sm:$0xff] %vm4241, %v4694
        %6615 = vst.msk [vmem:[#allocation2 + $0x28] sm:$0xff] %vm4241, %v4695
        %6616 = vst.msk [vmem:[#allocation2 + $0x30] sm:$0xff] %vm4241, %v4696
        %6617 = vst.msk [vmem:[#allocation2 + $0x38] sm:$0xff] %vm4241, %v4697
        %6618 = vst.msk [vmem:[#allocation2 + $0x40] sm:$0xff] %vm4241, %v4698
        %6619 = vst.msk [vmem:[#allocation2 + $0x48] sm:$0xff] %vm4241, %v4699
        %6620 = vst.msk [vmem:[#allocation2 + $0x50] sm:$0xff] %vm4241, %v4700
        %6621 = vst.msk [vmem:[#allocation2 + $0x58] sm:$0xff] %vm4241, %v4701
        %6622 = vst.msk [vmem:[#allocation2 + $0x60] sm:$0xff] %vm4241, %v4702
        %6623 = vst.msk [vmem:[#allocation2 + $0x68] sm:$0xff] %vm4241, %v4703
        %6624 = vst.msk [vmem:[#allocation2 + $0x70] sm:$0xff] %vm4241, %v4704
        %6625 = vst.msk [vmem:[#allocation2 + $0x78] sm:$0xff] %vm4241, %v4705
        %6626 = vst.msk [vmem:[#allocation2 + $0x80] sm:$0xff] %vm4241, %v4706
        %6627 = vst.msk [vmem:[#allocation2 + $0x88] sm:$0xff] %vm4241, %v4707
        %6628 = vst.msk [vmem:[#allocation2 + $0x90] sm:$0xff] %vm4241, %v4708
        %6629 = vst.msk [vmem:[#allocation2 + $0x98] sm:$0xff] %vm4241, %v4709
        %6630 = vst.msk [vmem:[#allocation2 + $0xa0] sm:$0xff] %vm4241, %v4710
        %6631 = vst.msk [vmem:[#allocation2 + $0xa8] sm:$0xff] %vm4241, %v4711
        %6632 = vst.msk [vmem:[#allocation2 + $0xb0] sm:$0xff] %vm4241, %v4712
        %6633 = vst.msk [vmem:[#allocation2 + $0xb8] sm:$0xff] %vm4241, %v4713
        %6634 = vst.msk [vmem:[#allocation2 + $0xc0] sm:$0xff] %vm4241, %v4714
        %6635 = vst.msk [vmem:[#allocation2 + $0xc8] sm:$0xff] %vm4241, %v4715
        %6636 = vst.msk [vmem:[#allocation2 + $0xd0] sm:$0xff] %vm4241, %v4716
        %6637 = vst.msk [vmem:[#allocation2 + $0xd8] sm:$0xff] %vm4241, %v4717
        %6638 = vst.msk [vmem:[#allocation2 + $0xe0] sm:$0xff] %vm4241, %v4718
        %6639 = vst.msk [vmem:[#allocation2 + $0xe8] sm:$0xff] %vm4241, %v4719
        %6640 = vst.msk [vmem:[#allocation2 + $0xf0] sm:$0xff] %vm4241, %v4720
        %6641 = vst.msk [vmem:[#allocation2 + $0xf8] sm:$0xff] %vm4241, %v4721
        %6642 = vst.msk [vmem:[#allocation2 + $0x100] sm:$0xff] %vm4241, %v4722
        %6643 = vst.msk [vmem:[#allocation2 + $0x108] sm:$0xff] %vm4241, %v4723
        %6644 = vst.msk [vmem:[#allocation2 + $0x110] sm:$0xff] %vm4241, %v4724
        %6645 = vst.msk [vmem:[#allocation2 + $0x118] sm:$0xff] %vm4241, %v4725
        %6646 = vst.msk [vmem:[#allocation2 + $0x120] sm:$0xff] %vm4241, %v4726
        %6647 = vst.msk [vmem:[#allocation2 + $0x128] sm:$0xff] %vm4241, %v4727
        %6648 = vst.msk [vmem:[#allocation2 + $0x130] sm:$0xff] %vm4241, %v4728
        %6649 = vst.msk [vmem:[#allocation2 + $0x138] sm:$0xff] %vm4241, %v4729
        %6650 = vst.msk [vmem:[#allocation2 + $0x140] sm:$0xff] %vm4241, %v4730
        %6651 = vst.msk [vmem:[#allocation2 + $0x148] sm:$0xff] %vm4241, %v4731
        %6652 = vst.msk [vmem:[#allocation2 + $0x150] sm:$0xff] %vm4241, %v4732
        %6653 = vst.msk [vmem:[#allocation2 + $0x158] sm:$0xff] %vm4241, %v4733
        %6654 = vst.msk [vmem:[#allocation2 + $0x160] sm:$0xff] %vm4241, %v4734
        %6655 = vst.msk [vmem:[#allocation2 + $0x168] sm:$0xff] %vm4241, %v4735
        %6656 = vst.msk [vmem:[#allocation2 + $0x170] sm:$0xff] %vm4241, %v4736
        %6657 = vst.msk [vmem:[#allocation2 + $0x178] sm:$0xff] %vm4241, %v4737
        %6658 = vst.msk [vmem:[#allocation2 + $0x180] sm:$0xff] %vm4241, %v4738
        %6659 = vst.msk [vmem:[#allocation2 + $0x188] sm:$0xff] %vm4241, %v4739
        %6660 = vst.msk [vmem:[#allocation2 + $0x190] sm:$0xff] %vm4241, %v4740
        %6661 = vst.msk [vmem:[#allocation2 + $0x198] sm:$0xff] %vm4241, %v4741
        %6662 = vst.msk [vmem:[#allocation2 + $0x1a0] sm:$0xff] %vm4241, %v4742
        %6663 = vst.msk [vmem:[#allocation2 + $0x1a8] sm:$0xff] %vm4241, %v4743
        %6664 = vst.msk [vmem:[#allocation2 + $0x1b0] sm:$0xff] %vm4241, %v4744
        %6665 = vst.msk [vmem:[#allocation2 + $0x1b8] sm:$0xff] %vm4241, %v4745
        %6666 = vst.msk [vmem:[#allocation2 + $0x1c0] sm:$0xff] %vm4241, %v4746
        %6667 = vst.msk [vmem:[#allocation2 + $0x1c8] sm:$0xff] %vm4241, %v4747
        %6668 = vst.msk [vmem:[#allocation2 + $0x1d0] sm:$0xff] %vm4241, %v4748
        %6669 = vst.msk [vmem:[#allocation2 + $0x1d8] sm:$0xff] %vm4241, %v4749
        %6670 = vst.msk [vmem:[#allocation2 + $0x1e0] sm:$0xff] %vm4241, %v4750
        %6671 = vst.msk [vmem:[#allocation2 + $0x1e8] sm:$0xff] %vm4241, %v4751
        %6672 = vst.msk [vmem:[#allocation2 + $0x1f0] sm:$0xff] %vm4241, %v4752
        %6673 = vst.msk [vmem:[#allocation2 + $0x1f8] sm:$0xff] %vm4241, %v4753
        %p6674 = scmp.eq.s32.totalorder %s19, 1
        // Predicated region
        $region60: #{attack_forward.3} parent=50 // pred_check
          %p6675 = pneg %p6674
        $region61: #{attack_forward.3} parent=50 // pred_check_branch
          %6677 = sbr.rel (%p6675) target = $region63
        $region62: #{attack_forward.3} parent=50 // pred_region
          %v6678 = vld [vmem:[#allocation2] sm:$0xff]
          %v6679 = vld [vmem:[#allocation2 + $0x8] sm:$0xff]
          %v6680 = vld [vmem:[#allocation2 + $0x10] sm:$0xff]
          %v6681 = vld [vmem:[#allocation2 + $0x18] sm:$0xff]
          %v6682 = vld [vmem:[#allocation2 + $0x20] sm:$0xff]
          %v6683 = vld [vmem:[#allocation2 + $0x28] sm:$0xff]
          %v6684 = vld [vmem:[#allocation2 + $0x30] sm:$0xff]
          %v6685 = vld [vmem:[#allocation2 + $0x38] sm:$0xff]
          %v6686 = vld [vmem:[#allocation2 + $0x40] sm:$0xff]
          %v6687 = vld [vmem:[#allocation2 + $0x48] sm:$0xff]
          %v6688 = vld [vmem:[#allocation2 + $0x50] sm:$0xff]
          %v6689 = vld [vmem:[#allocation2 + $0x58] sm:$0xff]
          %v6690 = vld [vmem:[#allocation2 + $0x60] sm:$0xff]
          %v6691 = vld [vmem:[#allocation2 + $0x68] sm:$0xff]
          %v6692 = vld [vmem:[#allocation2 + $0x70] sm:$0xff]
          %v6693 = vld [vmem:[#allocation2 + $0x78] sm:$0xff]
          %v6694 = vld [vmem:[#allocation2 + $0x80] sm:$0xff]
          %v6695 = vld [vmem:[#allocation2 + $0x88] sm:$0xff]
          %v6696 = vld [vmem:[#allocation2 + $0x90] sm:$0xff]
          %v6697 = vld [vmem:[#allocation2 + $0x98] sm:$0xff]
          %v6698 = vld [vmem:[#allocation2 + $0xa0] sm:$0xff]
          %v6699 = vld [vmem:[#allocation2 + $0xa8] sm:$0xff]
          %v6700 = vld [vmem:[#allocation2 + $0xb0] sm:$0xff]
          %v6701 = vld [vmem:[#allocation2 + $0xb8] sm:$0xff]
          %v6702 = vld [vmem:[#allocation2 + $0xc0] sm:$0xff]
          %v6703 = vld [vmem:[#allocation2 + $0xc8] sm:$0xff]
          %v6704 = vld [vmem:[#allocation2 + $0xd0] sm:$0xff]
          %v6705 = vld [vmem:[#allocation2 + $0xd8] sm:$0xff]
          %v6706 = vld [vmem:[#allocation2 + $0xe0] sm:$0xff]
          %v6707 = vld [vmem:[#allocation2 + $0xe8] sm:$0xff]
          %v6708 = vld [vmem:[#allocation2 + $0xf0] sm:$0xff]
          %v6709 = vld [vmem:[#allocation2 + $0xf8] sm:$0xff]
          %v6710 = vld [vmem:[#allocation2 + $0x100] sm:$0xff]
          %v6711 = vld [vmem:[#allocation2 + $0x108] sm:$0xff]
          %v6712 = vld [vmem:[#allocation2 + $0x110] sm:$0xff]
          %v6713 = vld [vmem:[#allocation2 + $0x118] sm:$0xff]
          %v6714 = vld [vmem:[#allocation2 + $0x120] sm:$0xff]
          %v6715 = vld [vmem:[#allocation2 + $0x128] sm:$0xff]
          %v6716 = vld [vmem:[#allocation2 + $0x130] sm:$0xff]
          %v6717 = vld [vmem:[#allocation2 + $0x138] sm:$0xff]
          %v6718 = vld [vmem:[#allocation2 + $0x140] sm:$0xff]
          %v6719 = vld [vmem:[#allocation2 + $0x148] sm:$0xff]
          %v6720 = vld [vmem:[#allocation2 + $0x150] sm:$0xff]
          %v6721 = vld [vmem:[#allocation2 + $0x158] sm:$0xff]
          %v6722 = vld [vmem:[#allocation2 + $0x160] sm:$0xff]
          %v6723 = vld [vmem:[#allocation2 + $0x168] sm:$0xff]
          %v6724 = vld [vmem:[#allocation2 + $0x170] sm:$0xff]
          %v6725 = vld [vmem:[#allocation2 + $0x178] sm:$0xff]
          %v6726 = vld [vmem:[#allocation2 + $0x180] sm:$0xff]
          %v6727 = vld [vmem:[#allocation2 + $0x188] sm:$0xff]
          %v6728 = vld [vmem:[#allocation2 + $0x190] sm:$0xff]
          %v6729 = vld [vmem:[#allocation2 + $0x198] sm:$0xff]
          %v6730 = vld [vmem:[#allocation2 + $0x1a0] sm:$0xff]
          %v6731 = vld [vmem:[#allocation2 + $0x1a8] sm:$0xff]
          %v6732 = vld [vmem:[#allocation2 + $0x1b0] sm:$0xff]
          %v6733 = vld [vmem:[#allocation2 + $0x1b8] sm:$0xff]
          %v6734 = vld [vmem:[#allocation2 + $0x1c0] sm:$0xff]
          %v6735 = vld [vmem:[#allocation2 + $0x1c8] sm:$0xff]
          %v6736 = vld [vmem:[#allocation2 + $0x1d0] sm:$0xff]
          %v6737 = vld [vmem:[#allocation2 + $0x1d8] sm:$0xff]
          %v6738 = vld [vmem:[#allocation2 + $0x1e0] sm:$0xff]
          %v6739 = vld [vmem:[#allocation2 + $0x1e8] sm:$0xff]
          %v6740 = vld [vmem:[#allocation2 + $0x1f0] sm:$0xff]
          %v6741 = vld [vmem:[#allocation2 + $0x1f8] sm:$0xff]
          %v6742 = vld [vmem:[#allocation3] sm:$0xff]
          %v6743 = vld [vmem:[#allocation3 + $0x8] sm:$0xff]
          %v6744 = vld [vmem:[#allocation3 + $0x10] sm:$0xff]
          %v6745 = vld [vmem:[#allocation3 + $0x18] sm:$0xff]
          %v6746 = vld [vmem:[#allocation3 + $0x20] sm:$0xff]
          %v6747 = vld [vmem:[#allocation3 + $0x28] sm:$0xff]
          %v6748 = vld [vmem:[#allocation3 + $0x30] sm:$0xff]
          %v6749 = vld [vmem:[#allocation3 + $0x38] sm:$0xff]
          %v6750 = vld [vmem:[#allocation3 + $0x40] sm:$0xff]
          %v6751 = vld [vmem:[#allocation3 + $0x48] sm:$0xff]
          %v6752 = vld [vmem:[#allocation3 + $0x50] sm:$0xff]
          %v6753 = vld [vmem:[#allocation3 + $0x58] sm:$0xff]
          %v6754 = vld [vmem:[#allocation3 + $0x60] sm:$0xff]
          %v6755 = vld [vmem:[#allocation3 + $0x68] sm:$0xff]
          %v6756 = vld [vmem:[#allocation3 + $0x70] sm:$0xff]
          %v6757 = vld [vmem:[#allocation3 + $0x78] sm:$0xff]
          %v6758 = vld [vmem:[#allocation3 + $0x80] sm:$0xff]
          %v6759 = vld [vmem:[#allocation3 + $0x88] sm:$0xff]
          %v6760 = vld [vmem:[#allocation3 + $0x90] sm:$0xff]
          %v6761 = vld [vmem:[#allocation3 + $0x98] sm:$0xff]
          %v6762 = vld [vmem:[#allocation3 + $0xa0] sm:$0xff]
          %v6763 = vld [vmem:[#allocation3 + $0xa8] sm:$0xff]
          %v6764 = vld [vmem:[#allocation3 + $0xb0] sm:$0xff]
          %v6765 = vld [vmem:[#allocation3 + $0xb8] sm:$0xff]
          %v6766 = vld [vmem:[#allocation3 + $0xc0] sm:$0xff]
          %v6767 = vld [vmem:[#allocation3 + $0xc8] sm:$0xff]
          %v6768 = vld [vmem:[#allocation3 + $0xd0] sm:$0xff]
          %v6769 = vld [vmem:[#allocation3 + $0xd8] sm:$0xff]
          %v6770 = vld [vmem:[#allocation3 + $0xe0] sm:$0xff]
          %v6771 = vld [vmem:[#allocation3 + $0xe8] sm:$0xff]
          %v6772 = vld [vmem:[#allocation3 + $0xf0] sm:$0xff]
          %v6773 = vld [vmem:[#allocation3 + $0xf8] sm:$0xff]
          %v6774 = vld [vmem:[#allocation3 + $0x100] sm:$0xff]
          %v6775 = vld [vmem:[#allocation3 + $0x108] sm:$0xff]
          %v6776 = vld [vmem:[#allocation3 + $0x110] sm:$0xff]
          %v6777 = vld [vmem:[#allocation3 + $0x118] sm:$0xff]
          %v6778 = vld [vmem:[#allocation3 + $0x120] sm:$0xff]
          %v6779 = vld [vmem:[#allocation3 + $0x128] sm:$0xff]
          %v6780 = vld [vmem:[#allocation3 + $0x130] sm:$0xff]
          %v6781 = vld [vmem:[#allocation3 + $0x138] sm:$0xff]
          %v6782 = vld [vmem:[#allocation3 + $0x140] sm:$0xff]
          %v6783 = vld [vmem:[#allocation3 + $0x148] sm:$0xff]
          %v6784 = vld [vmem:[#allocation3 + $0x150] sm:$0xff]
          %v6785 = vld [vmem:[#allocation3 + $0x158] sm:$0xff]
          %v6786 = vld [vmem:[#allocation3 + $0x160] sm:$0xff]
          %v6787 = vld [vmem:[#allocation3 + $0x168] sm:$0xff]
          %v6788 = vld [vmem:[#allocation3 + $0x170] sm:$0xff]
          %v6789 = vld [vmem:[#allocation3 + $0x178] sm:$0xff]
          %v6790 = vld [vmem:[#allocation3 + $0x180] sm:$0xff]
          %v6791 = vld [vmem:[#allocation3 + $0x188] sm:$0xff]
          %v6792 = vld [vmem:[#allocation3 + $0x190] sm:$0xff]
          %v6793 = vld [vmem:[#allocation3 + $0x198] sm:$0xff]
          %v6794 = vld [vmem:[#allocation3 + $0x1a0] sm:$0xff]
          %v6795 = vld [vmem:[#allocation3 + $0x1a8] sm:$0xff]
          %v6796 = vld [vmem:[#allocation3 + $0x1b0] sm:$0xff]
          %v6797 = vld [vmem:[#allocation3 + $0x1b8] sm:$0xff]
          %v6798 = vld [vmem:[#allocation3 + $0x1c0] sm:$0xff]
          %v6799 = vld [vmem:[#allocation3 + $0x1c8] sm:$0xff]
          %v6800 = vld [vmem:[#allocation3 + $0x1d0] sm:$0xff]
          %v6801 = vld [vmem:[#allocation3 + $0x1d8] sm:$0xff]
          %v6802 = vld [vmem:[#allocation3 + $0x1e0] sm:$0xff]
          %v6803 = vld [vmem:[#allocation3 + $0x1e8] sm:$0xff]
          %v6804 = vld [vmem:[#allocation3 + $0x1f0] sm:$0xff]
          %v6805 = vld [vmem:[#allocation3 + $0x1f8] sm:$0xff]
          %v6806 = vlog2.pop %v6742
          %v6807 = vmul.f32 %v6806, 0.6931472
          %v6808 = vlog2.pop %v6743
          %v6809 = vmul.f32 %v6808, 0.6931472
          %v6810 = vlog2.pop %v6744
          %v6811 = vmul.f32 %v6810, 0.6931472
          %v6812 = vlog2.pop %v6745
          %v6813 = vmul.f32 %v6812, 0.6931472
          %v6814 = vlog2.pop %v6746
          %v6815 = vmul.f32 %v6814, 0.6931472
          %v6816 = vlog2.pop %v6747
          %v6817 = vmul.f32 %v6816, 0.6931472
          %v6818 = vlog2.pop %v6748
          %v6819 = vmul.f32 %v6818, 0.6931472
          %v6820 = vlog2.pop %v6749
          %v6821 = vmul.f32 %v6820, 0.6931472
          %v6822 = vlog2.pop %v6750
          %v6823 = vmul.f32 %v6822, 0.6931472
          %v6824 = vlog2.pop %v6751
          %v6825 = vmul.f32 %v6824, 0.6931472
          %v6826 = vlog2.pop %v6752
          %v6827 = vmul.f32 %v6826, 0.6931472
          %v6828 = vlog2.pop %v6753
          %v6829 = vmul.f32 %v6828, 0.6931472
          %v6830 = vlog2.pop %v6754
          %v6831 = vmul.f32 %v6830, 0.6931472
          %v6832 = vlog2.pop %v6755
          %v6833 = vmul.f32 %v6832, 0.6931472
          %v6834 = vlog2.pop %v6756
          %v6835 = vmul.f32 %v6834, 0.6931472
          %v6836 = vlog2.pop %v6757
          %v6837 = vmul.f32 %v6836, 0.6931472
          %v6838 = vlog2.pop %v6758
          %v6839 = vmul.f32 %v6838, 0.6931472
          %v6840 = vlog2.pop %v6759
          %v6841 = vmul.f32 %v6840, 0.6931472
          %v6842 = vlog2.pop %v6760
          %v6843 = vmul.f32 %v6842, 0.6931472
          %v6844 = vlog2.pop %v6761
          %v6845 = vmul.f32 %v6844, 0.6931472
          %v6846 = vlog2.pop %v6762
          %v6847 = vmul.f32 %v6846, 0.6931472
          %v6848 = vlog2.pop %v6763
          %v6849 = vmul.f32 %v6848, 0.6931472
          %v6850 = vlog2.pop %v6764
          %v6851 = vmul.f32 %v6850, 0.6931472
          %v6852 = vlog2.pop %v6765
          %v6853 = vmul.f32 %v6852, 0.6931472
          %v6854 = vlog2.pop %v6766
          %v6855 = vmul.f32 %v6854, 0.6931472
          %v6856 = vlog2.pop %v6767
          %v6857 = vmul.f32 %v6856, 0.6931472
          %v6858 = vlog2.pop %v6768
          %v6859 = vmul.f32 %v6858, 0.6931472
          %v6860 = vlog2.pop %v6769
          %v6861 = vmul.f32 %v6860, 0.6931472
          %v6862 = vlog2.pop %v6770
          %v6863 = vmul.f32 %v6862, 0.6931472
          %v6864 = vlog2.pop %v6771
          %v6865 = vmul.f32 %v6864, 0.6931472
          %v6866 = vlog2.pop %v6772
          %v6867 = vmul.f32 %v6866, 0.6931472
          %v6868 = vlog2.pop %v6773
          %v6869 = vmul.f32 %v6868, 0.6931472
          %v6870 = vlog2.pop %v6774
          %v6871 = vmul.f32 %v6870, 0.6931472
          %v6872 = vlog2.pop %v6775
          %v6873 = vmul.f32 %v6872, 0.6931472
          %v6874 = vlog2.pop %v6776
          %v6875 = vmul.f32 %v6874, 0.6931472
          %v6876 = vlog2.pop %v6777
          %v6877 = vmul.f32 %v6876, 0.6931472
          %v6878 = vlog2.pop %v6778
          %v6879 = vmul.f32 %v6878, 0.6931472
          %v6880 = vlog2.pop %v6779
          %v6881 = vmul.f32 %v6880, 0.6931472
          %v6882 = vlog2.pop %v6780
          %v6883 = vmul.f32 %v6882, 0.6931472
          %v6884 = vlog2.pop %v6781
          %v6885 = vmul.f32 %v6884, 0.6931472
          %v6886 = vlog2.pop %v6782
          %v6887 = vmul.f32 %v6886, 0.6931472
          %v6888 = vlog2.pop %v6783
          %v6889 = vmul.f32 %v6888, 0.6931472
          %v6890 = vlog2.pop %v6784
          %v6891 = vmul.f32 %v6890, 0.6931472
          %v6892 = vlog2.pop %v6785
          %v6893 = vmul.f32 %v6892, 0.6931472
          %v6894 = vlog2.pop %v6786
          %v6895 = vmul.f32 %v6894, 0.6931472
          %v6896 = vlog2.pop %v6787
          %v6897 = vmul.f32 %v6896, 0.6931472
          %v6898 = vlog2.pop %v6788
          %v6899 = vmul.f32 %v6898, 0.6931472
          %v6900 = vlog2.pop %v6789
          %v6901 = vmul.f32 %v6900, 0.6931472
          %v6902 = vlog2.pop %v6790
          %v6903 = vmul.f32 %v6902, 0.6931472
          %v6904 = vlog2.pop %v6791
          %v6905 = vmul.f32 %v6904, 0.6931472
          %v6906 = vlog2.pop %v6792
          %v6907 = vmul.f32 %v6906, 0.6931472
          %v6908 = vlog2.pop %v6793
          %v6909 = vmul.f32 %v6908, 0.6931472
          %v6910 = vlog2.pop %v6794
          %v6911 = vmul.f32 %v6910, 0.6931472
          %v6912 = vlog2.pop %v6795
          %v6913 = vmul.f32 %v6912, 0.6931472
          %v6914 = vlog2.pop %v6796
          %v6915 = vmul.f32 %v6914, 0.6931472
          %v6916 = vlog2.pop %v6797
          %v6917 = vmul.f32 %v6916, 0.6931472
          %v6918 = vlog2.pop %v6798
          %v6919 = vmul.f32 %v6918, 0.6931472
          %v6920 = vlog2.pop %v6799
          %v6921 = vmul.f32 %v6920, 0.6931472
          %v6922 = vlog2.pop %v6800
          %v6923 = vmul.f32 %v6922, 0.6931472
          %v6924 = vlog2.pop %v6801
          %v6925 = vmul.f32 %v6924, 0.6931472
          %v6926 = vlog2.pop %v6802
          %v6927 = vmul.f32 %v6926, 0.6931472
          %v6928 = vlog2.pop %v6803
          %v6929 = vmul.f32 %v6928, 0.6931472
          %v6930 = vlog2.pop %v6804
          %v6931 = vmul.f32 %v6930, 0.6931472
          %v6932 = vlog2.pop %v6805
          %v6933 = vmul.f32 %v6932, 0.6931472
          %v6934 = vadd.f32 %v6678, %v6807
          %v6935 = vadd.f32 %v6679, %v6809
          %v6936 = vadd.f32 %v6680, %v6811
          %v6937 = vadd.f32 %v6681, %v6813
          %v6938 = vadd.f32 %v6682, %v6815
          %v6939 = vadd.f32 %v6683, %v6817
          %v6940 = vadd.f32 %v6684, %v6819
          %v6941 = vadd.f32 %v6685, %v6821
          %v6942 = vadd.f32 %v6686, %v6823
          %v6943 = vadd.f32 %v6687, %v6825
          %v6944 = vadd.f32 %v6688, %v6827
          %v6945 = vadd.f32 %v6689, %v6829
          %v6946 = vadd.f32 %v6690, %v6831
          %v6947 = vadd.f32 %v6691, %v6833
          %v6948 = vadd.f32 %v6692, %v6835
          %v6949 = vadd.f32 %v6693, %v6837
          %v6950 = vadd.f32 %v6694, %v6839
          %v6951 = vadd.f32 %v6695, %v6841
          %v6952 = vadd.f32 %v6696, %v6843
          %v6953 = vadd.f32 %v6697, %v6845
          %v6954 = vadd.f32 %v6698, %v6847
          %v6955 = vadd.f32 %v6699, %v6849
          %v6956 = vadd.f32 %v6700, %v6851
          %v6957 = vadd.f32 %v6701, %v6853
          %v6958 = vadd.f32 %v6702, %v6855
          %v6959 = vadd.f32 %v6703, %v6857
          %v6960 = vadd.f32 %v6704, %v6859
          %v6961 = vadd.f32 %v6705, %v6861
          %v6962 = vadd.f32 %v6706, %v6863
          %v6963 = vadd.f32 %v6707, %v6865
          %v6964 = vadd.f32 %v6708, %v6867
          %v6965 = vadd.f32 %v6709, %v6869
          %v6966 = vadd.f32 %v6710, %v6871
          %v6967 = vadd.f32 %v6711, %v6873
          %v6968 = vadd.f32 %v6712, %v6875
          %v6969 = vadd.f32 %v6713, %v6877
          %v6970 = vadd.f32 %v6714, %v6879
          %v6971 = vadd.f32 %v6715, %v6881
          %v6972 = vadd.f32 %v6716, %v6883
          %v6973 = vadd.f32 %v6717, %v6885
          %v6974 = vadd.f32 %v6718, %v6887
          %v6975 = vadd.f32 %v6719, %v6889
          %v6976 = vadd.f32 %v6720, %v6891
          %v6977 = vadd.f32 %v6721, %v6893
          %v6978 = vadd.f32 %v6722, %v6895
          %v6979 = vadd.f32 %v6723, %v6897
          %v6980 = vadd.f32 %v6724, %v6899
          %v6981 = vadd.f32 %v6725, %v6901
          %v6982 = vadd.f32 %v6726, %v6903
          %v6983 = vadd.f32 %v6727, %v6905
          %v6984 = vadd.f32 %v6728, %v6907
          %v6985 = vadd.f32 %v6729, %v6909
          %v6986 = vadd.f32 %v6730, %v6911
          %v6987 = vadd.f32 %v6731, %v6913
          %v6988 = vadd.f32 %v6732, %v6915
          %v6989 = vadd.f32 %v6733, %v6917
          %v6990 = vadd.f32 %v6734, %v6919
          %v6991 = vadd.f32 %v6735, %v6921
          %v6992 = vadd.f32 %v6736, %v6923
          %v6993 = vadd.f32 %v6737, %v6925
          %v6994 = vadd.f32 %v6738, %v6927
          %v6995 = vadd.f32 %v6739, %v6929
          %v6996 = vadd.f32 %v6740, %v6931
          %v6997 = vadd.f32 %v6741, %v6933
          %vm6998 = vcmp.ne.s32.totalorder %v2960, 4294967196
          %vm6999 = vcmp.ne.s32.totalorder %v2961, 4294967196
          %vm7000 = vcmp.ne.s32.totalorder %v2962, 4294967196
          %vm7001 = vcmp.ne.s32.totalorder %v2963, 4294967196
          %vm7002 = vcmp.ne.s32.totalorder %v2964, 4294967196
          %vm7003 = vcmp.ne.s32.totalorder %v2965, 4294967196
          %vm7004 = vcmp.ne.s32.totalorder %v2966, 4294967196
          %vm7005 = vcmp.ne.s32.totalorder %v2967, 4294967196
          %vm7006 = vcmp.ne.s32.totalorder %v2968, 4294967196
          %vm7007 = vcmp.ne.s32.totalorder %v2969, 4294967196
          %vm7008 = vcmp.ne.s32.totalorder %v2970, 4294967196
          %vm7009 = vcmp.ne.s32.totalorder %v2971, 4294967196
          %vm7010 = vcmp.ne.s32.totalorder %v2972, 4294967196
          %vm7011 = vcmp.ne.s32.totalorder %v2973, 4294967196
          %vm7012 = vcmp.ne.s32.totalorder %v2974, 4294967196
          %vm7013 = vcmp.ne.s32.totalorder %v2975, 4294967196
          %vm7014 = vcmp.ne.s32.totalorder %v2976, 4294967196
          %vm7015 = vcmp.ne.s32.totalorder %v2977, 4294967196
          %vm7016 = vcmp.ne.s32.totalorder %v2978, 4294967196
          %vm7017 = vcmp.ne.s32.totalorder %v2979, 4294967196
          %vm7018 = vcmp.ne.s32.totalorder %v2980, 4294967196
          %vm7019 = vcmp.ne.s32.totalorder %v2981, 4294967196
          %vm7020 = vcmp.ne.s32.totalorder %v2982, 4294967196
          %vm7021 = vcmp.ne.s32.totalorder %v2983, 4294967196
          %vm7022 = vcmp.ne.s32.totalorder %v2984, 4294967196
          %vm7023 = vcmp.ne.s32.totalorder %v2985, 4294967196
          %vm7024 = vcmp.ne.s32.totalorder %v2986, 4294967196
          %vm7025 = vcmp.ne.s32.totalorder %v2987, 4294967196
          %vm7026 = vcmp.ne.s32.totalorder %v2988, 4294967196
          %vm7027 = vcmp.ne.s32.totalorder %v2989, 4294967196
          %vm7028 = vcmp.ne.s32.totalorder %v2990, 4294967196
          %vm7029 = vcmp.ne.s32.totalorder %v2991, 4294967196
          %vm7030 = vcmp.ne.s32.totalorder %v2992, 4294967196
          %vm7031 = vcmp.ne.s32.totalorder %v2993, 4294967196
          %vm7032 = vcmp.ne.s32.totalorder %v2994, 4294967196
          %vm7033 = vcmp.ne.s32.totalorder %v2995, 4294967196
          %vm7034 = vcmp.ne.s32.totalorder %v2996, 4294967196
          %vm7035 = vcmp.ne.s32.totalorder %v2997, 4294967196
          %vm7036 = vcmp.ne.s32.totalorder %v2998, 4294967196
          %vm7037 = vcmp.ne.s32.totalorder %v2999, 4294967196
          %vm7038 = vcmp.ne.s32.totalorder %v3000, 4294967196
          %vm7039 = vcmp.ne.s32.totalorder %v3001, 4294967196
          %vm7040 = vcmp.ne.s32.totalorder %v3002, 4294967196
          %vm7041 = vcmp.ne.s32.totalorder %v3003, 4294967196
          %vm7042 = vcmp.ne.s32.totalorder %v3004, 4294967196
          %vm7043 = vcmp.ne.s32.totalorder %v3005, 4294967196
          %vm7044 = vcmp.ne.s32.totalorder %v3006, 4294967196
          %vm7045 = vcmp.ne.s32.totalorder %v3007, 4294967196
          %vm7046 = vcmp.ne.s32.totalorder %v3008, 4294967196
          %vm7047 = vcmp.ne.s32.totalorder %v3009, 4294967196
          %vm7048 = vcmp.ne.s32.totalorder %v3010, 4294967196
          %vm7049 = vcmp.ne.s32.totalorder %v3011, 4294967196
          %vm7050 = vcmp.ne.s32.totalorder %v3012, 4294967196
          %vm7051 = vcmp.ne.s32.totalorder %v3013, 4294967196
          %vm7052 = vcmp.ne.s32.totalorder %v3014, 4294967196
          %vm7053 = vcmp.ne.s32.totalorder %v3015, 4294967196
          %vm7054 = vcmp.ne.s32.totalorder %v3016, 4294967196
          %vm7055 = vcmp.ne.s32.totalorder %v3017, 4294967196
          %vm7056 = vcmp.ne.s32.totalorder %v3018, 4294967196
          %vm7057 = vcmp.ne.s32.totalorder %v3019, 4294967196
          %vm7058 = vcmp.ne.s32.totalorder %v3020, 4294967196
          %vm7059 = vcmp.ne.s32.totalorder %v3021, 4294967196
          %vm7060 = vcmp.ne.s32.totalorder %v3022, 4294967196
          %vm7061 = vcmp.ne.s32.totalorder %v3023, 4294967196
          %v7062 = vld [vmem:[#allocation4] sm:$0xff]
          %v7063 = vld [vmem:[#allocation4 + $0x8] sm:$0xff]
          %v7064 = vld [vmem:[#allocation4 + $0x10] sm:$0xff]
          %v7065 = vld [vmem:[#allocation4 + $0x18] sm:$0xff]
          %v7066 = vld [vmem:[#allocation4 + $0x20] sm:$0xff]
          %v7067 = vld [vmem:[#allocation4 + $0x28] sm:$0xff]
          %v7068 = vld [vmem:[#allocation4 + $0x30] sm:$0xff]
          %v7069 = vld [vmem:[#allocation4 + $0x38] sm:$0xff]
          %v7070 = vld [vmem:[#allocation4 + $0x40] sm:$0xff]
          %v7071 = vld [vmem:[#allocation4 + $0x48] sm:$0xff]
          %v7072 = vld [vmem:[#allocation4 + $0x50] sm:$0xff]
          %v7073 = vld [vmem:[#allocation4 + $0x58] sm:$0xff]
          %v7074 = vld [vmem:[#allocation4 + $0x60] sm:$0xff]
          %v7075 = vld [vmem:[#allocation4 + $0x68] sm:$0xff]
          %v7076 = vld [vmem:[#allocation4 + $0x70] sm:$0xff]
          %v7077 = vld [vmem:[#allocation4 + $0x78] sm:$0xff]
          %v7078 = vld [vmem:[#allocation4 + $0x80] sm:$0xff]
          %v7079 = vld [vmem:[#allocation4 + $0x88] sm:$0xff]
          %v7080 = vld [vmem:[#allocation4 + $0x90] sm:$0xff]
          %v7081 = vld [vmem:[#allocation4 + $0x98] sm:$0xff]
          %v7082 = vld [vmem:[#allocation4 + $0xa0] sm:$0xff]
          %v7083 = vld [vmem:[#allocation4 + $0xa8] sm:$0xff]
          %v7084 = vld [vmem:[#allocation4 + $0xb0] sm:$0xff]
          %v7085 = vld [vmem:[#allocation4 + $0xb8] sm:$0xff]
          %v7086 = vld [vmem:[#allocation4 + $0xc0] sm:$0xff]
          %v7087 = vld [vmem:[#allocation4 + $0xc8] sm:$0xff]
          %v7088 = vld [vmem:[#allocation4 + $0xd0] sm:$0xff]
          %v7089 = vld [vmem:[#allocation4 + $0xd8] sm:$0xff]
          %v7090 = vld [vmem:[#allocation4 + $0xe0] sm:$0xff]
          %v7091 = vld [vmem:[#allocation4 + $0xe8] sm:$0xff]
          %v7092 = vld [vmem:[#allocation4 + $0xf0] sm:$0xff]
          %v7093 = vld [vmem:[#allocation4 + $0xf8] sm:$0xff]
          %v7094 = vld [vmem:[#allocation4 + $0x100] sm:$0xff]
          %v7095 = vld [vmem:[#allocation4 + $0x108] sm:$0xff]
          %v7096 = vld [vmem:[#allocation4 + $0x110] sm:$0xff]
          %v7097 = vld [vmem:[#allocation4 + $0x118] sm:$0xff]
          %v7098 = vld [vmem:[#allocation4 + $0x120] sm:$0xff]
          %v7099 = vld [vmem:[#allocation4 + $0x128] sm:$0xff]
          %v7100 = vld [vmem:[#allocation4 + $0x130] sm:$0xff]
          %v7101 = vld [vmem:[#allocation4 + $0x138] sm:$0xff]
          %v7102 = vld [vmem:[#allocation4 + $0x140] sm:$0xff]
          %v7103 = vld [vmem:[#allocation4 + $0x148] sm:$0xff]
          %v7104 = vld [vmem:[#allocation4 + $0x150] sm:$0xff]
          %v7105 = vld [vmem:[#allocation4 + $0x158] sm:$0xff]
          %v7106 = vld [vmem:[#allocation4 + $0x160] sm:$0xff]
          %v7107 = vld [vmem:[#allocation4 + $0x168] sm:$0xff]
          %v7108 = vld [vmem:[#allocation4 + $0x170] sm:$0xff]
          %v7109 = vld [vmem:[#allocation4 + $0x178] sm:$0xff]
          %v7110 = vld [vmem:[#allocation4 + $0x180] sm:$0xff]
          %v7111 = vld [vmem:[#allocation4 + $0x188] sm:$0xff]
          %v7112 = vld [vmem:[#allocation4 + $0x190] sm:$0xff]
          %v7113 = vld [vmem:[#allocation4 + $0x198] sm:$0xff]
          %v7114 = vld [vmem:[#allocation4 + $0x1a0] sm:$0xff]
          %v7115 = vld [vmem:[#allocation4 + $0x1a8] sm:$0xff]
          %v7116 = vld [vmem:[#allocation4 + $0x1b0] sm:$0xff]
          %v7117 = vld [vmem:[#allocation4 + $0x1b8] sm:$0xff]
          %v7118 = vld [vmem:[#allocation4 + $0x1c0] sm:$0xff]
          %v7119 = vld [vmem:[#allocation4 + $0x1c8] sm:$0xff]
          %v7120 = vld [vmem:[#allocation4 + $0x1d0] sm:$0xff]
          %v7121 = vld [vmem:[#allocation4 + $0x1d8] sm:$0xff]
          %v7122 = vld [vmem:[#allocation4 + $0x1e0] sm:$0xff]
          %v7123 = vld [vmem:[#allocation4 + $0x1e8] sm:$0xff]
          %v7124 = vld [vmem:[#allocation4 + $0x1f0] sm:$0xff]
          %v7125 = vld [vmem:[#allocation4 + $0x1f8] sm:$0xff]
          %v7126 = vsub.f32 %v6934, %v7062
          %v7127 = vsub.f32 %v6935, %v7063
          %v7128 = vsub.f32 %v6936, %v7064
          %v7129 = vsub.f32 %v6937, %v7065
          %v7130 = vsub.f32 %v6938, %v7066
          %v7131 = vsub.f32 %v6939, %v7067
          %v7132 = vsub.f32 %v6940, %v7068
          %v7133 = vsub.f32 %v6941, %v7069
          %v7134 = vsub.f32 %v6942, %v7070
          %v7135 = vsub.f32 %v6943, %v7071
          %v7136 = vsub.f32 %v6944, %v7072
          %v7137 = vsub.f32 %v6945, %v7073
          %v7138 = vsub.f32 %v6946, %v7074
          %v7139 = vsub.f32 %v6947, %v7075
          %v7140 = vsub.f32 %v6948, %v7076
          %v7141 = vsub.f32 %v6949, %v7077
          %v7142 = vsub.f32 %v6950, %v7078
          %v7143 = vsub.f32 %v6951, %v7079
          %v7144 = vsub.f32 %v6952, %v7080
          %v7145 = vsub.f32 %v6953, %v7081
          %v7146 = vsub.f32 %v6954, %v7082
          %v7147 = vsub.f32 %v6955, %v7083
          %v7148 = vsub.f32 %v6956, %v7084
          %v7149 = vsub.f32 %v6957, %v7085
          %v7150 = vsub.f32 %v6958, %v7086
          %v7151 = vsub.f32 %v6959, %v7087
          %v7152 = vsub.f32 %v6960, %v7088
          %v7153 = vsub.f32 %v6961, %v7089
          %v7154 = vsub.f32 %v6962, %v7090
          %v7155 = vsub.f32 %v6963, %v7091
          %v7156 = vsub.f32 %v6964, %v7092
          %v7157 = vsub.f32 %v6965, %v7093
          %v7158 = vsub.f32 %v6966, %v7094
          %v7159 = vsub.f32 %v6967, %v7095
          %v7160 = vsub.f32 %v6968, %v7096
          %v7161 = vsub.f32 %v6969, %v7097
          %v7162 = vsub.f32 %v6970, %v7098
          %v7163 = vsub.f32 %v6971, %v7099
          %v7164 = vsub.f32 %v6972, %v7100
          %v7165 = vsub.f32 %v6973, %v7101
          %v7166 = vsub.f32 %v6974, %v7102
          %v7167 = vsub.f32 %v6975, %v7103
          %v7168 = vsub.f32 %v6976, %v7104
          %v7169 = vsub.f32 %v6977, %v7105
          %v7170 = vsub.f32 %v6978, %v7106
          %v7171 = vsub.f32 %v6979, %v7107
          %v7172 = vsub.f32 %v6980, %v7108
          %v7173 = vsub.f32 %v6981, %v7109
          %v7174 = vsub.f32 %v6982, %v7110
          %v7175 = vsub.f32 %v6983, %v7111
          %v7176 = vsub.f32 %v6984, %v7112
          %v7177 = vsub.f32 %v6985, %v7113
          %v7178 = vsub.f32 %v6986, %v7114
          %v7179 = vsub.f32 %v6987, %v7115
          %v7180 = vsub.f32 %v6988, %v7116
          %v7181 = vsub.f32 %v6989, %v7117
          %v7182 = vsub.f32 %v6990, %v7118
          %v7183 = vsub.f32 %v6991, %v7119
          %v7184 = vsub.f32 %v6992, %v7120
          %v7185 = vsub.f32 %v6993, %v7121
          %v7186 = vsub.f32 %v6994, %v7122
          %v7187 = vsub.f32 %v6995, %v7123
          %v7188 = vsub.f32 %v6996, %v7124
          %v7189 = vsub.f32 %v6997, %v7125
          %v7190 = vsel %vm6998, %v7126, 0.0
          %v7191 = vsel %vm6999, %v7127, 0.0
          %v7192 = vsel %vm7000, %v7128, 0.0
          %v7193 = vsel %vm7001, %v7129, 0.0
          %v7194 = vsel %vm7002, %v7130, 0.0
          %v7195 = vsel %vm7003, %v7131, 0.0
          %v7196 = vsel %vm7004, %v7132, 0.0
          %v7197 = vsel %vm7005, %v7133, 0.0
          %v7198 = vsel %vm7006, %v7134, 0.0
          %v7199 = vsel %vm7007, %v7135, 0.0
          %v7200 = vsel %vm7008, %v7136, 0.0
          %v7201 = vsel %vm7009, %v7137, 0.0
          %v7202 = vsel %vm7010, %v7138, 0.0
          %v7203 = vsel %vm7011, %v7139, 0.0
          %v7204 = vsel %vm7012, %v7140, 0.0
          %v7205 = vsel %vm7013, %v7141, 0.0
          %v7206 = vsel %vm7014, %v7142, 0.0
          %v7207 = vsel %vm7015, %v7143, 0.0
          %v7208 = vsel %vm7016, %v7144, 0.0
          %v7209 = vsel %vm7017, %v7145, 0.0
          %v7210 = vsel %vm7018, %v7146, 0.0
          %v7211 = vsel %vm7019, %v7147, 0.0
          %v7212 = vsel %vm7020, %v7148, 0.0
          %v7213 = vsel %vm7021, %v7149, 0.0
          %v7214 = vsel %vm7022, %v7150, 0.0
          %v7215 = vsel %vm7023, %v7151, 0.0
          %v7216 = vsel %vm7024, %v7152, 0.0
          %v7217 = vsel %vm7025, %v7153, 0.0
          %v7218 = vsel %vm7026, %v7154, 0.0
          %v7219 = vsel %vm7027, %v7155, 0.0
          %v7220 = vsel %vm7028, %v7156, 0.0
          %v7221 = vsel %vm7029, %v7157, 0.0
          %v7222 = vsel %vm7030, %v7158, 0.0
          %v7223 = vsel %vm7031, %v7159, 0.0
          %v7224 = vsel %vm7032, %v7160, 0.0
          %v7225 = vsel %vm7033, %v7161, 0.0
          %v7226 = vsel %vm7034, %v7162, 0.0
          %v7227 = vsel %vm7035, %v7163, 0.0
          %v7228 = vsel %vm7036, %v7164, 0.0
          %v7229 = vsel %vm7037, %v7165, 0.0
          %v7230 = vsel %vm7038, %v7166, 0.0
          %v7231 = vsel %vm7039, %v7167, 0.0
          %v7232 = vsel %vm7040, %v7168, 0.0
          %v7233 = vsel %vm7041, %v7169, 0.0
          %v7234 = vsel %vm7042, %v7170, 0.0
          %v7235 = vsel %vm7043, %v7171, 0.0
          %v7236 = vsel %vm7044, %v7172, 0.0
          %v7237 = vsel %vm7045, %v7173, 0.0
          %v7238 = vsel %vm7046, %v7174, 0.0
          %v7239 = vsel %vm7047, %v7175, 0.0
          %v7240 = vsel %vm7048, %v7176, 0.0
          %v7241 = vsel %vm7049, %v7177, 0.0
          %v7242 = vsel %vm7050, %v7178, 0.0
          %v7243 = vsel %vm7051, %v7179, 0.0
          %v7244 = vsel %vm7052, %v7180, 0.0
          %v7245 = vsel %vm7053, %v7181, 0.0
          %v7246 = vsel %vm7054, %v7182, 0.0
          %v7247 = vsel %vm7055, %v7183, 0.0
          %v7248 = vsel %vm7056, %v7184, 0.0
          %v7249 = vsel %vm7057, %v7185, 0.0
          %v7250 = vsel %vm7058, %v7186, 0.0
          %v7251 = vsel %vm7059, %v7187, 0.0
          %v7252 = vsel %vm7060, %v7188, 0.0
          %v7253 = vsel %vm7061, %v7189, 0.0
          %v7254 = vsel %vm4241, %v7190, 0.0
          %v7255 = vsel %vm4241, %v7191, 0.0
          %v7256 = vadd.f32 %v7254, %v7255
          %v7257 = vsel %vm4241, %v7192, 0.0
          %v7258 = vadd.f32 %v7256, %v7257
          %v7259 = vsel %vm4241, %v7193, 0.0
          %v7260 = vadd.f32 %v7258, %v7259
          %v7261 = vsel %vm4241, %v7194, 0.0
          %v7262 = vadd.f32 %v7260, %v7261
          %v7263 = vsel %vm4241, %v7195, 0.0
          %v7264 = vadd.f32 %v7262, %v7263
          %v7265 = vsel %vm4241, %v7196, 0.0
          %v7266 = vadd.f32 %v7264, %v7265
          %v7267 = vsel %vm4241, %v7197, 0.0
          %v7268 = vadd.f32 %v7266, %v7267
          %v7269 = vsel %vm4241, %v7198, 0.0
          %v7270 = vadd.f32 %v7268, %v7269
          %v7271 = vsel %vm4241, %v7199, 0.0
          %v7272 = vadd.f32 %v7270, %v7271
          %v7273 = vsel %vm4241, %v7200, 0.0
          %v7274 = vadd.f32 %v7272, %v7273
          %v7275 = vsel %vm4241, %v7201, 0.0
          %v7276 = vadd.f32 %v7274, %v7275
          %v7277 = vsel %vm4241, %v7202, 0.0
          %v7278 = vadd.f32 %v7276, %v7277
          %v7279 = vsel %vm4241, %v7203, 0.0
          %v7280 = vadd.f32 %v7278, %v7279
          %v7281 = vsel %vm4241, %v7204, 0.0
          %v7282 = vadd.f32 %v7280, %v7281
          %v7283 = vsel %vm4241, %v7205, 0.0
          %v7284 = vadd.f32 %v7282, %v7283
          %v7285 = vsel %vm4241, %v7206, 0.0
          %v7286 = vadd.f32 %v7284, %v7285
          %v7287 = vsel %vm4241, %v7207, 0.0
          %v7288 = vadd.f32 %v7286, %v7287
          %v7289 = vsel %vm4241, %v7208, 0.0
          %v7290 = vadd.f32 %v7288, %v7289
          %v7291 = vsel %vm4241, %v7209, 0.0
          %v7292 = vadd.f32 %v7290, %v7291
          %v7293 = vsel %vm4241, %v7210, 0.0
          %v7294 = vadd.f32 %v7292, %v7293
          %v7295 = vsel %vm4241, %v7211, 0.0
          %v7296 = vadd.f32 %v7294, %v7295
          %v7297 = vsel %vm4241, %v7212, 0.0
          %v7298 = vadd.f32 %v7296, %v7297
          %v7299 = vsel %vm4241, %v7213, 0.0
          %v7300 = vadd.f32 %v7298, %v7299
          %v7301 = vsel %vm4241, %v7214, 0.0
          %v7302 = vadd.f32 %v7300, %v7301
          %v7303 = vsel %vm4241, %v7215, 0.0
          %v7304 = vadd.f32 %v7302, %v7303
          %v7305 = vsel %vm4241, %v7216, 0.0
          %v7306 = vadd.f32 %v7304, %v7305
          %v7307 = vsel %vm4241, %v7217, 0.0
          %v7308 = vadd.f32 %v7306, %v7307
          %v7309 = vsel %vm4241, %v7218, 0.0
          %v7310 = vadd.f32 %v7308, %v7309
          %v7311 = vsel %vm4241, %v7219, 0.0
          %v7312 = vadd.f32 %v7310, %v7311
          %v7313 = vsel %vm4241, %v7220, 0.0
          %v7314 = vadd.f32 %v7312, %v7313
          %v7315 = vsel %vm4241, %v7221, 0.0
          %v7316 = vadd.f32 %v7314, %v7315
          %v7317 = vsel %vm4241, %v7222, 0.0
          %v7318 = vadd.f32 %v7316, %v7317
          %v7319 = vsel %vm4241, %v7223, 0.0
          %v7320 = vadd.f32 %v7318, %v7319
          %v7321 = vsel %vm4241, %v7224, 0.0
          %v7322 = vadd.f32 %v7320, %v7321
          %v7323 = vsel %vm4241, %v7225, 0.0
          %v7324 = vadd.f32 %v7322, %v7323
          %v7325 = vsel %vm4241, %v7226, 0.0
          %v7326 = vadd.f32 %v7324, %v7325
          %v7327 = vsel %vm4241, %v7227, 0.0
          %v7328 = vadd.f32 %v7326, %v7327
          %v7329 = vsel %vm4241, %v7228, 0.0
          %v7330 = vadd.f32 %v7328, %v7329
          %v7331 = vsel %vm4241, %v7229, 0.0
          %v7332 = vadd.f32 %v7330, %v7331
          %v7333 = vsel %vm4241, %v7230, 0.0
          %v7334 = vadd.f32 %v7332, %v7333
          %v7335 = vsel %vm4241, %v7231, 0.0
          %v7336 = vadd.f32 %v7334, %v7335
          %v7337 = vsel %vm4241, %v7232, 0.0
          %v7338 = vadd.f32 %v7336, %v7337
          %v7339 = vsel %vm4241, %v7233, 0.0
          %v7340 = vadd.f32 %v7338, %v7339
          %v7341 = vsel %vm4241, %v7234, 0.0
          %v7342 = vadd.f32 %v7340, %v7341
          %v7343 = vsel %vm4241, %v7235, 0.0
          %v7344 = vadd.f32 %v7342, %v7343
          %v7345 = vsel %vm4241, %v7236, 0.0
          %v7346 = vadd.f32 %v7344, %v7345
          %v7347 = vsel %vm4241, %v7237, 0.0
          %v7348 = vadd.f32 %v7346, %v7347
          %v7349 = vsel %vm4241, %v7238, 0.0
          %v7350 = vadd.f32 %v7348, %v7349
          %v7351 = vsel %vm4241, %v7239, 0.0
          %v7352 = vadd.f32 %v7350, %v7351
          %v7353 = vsel %vm4241, %v7240, 0.0
          %v7354 = vadd.f32 %v7352, %v7353
          %v7355 = vsel %vm4241, %v7241, 0.0
          %v7356 = vadd.f32 %v7354, %v7355
          %v7357 = vsel %vm4241, %v7242, 0.0
          %v7358 = vadd.f32 %v7356, %v7357
          %v7359 = vsel %vm4241, %v7243, 0.0
          %v7360 = vadd.f32 %v7358, %v7359
          %v7361 = vsel %vm4241, %v7244, 0.0
          %v7362 = vadd.f32 %v7360, %v7361
          %v7363 = vsel %vm4241, %v7245, 0.0
          %v7364 = vadd.f32 %v7362, %v7363
          %v7365 = vsel %vm4241, %v7246, 0.0
          %v7366 = vadd.f32 %v7364, %v7365
          %v7367 = vsel %vm4241, %v7247, 0.0
          %v7368 = vadd.f32 %v7366, %v7367
          %v7369 = vsel %vm4241, %v7248, 0.0
          %v7370 = vadd.f32 %v7368, %v7369
          %v7371 = vsel %vm4241, %v7249, 0.0
          %v7372 = vadd.f32 %v7370, %v7371
          %v7373 = vsel %vm4241, %v7250, 0.0
          %v7374 = vadd.f32 %v7372, %v7373
          %v7375 = vsel %vm4241, %v7251, 0.0
          %v7376 = vadd.f32 %v7374, %v7375
          %v7377 = vsel %vm4241, %v7252, 0.0
          %v7378 = vadd.f32 %v7376, %v7377
          %v7379 = vsel %vm4241, %v7253, 0.0
          %v7380 = vadd.f32 %v7378, %v7379
          %7381 = vadd.xlane.f32.xlu0 %v7380
          %v7382 = vpop.xlane.xlu0 %7381
          %v7383 = vrot.slane %v7382, 4
          %v7384 = vadd.f32 %v7382, %v7383
          %v7385 = vrot.slane %v7384, 2
          %v7386 = vadd.f32 %v7384, %v7385
          %v7387 = vrot.slane %v7386, 1
          %v7388 = vadd.f32 %v7386, %v7387
          %s7389 = vtos %v7388
          %v7390 = vstv %s7389
          %v7391 = vadd.f32 %v7390, 0.0
          %7392 = vst [vmem:[%s374] sm:$0xff] %v7391
        $region63: #{attack_forward.3} parent=50 // pred_fallthru
          _
        %p7393 = scmp.lt.s32.totalorder %s18, 1
        %s7394 = scalar_select %p7393, %s18, 1
        %s7395 = smul.addr %s7394, 8
        %s7396 = scalar_lea.vmem %s3, %s7395
        // Predicated region
        $region64: #{attack_forward.3} parent=50 // pred_check
          %p7397 = pneg %p122
        $region65: #{attack_forward.3} parent=50 // pred_check_branch
          %7399 = sbr.rel (%p7397) target = $region67
        $region66: #{attack_forward.3} parent=50 // pred_region
          _
        $region67: #{attack_forward.3} parent=50 // pred_fallthru
          _
      $region51: #{attack_forward.3} parent=5 // pred_fallthru
        _
      %p7400 = scmp.le.s32.totalorder 2, %s9
      // Predicated region
      $region68: #{attack_forward.3} parent=5 // pred_check
        %p7401 = pneg %p7400
      $region69: #{attack_forward.3} parent=5 // pred_check_branch
        %7403 = sbr.rel (%p7401) target = $region71
      $region70: #{attack_forward.3} parent=5 // pred_region
        %s7404 = ssub.s32 %s9, 2
        // Predicated region
        $region72: #{attack_forward.3} parent=70 // pred_check
          %p7405 = pneg %p128
        $region73: #{attack_forward.3} parent=70 // pred_check_branch
          %7407 = sbr.rel (%p7405) target = $region75
        $region74: #{attack_forward.3} parent=70 // pred_region
          %p7408 = scmp.lt.s32.totalorder %s20, 1
          %s7409 = scalar_select %p7408, %s20, 1
          %s7410 = smul.addr %s7409, 8
          %s7411 = scalar_lea.vmem %s3, %s7410
        $region75: #{attack_forward.3} parent=70 // pred_fallthru
          _
      $region71: #{attack_forward.3} parent=5 // pred_fallthru
        _
    $region6: #{attack_forward.3} parent=1 // loop_footer
      %s13 = sadd.s32 1, %s9
    $region7: #{attack_forward.3} parent=1 // loop_footer_branch
      %8 = sbr.rel target = $region3
    $region8: #{attack_forward.3} parent=1 // loop_exit
      _

</llo_original>
